<compile_context>
chip_gen: v5e
topology: v5e:2x2
jax: 0.10.0
libtpu: 0.0.40
codegen_flags: <defaults>
</compile_context>

<pallas_src>
import functools

import jax
import jax.numpy as jnp
from jax.experimental import pallas as pl
from jax.experimental.pallas import tpu as pltpu


# ------------------------------ Pallas kernel ------------------------------

def _resblock_kernel(x_ref, w1_ref, w2_ref, o_ref, pad_ref, patch_ref,
                     *, H, W, C, pad_top, act):
    """Fused ResBlock for one batch sample.

    x_ref    : (1, H*W, C)              input sample, spatially flattened
    w1_ref   : (9*C, C)                 conv1 weights (tap-major rows), VMEM
    w2_ref   : (9*C, C)                 conv2 weights, VMEM
    o_ref    : (1, H*W, C)              output sample
    pad_ref  : (H*W + 2*pad_top, C)     row-padded conv input (VMEM scratch)
    patch_ref: (H*W, 9*C)               im2col patch buffer (VMEM scratch)
    """
    HW = H * W

    # Zero the top/bottom padding strips (vertical conv padding).  Tiny
    # (2*pad_top rows); done every step so correctness never depends on
    # scratch persistence when the parallel grid axis is split across cores.
    pad_ref[pl.ds(0, pad_top), :] = jnp.zeros((pad_top, C), jnp.float32)
    pad_ref[pl.ds(pad_top + HW, pad_top), :] = jnp.zeros((pad_top, C),
                                                         jnp.float32)

    def activate(v):
        if act == "relu":
            return jnp.maximum(v, 0.0)
        if act == "sin":
            return jnp.sin(v)
        raise ValueError(f"unsupported activation: {act}")

    def conv3x3(w_ref):
        # Column index of each flattened pixel; masks the horizontal
        # wrap-around of the dj=0/2 taps (replaces left/right zero padding).
        col = jax.lax.broadcasted_iota(jnp.int32, (HW, C), 0) % W
        for t in range(9):
            di, dj = divmod(t, 3)
            start = pad_top + (di - 1) * W + (dj - 1)      # static offset
            win = pad_ref[pl.ds(start, HW), :]
            if dj == 0:
                win = jnp.where(col >= 1, win, 0.0)
            elif dj == 2:
                win = jnp.where(col <= W - 2, win, 0.0)
            # Lane-aligned column slot of the im2col patch (unmasked stores).
            patch_ref[:, t * C:(t + 1) * C] = win
        # ONE lane-dense (HW, 9C) @ (9C, C) MXU matmul, f32 accumulation.
        # Operands kept in f32 to match the PyTorch module's numerics.
        return jnp.dot(patch_ref[...], w_ref[...],
                       preferred_element_type=jnp.float32)

    # conv1 + act  (interior write is sublane-aligned: pad_top % 8 == 0)
    pad_ref[pl.ds(pad_top, HW), :] = x_ref[0]
    h = activate(conv3x3(w1_ref))

    # conv2 + act  (reuse the padded buffer; pad strips are still zero)
    pad_ref[pl.ds(pad_top, HW), :] = h
    h = activate(conv3x3(w2_ref))

    # Residual add fused into the store epilogue (lane-dense, C = 128).
    o_ref[0] = (h + x_ref[0]).astype(o_ref.dtype)


# ------------------------------ host wrapper -------------------------------

def resblock_forward(x_nchw, w1_hwio, w2_hwio, act="relu"):
    """ResBlock forward.  x: (N,C,H,W) like PyTorch; weights in HWIO layout
    (PyTorch OIHW weights correspond to w.transpose(2, 3, 1, 0))."""
    N, C, H, W = x_nchw.shape
    assert w1_hwio.shape == (3, 3, C, C) and w2_hwio.shape == (3, 3, C, C)
    # Layout assumptions for lane/sublane-dense execution.
    assert C % 128 == 0, "channels must fill the 128 TPU lanes"
    assert (H * W) % 8 == 0, "flattened spatial extent must be sublane-aligned"

    HW = H * W
    pad_top = ((W + 1 + 7) // 8) * 8          # >= W+1 and sublane aligned

    x = jnp.transpose(x_nchw, (0, 2, 3, 1)).reshape(N, HW, C).astype(jnp.float32)
    # HWIO -> (9*C, C): row index = tap*C + in_channel (matches patch layout).
    w1 = w1_hwio.reshape(9 * C, C).astype(jnp.float32)
    w2 = w2_hwio.reshape(9 * C, C).astype(jnp.float32)

    # VMEM per core at (16,16,128): x/out blocks 2*2*128 KB, weights 1.1 MB
    # (single-buffered), pad scratch ~152 KB, patch scratch ~1.2 MB  =>  ~3 MB,
    # well inside every generation's default scoped VMEM limit.
    # TODO(synk): row-band tiling (halo rows) for large H*W so the patch
    # buffer also fits v7x's 64 MiB VMEM at high resolutions, and to expose a
    # second "parallel" grid axis when N == 1 (keep both v7x TCs busy).
    kernel = functools.partial(_resblock_kernel, H=H, W=W, C=C,
                               pad_top=pad_top, act=act)
    out = pl.pallas_call(
        kernel,
        out_shape=jax.ShapeDtypeStruct((N, HW, C), jnp.float32),
        grid=(N,),
        in_specs=[
            pl.BlockSpec((1, HW, C), lambda n: (n, 0, 0)),
            pl.BlockSpec(memory_space=pltpu.MemorySpace.VMEM),  # w1: single buf
            pl.BlockSpec(memory_space=pltpu.MemorySpace.VMEM),  # w2: single buf
        ],
        out_specs=pl.BlockSpec((1, HW, C), lambda n: (n, 0, 0)),
        scratch_shapes=[
            pltpu.VMEM((HW + 2 * pad_top, C), jnp.float32),     # padded input
            pltpu.VMEM((HW, 9 * C), jnp.float32),               # im2col patch
        ],
        compiler_params=pltpu.CompilerParams(
            dimension_semantics=("parallel",)),
    )(x, w1, w2)
    out = out.reshape(N, H, W, C)
    return jnp.transpose(out, (0, 3, 1, 2))                      # NCHW


# ------------------------- pure-JAX reference (XLA) -------------------------

def resblock_reference(x_nchw, w1_hwio, w2_hwio, act="relu"):
    x = jnp.transpose(x_nchw, (0, 2, 3, 1)).astype(jnp.float32)
    dn = jax.lax.conv_dimension_numbers(x.shape, w1_hwio.shape,
                                        ("NHWC", "HWIO", "NHWC"))

    def conv(v, w):
        return jax.lax.conv_general_dilated(
            v, w, window_strides=(1, 1), padding=((1, 1), (1, 1)),
            dimension_numbers=dn, precision=jax.lax.Precision.HIGHEST)

    a = (lambda v: jnp.maximum(v, 0.0)) if act == "relu" else jnp.sin
    h = a(conv(x, w1_hwio))
    h = a(conv(h, w2_hwio))
    return jnp.transpose(h + x, (0, 3, 1, 2))


# ---------------------------------- main ------------------------------------

if __name__ == "__main__":
    key = jax.random.PRNGKey(0)
    kx, k1, k2 = jax.random.split(key, 3)

    # TPU-friendly ResBlock config: in_planes = planes = 128 fills the 128
    # lanes exactly; batch = 2 gives two "parallel" grid steps (v7x 2 TCs).
    N, C, H, W = 2, 128, 16, 16
    x = jax.random.normal(kx, (N, C, H, W), dtype=jnp.float32)
    w1 = 0.05 * jax.random.normal(k1, (3, 3, C, C), dtype=jnp.float32)  # HWIO
    w2 = 0.05 * jax.random.normal(k2, (3, 3, C, C), dtype=jnp.float32)  # HWIO

    fwd = jax.jit(functools.partial(resblock_forward, act="relu"))
    out = jax.block_until_ready(fwd(x, w1, w2))

    assert out.shape == (N, C, H, W), out.shape
    assert bool(jnp.all(jnp.isfinite(out)))

    # Check against the XLA reference.  Operands are f32 end-to-end, so the
    # tolerance is tightened 10x vs. before; it only has to absorb worst-case
    # MXU f32 multi-pass rounding (a silent bf16 cast would not pass).
    ref = jax.block_until_ready(
        jax.jit(functools.partial(resblock_reference, act="relu"))(x, w1, w2))
    rel_err = float(jnp.max(jnp.abs(out - ref)) /
                    (jnp.max(jnp.abs(ref)) + 1e-6))
    assert rel_err < 5e-3, rel_err

    print("KERNEL_OK")
</pallas_src>

<mosaic_0001>
module attributes {stable_mosaic.version = 11 : i64} {
  func.func @_resblock_kernel(%arg0: i32, %arg1: memref<1x256x128xf32, #tpu.memory_space<vmem>>, %arg2: memref<1152x128xf32, #tpu.memory_space<vmem>>, %arg3: memref<1152x128xf32, #tpu.memory_space<vmem>>, %arg4: memref<1x256x128xf32, #tpu.memory_space<vmem>>, %arg5: memref<304x128xf32, #tpu.memory_space<vmem>>, %arg6: memref<256x1152xf32, #tpu.memory_space<vmem>>) attributes {dimension_semantics = [#tpu.dimension_semantics<parallel>], iteration_bounds = array<i64: 2>, scalar_prefetch = 0 : i64, scratch_operands = 2 : i64, tpu.core_type = #tpu.core_type<tc>, window_params = [{transform_indices = @transform_0, window_bounds = array<i64: 1, 256, 128>}, {pipeline_mode = #tpu.pipeline_mode<synchronous>, transform_indices = @transform_1, window_bounds = array<i64: 1152, 128>}, {pipeline_mode = #tpu.pipeline_mode<synchronous>, transform_indices = @transform_2, window_bounds = array<i64: 1152, 128>}, {transform_indices = @transform_3, window_bounds = array<i64: 1, 256, 128>}]} {
    %cst = arith.constant 0.000000e+00 : f32
    %0 = vector.broadcast %cst : f32 to vector<24x128xf32>
    %c0 = arith.constant 0 : index
    %c0_0 = arith.constant 0 : index
    %1 = vector.load %arg5[%c0, %c0_0] : memref<304x128xf32, #tpu.memory_space<vmem>>, vector<24x128xf32>
    tpu.vector_store %arg5[%c0, %c0_0], %0 {strides = array<i32>} : memref<304x128xf32, #tpu.memory_space<vmem>>, vector<24x128xf32>,
    %cst_1 = arith.constant 0.000000e+00 : f32
    %2 = vector.broadcast %cst_1 : f32 to vector<24x128xf32>
    %c280 = arith.constant 280 : index
    %c0_2 = arith.constant 0 : index
    %3 = vector.load %arg5[%c280, %c0_2] : memref<304x128xf32, #tpu.memory_space<vmem>>, vector<24x128xf32>
    tpu.vector_store %arg5[%c280, %c0_2], %2 {strides = array<i32>} : memref<304x128xf32, #tpu.memory_space<vmem>>, vector<24x128xf32>,
    %c0_3 = arith.constant 0 : index
    %c0_4 = arith.constant 0 : index
    %c0_5 = arith.constant 0 : index
    %4 = vector.load %arg1[%c0_3, %c0_4, %c0_5] : memref<1x256x128xf32, #tpu.memory_space<vmem>>, vector<1x256x128xf32>
    %5 = vector.shape_cast %4 : vector<1x256x128xf32> to vector<256x128xf32>
    %c24 = arith.constant 24 : index
    %c0_6 = arith.constant 0 : index
    %6 = vector.load %arg5[%c24, %c0_6] : memref<304x128xf32, #tpu.memory_space<vmem>>, vector<256x128xf32>
    tpu.vector_store %arg5[%c24, %c0_6], %5 {strides = array<i32>} : memref<304x128xf32, #tpu.memory_space<vmem>>, vector<256x128xf32>,
    %7 = tpu.iota {dimensions = array<i32: 0>} : vector<256x128xi32>
    %c16_i32 = arith.constant 16 : i32
    %c0_i32 = arith.constant 0 : i32
    %8 = arith.cmpi eq, %c16_i32, %c0_i32 : i32
    %c1_i32 = arith.constant 1 : i32
    %9 = arith.select %8, %c1_i32, %c16_i32 : i32
    %10 = vector.broadcast %9 : i32 to vector<256x128xi32>
    %11 = arith.remsi %7, %10 : vector<256x128xi32>
    %c0_i32_7 = arith.constant 0 : i32
    %12 = vector.broadcast %c0_i32_7 : i32 to vector<256x128xi32>
    %13 = arith.cmpi ne, %11, %12 : vector<256x128xi32>
    %c0_i32_8 = arith.constant 0 : i32
    %14 = vector.broadcast %c0_i32_8 : i32 to vector<256x128xi32>
    %15 = arith.cmpi slt, %11, %14 : vector<256x128xi32>
    %c0_i32_9 = arith.constant 0 : i32
    %16 = arith.cmpi slt, %9, %c0_i32_9 : i32
    %17 = vector.broadcast %16 : i1 to vector<256x128xi1>
    %18 = vector.broadcast %17 : vector<256x128xi1> to vector<256x128xi1>
    %19 = arith.xori %15, %18 : vector<256x128xi1>
    %20 = arith.andi %19, %13 : vector<256x128xi1>
    %21 = vector.broadcast %9 : i32 to vector<256x128xi32>
    %22 = arith.addi %11, %21 : vector<256x128xi32>
    %23 = arith.select %20, %22, %11 : vector<256x128xi1>, vector<256x128xi32>
    %c7 = arith.constant 7 : index
    %c0_10 = arith.constant 0 : index
    %24 = vector.load %arg5[%c7, %c0_10] : memref<304x128xf32, #tpu.memory_space<vmem>>, vector<256x128xf32>
    %c1_i32_11 = arith.constant 1 : i32
    %25 = vector.broadcast %c1_i32_11 : i32 to vector<256x128xi32>
    %26 = arith.cmpi sge, %23, %25 : vector<256x128xi32>
    %cst_12 = arith.constant 0.000000e+00 : f32
    %27 = vector.broadcast %cst_12 : f32 to vector<256x128xf32>
    %28 = arith.select %26, %24, %27 : vector<256x128xi1>, vector<256x128xf32>
    %c0_13 = arith.constant 0 : index
    %c0_14 = arith.constant 0 : index
    %29 = vector.load %arg6[%c0_13, %c0_14] : memref<256x1152xf32, #tpu.memory_space<vmem>>, vector<256x128xf32>
    tpu.vector_store %arg6[%c0_13, %c0_14], %28 {strides = array<i32>} : memref<256x1152xf32, #tpu.memory_space<vmem>>, vector<256x128xf32>,
    %c8 = arith.constant 8 : index
    %c0_15 = arith.constant 0 : index
    %30 = vector.load %arg5[%c8, %c0_15] : memref<304x128xf32, #tpu.memory_space<vmem>>, vector<256x128xf32>
    %c0_16 = arith.constant 0 : index
    %c128 = arith.constant 128 : index
    %31 = vector.load %arg6[%c0_16, %c128] : memref<256x1152xf32, #tpu.memory_space<vmem>>, vector<256x128xf32>
    tpu.vector_store %arg6[%c0_16, %c128], %30 {strides = array<i32>} : memref<256x1152xf32, #tpu.memory_space<vmem>>, vector<256x128xf32>,
    %c9 = arith.constant 9 : index
    %c0_17 = arith.constant 0 : index
    %32 = vector.load %arg5[%c9, %c0_17] : memref<304x128xf32, #tpu.memory_space<vmem>>, vector<256x128xf32>
    %c14_i32 = arith.constant 14 : i32
    %33 = vector.broadcast %c14_i32 : i32 to vector<256x128xi32>
    %34 = arith.cmpi sle, %23, %33 : vector<256x128xi32>
    %cst_18 = arith.constant 0.000000e+00 : f32
    %35 = vector.broadcast %cst_18 : f32 to vector<256x128xf32>
    %36 = arith.select %34, %32, %35 : vector<256x128xi1>, vector<256x128xf32>
    %c0_19 = arith.constant 0 : index
    %c256 = arith.constant 256 : index
    %37 = vector.load %arg6[%c0_19, %c256] : memref<256x1152xf32, #tpu.memory_space<vmem>>, vector<256x128xf32>
    tpu.vector_store %arg6[%c0_19, %c256], %36 {strides = array<i32>} : memref<256x1152xf32, #tpu.memory_space<vmem>>, vector<256x128xf32>,
    %c23 = arith.constant 23 : index
    %c0_20 = arith.constant 0 : index
    %38 = vector.load %arg5[%c23, %c0_20] : memref<304x128xf32, #tpu.memory_space<vmem>>, vector<256x128xf32>
    %c1_i32_21 = arith.constant 1 : i32
    %39 = vector.broadcast %c1_i32_21 : i32 to vector<256x128xi32>
    %40 = arith.cmpi sge, %23, %39 : vector<256x128xi32>
    %cst_22 = arith.constant 0.000000e+00 : f32
    %41 = vector.broadcast %cst_22 : f32 to vector<256x128xf32>
    %42 = arith.select %40, %38, %41 : vector<256x128xi1>, vector<256x128xf32>
    %c0_23 = arith.constant 0 : index
    %c384 = arith.constant 384 : index
    %43 = vector.load %arg6[%c0_23, %c384] : memref<256x1152xf32, #tpu.memory_space<vmem>>, vector<256x128xf32>
    tpu.vector_store %arg6[%c0_23, %c384], %42 {strides = array<i32>} : memref<256x1152xf32, #tpu.memory_space<vmem>>, vector<256x128xf32>,
    %c24_24 = arith.constant 24 : index
    %c0_25 = arith.constant 0 : index
    %44 = vector.load %arg5[%c24_24, %c0_25] : memref<304x128xf32, #tpu.memory_space<vmem>>, vector<256x128xf32>
    %c0_26 = arith.constant 0 : index
    %c512 = arith.constant 512 : index
    %45 = vector.load %arg6[%c0_26, %c512] : memref<256x1152xf32, #tpu.memory_space<vmem>>, vector<256x128xf32>
    tpu.vector_store %arg6[%c0_26, %c512], %44 {strides = array<i32>} : memref<256x1152xf32, #tpu.memory_space<vmem>>, vector<256x128xf32>,
    %c25 = arith.constant 25 : index
    %c0_27 = arith.constant 0 : index
    %46 = vector.load %arg5[%c25, %c0_27] : memref<304x128xf32, #tpu.memory_space<vmem>>, vector<256x128xf32>
    %c14_i32_28 = arith.constant 14 : i32
    %47 = vector.broadcast %c14_i32_28 : i32 to vector<256x128xi32>
    %48 = arith.cmpi sle, %23, %47 : vector<256x128xi32>
    %cst_29 = arith.constant 0.000000e+00 : f32
    %49 = vector.broadcast %cst_29 : f32 to vector<256x128xf32>
    %50 = arith.select %48, %46, %49 : vector<256x128xi1>, vector<256x128xf32>
    %c0_30 = arith.constant 0 : index
    %c640 = arith.constant 640 : index
    %51 = vector.load %arg6[%c0_30, %c640] : memref<256x1152xf32, #tpu.memory_space<vmem>>, vector<256x128xf32>
    tpu.vector_store %arg6[%c0_30, %c640], %50 {strides = array<i32>} : memref<256x1152xf32, #tpu.memory_space<vmem>>, vector<256x128xf32>,
    %c39 = arith.constant 39 : index
    %c0_31 = arith.constant 0 : index
    %52 = vector.load %arg5[%c39, %c0_31] : memref<304x128xf32, #tpu.memory_space<vmem>>, vector<256x128xf32>
    %c1_i32_32 = arith.constant 1 : i32
    %53 = vector.broadcast %c1_i32_32 : i32 to vector<256x128xi32>
    %54 = arith.cmpi sge, %23, %53 : vector<256x128xi32>
    %cst_33 = arith.constant 0.000000e+00 : f32
    %55 = vector.broadcast %cst_33 : f32 to vector<256x128xf32>
    %56 = arith.select %54, %52, %55 : vector<256x128xi1>, vector<256x128xf32>
    %c0_34 = arith.constant 0 : index
    %c768 = arith.constant 768 : index
    %57 = vector.load %arg6[%c0_34, %c768] : memref<256x1152xf32, #tpu.memory_space<vmem>>, vector<256x128xf32>
    tpu.vector_store %arg6[%c0_34, %c768], %56 {strides = array<i32>} : memref<256x1152xf32, #tpu.memory_space<vmem>>, vector<256x128xf32>,
    %c40 = arith.constant 40 : index
    %c0_35 = arith.constant 0 : index
    %58 = vector.load %arg5[%c40, %c0_35] : memref<304x128xf32, #tpu.memory_space<vmem>>, vector<256x128xf32>
    %c0_36 = arith.constant 0 : index
    %c896 = arith.constant 896 : index
    %59 = vector.load %arg6[%c0_36, %c896] : memref<256x1152xf32, #tpu.memory_space<vmem>>, vector<256x128xf32>
    tpu.vector_store %arg6[%c0_36, %c896], %58 {strides = array<i32>} : memref<256x1152xf32, #tpu.memory_space<vmem>>, vector<256x128xf32>,
    %c41 = arith.constant 41 : index
    %c0_37 = arith.constant 0 : index
    %60 = vector.load %arg5[%c41, %c0_37] : memref<304x128xf32, #tpu.memory_space<vmem>>, vector<256x128xf32>
    %c14_i32_38 = arith.constant 14 : i32
    %61 = vector.broadcast %c14_i32_38 : i32 to vector<256x128xi32>
    %62 = arith.cmpi sle, %23, %61 : vector<256x128xi32>
    %cst_39 = arith.constant 0.000000e+00 : f32
    %63 = vector.broadcast %cst_39 : f32 to vector<256x128xf32>
    %64 = arith.select %62, %60, %63 : vector<256x128xi1>, vector<256x128xf32>
    %c0_40 = arith.constant 0 : index
    %c1024 = arith.constant 1024 : index
    %65 = vector.load %arg6[%c0_40, %c1024] : memref<256x1152xf32, #tpu.memory_space<vmem>>, vector<256x128xf32>
    tpu.vector_store %arg6[%c0_40, %c1024], %64 {strides = array<i32>} : memref<256x1152xf32, #tpu.memory_space<vmem>>, vector<256x128xf32>,
    %c0_41 = arith.constant 0 : index
    %c0_42 = arith.constant 0 : index
    %66 = vector.load %arg6[%c0_41, %c0_42] : memref<256x1152xf32, #tpu.memory_space<vmem>>, vector<256x1152xf32>
    %c0_43 = arith.constant 0 : index
    %c0_44 = arith.constant 0 : index
    %67 = vector.load %arg2[%c0_43, %c0_44] : memref<1152x128xf32, #tpu.memory_space<vmem>>, vector<1152x128xf32>
    %cst_45 = arith.constant dense<0.000000e+00> : vector<256x128xf32>
    %68 = tpu.matmul %66, %67, %cst_45 {dimension_numbers = #tpu.dot_dimension_numbers<[1], [0], [0], [1], [0, 0, 1, 1], [], []>} : vector<256x1152xf32>, vector<1152x128xf32>, vector<256x128xf32> -> vector<256x128xf32>
    %cst_46 = arith.constant 0.000000e+00 : f32
    %69 = vector.broadcast %cst_46 : f32 to vector<256x128xf32>
    %70 = arith.maximumf %68, %69 : vector<256x128xf32>
    %c24_47 = arith.constant 24 : index
    %c0_48 = arith.constant 0 : index
    %71 = vector.load %arg5[%c24_47, %c0_48] : memref<304x128xf32, #tpu.memory_space<vmem>>, vector<256x128xf32>
    tpu.vector_store %arg5[%c24_47, %c0_48], %70 {strides = array<i32>} : memref<304x128xf32, #tpu.memory_space<vmem>>, vector<256x128xf32>,
    %72 = tpu.iota {dimensions = array<i32: 0>} : vector<256x128xi32>
    %c16_i32_49 = arith.constant 16 : i32
    %c0_i32_50 = arith.constant 0 : i32
    %73 = arith.cmpi eq, %c16_i32_49, %c0_i32_50 : i32
    %c1_i32_51 = arith.constant 1 : i32
    %74 = arith.select %73, %c1_i32_51, %c16_i32_49 : i32
    %75 = vector.broadcast %74 : i32 to vector<256x128xi32>
    %76 = arith.remsi %72, %75 : vector<256x128xi32>
    %c0_i32_52 = arith.constant 0 : i32
    %77 = vector.broadcast %c0_i32_52 : i32 to vector<256x128xi32>
    %78 = arith.cmpi ne, %76, %77 : vector<256x128xi32>
    %c0_i32_53 = arith.constant 0 : i32
    %79 = vector.broadcast %c0_i32_53 : i32 to vector<256x128xi32>
    %80 = arith.cmpi slt, %76, %79 : vector<256x128xi32>
    %c0_i32_54 = arith.constant 0 : i32
    %81 = arith.cmpi slt, %74, %c0_i32_54 : i32
    %82 = vector.broadcast %81 : i1 to vector<256x128xi1>
    %83 = vector.broadcast %82 : vector<256x128xi1> to vector<256x128xi1>
    %84 = arith.xori %80, %83 : vector<256x128xi1>
    %85 = arith.andi %84, %78 : vector<256x128xi1>
    %86 = vector.broadcast %74 : i32 to vector<256x128xi32>
    %87 = arith.addi %76, %86 : vector<256x128xi32>
    %88 = arith.select %85, %87, %76 : vector<256x128xi1>, vector<256x128xi32>
    %c7_55 = arith.constant 7 : index
    %c0_56 = arith.constant 0 : index
    %89 = vector.load %arg5[%c7_55, %c0_56] : memref<304x128xf32, #tpu.memory_space<vmem>>, vector<256x128xf32>
    %c1_i32_57 = arith.constant 1 : i32
    %90 = vector.broadcast %c1_i32_57 : i32 to vector<256x128xi32>
    %91 = arith.cmpi sge, %88, %90 : vector<256x128xi32>
    %cst_58 = arith.constant 0.000000e+00 : f32
    %92 = vector.broadcast %cst_58 : f32 to vector<256x128xf32>
    %93 = arith.select %91, %89, %92 : vector<256x128xi1>, vector<256x128xf32>
    %c0_59 = arith.constant 0 : index
    %c0_60 = arith.constant 0 : index
    %94 = vector.load %arg6[%c0_59, %c0_60] : memref<256x1152xf32, #tpu.memory_space<vmem>>, vector<256x128xf32>
    tpu.vector_store %arg6[%c0_59, %c0_60], %93 {strides = array<i32>} : memref<256x1152xf32, #tpu.memory_space<vmem>>, vector<256x128xf32>,
    %c8_61 = arith.constant 8 : index
    %c0_62 = arith.constant 0 : index
    %95 = vector.load %arg5[%c8_61, %c0_62] : memref<304x128xf32, #tpu.memory_space<vmem>>, vector<256x128xf32>
    %c0_63 = arith.constant 0 : index
    %c128_64 = arith.constant 128 : index
    %96 = vector.load %arg6[%c0_63, %c128_64] : memref<256x1152xf32, #tpu.memory_space<vmem>>, vector<256x128xf32>
    tpu.vector_store %arg6[%c0_63, %c128_64], %95 {strides = array<i32>} : memref<256x1152xf32, #tpu.memory_space<vmem>>, vector<256x128xf32>,
    %c9_65 = arith.constant 9 : index
    %c0_66 = arith.constant 0 : index
    %97 = vector.load %arg5[%c9_65, %c0_66] : memref<304x128xf32, #tpu.memory_space<vmem>>, vector<256x128xf32>
    %c14_i32_67 = arith.constant 14 : i32
    %98 = vector.broadcast %c14_i32_67 : i32 to vector<256x128xi32>
    %99 = arith.cmpi sle, %88, %98 : vector<256x128xi32>
    %cst_68 = arith.constant 0.000000e+00 : f32
    %100 = vector.broadcast %cst_68 : f32 to vector<256x128xf32>
    %101 = arith.select %99, %97, %100 : vector<256x128xi1>, vector<256x128xf32>
    %c0_69 = arith.constant 0 : index
    %c256_70 = arith.constant 256 : index
    %102 = vector.load %arg6[%c0_69, %c256_70] : memref<256x1152xf32, #tpu.memory_space<vmem>>, vector<256x128xf32>
    tpu.vector_store %arg6[%c0_69, %c256_70], %101 {strides = array<i32>} : memref<256x1152xf32, #tpu.memory_space<vmem>>, vector<256x128xf32>,
    %c23_71 = arith.constant 23 : index
    %c0_72 = arith.constant 0 : index
    %103 = vector.load %arg5[%c23_71, %c0_72] : memref<304x128xf32, #tpu.memory_space<vmem>>, vector<256x128xf32>
    %c1_i32_73 = arith.constant 1 : i32
    %104 = vector.broadcast %c1_i32_73 : i32 to vector<256x128xi32>
    %105 = arith.cmpi sge, %88, %104 : vector<256x128xi32>
    %cst_74 = arith.constant 0.000000e+00 : f32
    %106 = vector.broadcast %cst_74 : f32 to vector<256x128xf32>
    %107 = arith.select %105, %103, %106 : vector<256x128xi1>, vector<256x128xf32>
    %c0_75 = arith.constant 0 : index
    %c384_76 = arith.constant 384 : index
    %108 = vector.load %arg6[%c0_75, %c384_76] : memref<256x1152xf32, #tpu.memory_space<vmem>>, vector<256x128xf32>
    tpu.vector_store %arg6[%c0_75, %c384_76], %107 {strides = array<i32>} : memref<256x1152xf32, #tpu.memory_space<vmem>>, vector<256x128xf32>,
    %c24_77 = arith.constant 24 : index
    %c0_78 = arith.constant 0 : index
    %109 = vector.load %arg5[%c24_77, %c0_78] : memref<304x128xf32, #tpu.memory_space<vmem>>, vector<256x128xf32>
    %c0_79 = arith.constant 0 : index
    %c512_80 = arith.constant 512 : index
    %110 = vector.load %arg6[%c0_79, %c512_80] : memref<256x1152xf32, #tpu.memory_space<vmem>>, vector<256x128xf32>
    tpu.vector_store %arg6[%c0_79, %c512_80], %109 {strides = array<i32>} : memref<256x1152xf32, #tpu.memory_space<vmem>>, vector<256x128xf32>,
    %c25_81 = arith.constant 25 : index
    %c0_82 = arith.constant 0 : index
    %111 = vector.load %arg5[%c25_81, %c0_82] : memref<304x128xf32, #tpu.memory_space<vmem>>, vector<256x128xf32>
    %c14_i32_83 = arith.constant 14 : i32
    %112 = vector.broadcast %c14_i32_83 : i32 to vector<256x128xi32>
    %113 = arith.cmpi sle, %88, %112 : vector<256x128xi32>
    %cst_84 = arith.constant 0.000000e+00 : f32
    %114 = vector.broadcast %cst_84 : f32 to vector<256x128xf32>
    %115 = arith.select %113, %111, %114 : vector<256x128xi1>, vector<256x128xf32>
    %c0_85 = arith.constant 0 : index
    %c640_86 = arith.constant 640 : index
    %116 = vector.load %arg6[%c0_85, %c640_86] : memref<256x1152xf32, #tpu.memory_space<vmem>>, vector<256x128xf32>
    tpu.vector_store %arg6[%c0_85, %c640_86], %115 {strides = array<i32>} : memref<256x1152xf32, #tpu.memory_space<vmem>>, vector<256x128xf32>,
    %c39_87 = arith.constant 39 : index
    %c0_88 = arith.constant 0 : index
    %117 = vector.load %arg5[%c39_87, %c0_88] : memref<304x128xf32, #tpu.memory_space<vmem>>, vector<256x128xf32>
    %c1_i32_89 = arith.constant 1 : i32
    %118 = vector.broadcast %c1_i32_89 : i32 to vector<256x128xi32>
    %119 = arith.cmpi sge, %88, %118 : vector<256x128xi32>
    %cst_90 = arith.constant 0.000000e+00 : f32
    %120 = vector.broadcast %cst_90 : f32 to vector<256x128xf32>
    %121 = arith.select %119, %117, %120 : vector<256x128xi1>, vector<256x128xf32>
    %c0_91 = arith.constant 0 : index
    %c768_92 = arith.constant 768 : index
    %122 = vector.load %arg6[%c0_91, %c768_92] : memref<256x1152xf32, #tpu.memory_space<vmem>>, vector<256x128xf32>
    tpu.vector_store %arg6[%c0_91, %c768_92], %121 {strides = array<i32>} : memref<256x1152xf32, #tpu.memory_space<vmem>>, vector<256x128xf32>,
    %c40_93 = arith.constant 40 : index
    %c0_94 = arith.constant 0 : index
    %123 = vector.load %arg5[%c40_93, %c0_94] : memref<304x128xf32, #tpu.memory_space<vmem>>, vector<256x128xf32>
    %c0_95 = arith.constant 0 : index
    %c896_96 = arith.constant 896 : index
    %124 = vector.load %arg6[%c0_95, %c896_96] : memref<256x1152xf32, #tpu.memory_space<vmem>>, vector<256x128xf32>
    tpu.vector_store %arg6[%c0_95, %c896_96], %123 {strides = array<i32>} : memref<256x1152xf32, #tpu.memory_space<vmem>>, vector<256x128xf32>,
    %c41_97 = arith.constant 41 : index
    %c0_98 = arith.constant 0 : index
    %125 = vector.load %arg5[%c41_97, %c0_98] : memref<304x128xf32, #tpu.memory_space<vmem>>, vector<256x128xf32>
    %c14_i32_99 = arith.constant 14 : i32
    %126 = vector.broadcast %c14_i32_99 : i32 to vector<256x128xi32>
    %127 = arith.cmpi sle, %88, %126 : vector<256x128xi32>
    %cst_100 = arith.constant 0.000000e+00 : f32
    %128 = vector.broadcast %cst_100 : f32 to vector<256x128xf32>
    %129 = arith.select %127, %125, %128 : vector<256x128xi1>, vector<256x128xf32>
    %c0_101 = arith.constant 0 : index
    %c1024_102 = arith.constant 1024 : index
    %130 = vector.load %arg6[%c0_101, %c1024_102] : memref<256x1152xf32, #tpu.memory_space<vmem>>, vector<256x128xf32>
    tpu.vector_store %arg6[%c0_101, %c1024_102], %129 {strides = array<i32>} : memref<256x1152xf32, #tpu.memory_space<vmem>>, vector<256x128xf32>,
    %c0_103 = arith.constant 0 : index
    %c0_104 = arith.constant 0 : index
    %131 = vector.load %arg6[%c0_103, %c0_104] : memref<256x1152xf32, #tpu.memory_space<vmem>>, vector<256x1152xf32>
    %c0_105 = arith.constant 0 : index
    %c0_106 = arith.constant 0 : index
    %132 = vector.load %arg3[%c0_105, %c0_106] : memref<1152x128xf32, #tpu.memory_space<vmem>>, vector<1152x128xf32>
    %cst_107 = arith.constant dense<0.000000e+00> : vector<256x128xf32>
    %133 = tpu.matmul %131, %132, %cst_107 {dimension_numbers = #tpu.dot_dimension_numbers<[1], [0], [0], [1], [0, 0, 1, 1], [], []>} : vector<256x1152xf32>, vector<1152x128xf32>, vector<256x128xf32> -> vector<256x128xf32>
    %cst_108 = arith.constant 0.000000e+00 : f32
    %134 = vector.broadcast %cst_108 : f32 to vector<256x128xf32>
    %135 = arith.maximumf %133, %134 : vector<256x128xf32>
    %c0_109 = arith.constant 0 : index
    %c0_110 = arith.constant 0 : index
    %c0_111 = arith.constant 0 : index
    %136 = vector.load %arg1[%c0_109, %c0_110, %c0_111] : memref<1x256x128xf32, #tpu.memory_space<vmem>>, vector<1x256x128xf32>
    %137 = vector.shape_cast %136 : vector<1x256x128xf32> to vector<256x128xf32>
    %138 = arith.addf %135, %137 : vector<256x128xf32>
    %c0_112 = arith.constant 0 : index
    %c0_113 = arith.constant 0 : index
    %c0_114 = arith.constant 0 : index
    %139 = vector.load %arg4[%c0_112, %c0_113, %c0_114] : memref<1x256x128xf32, #tpu.memory_space<vmem>>, vector<1x256x128xf32>
    %140 = vector.shape_cast %139 : vector<1x256x128xf32> to vector<256x128xf32>
    %141 = vector.shape_cast %138 : vector<256x128xf32> to vector<1x256x128xf32>
    tpu.vector_store %arg4[%c0_112, %c0_113, %c0_114], %141 {strides = array<i32>} : memref<1x256x128xf32, #tpu.memory_space<vmem>>, vector<1x256x128xf32>,
    return
  }
  func.func @transform_0(%arg0: i32) -> (i32, i32, i32) {
    %c0_i32 = arith.constant 0 : i32
    %c0_i32_0 = arith.constant 0 : i32
    %c0_i32_1 = arith.constant 0 : i32
    return %arg0, %c0_i32, %c0_i32_0 : i32, i32, i32
  }
  func.func @transform_1(%arg0: i32) -> (i32, i32) {
    %c0_i32 = arith.constant 0 : i32
    %c0_i32_0 = arith.constant 0 : i32
    %c0_i32_1 = arith.constant 0 : i32
    return %c0_i32, %c0_i32_0 : i32, i32
  }
  func.func @transform_2(%arg0: i32) -> (i32, i32) {
    %c0_i32 = arith.constant 0 : i32
    %c0_i32_0 = arith.constant 0 : i32
    %c0_i32_1 = arith.constant 0 : i32
    return %c0_i32, %c0_i32_0 : i32, i32
  }
  func.func @transform_3(%arg0: i32) -> (i32, i32, i32) {
    %c0_i32 = arith.constant 0 : i32
    %c0_i32_0 = arith.constant 0 : i32
    %c0_i32_1 = arith.constant 0 : i32
    return %arg0, %c0_i32, %c0_i32_0 : i32, i32, i32
  }
}

</mosaic_0001>

<llo_original>
// kernel: resblock_forward.1
$region0: #{resblock_forward.1}
  #allocation0 [shape = 'u32[]', space=smem, size = 0x4, offset = 0x4, fixed_abs, tag = 'smem constant byte address 0x4 - core index']
  #allocation1 [shape = 'u32[72,128]{1,0:T(1,128)}', space=vmem, size = 0x9000, scoped, tag = 'internal scratch']
  #allocation2 [shape = 'f32[304,128]{1,0:T(8,128)}', space=vmem, size = 0x26000, scoped, tag = 'scratch operand']
  #allocation3 [shape = 'f32[256,1152]{1,0:T(8,128)}', space=vmem, size = 0x120000, scoped, tag = 'scratch operand']
  %s0 = inlined_call_operand.hbm [shape: f32[2,256,128], index: 0, kind: input, shape index: {}]
  %s1 = inlined_call_operand.hbm [shape: f32[1152,128], index: 1, kind: input, shape index: {}]
  %s2 = inlined_call_operand.hbm [shape: f32[1152,128], index: 2, kind: input, shape index: {}]
  %s3 = inlined_call_operand.hbm [shape: f32[2,256,128], index: 3, kind: output, shape index: {}]
  %s4 = sld [smem:[#allocation0]]
  $region57: #{resblock_forward.1} parent=0
    _
  %s6 = ssub.s32 1, %s4
  %s7 = scalar_select 0, %s6, %s4
  $region1: #{resblock_forward.1} parent=0
    #allocation4 [shape = 'u8[262144]{0}', space=vmem, size = 0x40000, scoped, tag = 'input window, operand 0']
    #allocation5 [shape = 's32[2]{0}', space=sflag, size = 0x8, scoped, tag = 'scoped memory for resblock_forward.1']
    #allocation6 [shape = 's32[2]{0}', space=sflag, size = 0x8, scoped, tag = 'scoped memory for resblock_forward.1']
    #allocation7 [shape = 'u8[589824]{0}', space=vmem, size = 0x90000, scoped, tag = 'input window, operand 1, single buffered']
    #allocation8 [shape = 's32[1]{0}', space=sflag, size = 0x4, scoped, tag = 'scoped memory for resblock_forward.1']
    #allocation9 [shape = 'u8[589824]{0}', space=vmem, size = 0x90000, scoped, tag = 'input window, operand 2, single buffered']
    #allocation10 [shape = 'u8[262144]{0}', space=vmem, size = 0x40000, scoped, tag = 'output window, operand 0']
    %8 = vsyncpa [#allocation5], 0
    %s9 = scalar_lea.sflag [#allocation5], 1
    %10 = vsyncpa %s9, 0
    %11 = vsyncpa [#allocation8], 0
    %12 = vsyncpa [#allocation6], 0
    %s13 = scalar_lea.sflag [#allocation6], 1
    %14 = vsyncpa %s13, 0
    loop: start=0, step=1, limit=4
    $region2: #{resblock_forward.1} parent=1 // loop_pre_header
      _
    $region3: #{resblock_forward.1} parent=1 // loop_header
      %s16 = sphi 0, %s20
      %p17 = scmp.ge.s32.totalorder %s16, 4
      %s26 = sphi 0, %s28
      %s29 = sphi 0, %s26
      %s30 = sphi 0, %s29
      %s46 = sphi 0, %s30
      %s50 = sphi 0, %s50
      %s52 = sphi 0, %s50
      %s53 = sphi 0, %s52
      %s67 = sphi 0, %s53
      %s71 = sphi 0, %s71
      %s73 = sphi 0, %s71
      %s74 = sphi 0, %s73
      %s88 = sphi 0, %s74
      %s94 = sphi 0, %s96
      %s97 = sphi 0, %s94
      %s98 = sphi 0, %s97
      %s114 = sphi 0, %s98
    $region4: #{resblock_forward.1} parent=1 // loop_header_branch
      %19 = sbr.rel (%p17) target = $region8
    $region5: #{resblock_forward.1} parent=1 // loop_body
      %s21 = ssub.s32 %s16, 1
      %s22 = ssub.s32 %s16, 2
      %s23 = sadd.s32 %s16, 1
      %s24 = ssub.s32 %s16, %s23
      %p25 = scmp.eq.s32.totalorder %s24, 0
      %s27 = sadd.s32 %s26, 1
      %s28 = scalar_select %p25, %s26, %s27
      %p31 = pneg %p25
      %p32 = scmp.eq.s32.totalorder %s16, 1
      %p33 = por %p31, %p32
      %p34 = scmp.ne.s32.totalorder %s26, %s29
      %p35 = scmp.eq.s32.totalorder %s16, 0
      %p36 = por %p34, %p35
      %p37 = scmp.ne.s32.totalorder %s26, %s29
      %p38 = scmp.eq.s32.totalorder %s21, 1
      %p39 = por %p37, %p38
      %p40 = scmp.ne.s32.totalorder %s29, %s30
      %p41 = scmp.eq.s32.totalorder %s21, 0
      %p42 = por %p40, %p41
      %p43 = scmp.ne.s32.totalorder %s29, %s30
      %p44 = scmp.eq.s32.totalorder %s22, 1
      %p45 = por %p43, %p44
      %p47 = scmp.ne.s32.totalorder %s30, %s46
      %p48 = scmp.eq.s32.totalorder %s22, 0
      %p49 = por %p47, %p48
      %s51 = sadd.s32 %s50, 1
      %p54 = scmp.eq.s32.totalorder %s16, 1
      %p55 = scmp.ne.s32.totalorder %s50, %s52
      %p56 = scmp.eq.s32.totalorder %s16, 0
      %p57 = por %p55, %p56
      %p58 = scmp.ne.s32.totalorder %s50, %s52
      %p59 = scmp.eq.s32.totalorder %s21, 1
      %p60 = por %p58, %p59
      %p61 = scmp.ne.s32.totalorder %s52, %s53
      %p62 = scmp.eq.s32.totalorder %s21, 0
      %p63 = por %p61, %p62
      %p64 = scmp.ne.s32.totalorder %s52, %s53
      %p65 = scmp.eq.s32.totalorder %s22, 1
      %p66 = por %p64, %p65
      %p68 = scmp.ne.s32.totalorder %s53, %s67
      %p69 = scmp.eq.s32.totalorder %s22, 0
      %p70 = por %p68, %p69
      %s72 = sadd.s32 %s71, 1
      %p75 = scmp.eq.s32.totalorder %s16, 1
      %p76 = scmp.ne.s32.totalorder %s71, %s73
      %p77 = scmp.eq.s32.totalorder %s16, 0
      %p78 = por %p76, %p77
      %p79 = scmp.ne.s32.totalorder %s71, %s73
      %p80 = scmp.eq.s32.totalorder %s21, 1
      %p81 = por %p79, %p80
      %p82 = scmp.ne.s32.totalorder %s73, %s74
      %p83 = scmp.eq.s32.totalorder %s21, 0
      %p84 = por %p82, %p83
      %p85 = scmp.ne.s32.totalorder %s73, %s74
      %p86 = scmp.eq.s32.totalorder %s22, 1
      %p87 = por %p85, %p86
      %p89 = scmp.ne.s32.totalorder %s74, %s88
      %p90 = scmp.eq.s32.totalorder %s22, 0
      %p91 = por %p89, %p90
      %s92 = ssub.s32 %s16, %s23
      %p93 = scmp.eq.s32.totalorder %s92, 0
      %s95 = sadd.s32 %s94, 1
      %s96 = scalar_select %p93, %s94, %s95
      %p99 = pneg %p93
      %p100 = scmp.eq.s32.totalorder %s16, 1
      %p101 = por %p99, %p100
      %p102 = scmp.ne.s32.totalorder %s94, %s97
      %p103 = scmp.eq.s32.totalorder %s16, 0
      %p104 = por %p102, %p103
      %p105 = scmp.ne.s32.totalorder %s94, %s97
      %p106 = scmp.eq.s32.totalorder %s21, 1
      %p107 = por %p105, %p106
      %p108 = scmp.ne.s32.totalorder %s97, %s98
      %p109 = scmp.eq.s32.totalorder %s21, 0
      %p110 = por %p108, %p109
      %p111 = scmp.ne.s32.totalorder %s97, %s98
      %p112 = scmp.eq.s32.totalorder %s22, 1
      %p113 = por %p111, %p112
      %p115 = scmp.ne.s32.totalorder %s98, %s114
      %p116 = scmp.eq.s32.totalorder %s22, 0
      %p117 = por %p115, %p116
      %p118 = scmp.le.s32.totalorder 1, %s16
      %p119 = scmp.lt.s32.totalorder %s16, 3
      %p120 = pnand %p118, %p119
      %p121 = pneg %p120
      // Predicated region
      $region9: #{resblock_forward.1} parent=5 // pred_check
        _
      $region10: #{resblock_forward.1} parent=5 // pred_check_branch
        %123 = sbr.rel (%p120) target = $region12
      $region11: #{resblock_forward.1} parent=5 // pred_region
        %s124 = ssub.s32 %s16, 1
        // Predicated region
        $region13: #{resblock_forward.1} parent=11 // pred_check
          %p125 = pneg %p63
        $region14: #{resblock_forward.1} parent=11 // pred_check_branch
          %127 = sbr.rel (%p125) target = $region16
        $region15: #{resblock_forward.1} parent=11 // pred_region
          %129 = vsyncadd [#allocation8], 0
          %s130 = sshll.u32 %s1, 4
          %s131 = int_to_ptr.hbm [resolvable:$true] %s130
          %s132 = sshll.u32 [#allocation7], 4
          %s133 = int_to_ptr.vmem [resolvable:$true] %s132
          %138 = dma.hbm_to_vmem [thread:$0]  %s131, 18432, %s133, [#allocation8], 128, 128, 8
        $region16: #{resblock_forward.1} parent=11 // pred_fallthru
          _
        // Predicated region
        $region17: #{resblock_forward.1} parent=11 // pred_check
          %p139 = pneg %p84
        $region18: #{resblock_forward.1} parent=11 // pred_check_branch
          %141 = sbr.rel (%p139) target = $region20
        $region19: #{resblock_forward.1} parent=11 // pred_region
          %143 = vsyncadd [#allocation8], 0
          %s144 = sshll.u32 %s2, 4
          %s145 = int_to_ptr.hbm [resolvable:$true] %s144
          %s146 = sshll.u32 [#allocation9], 4
          %s147 = int_to_ptr.vmem [resolvable:$true] %s146
          %152 = dma.hbm_to_vmem [thread:$0]  %s145, 18432, %s147, [#allocation8], 128, 128, 8
        $region20: #{resblock_forward.1} parent=11 // pred_fallthru
          _
      $region12: #{resblock_forward.1} parent=5 // pred_fallthru
        _
      %p153 = scmp.lt.s32.totalorder %s16, 2
      // Predicated region
      $region21: #{resblock_forward.1} parent=5 // pred_check
        %p154 = pneg %p153
      $region22: #{resblock_forward.1} parent=5 // pred_check_branch
        %156 = sbr.rel (%p154) target = $region24
      $region23: #{resblock_forward.1} parent=5 // pred_region
        // Predicated region
        $region25: #{resblock_forward.1} parent=23 // pred_check
          %p157 = pneg %p36
        $region26: #{resblock_forward.1} parent=23 // pred_check_branch
          %159 = sbr.rel (%p157) target = $region28
        $region27: #{resblock_forward.1} parent=23 // pred_region
          %s160 = sand.u32 %s26, 1
          %s161 = scalar_lea.sflag [#allocation5], %s160
          %s162 = sand.u32 %s26, 1
          %s163 = smul.addr %s162, 256
          %s164 = scalar_lea.vmem [#allocation4], %s163
          %166 = vsyncadd %s161, 0
          %s167 = smul.addr %s16, 32
          %s168 = smul.addr %s167, 8
          %s169 = scalar_lea.hbm %s0, %s168
          %s170 = sshll.u32 %s169, 4
          %s171 = int_to_ptr.hbm [resolvable:$true] %s170
          %s172 = sshll.u32 %s164, 4
          %s173 = int_to_ptr.vmem [resolvable:$true] %s172
          %178 = dma.hbm_to_vmem [thread:$0]  %s171, 4096, %s173, %s161, 128, 128, 8
        $region28: #{resblock_forward.1} parent=23 // pred_fallthru
          _
      $region24: #{resblock_forward.1} parent=5 // pred_fallthru
        _
      %p179 = scmp.le.s32.totalorder 1, %s16
      %p180 = scmp.lt.s32.totalorder %s16, 3
      %p181 = pnand %p179, %p180
      %p182 = pneg %p181
      // Predicated region
      $region29: #{resblock_forward.1} parent=5 // pred_check
        _
      $region30: #{resblock_forward.1} parent=5 // pred_check_branch
        %184 = sbr.rel (%p181) target = $region32
      $region31: #{resblock_forward.1} parent=5 // pred_region
        %s185 = ssub.s32 %s16, 1
        %s186 = sand.u32 %s29, 1
        %s187 = scalar_lea.sflag [#allocation5], %s186
        %s188 = sand.u32 %s29, 1
        %s189 = smul.addr %s188, 256
        %s190 = scalar_lea.vmem [#allocation4], %s189
        // Predicated region
        $region33: #{resblock_forward.1} parent=31 // pred_check
          %p191 = pneg %p42
        $region34: #{resblock_forward.1} parent=31 // pred_check_branch
          %193 = sbr.rel (%p191) target = $region36
        $region35: #{resblock_forward.1} parent=31 // pred_region
          %195 = dma.done %s187, 4096
        $region36: #{resblock_forward.1} parent=31 // pred_fallthru
          _
        // Predicated region
        $region37: #{resblock_forward.1} parent=31 // pred_check
          %p196 = pneg %p63
        $region38: #{resblock_forward.1} parent=31 // pred_check_branch
          %198 = sbr.rel (%p196) target = $region40
        $region39: #{resblock_forward.1} parent=31 // pred_region
          %200 = dma.done [#allocation8], 18432
        $region40: #{resblock_forward.1} parent=31 // pred_fallthru
          _
        // Predicated region
        $region41: #{resblock_forward.1} parent=31 // pred_check
          %p201 = pneg %p84
        $region42: #{resblock_forward.1} parent=31 // pred_check_branch
          %203 = sbr.rel (%p201) target = $region44
        $region43: #{resblock_forward.1} parent=31 // pred_region
          %205 = dma.done [#allocation8], 18432
        $region44: #{resblock_forward.1} parent=31 // pred_fallthru
          _
        %s206 = sand.u32 %s29, 1
        %s207 = scalar_lea.sflag [#allocation5], %s206
        %s208 = sand.u32 %s29, 1
        %s209 = smul.addr %s208, 256
        %s210 = scalar_lea.vmem [#allocation4], %s209
        %p211 = pneg %p42
        %p212 = pneg %p39
        %p213 = pneg %p63
        %p214 = pneg %p60
        %p215 = pneg %p84
        %p216 = pneg %p81
        %p217 = pneg %p110
        %p218 = pneg %p107
        %s219 = sand.u32 %s97, 1
        %s220 = scalar_lea.sflag [#allocation6], %s219
        %s221 = sand.u32 %s97, 1
        %s222 = smul.addr %s221, 256
        %s223 = scalar_lea.vmem [#allocation10], %s222
        %224 = vst [vmem:[#allocation2] sm:$0xff] 0.0
        %225 = vst [vmem:[#allocation2 + $0x8] sm:$0xff] 0.0
        %226 = vst [vmem:[#allocation2 + $0x10] sm:$0xff] 0.0
        %227 = vst [vmem:[#allocation2 + $0x118] sm:$0xff] 0.0
        %228 = vst [vmem:[#allocation2 + $0x120] sm:$0xff] 0.0
        %229 = vst [vmem:[#allocation2 + $0x128] sm:$0xff] 0.0
        %v230 = vld [vmem:[%s190] sm:$0xff]
        %v231 = vld [vmem:[%s190 + $0x8] sm:$0xff]
        %v232 = vld [vmem:[%s190 + $0x10] sm:$0xff]
        %v233 = vld [vmem:[%s190 + $0x18] sm:$0xff]
        %v234 = vld [vmem:[%s190 + $0x20] sm:$0xff]
        %v235 = vld [vmem:[%s190 + $0x28] sm:$0xff]
        %v236 = vld [vmem:[%s190 + $0x30] sm:$0xff]
        %v237 = vld [vmem:[%s190 + $0x38] sm:$0xff]
        %v238 = vld [vmem:[%s190 + $0x40] sm:$0xff]
        %v239 = vld [vmem:[%s190 + $0x48] sm:$0xff]
        %v240 = vld [vmem:[%s190 + $0x50] sm:$0xff]
        %v241 = vld [vmem:[%s190 + $0x58] sm:$0xff]
        %v242 = vld [vmem:[%s190 + $0x60] sm:$0xff]
        %v243 = vld [vmem:[%s190 + $0x68] sm:$0xff]
        %v244 = vld [vmem:[%s190 + $0x70] sm:$0xff]
        %v245 = vld [vmem:[%s190 + $0x78] sm:$0xff]
        %v246 = vld [vmem:[%s190 + $0x80] sm:$0xff]
        %v247 = vld [vmem:[%s190 + $0x88] sm:$0xff]
        %v248 = vld [vmem:[%s190 + $0x90] sm:$0xff]
        %v249 = vld [vmem:[%s190 + $0x98] sm:$0xff]
        %v250 = vld [vmem:[%s190 + $0xa0] sm:$0xff]
        %v251 = vld [vmem:[%s190 + $0xa8] sm:$0xff]
        %v252 = vld [vmem:[%s190 + $0xb0] sm:$0xff]
        %v253 = vld [vmem:[%s190 + $0xb8] sm:$0xff]
        %v254 = vld [vmem:[%s190 + $0xc0] sm:$0xff]
        %v255 = vld [vmem:[%s190 + $0xc8] sm:$0xff]
        %v256 = vld [vmem:[%s190 + $0xd0] sm:$0xff]
        %v257 = vld [vmem:[%s190 + $0xd8] sm:$0xff]
        %v258 = vld [vmem:[%s190 + $0xe0] sm:$0xff]
        %v259 = vld [vmem:[%s190 + $0xe8] sm:$0xff]
        %v260 = vld [vmem:[%s190 + $0xf0] sm:$0xff]
        %v261 = vld [vmem:[%s190 + $0xf8] sm:$0xff]
        %262 = vst [vmem:[#allocation2 + $0x18] sm:$0xff] %v230
        %263 = vst [vmem:[#allocation2 + $0x20] sm:$0xff] %v231
        %264 = vst [vmem:[#allocation2 + $0x28] sm:$0xff] %v232
        %265 = vst [vmem:[#allocation2 + $0x30] sm:$0xff] %v233
        %266 = vst [vmem:[#allocation2 + $0x38] sm:$0xff] %v234
        %267 = vst [vmem:[#allocation2 + $0x40] sm:$0xff] %v235
        %268 = vst [vmem:[#allocation2 + $0x48] sm:$0xff] %v236
        %269 = vst [vmem:[#allocation2 + $0x50] sm:$0xff] %v237
        %270 = vst [vmem:[#allocation2 + $0x58] sm:$0xff] %v238
        %271 = vst [vmem:[#allocation2 + $0x60] sm:$0xff] %v239
        %272 = vst [vmem:[#allocation2 + $0x68] sm:$0xff] %v240
        %273 = vst [vmem:[#allocation2 + $0x70] sm:$0xff] %v241
        %274 = vst [vmem:[#allocation2 + $0x78] sm:$0xff] %v242
        %275 = vst [vmem:[#allocation2 + $0x80] sm:$0xff] %v243
        %276 = vst [vmem:[#allocation2 + $0x88] sm:$0xff] %v244
        %277 = vst [vmem:[#allocation2 + $0x90] sm:$0xff] %v245
        %278 = vst [vmem:[#allocation2 + $0x98] sm:$0xff] %v246
        %279 = vst [vmem:[#allocation2 + $0xa0] sm:$0xff] %v247
        %280 = vst [vmem:[#allocation2 + $0xa8] sm:$0xff] %v248
        %281 = vst [vmem:[#allocation2 + $0xb0] sm:$0xff] %v249
        %282 = vst [vmem:[#allocation2 + $0xb8] sm:$0xff] %v250
        %283 = vst [vmem:[#allocation2 + $0xc0] sm:$0xff] %v251
        %284 = vst [vmem:[#allocation2 + $0xc8] sm:$0xff] %v252
        %285 = vst [vmem:[#allocation2 + $0xd0] sm:$0xff] %v253
        %286 = vst [vmem:[#allocation2 + $0xd8] sm:$0xff] %v254
        %287 = vst [vmem:[#allocation2 + $0xe0] sm:$0xff] %v255
        %288 = vst [vmem:[#allocation2 + $0xe8] sm:$0xff] %v256
        %289 = vst [vmem:[#allocation2 + $0xf0] sm:$0xff] %v257
        %290 = vst [vmem:[#allocation2 + $0xf8] sm:$0xff] %v258
        %291 = vst [vmem:[#allocation2 + $0x100] sm:$0xff] %v259
        %292 = vst [vmem:[#allocation2 + $0x108] sm:$0xff] %v260
        %293 = vst [vmem:[#allocation2 + $0x110] sm:$0xff] %v261
        %v294 = vlaneseq
        %v295 = vshrl.u32 %v294, 7
        %v296 = vadd.s32 %v295, 8
        %v297 = vadd.s32 %v295, 16
        %v298 = vadd.s32 %v295, 24
        %v299 = vadd.s32 %v295, 32
        %v300 = vadd.s32 %v295, 40
        %v301 = vadd.s32 %v295, 48
        %v302 = vadd.s32 %v295, 56
        %v303 = vadd.s32 %v295, 64
        %v304 = vadd.s32 %v295, 72
        %v305 = vadd.s32 %v295, 80
        %v306 = vadd.s32 %v295, 88
        %v307 = vadd.s32 %v295, 96
        %v308 = vadd.s32 %v295, 104
        %v309 = vadd.s32 %v295, 112
        %v310 = vadd.s32 %v295, 120
        %v311 = vadd.s32 %v295, 128
        %v312 = vadd.s32 %v295, 136
        %v313 = vadd.s32 %v295, 144
        %v314 = vadd.s32 %v295, 152
        %v315 = vadd.s32 %v295, 160
        %v316 = vadd.s32 %v295, 168
        %v317 = vadd.s32 %v295, 176
        %v318 = vadd.s32 %v295, 184
        %v319 = vadd.s32 %v295, 192
        %v320 = vadd.s32 %v295, 200
        %v321 = vadd.s32 %v295, 208
        %v322 = vadd.s32 %v295, 216
        %v323 = vadd.s32 %v295, 224
        %v324 = vadd.s32 %v295, 232
        %v325 = vadd.s32 %v295, 240
        %v326 = vadd.s32 %v295, 248
        %vm327 = vcmp.lt.s32.totalorder %v295, 0
        %v328 = vsub.s32 0, %v295
        %v329 = vsel %vm327, %v328, %v295
        %v330 = vshrl.u32 %v329, 4
        %v331 = vand.u32 %v329, 15
        %v332 = vsub.s32 0, %v331
        %v333 = vsel %vm327, %v332, %v331
        %vm334 = vcmp.lt.s32.totalorder %v296, 0
        %v335 = vsub.s32 0, %v296
        %v336 = vsel %vm334, %v335, %v296
        %v337 = vshrl.u32 %v336, 4
        %v338 = vand.u32 %v336, 15
        %v339 = vsub.s32 0, %v338
        %v340 = vsel %vm334, %v339, %v338
        %vm341 = vcmp.lt.s32.totalorder %v297, 0
        %v342 = vsub.s32 0, %v297
        %v343 = vsel %vm341, %v342, %v297
        %v344 = vshrl.u32 %v343, 4
        %v345 = vand.u32 %v343, 15
        %v346 = vsub.s32 0, %v345
        %v347 = vsel %vm341, %v346, %v345
        %vm348 = vcmp.lt.s32.totalorder %v298, 0
        %v349 = vsub.s32 0, %v298
        %v350 = vsel %vm348, %v349, %v298
        %v351 = vshrl.u32 %v350, 4
        %v352 = vand.u32 %v350, 15
        %v353 = vsub.s32 0, %v352
        %v354 = vsel %vm348, %v353, %v352
        %vm355 = vcmp.lt.s32.totalorder %v299, 0
        %v356 = vsub.s32 0, %v299
        %v357 = vsel %vm355, %v356, %v299
        %v358 = vshrl.u32 %v357, 4
        %v359 = vand.u32 %v357, 15
        %v360 = vsub.s32 0, %v359
        %v361 = vsel %vm355, %v360, %v359
        %vm362 = vcmp.lt.s32.totalorder %v300, 0
        %v363 = vsub.s32 0, %v300
        %v364 = vsel %vm362, %v363, %v300
        %v365 = vshrl.u32 %v364, 4
        %v366 = vand.u32 %v364, 15
        %v367 = vsub.s32 0, %v366
        %v368 = vsel %vm362, %v367, %v366
        %vm369 = vcmp.lt.s32.totalorder %v301, 0
        %v370 = vsub.s32 0, %v301
        %v371 = vsel %vm369, %v370, %v301
        %v372 = vshrl.u32 %v371, 4
        %v373 = vand.u32 %v371, 15
        %v374 = vsub.s32 0, %v373
        %v375 = vsel %vm369, %v374, %v373
        %vm376 = vcmp.lt.s32.totalorder %v302, 0
        %v377 = vsub.s32 0, %v302
        %v378 = vsel %vm376, %v377, %v302
        %v379 = vshrl.u32 %v378, 4
        %v380 = vand.u32 %v378, 15
        %v381 = vsub.s32 0, %v380
        %v382 = vsel %vm376, %v381, %v380
        %vm383 = vcmp.lt.s32.totalorder %v303, 0
        %v384 = vsub.s32 0, %v303
        %v385 = vsel %vm383, %v384, %v303
        %v386 = vshrl.u32 %v385, 4
        %v387 = vand.u32 %v385, 15
        %v388 = vsub.s32 0, %v387
        %v389 = vsel %vm383, %v388, %v387
        %vm390 = vcmp.lt.s32.totalorder %v304, 0
        %v391 = vsub.s32 0, %v304
        %v392 = vsel %vm390, %v391, %v304
        %v393 = vshrl.u32 %v392, 4
        %v394 = vand.u32 %v392, 15
        %v395 = vsub.s32 0, %v394
        %v396 = vsel %vm390, %v395, %v394
        %vm397 = vcmp.lt.s32.totalorder %v305, 0
        %v398 = vsub.s32 0, %v305
        %v399 = vsel %vm397, %v398, %v305
        %v400 = vshrl.u32 %v399, 4
        %v401 = vand.u32 %v399, 15
        %v402 = vsub.s32 0, %v401
        %v403 = vsel %vm397, %v402, %v401
        %vm404 = vcmp.lt.s32.totalorder %v306, 0
        %v405 = vsub.s32 0, %v306
        %v406 = vsel %vm404, %v405, %v306
        %v407 = vshrl.u32 %v406, 4
        %v408 = vand.u32 %v406, 15
        %v409 = vsub.s32 0, %v408
        %v410 = vsel %vm404, %v409, %v408
        %vm411 = vcmp.lt.s32.totalorder %v307, 0
        %v412 = vsub.s32 0, %v307
        %v413 = vsel %vm411, %v412, %v307
        %v414 = vshrl.u32 %v413, 4
        %v415 = vand.u32 %v413, 15
        %v416 = vsub.s32 0, %v415
        %v417 = vsel %vm411, %v416, %v415
        %vm418 = vcmp.lt.s32.totalorder %v308, 0
        %v419 = vsub.s32 0, %v308
        %v420 = vsel %vm418, %v419, %v308
        %v421 = vshrl.u32 %v420, 4
        %v422 = vand.u32 %v420, 15
        %v423 = vsub.s32 0, %v422
        %v424 = vsel %vm418, %v423, %v422
        %vm425 = vcmp.lt.s32.totalorder %v309, 0
        %v426 = vsub.s32 0, %v309
        %v427 = vsel %vm425, %v426, %v309
        %v428 = vshrl.u32 %v427, 4
        %v429 = vand.u32 %v427, 15
        %v430 = vsub.s32 0, %v429
        %v431 = vsel %vm425, %v430, %v429
        %vm432 = vcmp.lt.s32.totalorder %v310, 0
        %v433 = vsub.s32 0, %v310
        %v434 = vsel %vm432, %v433, %v310
        %v435 = vshrl.u32 %v434, 4
        %v436 = vand.u32 %v434, 15
        %v437 = vsub.s32 0, %v436
        %v438 = vsel %vm432, %v437, %v436
        %vm439 = vcmp.lt.s32.totalorder %v311, 0
        %v440 = vsub.s32 0, %v311
        %v441 = vsel %vm439, %v440, %v311
        %v442 = vshrl.u32 %v441, 4
        %v443 = vand.u32 %v441, 15
        %v444 = vsub.s32 0, %v443
        %v445 = vsel %vm439, %v444, %v443
        %vm446 = vcmp.lt.s32.totalorder %v312, 0
        %v447 = vsub.s32 0, %v312
        %v448 = vsel %vm446, %v447, %v312
        %v449 = vshrl.u32 %v448, 4
        %v450 = vand.u32 %v448, 15
        %v451 = vsub.s32 0, %v450
        %v452 = vsel %vm446, %v451, %v450
        %vm453 = vcmp.lt.s32.totalorder %v313, 0
        %v454 = vsub.s32 0, %v313
        %v455 = vsel %vm453, %v454, %v313
        %v456 = vshrl.u32 %v455, 4
        %v457 = vand.u32 %v455, 15
        %v458 = vsub.s32 0, %v457
        %v459 = vsel %vm453, %v458, %v457
        %vm460 = vcmp.lt.s32.totalorder %v314, 0
        %v461 = vsub.s32 0, %v314
        %v462 = vsel %vm460, %v461, %v314
        %v463 = vshrl.u32 %v462, 4
        %v464 = vand.u32 %v462, 15
        %v465 = vsub.s32 0, %v464
        %v466 = vsel %vm460, %v465, %v464
        %vm467 = vcmp.lt.s32.totalorder %v315, 0
        %v468 = vsub.s32 0, %v315
        %v469 = vsel %vm467, %v468, %v315
        %v470 = vshrl.u32 %v469, 4
        %v471 = vand.u32 %v469, 15
        %v472 = vsub.s32 0, %v471
        %v473 = vsel %vm467, %v472, %v471
        %vm474 = vcmp.lt.s32.totalorder %v316, 0
        %v475 = vsub.s32 0, %v316
        %v476 = vsel %vm474, %v475, %v316
        %v477 = vshrl.u32 %v476, 4
        %v478 = vand.u32 %v476, 15
        %v479 = vsub.s32 0, %v478
        %v480 = vsel %vm474, %v479, %v478
        %vm481 = vcmp.lt.s32.totalorder %v317, 0
        %v482 = vsub.s32 0, %v317
        %v483 = vsel %vm481, %v482, %v317
        %v484 = vshrl.u32 %v483, 4
        %v485 = vand.u32 %v483, 15
        %v486 = vsub.s32 0, %v485
        %v487 = vsel %vm481, %v486, %v485
        %vm488 = vcmp.lt.s32.totalorder %v318, 0
        %v489 = vsub.s32 0, %v318
        %v490 = vsel %vm488, %v489, %v318
        %v491 = vshrl.u32 %v490, 4
        %v492 = vand.u32 %v490, 15
        %v493 = vsub.s32 0, %v492
        %v494 = vsel %vm488, %v493, %v492
        %vm495 = vcmp.lt.s32.totalorder %v319, 0
        %v496 = vsub.s32 0, %v319
        %v497 = vsel %vm495, %v496, %v319
        %v498 = vshrl.u32 %v497, 4
        %v499 = vand.u32 %v497, 15
        %v500 = vsub.s32 0, %v499
        %v501 = vsel %vm495, %v500, %v499
        %vm502 = vcmp.lt.s32.totalorder %v320, 0
        %v503 = vsub.s32 0, %v320
        %v504 = vsel %vm502, %v503, %v320
        %v505 = vshrl.u32 %v504, 4
        %v506 = vand.u32 %v504, 15
        %v507 = vsub.s32 0, %v506
        %v508 = vsel %vm502, %v507, %v506
        %vm509 = vcmp.lt.s32.totalorder %v321, 0
        %v510 = vsub.s32 0, %v321
        %v511 = vsel %vm509, %v510, %v321
        %v512 = vshrl.u32 %v511, 4
        %v513 = vand.u32 %v511, 15
        %v514 = vsub.s32 0, %v513
        %v515 = vsel %vm509, %v514, %v513
        %vm516 = vcmp.lt.s32.totalorder %v322, 0
        %v517 = vsub.s32 0, %v322
        %v518 = vsel %vm516, %v517, %v322
        %v519 = vshrl.u32 %v518, 4
        %v520 = vand.u32 %v518, 15
        %v521 = vsub.s32 0, %v520
        %v522 = vsel %vm516, %v521, %v520
        %vm523 = vcmp.lt.s32.totalorder %v323, 0
        %v524 = vsub.s32 0, %v323
        %v525 = vsel %vm523, %v524, %v323
        %v526 = vshrl.u32 %v525, 4
        %v527 = vand.u32 %v525, 15
        %v528 = vsub.s32 0, %v527
        %v529 = vsel %vm523, %v528, %v527
        %vm530 = vcmp.lt.s32.totalorder %v324, 0
        %v531 = vsub.s32 0, %v324
        %v532 = vsel %vm530, %v531, %v324
        %v533 = vshrl.u32 %v532, 4
        %v534 = vand.u32 %v532, 15
        %v535 = vsub.s32 0, %v534
        %v536 = vsel %vm530, %v535, %v534
        %vm537 = vcmp.lt.s32.totalorder %v325, 0
        %v538 = vsub.s32 0, %v325
        %v539 = vsel %vm537, %v538, %v325
        %v540 = vshrl.u32 %v539, 4
        %v541 = vand.u32 %v539, 15
        %v542 = vsub.s32 0, %v541
        %v543 = vsel %vm537, %v542, %v541
        %vm544 = vcmp.lt.s32.totalorder %v326, 0
        %v545 = vsub.s32 0, %v326
        %v546 = vsel %vm544, %v545, %v326
        %v547 = vshrl.u32 %v546, 4
        %v548 = vand.u32 %v546, 15
        %v549 = vsub.s32 0, %v548
        %v550 = vsel %vm544, %v549, %v548
        %vm551 = vcmp.ne.s32.totalorder %v333, 0
        %vm552 = vcmp.ne.s32.totalorder %v340, 0
        %vm553 = vcmp.ne.s32.totalorder %v347, 0
        %vm554 = vcmp.ne.s32.totalorder %v354, 0
        %vm555 = vcmp.ne.s32.totalorder %v361, 0
        %vm556 = vcmp.ne.s32.totalorder %v368, 0
        %vm557 = vcmp.ne.s32.totalorder %v375, 0
        %vm558 = vcmp.ne.s32.totalorder %v382, 0
        %vm559 = vcmp.ne.s32.totalorder %v389, 0
        %vm560 = vcmp.ne.s32.totalorder %v396, 0
        %vm561 = vcmp.ne.s32.totalorder %v403, 0
        %vm562 = vcmp.ne.s32.totalorder %v410, 0
        %vm563 = vcmp.ne.s32.totalorder %v417, 0
        %vm564 = vcmp.ne.s32.totalorder %v424, 0
        %vm565 = vcmp.ne.s32.totalorder %v431, 0
        %vm566 = vcmp.ne.s32.totalorder %v438, 0
        %vm567 = vcmp.ne.s32.totalorder %v445, 0
        %vm568 = vcmp.ne.s32.totalorder %v452, 0
        %vm569 = vcmp.ne.s32.totalorder %v459, 0
        %vm570 = vcmp.ne.s32.totalorder %v466, 0
        %vm571 = vcmp.ne.s32.totalorder %v473, 0
        %vm572 = vcmp.ne.s32.totalorder %v480, 0
        %vm573 = vcmp.ne.s32.totalorder %v487, 0
        %vm574 = vcmp.ne.s32.totalorder %v494, 0
        %vm575 = vcmp.ne.s32.totalorder %v501, 0
        %vm576 = vcmp.ne.s32.totalorder %v508, 0
        %vm577 = vcmp.ne.s32.totalorder %v515, 0
        %vm578 = vcmp.ne.s32.totalorder %v522, 0
        %vm579 = vcmp.ne.s32.totalorder %v529, 0
        %vm580 = vcmp.ne.s32.totalorder %v536, 0
        %vm581 = vcmp.ne.s32.totalorder %v543, 0
        %vm582 = vcmp.ne.s32.totalorder %v550, 0
        %vm583 = vcmp.lt.s32.totalorder %v333, 0
        %vm584 = vcmp.lt.s32.totalorder %v340, 0
        %vm585 = vcmp.lt.s32.totalorder %v347, 0
        %vm586 = vcmp.lt.s32.totalorder %v354, 0
        %vm587 = vcmp.lt.s32.totalorder %v361, 0
        %vm588 = vcmp.lt.s32.totalorder %v368, 0
        %vm589 = vcmp.lt.s32.totalorder %v375, 0
        %vm590 = vcmp.lt.s32.totalorder %v382, 0
        %vm591 = vcmp.lt.s32.totalorder %v389, 0
        %vm592 = vcmp.lt.s32.totalorder %v396, 0
        %vm593 = vcmp.lt.s32.totalorder %v403, 0
        %vm594 = vcmp.lt.s32.totalorder %v410, 0
        %vm595 = vcmp.lt.s32.totalorder %v417, 0
        %vm596 = vcmp.lt.s32.totalorder %v424, 0
        %vm597 = vcmp.lt.s32.totalorder %v431, 0
        %vm598 = vcmp.lt.s32.totalorder %v438, 0
        %vm599 = vcmp.lt.s32.totalorder %v445, 0
        %vm600 = vcmp.lt.s32.totalorder %v452, 0
        %vm601 = vcmp.lt.s32.totalorder %v459, 0
        %vm602 = vcmp.lt.s32.totalorder %v466, 0
        %vm603 = vcmp.lt.s32.totalorder %v473, 0
        %vm604 = vcmp.lt.s32.totalorder %v480, 0
        %vm605 = vcmp.lt.s32.totalorder %v487, 0
        %vm606 = vcmp.lt.s32.totalorder %v494, 0
        %vm607 = vcmp.lt.s32.totalorder %v501, 0
        %vm608 = vcmp.lt.s32.totalorder %v508, 0
        %vm609 = vcmp.lt.s32.totalorder %v515, 0
        %vm610 = vcmp.lt.s32.totalorder %v522, 0
        %vm611 = vcmp.lt.s32.totalorder %v529, 0
        %vm612 = vcmp.lt.s32.totalorder %v536, 0
        %vm613 = vcmp.lt.s32.totalorder %v543, 0
        %vm614 = vcmp.lt.s32.totalorder %v550, 0
        %vm615 = vmand %vm583, %vm551
        %vm616 = vmand %vm584, %vm552
        %vm617 = vmand %vm585, %vm553
        %vm618 = vmand %vm586, %vm554
        %vm619 = vmand %vm587, %vm555
        %vm620 = vmand %vm588, %vm556
        %vm621 = vmand %vm589, %vm557
        %vm622 = vmand %vm590, %vm558
        %vm623 = vmand %vm591, %vm559
        %vm624 = vmand %vm592, %vm560
        %vm625 = vmand %vm593, %vm561
        %vm626 = vmand %vm594, %vm562
        %vm627 = vmand %vm595, %vm563
        %vm628 = vmand %vm596, %vm564
        %vm629 = vmand %vm597, %vm565
        %vm630 = vmand %vm598, %vm566
        %vm631 = vmand %vm599, %vm567
        %vm632 = vmand %vm600, %vm568
        %vm633 = vmand %vm601, %vm569
        %vm634 = vmand %vm602, %vm570
        %vm635 = vmand %vm603, %vm571
        %vm636 = vmand %vm604, %vm572
        %vm637 = vmand %vm605, %vm573
        %vm638 = vmand %vm606, %vm574
        %vm639 = vmand %vm607, %vm575
        %vm640 = vmand %vm608, %vm576
        %vm641 = vmand %vm609, %vm577
        %vm642 = vmand %vm610, %vm578
        %vm643 = vmand %vm611, %vm579
        %vm644 = vmand %vm612, %vm580
        %vm645 = vmand %vm613, %vm581
        %vm646 = vmand %vm614, %vm582
        %v647 = vadd.s32 %v333, 16
        %v648 = vadd.s32 %v340, 16
        %v649 = vadd.s32 %v347, 16
        %v650 = vadd.s32 %v354, 16
        %v651 = vadd.s32 %v361, 16
        %v652 = vadd.s32 %v368, 16
        %v653 = vadd.s32 %v375, 16
        %v654 = vadd.s32 %v382, 16
        %v655 = vadd.s32 %v389, 16
        %v656 = vadd.s32 %v396, 16
        %v657 = vadd.s32 %v403, 16
        %v658 = vadd.s32 %v410, 16
        %v659 = vadd.s32 %v417, 16
        %v660 = vadd.s32 %v424, 16
        %v661 = vadd.s32 %v431, 16
        %v662 = vadd.s32 %v438, 16
        %v663 = vadd.s32 %v445, 16
        %v664 = vadd.s32 %v452, 16
        %v665 = vadd.s32 %v459, 16
        %v666 = vadd.s32 %v466, 16
        %v667 = vadd.s32 %v473, 16
        %v668 = vadd.s32 %v480, 16
        %v669 = vadd.s32 %v487, 16
        %v670 = vadd.s32 %v494, 16
        %v671 = vadd.s32 %v501, 16
        %v672 = vadd.s32 %v508, 16
        %v673 = vadd.s32 %v515, 16
        %v674 = vadd.s32 %v522, 16
        %v675 = vadd.s32 %v529, 16
        %v676 = vadd.s32 %v536, 16
        %v677 = vadd.s32 %v543, 16
        %v678 = vadd.s32 %v550, 16
        %v679 = vsel %vm615, %v647, %v333
        %v680 = vsel %vm616, %v648, %v340
        %v681 = vsel %vm617, %v649, %v347
        %v682 = vsel %vm618, %v650, %v354
        %v683 = vsel %vm619, %v651, %v361
        %v684 = vsel %vm620, %v652, %v368
        %v685 = vsel %vm621, %v653, %v375
        %v686 = vsel %vm622, %v654, %v382
        %v687 = vsel %vm623, %v655, %v389
        %v688 = vsel %vm624, %v656, %v396
        %v689 = vsel %vm625, %v657, %v403
        %v690 = vsel %vm626, %v658, %v410
        %v691 = vsel %vm627, %v659, %v417
        %v692 = vsel %vm628, %v660, %v424
        %v693 = vsel %vm629, %v661, %v431
        %v694 = vsel %vm630, %v662, %v438
        %v695 = vsel %vm631, %v663, %v445
        %v696 = vsel %vm632, %v664, %v452
        %v697 = vsel %vm633, %v665, %v459
        %v698 = vsel %vm634, %v666, %v466
        %v699 = vsel %vm635, %v667, %v473
        %v700 = vsel %vm636, %v668, %v480
        %v701 = vsel %vm637, %v669, %v487
        %v702 = vsel %vm638, %v670, %v494
        %v703 = vsel %vm639, %v671, %v501
        %v704 = vsel %vm640, %v672, %v508
        %v705 = vsel %vm641, %v673, %v515
        %v706 = vsel %vm642, %v674, %v522
        %v707 = vsel %vm643, %v675, %v529
        %v708 = vsel %vm644, %v676, %v536
        %v709 = vsel %vm645, %v677, %v543
        %v710 = vsel %vm646, %v678, %v550
        %v711 = vld [vmem:[#allocation2 + $0x7] sm:$0xff]
        %v712 = vld [vmem:[#allocation2 + $0xf] sm:$0xff]
        %v713 = vld [vmem:[#allocation2 + $0x17] sm:$0xff]
        %v714 = vld [vmem:[#allocation2 + $0x1f] sm:$0xff]
        %v715 = vld [vmem:[#allocation2 + $0x27] sm:$0xff]
        %v716 = vld [vmem:[#allocation2 + $0x2f] sm:$0xff]
        %v717 = vld [vmem:[#allocation2 + $0x37] sm:$0xff]
        %v718 = vld [vmem:[#allocation2 + $0x3f] sm:$0xff]
        %v719 = vld [vmem:[#allocation2 + $0x47] sm:$0xff]
        %v720 = vld [vmem:[#allocation2 + $0x4f] sm:$0xff]
        %v721 = vld [vmem:[#allocation2 + $0x57] sm:$0xff]
        %v722 = vld [vmem:[#allocation2 + $0x5f] sm:$0xff]
        %v723 = vld [vmem:[#allocation2 + $0x67] sm:$0xff]
        %v724 = vld [vmem:[#allocation2 + $0x6f] sm:$0xff]
        %v725 = vld [vmem:[#allocation2 + $0x77] sm:$0xff]
        %v726 = vld [vmem:[#allocation2 + $0x7f] sm:$0xff]
        %v727 = vld [vmem:[#allocation2 + $0x87] sm:$0xff]
        %v728 = vld [vmem:[#allocation2 + $0x8f] sm:$0xff]
        %v729 = vld [vmem:[#allocation2 + $0x97] sm:$0xff]
        %v730 = vld [vmem:[#allocation2 + $0x9f] sm:$0xff]
        %v731 = vld [vmem:[#allocation2 + $0xa7] sm:$0xff]
        %v732 = vld [vmem:[#allocation2 + $0xaf] sm:$0xff]
        %v733 = vld [vmem:[#allocation2 + $0xb7] sm:$0xff]
        %v734 = vld [vmem:[#allocation2 + $0xbf] sm:$0xff]
        %v735 = vld [vmem:[#allocation2 + $0xc7] sm:$0xff]
        %v736 = vld [vmem:[#allocation2 + $0xcf] sm:$0xff]
        %v737 = vld [vmem:[#allocation2 + $0xd7] sm:$0xff]
        %v738 = vld [vmem:[#allocation2 + $0xdf] sm:$0xff]
        %v739 = vld [vmem:[#allocation2 + $0xe7] sm:$0xff]
        %v740 = vld [vmem:[#allocation2 + $0xef] sm:$0xff]
        %v741 = vld [vmem:[#allocation2 + $0xf7] sm:$0xff]
        %v742 = vld [vmem:[#allocation2 + $0xff] sm:$0xff]
        %vm743 = vcmp.ge.s32.totalorder %v679, 1
        %vm744 = vcmp.ge.s32.totalorder %v680, 1
        %vm745 = vcmp.ge.s32.totalorder %v681, 1
        %vm746 = vcmp.ge.s32.totalorder %v682, 1
        %vm747 = vcmp.ge.s32.totalorder %v683, 1
        %vm748 = vcmp.ge.s32.totalorder %v684, 1
        %vm749 = vcmp.ge.s32.totalorder %v685, 1
        %vm750 = vcmp.ge.s32.totalorder %v686, 1
        %vm751 = vcmp.ge.s32.totalorder %v687, 1
        %vm752 = vcmp.ge.s32.totalorder %v688, 1
        %vm753 = vcmp.ge.s32.totalorder %v689, 1
        %vm754 = vcmp.ge.s32.totalorder %v690, 1
        %vm755 = vcmp.ge.s32.totalorder %v691, 1
        %vm756 = vcmp.ge.s32.totalorder %v692, 1
        %vm757 = vcmp.ge.s32.totalorder %v693, 1
        %vm758 = vcmp.ge.s32.totalorder %v694, 1
        %vm759 = vcmp.ge.s32.totalorder %v695, 1
        %vm760 = vcmp.ge.s32.totalorder %v696, 1
        %vm761 = vcmp.ge.s32.totalorder %v697, 1
        %vm762 = vcmp.ge.s32.totalorder %v698, 1
        %vm763 = vcmp.ge.s32.totalorder %v699, 1
        %vm764 = vcmp.ge.s32.totalorder %v700, 1
        %vm765 = vcmp.ge.s32.totalorder %v701, 1
        %vm766 = vcmp.ge.s32.totalorder %v702, 1
        %vm767 = vcmp.ge.s32.totalorder %v703, 1
        %vm768 = vcmp.ge.s32.totalorder %v704, 1
        %vm769 = vcmp.ge.s32.totalorder %v705, 1
        %vm770 = vcmp.ge.s32.totalorder %v706, 1
        %vm771 = vcmp.ge.s32.totalorder %v707, 1
        %vm772 = vcmp.ge.s32.totalorder %v708, 1
        %vm773 = vcmp.ge.s32.totalorder %v709, 1
        %vm774 = vcmp.ge.s32.totalorder %v710, 1
        %v775 = vsel %vm743, %v711, 0.0
        %v776 = vsel %vm744, %v712, 0.0
        %v777 = vsel %vm745, %v713, 0.0
        %v778 = vsel %vm746, %v714, 0.0
        %v779 = vsel %vm747, %v715, 0.0
        %v780 = vsel %vm748, %v716, 0.0
        %v781 = vsel %vm749, %v717, 0.0
        %v782 = vsel %vm750, %v718, 0.0
        %v783 = vsel %vm751, %v719, 0.0
        %v784 = vsel %vm752, %v720, 0.0
        %v785 = vsel %vm753, %v721, 0.0
        %v786 = vsel %vm754, %v722, 0.0
        %v787 = vsel %vm755, %v723, 0.0
        %v788 = vsel %vm756, %v724, 0.0
        %v789 = vsel %vm757, %v725, 0.0
        %v790 = vsel %vm758, %v726, 0.0
        %v791 = vsel %vm759, %v727, 0.0
        %v792 = vsel %vm760, %v728, 0.0
        %v793 = vsel %vm761, %v729, 0.0
        %v794 = vsel %vm762, %v730, 0.0
        %v795 = vsel %vm763, %v731, 0.0
        %v796 = vsel %vm764, %v732, 0.0
        %v797 = vsel %vm765, %v733, 0.0
        %v798 = vsel %vm766, %v734, 0.0
        %v799 = vsel %vm767, %v735, 0.0
        %v800 = vsel %vm768, %v736, 0.0
        %v801 = vsel %vm769, %v737, 0.0
        %v802 = vsel %vm770, %v738, 0.0
        %v803 = vsel %vm771, %v739, 0.0
        %v804 = vsel %vm772, %v740, 0.0
        %v805 = vsel %vm773, %v741, 0.0
        %v806 = vsel %vm774, %v742, 0.0
        %807 = vst [vmem:[#allocation3] sm:$0xff] %v775
        %808 = vst [vmem:[#allocation3 + $0x48] sm:$0xff] %v776
        %809 = vst [vmem:[#allocation3 + $0x90] sm:$0xff] %v777
        %810 = vst [vmem:[#allocation3 + $0xd8] sm:$0xff] %v778
        %811 = vst [vmem:[#allocation3 + $0x120] sm:$0xff] %v779
        %812 = vst [vmem:[#allocation3 + $0x168] sm:$0xff] %v780
        %813 = vst [vmem:[#allocation3 + $0x1b0] sm:$0xff] %v781
        %814 = vst [vmem:[#allocation3 + $0x1f8] sm:$0xff] %v782
        %815 = vst [vmem:[#allocation3 + $0x240] sm:$0xff] %v783
        %816 = vst [vmem:[#allocation3 + $0x288] sm:$0xff] %v784
        %817 = vst [vmem:[#allocation3 + $0x2d0] sm:$0xff] %v785
        %818 = vst [vmem:[#allocation3 + $0x318] sm:$0xff] %v786
        %819 = vst [vmem:[#allocation3 + $0x360] sm:$0xff] %v787
        %820 = vst [vmem:[#allocation3 + $0x3a8] sm:$0xff] %v788
        %821 = vst [vmem:[#allocation3 + $0x3f0] sm:$0xff] %v789
        %822 = vst [vmem:[#allocation3 + $0x438] sm:$0xff] %v790
        %823 = vst [vmem:[#allocation3 + $0x480] sm:$0xff] %v791
        %824 = vst [vmem:[#allocation3 + $0x4c8] sm:$0xff] %v792
        %825 = vst [vmem:[#allocation3 + $0x510] sm:$0xff] %v793
        %826 = vst [vmem:[#allocation3 + $0x558] sm:$0xff] %v794
        %827 = vst [vmem:[#allocation3 + $0x5a0] sm:$0xff] %v795
        %828 = vst [vmem:[#allocation3 + $0x5e8] sm:$0xff] %v796
        %829 = vst [vmem:[#allocation3 + $0x630] sm:$0xff] %v797
        %830 = vst [vmem:[#allocation3 + $0x678] sm:$0xff] %v798
        %831 = vst [vmem:[#allocation3 + $0x6c0] sm:$0xff] %v799
        %832 = vst [vmem:[#allocation3 + $0x708] sm:$0xff] %v800
        %833 = vst [vmem:[#allocation3 + $0x750] sm:$0xff] %v801
        %834 = vst [vmem:[#allocation3 + $0x798] sm:$0xff] %v802
        %835 = vst [vmem:[#allocation3 + $0x7e0] sm:$0xff] %v803
        %836 = vst [vmem:[#allocation3 + $0x828] sm:$0xff] %v804
        %837 = vst [vmem:[#allocation3 + $0x870] sm:$0xff] %v805
        %838 = vst [vmem:[#allocation3 + $0x8b8] sm:$0xff] %v806
        %v839 = vld [vmem:[#allocation2 + $0x8] sm:$0xff]
        %v840 = vld [vmem:[#allocation2 + $0x10] sm:$0xff]
        %v841 = vld [vmem:[#allocation2 + $0x18] sm:$0xff]
        %v842 = vld [vmem:[#allocation2 + $0x20] sm:$0xff]
        %v843 = vld [vmem:[#allocation2 + $0x28] sm:$0xff]
        %v844 = vld [vmem:[#allocation2 + $0x30] sm:$0xff]
        %v845 = vld [vmem:[#allocation2 + $0x38] sm:$0xff]
        %v846 = vld [vmem:[#allocation2 + $0x40] sm:$0xff]
        %v847 = vld [vmem:[#allocation2 + $0x48] sm:$0xff]
        %v848 = vld [vmem:[#allocation2 + $0x50] sm:$0xff]
        %v849 = vld [vmem:[#allocation2 + $0x58] sm:$0xff]
        %v850 = vld [vmem:[#allocation2 + $0x60] sm:$0xff]
        %v851 = vld [vmem:[#allocation2 + $0x68] sm:$0xff]
        %v852 = vld [vmem:[#allocation2 + $0x70] sm:$0xff]
        %v853 = vld [vmem:[#allocation2 + $0x78] sm:$0xff]
        %v854 = vld [vmem:[#allocation2 + $0x80] sm:$0xff]
        %v855 = vld [vmem:[#allocation2 + $0x88] sm:$0xff]
        %v856 = vld [vmem:[#allocation2 + $0x90] sm:$0xff]
        %v857 = vld [vmem:[#allocation2 + $0x98] sm:$0xff]
        %v858 = vld [vmem:[#allocation2 + $0xa0] sm:$0xff]
        %v859 = vld [vmem:[#allocation2 + $0xa8] sm:$0xff]
        %v860 = vld [vmem:[#allocation2 + $0xb0] sm:$0xff]
        %v861 = vld [vmem:[#allocation2 + $0xb8] sm:$0xff]
        %v862 = vld [vmem:[#allocation2 + $0xc0] sm:$0xff]
        %v863 = vld [vmem:[#allocation2 + $0xc8] sm:$0xff]
        %v864 = vld [vmem:[#allocation2 + $0xd0] sm:$0xff]
        %v865 = vld [vmem:[#allocation2 + $0xd8] sm:$0xff]
        %v866 = vld [vmem:[#allocation2 + $0xe0] sm:$0xff]
        %v867 = vld [vmem:[#allocation2 + $0xe8] sm:$0xff]
        %v868 = vld [vmem:[#allocation2 + $0xf0] sm:$0xff]
        %v869 = vld [vmem:[#allocation2 + $0xf8] sm:$0xff]
        %v870 = vld [vmem:[#allocation2 + $0x100] sm:$0xff]
        %871 = vst [vmem:[#allocation3 + $0x8] sm:$0xff] %v839
        %872 = vst [vmem:[#allocation3 + $0x50] sm:$0xff] %v840
        %873 = vst [vmem:[#allocation3 + $0x98] sm:$0xff] %v841
        %874 = vst [vmem:[#allocation3 + $0xe0] sm:$0xff] %v842
        %875 = vst [vmem:[#allocation3 + $0x128] sm:$0xff] %v843
        %876 = vst [vmem:[#allocation3 + $0x170] sm:$0xff] %v844
        %877 = vst [vmem:[#allocation3 + $0x1b8] sm:$0xff] %v845
        %878 = vst [vmem:[#allocation3 + $0x200] sm:$0xff] %v846
        %879 = vst [vmem:[#allocation3 + $0x248] sm:$0xff] %v847
        %880 = vst [vmem:[#allocation3 + $0x290] sm:$0xff] %v848
        %881 = vst [vmem:[#allocation3 + $0x2d8] sm:$0xff] %v849
        %882 = vst [vmem:[#allocation3 + $0x320] sm:$0xff] %v850
        %883 = vst [vmem:[#allocation3 + $0x368] sm:$0xff] %v851
        %884 = vst [vmem:[#allocation3 + $0x3b0] sm:$0xff] %v852
        %885 = vst [vmem:[#allocation3 + $0x3f8] sm:$0xff] %v853
        %886 = vst [vmem:[#allocation3 + $0x440] sm:$0xff] %v854
        %887 = vst [vmem:[#allocation3 + $0x488] sm:$0xff] %v855
        %888 = vst [vmem:[#allocation3 + $0x4d0] sm:$0xff] %v856
        %889 = vst [vmem:[#allocation3 + $0x518] sm:$0xff] %v857
        %890 = vst [vmem:[#allocation3 + $0x560] sm:$0xff] %v858
        %891 = vst [vmem:[#allocation3 + $0x5a8] sm:$0xff] %v859
        %892 = vst [vmem:[#allocation3 + $0x5f0] sm:$0xff] %v860
        %893 = vst [vmem:[#allocation3 + $0x638] sm:$0xff] %v861
        %894 = vst [vmem:[#allocation3 + $0x680] sm:$0xff] %v862
        %895 = vst [vmem:[#allocation3 + $0x6c8] sm:$0xff] %v863
        %896 = vst [vmem:[#allocation3 + $0x710] sm:$0xff] %v864
        %897 = vst [vmem:[#allocation3 + $0x758] sm:$0xff] %v865
        %898 = vst [vmem:[#allocation3 + $0x7a0] sm:$0xff] %v866
        %899 = vst [vmem:[#allocation3 + $0x7e8] sm:$0xff] %v867
        %900 = vst [vmem:[#allocation3 + $0x830] sm:$0xff] %v868
        %901 = vst [vmem:[#allocation3 + $0x878] sm:$0xff] %v869
        %902 = vst [vmem:[#allocation3 + $0x8c0] sm:$0xff] %v870
        %v903 = vld [vmem:[#allocation2 + $0x9] sm:$0xff]
        %v904 = vld [vmem:[#allocation2 + $0x11] sm:$0xff]
        %v905 = vld [vmem:[#allocation2 + $0x19] sm:$0xff]
        %v906 = vld [vmem:[#allocation2 + $0x21] sm:$0xff]
        %v907 = vld [vmem:[#allocation2 + $0x29] sm:$0xff]
        %v908 = vld [vmem:[#allocation2 + $0x31] sm:$0xff]
        %v909 = vld [vmem:[#allocation2 + $0x39] sm:$0xff]
        %v910 = vld [vmem:[#allocation2 + $0x41] sm:$0xff]
        %v911 = vld [vmem:[#allocation2 + $0x49] sm:$0xff]
        %v912 = vld [vmem:[#allocation2 + $0x51] sm:$0xff]
        %v913 = vld [vmem:[#allocation2 + $0x59] sm:$0xff]
        %v914 = vld [vmem:[#allocation2 + $0x61] sm:$0xff]
        %v915 = vld [vmem:[#allocation2 + $0x69] sm:$0xff]
        %v916 = vld [vmem:[#allocation2 + $0x71] sm:$0xff]
        %v917 = vld [vmem:[#allocation2 + $0x79] sm:$0xff]
        %v918 = vld [vmem:[#allocation2 + $0x81] sm:$0xff]
        %v919 = vld [vmem:[#allocation2 + $0x89] sm:$0xff]
        %v920 = vld [vmem:[#allocation2 + $0x91] sm:$0xff]
        %v921 = vld [vmem:[#allocation2 + $0x99] sm:$0xff]
        %v922 = vld [vmem:[#allocation2 + $0xa1] sm:$0xff]
        %v923 = vld [vmem:[#allocation2 + $0xa9] sm:$0xff]
        %v924 = vld [vmem:[#allocation2 + $0xb1] sm:$0xff]
        %v925 = vld [vmem:[#allocation2 + $0xb9] sm:$0xff]
        %v926 = vld [vmem:[#allocation2 + $0xc1] sm:$0xff]
        %v927 = vld [vmem:[#allocation2 + $0xc9] sm:$0xff]
        %v928 = vld [vmem:[#allocation2 + $0xd1] sm:$0xff]
        %v929 = vld [vmem:[#allocation2 + $0xd9] sm:$0xff]
        %v930 = vld [vmem:[#allocation2 + $0xe1] sm:$0xff]
        %v931 = vld [vmem:[#allocation2 + $0xe9] sm:$0xff]
        %v932 = vld [vmem:[#allocation2 + $0xf1] sm:$0xff]
        %v933 = vld [vmem:[#allocation2 + $0xf9] sm:$0xff]
        %v934 = vld [vmem:[#allocation2 + $0x101] sm:$0xff]
        %vm935 = vcmp.le.s32.totalorder %v679, 14
        %vm936 = vcmp.le.s32.totalorder %v680, 14
        %vm937 = vcmp.le.s32.totalorder %v681, 14
        %vm938 = vcmp.le.s32.totalorder %v682, 14
        %vm939 = vcmp.le.s32.totalorder %v683, 14
        %vm940 = vcmp.le.s32.totalorder %v684, 14
        %vm941 = vcmp.le.s32.totalorder %v685, 14
        %vm942 = vcmp.le.s32.totalorder %v686, 14
        %vm943 = vcmp.le.s32.totalorder %v687, 14
        %vm944 = vcmp.le.s32.totalorder %v688, 14
        %vm945 = vcmp.le.s32.totalorder %v689, 14
        %vm946 = vcmp.le.s32.totalorder %v690, 14
        %vm947 = vcmp.le.s32.totalorder %v691, 14
        %vm948 = vcmp.le.s32.totalorder %v692, 14
        %vm949 = vcmp.le.s32.totalorder %v693, 14
        %vm950 = vcmp.le.s32.totalorder %v694, 14
        %vm951 = vcmp.le.s32.totalorder %v695, 14
        %vm952 = vcmp.le.s32.totalorder %v696, 14
        %vm953 = vcmp.le.s32.totalorder %v697, 14
        %vm954 = vcmp.le.s32.totalorder %v698, 14
        %vm955 = vcmp.le.s32.totalorder %v699, 14
        %vm956 = vcmp.le.s32.totalorder %v700, 14
        %vm957 = vcmp.le.s32.totalorder %v701, 14
        %vm958 = vcmp.le.s32.totalorder %v702, 14
        %vm959 = vcmp.le.s32.totalorder %v703, 14
        %vm960 = vcmp.le.s32.totalorder %v704, 14
        %vm961 = vcmp.le.s32.totalorder %v705, 14
        %vm962 = vcmp.le.s32.totalorder %v706, 14
        %vm963 = vcmp.le.s32.totalorder %v707, 14
        %vm964 = vcmp.le.s32.totalorder %v708, 14
        %vm965 = vcmp.le.s32.totalorder %v709, 14
        %vm966 = vcmp.le.s32.totalorder %v710, 14
        %v967 = vsel %vm935, %v903, 0.0
        %v968 = vsel %vm936, %v904, 0.0
        %v969 = vsel %vm937, %v905, 0.0
        %v970 = vsel %vm938, %v906, 0.0
        %v971 = vsel %vm939, %v907, 0.0
        %v972 = vsel %vm940, %v908, 0.0
        %v973 = vsel %vm941, %v909, 0.0
        %v974 = vsel %vm942, %v910, 0.0
        %v975 = vsel %vm943, %v911, 0.0
        %v976 = vsel %vm944, %v912, 0.0
        %v977 = vsel %vm945, %v913, 0.0
        %v978 = vsel %vm946, %v914, 0.0
        %v979 = vsel %vm947, %v915, 0.0
        %v980 = vsel %vm948, %v916, 0.0
        %v981 = vsel %vm949, %v917, 0.0
        %v982 = vsel %vm950, %v918, 0.0
        %v983 = vsel %vm951, %v919, 0.0
        %v984 = vsel %vm952, %v920, 0.0
        %v985 = vsel %vm953, %v921, 0.0
        %v986 = vsel %vm954, %v922, 0.0
        %v987 = vsel %vm955, %v923, 0.0
        %v988 = vsel %vm956, %v924, 0.0
        %v989 = vsel %vm957, %v925, 0.0
        %v990 = vsel %vm958, %v926, 0.0
        %v991 = vsel %vm959, %v927, 0.0
        %v992 = vsel %vm960, %v928, 0.0
        %v993 = vsel %vm961, %v929, 0.0
        %v994 = vsel %vm962, %v930, 0.0
        %v995 = vsel %vm963, %v931, 0.0
        %v996 = vsel %vm964, %v932, 0.0
        %v997 = vsel %vm965, %v933, 0.0
        %v998 = vsel %vm966, %v934, 0.0
        %999 = vst [vmem:[#allocation3 + $0x10] sm:$0xff] %v967
        %1000 = vst [vmem:[#allocation3 + $0x58] sm:$0xff] %v968
        %1001 = vst [vmem:[#allocation3 + $0xa0] sm:$0xff] %v969
        %1002 = vst [vmem:[#allocation3 + $0xe8] sm:$0xff] %v970
        %1003 = vst [vmem:[#allocation3 + $0x130] sm:$0xff] %v971
        %1004 = vst [vmem:[#allocation3 + $0x178] sm:$0xff] %v972
        %1005 = vst [vmem:[#allocation3 + $0x1c0] sm:$0xff] %v973
        %1006 = vst [vmem:[#allocation3 + $0x208] sm:$0xff] %v974
        %1007 = vst [vmem:[#allocation3 + $0x250] sm:$0xff] %v975
        %1008 = vst [vmem:[#allocation3 + $0x298] sm:$0xff] %v976
        %1009 = vst [vmem:[#allocation3 + $0x2e0] sm:$0xff] %v977
        %1010 = vst [vmem:[#allocation3 + $0x328] sm:$0xff] %v978
        %1011 = vst [vmem:[#allocation3 + $0x370] sm:$0xff] %v979
        %1012 = vst [vmem:[#allocation3 + $0x3b8] sm:$0xff] %v980
        %1013 = vst [vmem:[#allocation3 + $0x400] sm:$0xff] %v981
        %1014 = vst [vmem:[#allocation3 + $0x448] sm:$0xff] %v982
        %1015 = vst [vmem:[#allocation3 + $0x490] sm:$0xff] %v983
        %1016 = vst [vmem:[#allocation3 + $0x4d8] sm:$0xff] %v984
        %1017 = vst [vmem:[#allocation3 + $0x520] sm:$0xff] %v985
        %1018 = vst [vmem:[#allocation3 + $0x568] sm:$0xff] %v986
        %1019 = vst [vmem:[#allocation3 + $0x5b0] sm:$0xff] %v987
        %1020 = vst [vmem:[#allocation3 + $0x5f8] sm:$0xff] %v988
        %1021 = vst [vmem:[#allocation3 + $0x640] sm:$0xff] %v989
        %1022 = vst [vmem:[#allocation3 + $0x688] sm:$0xff] %v990
        %1023 = vst [vmem:[#allocation3 + $0x6d0] sm:$0xff] %v991
        %1024 = vst [vmem:[#allocation3 + $0x718] sm:$0xff] %v992
        %1025 = vst [vmem:[#allocation3 + $0x760] sm:$0xff] %v993
        %1026 = vst [vmem:[#allocation3 + $0x7a8] sm:$0xff] %v994
        %1027 = vst [vmem:[#allocation3 + $0x7f0] sm:$0xff] %v995
        %1028 = vst [vmem:[#allocation3 + $0x838] sm:$0xff] %v996
        %1029 = vst [vmem:[#allocation3 + $0x880] sm:$0xff] %v997
        %1030 = vst [vmem:[#allocation3 + $0x8c8] sm:$0xff] %v998
        %v1031 = vld [vmem:[#allocation2 + $0x17] sm:$0xff]
        %v1032 = vld [vmem:[#allocation2 + $0x1f] sm:$0xff]
        %v1033 = vld [vmem:[#allocation2 + $0x27] sm:$0xff]
        %v1034 = vld [vmem:[#allocation2 + $0x2f] sm:$0xff]
        %v1035 = vld [vmem:[#allocation2 + $0x37] sm:$0xff]
        %v1036 = vld [vmem:[#allocation2 + $0x3f] sm:$0xff]
        %v1037 = vld [vmem:[#allocation2 + $0x47] sm:$0xff]
        %v1038 = vld [vmem:[#allocation2 + $0x4f] sm:$0xff]
        %v1039 = vld [vmem:[#allocation2 + $0x57] sm:$0xff]
        %v1040 = vld [vmem:[#allocation2 + $0x5f] sm:$0xff]
        %v1041 = vld [vmem:[#allocation2 + $0x67] sm:$0xff]
        %v1042 = vld [vmem:[#allocation2 + $0x6f] sm:$0xff]
        %v1043 = vld [vmem:[#allocation2 + $0x77] sm:$0xff]
        %v1044 = vld [vmem:[#allocation2 + $0x7f] sm:$0xff]
        %v1045 = vld [vmem:[#allocation2 + $0x87] sm:$0xff]
        %v1046 = vld [vmem:[#allocation2 + $0x8f] sm:$0xff]
        %v1047 = vld [vmem:[#allocation2 + $0x97] sm:$0xff]
        %v1048 = vld [vmem:[#allocation2 + $0x9f] sm:$0xff]
        %v1049 = vld [vmem:[#allocation2 + $0xa7] sm:$0xff]
        %v1050 = vld [vmem:[#allocation2 + $0xaf] sm:$0xff]
        %v1051 = vld [vmem:[#allocation2 + $0xb7] sm:$0xff]
        %v1052 = vld [vmem:[#allocation2 + $0xbf] sm:$0xff]
        %v1053 = vld [vmem:[#allocation2 + $0xc7] sm:$0xff]
        %v1054 = vld [vmem:[#allocation2 + $0xcf] sm:$0xff]
        %v1055 = vld [vmem:[#allocation2 + $0xd7] sm:$0xff]
        %v1056 = vld [vmem:[#allocation2 + $0xdf] sm:$0xff]
        %v1057 = vld [vmem:[#allocation2 + $0xe7] sm:$0xff]
        %v1058 = vld [vmem:[#allocation2 + $0xef] sm:$0xff]
        %v1059 = vld [vmem:[#allocation2 + $0xf7] sm:$0xff]
        %v1060 = vld [vmem:[#allocation2 + $0xff] sm:$0xff]
        %v1061 = vld [vmem:[#allocation2 + $0x107] sm:$0xff]
        %v1062 = vld [vmem:[#allocation2 + $0x10f] sm:$0xff]
        %v1063 = vsel %vm743, %v1031, 0.0
        %v1064 = vsel %vm744, %v1032, 0.0
        %v1065 = vsel %vm745, %v1033, 0.0
        %v1066 = vsel %vm746, %v1034, 0.0
        %v1067 = vsel %vm747, %v1035, 0.0
        %v1068 = vsel %vm748, %v1036, 0.0
        %v1069 = vsel %vm749, %v1037, 0.0
        %v1070 = vsel %vm750, %v1038, 0.0
        %v1071 = vsel %vm751, %v1039, 0.0
        %v1072 = vsel %vm752, %v1040, 0.0
        %v1073 = vsel %vm753, %v1041, 0.0
        %v1074 = vsel %vm754, %v1042, 0.0
        %v1075 = vsel %vm755, %v1043, 0.0
        %v1076 = vsel %vm756, %v1044, 0.0
        %v1077 = vsel %vm757, %v1045, 0.0
        %v1078 = vsel %vm758, %v1046, 0.0
        %v1079 = vsel %vm759, %v1047, 0.0
        %v1080 = vsel %vm760, %v1048, 0.0
        %v1081 = vsel %vm761, %v1049, 0.0
        %v1082 = vsel %vm762, %v1050, 0.0
        %v1083 = vsel %vm763, %v1051, 0.0
        %v1084 = vsel %vm764, %v1052, 0.0
        %v1085 = vsel %vm765, %v1053, 0.0
        %v1086 = vsel %vm766, %v1054, 0.0
        %v1087 = vsel %vm767, %v1055, 0.0
        %v1088 = vsel %vm768, %v1056, 0.0
        %v1089 = vsel %vm769, %v1057, 0.0
        %v1090 = vsel %vm770, %v1058, 0.0
        %v1091 = vsel %vm771, %v1059, 0.0
        %v1092 = vsel %vm772, %v1060, 0.0
        %v1093 = vsel %vm773, %v1061, 0.0
        %v1094 = vsel %vm774, %v1062, 0.0
        %1095 = vst [vmem:[#allocation3 + $0x18] sm:$0xff] %v1063
        %1096 = vst [vmem:[#allocation3 + $0x60] sm:$0xff] %v1064
        %1097 = vst [vmem:[#allocation3 + $0xa8] sm:$0xff] %v1065
        %1098 = vst [vmem:[#allocation3 + $0xf0] sm:$0xff] %v1066
        %1099 = vst [vmem:[#allocation3 + $0x138] sm:$0xff] %v1067
        %1100 = vst [vmem:[#allocation3 + $0x180] sm:$0xff] %v1068
        %1101 = vst [vmem:[#allocation3 + $0x1c8] sm:$0xff] %v1069
        %1102 = vst [vmem:[#allocation3 + $0x210] sm:$0xff] %v1070
        %1103 = vst [vmem:[#allocation3 + $0x258] sm:$0xff] %v1071
        %1104 = vst [vmem:[#allocation3 + $0x2a0] sm:$0xff] %v1072
        %1105 = vst [vmem:[#allocation3 + $0x2e8] sm:$0xff] %v1073
        %1106 = vst [vmem:[#allocation3 + $0x330] sm:$0xff] %v1074
        %1107 = vst [vmem:[#allocation3 + $0x378] sm:$0xff] %v1075
        %1108 = vst [vmem:[#allocation3 + $0x3c0] sm:$0xff] %v1076
        %1109 = vst [vmem:[#allocation3 + $0x408] sm:$0xff] %v1077
        %1110 = vst [vmem:[#allocation3 + $0x450] sm:$0xff] %v1078
        %1111 = vst [vmem:[#allocation3 + $0x498] sm:$0xff] %v1079
        %1112 = vst [vmem:[#allocation3 + $0x4e0] sm:$0xff] %v1080
        %1113 = vst [vmem:[#allocation3 + $0x528] sm:$0xff] %v1081
        %1114 = vst [vmem:[#allocation3 + $0x570] sm:$0xff] %v1082
        %1115 = vst [vmem:[#allocation3 + $0x5b8] sm:$0xff] %v1083
        %1116 = vst [vmem:[#allocation3 + $0x600] sm:$0xff] %v1084
        %1117 = vst [vmem:[#allocation3 + $0x648] sm:$0xff] %v1085
        %1118 = vst [vmem:[#allocation3 + $0x690] sm:$0xff] %v1086
        %1119 = vst [vmem:[#allocation3 + $0x6d8] sm:$0xff] %v1087
        %1120 = vst [vmem:[#allocation3 + $0x720] sm:$0xff] %v1088
        %1121 = vst [vmem:[#allocation3 + $0x768] sm:$0xff] %v1089
        %1122 = vst [vmem:[#allocation3 + $0x7b0] sm:$0xff] %v1090
        %1123 = vst [vmem:[#allocation3 + $0x7f8] sm:$0xff] %v1091
        %1124 = vst [vmem:[#allocation3 + $0x840] sm:$0xff] %v1092
        %1125 = vst [vmem:[#allocation3 + $0x888] sm:$0xff] %v1093
        %1126 = vst [vmem:[#allocation3 + $0x8d0] sm:$0xff] %v1094
        %v1127 = vld [vmem:[#allocation2 + $0x18] sm:$0xff]
        %v1128 = vld [vmem:[#allocation2 + $0x20] sm:$0xff]
        %v1129 = vld [vmem:[#allocation2 + $0x28] sm:$0xff]
        %v1130 = vld [vmem:[#allocation2 + $0x30] sm:$0xff]
        %v1131 = vld [vmem:[#allocation2 + $0x38] sm:$0xff]
        %v1132 = vld [vmem:[#allocation2 + $0x40] sm:$0xff]
        %v1133 = vld [vmem:[#allocation2 + $0x48] sm:$0xff]
        %v1134 = vld [vmem:[#allocation2 + $0x50] sm:$0xff]
        %v1135 = vld [vmem:[#allocation2 + $0x58] sm:$0xff]
        %v1136 = vld [vmem:[#allocation2 + $0x60] sm:$0xff]
        %v1137 = vld [vmem:[#allocation2 + $0x68] sm:$0xff]
        %v1138 = vld [vmem:[#allocation2 + $0x70] sm:$0xff]
        %v1139 = vld [vmem:[#allocation2 + $0x78] sm:$0xff]
        %v1140 = vld [vmem:[#allocation2 + $0x80] sm:$0xff]
        %v1141 = vld [vmem:[#allocation2 + $0x88] sm:$0xff]
        %v1142 = vld [vmem:[#allocation2 + $0x90] sm:$0xff]
        %v1143 = vld [vmem:[#allocation2 + $0x98] sm:$0xff]
        %v1144 = vld [vmem:[#allocation2 + $0xa0] sm:$0xff]
        %v1145 = vld [vmem:[#allocation2 + $0xa8] sm:$0xff]
        %v1146 = vld [vmem:[#allocation2 + $0xb0] sm:$0xff]
        %v1147 = vld [vmem:[#allocation2 + $0xb8] sm:$0xff]
        %v1148 = vld [vmem:[#allocation2 + $0xc0] sm:$0xff]
        %v1149 = vld [vmem:[#allocation2 + $0xc8] sm:$0xff]
        %v1150 = vld [vmem:[#allocation2 + $0xd0] sm:$0xff]
        %v1151 = vld [vmem:[#allocation2 + $0xd8] sm:$0xff]
        %v1152 = vld [vmem:[#allocation2 + $0xe0] sm:$0xff]
        %v1153 = vld [vmem:[#allocation2 + $0xe8] sm:$0xff]
        %v1154 = vld [vmem:[#allocation2 + $0xf0] sm:$0xff]
        %v1155 = vld [vmem:[#allocation2 + $0xf8] sm:$0xff]
        %v1156 = vld [vmem:[#allocation2 + $0x100] sm:$0xff]
        %v1157 = vld [vmem:[#allocation2 + $0x108] sm:$0xff]
        %v1158 = vld [vmem:[#allocation2 + $0x110] sm:$0xff]
        %1159 = vst [vmem:[#allocation3 + $0x20] sm:$0xff] %v1127
        %1160 = vst [vmem:[#allocation3 + $0x68] sm:$0xff] %v1128
        %1161 = vst [vmem:[#allocation3 + $0xb0] sm:$0xff] %v1129
        %1162 = vst [vmem:[#allocation3 + $0xf8] sm:$0xff] %v1130
        %1163 = vst [vmem:[#allocation3 + $0x140] sm:$0xff] %v1131
        %1164 = vst [vmem:[#allocation3 + $0x188] sm:$0xff] %v1132
        %1165 = vst [vmem:[#allocation3 + $0x1d0] sm:$0xff] %v1133
        %1166 = vst [vmem:[#allocation3 + $0x218] sm:$0xff] %v1134
        %1167 = vst [vmem:[#allocation3 + $0x260] sm:$0xff] %v1135
        %1168 = vst [vmem:[#allocation3 + $0x2a8] sm:$0xff] %v1136
        %1169 = vst [vmem:[#allocation3 + $0x2f0] sm:$0xff] %v1137
        %1170 = vst [vmem:[#allocation3 + $0x338] sm:$0xff] %v1138
        %1171 = vst [vmem:[#allocation3 + $0x380] sm:$0xff] %v1139
        %1172 = vst [vmem:[#allocation3 + $0x3c8] sm:$0xff] %v1140
        %1173 = vst [vmem:[#allocation3 + $0x410] sm:$0xff] %v1141
        %1174 = vst [vmem:[#allocation3 + $0x458] sm:$0xff] %v1142
        %1175 = vst [vmem:[#allocation3 + $0x4a0] sm:$0xff] %v1143
        %1176 = vst [vmem:[#allocation3 + $0x4e8] sm:$0xff] %v1144
        %1177 = vst [vmem:[#allocation3 + $0x530] sm:$0xff] %v1145
        %1178 = vst [vmem:[#allocation3 + $0x578] sm:$0xff] %v1146
        %1179 = vst [vmem:[#allocation3 + $0x5c0] sm:$0xff] %v1147
        %1180 = vst [vmem:[#allocation3 + $0x608] sm:$0xff] %v1148
        %1181 = vst [vmem:[#allocation3 + $0x650] sm:$0xff] %v1149
        %1182 = vst [vmem:[#allocation3 + $0x698] sm:$0xff] %v1150
        %1183 = vst [vmem:[#allocation3 + $0x6e0] sm:$0xff] %v1151
        %1184 = vst [vmem:[#allocation3 + $0x728] sm:$0xff] %v1152
        %1185 = vst [vmem:[#allocation3 + $0x770] sm:$0xff] %v1153
        %1186 = vst [vmem:[#allocation3 + $0x7b8] sm:$0xff] %v1154
        %1187 = vst [vmem:[#allocation3 + $0x800] sm:$0xff] %v1155
        %1188 = vst [vmem:[#allocation3 + $0x848] sm:$0xff] %v1156
        %1189 = vst [vmem:[#allocation3 + $0x890] sm:$0xff] %v1157
        %1190 = vst [vmem:[#allocation3 + $0x8d8] sm:$0xff] %v1158
        %v1191 = vld [vmem:[#allocation2 + $0x19] sm:$0xff]
        %v1192 = vld [vmem:[#allocation2 + $0x21] sm:$0xff]
        %v1193 = vld [vmem:[#allocation2 + $0x29] sm:$0xff]
        %v1194 = vld [vmem:[#allocation2 + $0x31] sm:$0xff]
        %v1195 = vld [vmem:[#allocation2 + $0x39] sm:$0xff]
        %v1196 = vld [vmem:[#allocation2 + $0x41] sm:$0xff]
        %v1197 = vld [vmem:[#allocation2 + $0x49] sm:$0xff]
        %v1198 = vld [vmem:[#allocation2 + $0x51] sm:$0xff]
        %v1199 = vld [vmem:[#allocation2 + $0x59] sm:$0xff]
        %v1200 = vld [vmem:[#allocation2 + $0x61] sm:$0xff]
        %v1201 = vld [vmem:[#allocation2 + $0x69] sm:$0xff]
        %v1202 = vld [vmem:[#allocation2 + $0x71] sm:$0xff]
        %v1203 = vld [vmem:[#allocation2 + $0x79] sm:$0xff]
        %v1204 = vld [vmem:[#allocation2 + $0x81] sm:$0xff]
        %v1205 = vld [vmem:[#allocation2 + $0x89] sm:$0xff]
        %v1206 = vld [vmem:[#allocation2 + $0x91] sm:$0xff]
        %v1207 = vld [vmem:[#allocation2 + $0x99] sm:$0xff]
        %v1208 = vld [vmem:[#allocation2 + $0xa1] sm:$0xff]
        %v1209 = vld [vmem:[#allocation2 + $0xa9] sm:$0xff]
        %v1210 = vld [vmem:[#allocation2 + $0xb1] sm:$0xff]
        %v1211 = vld [vmem:[#allocation2 + $0xb9] sm:$0xff]
        %v1212 = vld [vmem:[#allocation2 + $0xc1] sm:$0xff]
        %v1213 = vld [vmem:[#allocation2 + $0xc9] sm:$0xff]
        %v1214 = vld [vmem:[#allocation2 + $0xd1] sm:$0xff]
        %v1215 = vld [vmem:[#allocation2 + $0xd9] sm:$0xff]
        %v1216 = vld [vmem:[#allocation2 + $0xe1] sm:$0xff]
        %v1217 = vld [vmem:[#allocation2 + $0xe9] sm:$0xff]
        %v1218 = vld [vmem:[#allocation2 + $0xf1] sm:$0xff]
        %v1219 = vld [vmem:[#allocation2 + $0xf9] sm:$0xff]
        %v1220 = vld [vmem:[#allocation2 + $0x101] sm:$0xff]
        %v1221 = vld [vmem:[#allocation2 + $0x109] sm:$0xff]
        %v1222 = vld [vmem:[#allocation2 + $0x111] sm:$0xff]
        %v1223 = vsel %vm935, %v1191, 0.0
        %v1224 = vsel %vm936, %v1192, 0.0
        %v1225 = vsel %vm937, %v1193, 0.0
        %v1226 = vsel %vm938, %v1194, 0.0
        %v1227 = vsel %vm939, %v1195, 0.0
        %v1228 = vsel %vm940, %v1196, 0.0
        %v1229 = vsel %vm941, %v1197, 0.0
        %v1230 = vsel %vm942, %v1198, 0.0
        %v1231 = vsel %vm943, %v1199, 0.0
        %v1232 = vsel %vm944, %v1200, 0.0
        %v1233 = vsel %vm945, %v1201, 0.0
        %v1234 = vsel %vm946, %v1202, 0.0
        %v1235 = vsel %vm947, %v1203, 0.0
        %v1236 = vsel %vm948, %v1204, 0.0
        %v1237 = vsel %vm949, %v1205, 0.0
        %v1238 = vsel %vm950, %v1206, 0.0
        %v1239 = vsel %vm951, %v1207, 0.0
        %v1240 = vsel %vm952, %v1208, 0.0
        %v1241 = vsel %vm953, %v1209, 0.0
        %v1242 = vsel %vm954, %v1210, 0.0
        %v1243 = vsel %vm955, %v1211, 0.0
        %v1244 = vsel %vm956, %v1212, 0.0
        %v1245 = vsel %vm957, %v1213, 0.0
        %v1246 = vsel %vm958, %v1214, 0.0
        %v1247 = vsel %vm959, %v1215, 0.0
        %v1248 = vsel %vm960, %v1216, 0.0
        %v1249 = vsel %vm961, %v1217, 0.0
        %v1250 = vsel %vm962, %v1218, 0.0
        %v1251 = vsel %vm963, %v1219, 0.0
        %v1252 = vsel %vm964, %v1220, 0.0
        %v1253 = vsel %vm965, %v1221, 0.0
        %v1254 = vsel %vm966, %v1222, 0.0
        %1255 = vst [vmem:[#allocation3 + $0x28] sm:$0xff] %v1223
        %1256 = vst [vmem:[#allocation3 + $0x70] sm:$0xff] %v1224
        %1257 = vst [vmem:[#allocation3 + $0xb8] sm:$0xff] %v1225
        %1258 = vst [vmem:[#allocation3 + $0x100] sm:$0xff] %v1226
        %1259 = vst [vmem:[#allocation3 + $0x148] sm:$0xff] %v1227
        %1260 = vst [vmem:[#allocation3 + $0x190] sm:$0xff] %v1228
        %1261 = vst [vmem:[#allocation3 + $0x1d8] sm:$0xff] %v1229
        %1262 = vst [vmem:[#allocation3 + $0x220] sm:$0xff] %v1230
        %1263 = vst [vmem:[#allocation3 + $0x268] sm:$0xff] %v1231
        %1264 = vst [vmem:[#allocation3 + $0x2b0] sm:$0xff] %v1232
        %1265 = vst [vmem:[#allocation3 + $0x2f8] sm:$0xff] %v1233
        %1266 = vst [vmem:[#allocation3 + $0x340] sm:$0xff] %v1234
        %1267 = vst [vmem:[#allocation3 + $0x388] sm:$0xff] %v1235
        %1268 = vst [vmem:[#allocation3 + $0x3d0] sm:$0xff] %v1236
        %1269 = vst [vmem:[#allocation3 + $0x418] sm:$0xff] %v1237
        %1270 = vst [vmem:[#allocation3 + $0x460] sm:$0xff] %v1238
        %1271 = vst [vmem:[#allocation3 + $0x4a8] sm:$0xff] %v1239
        %1272 = vst [vmem:[#allocation3 + $0x4f0] sm:$0xff] %v1240
        %1273 = vst [vmem:[#allocation3 + $0x538] sm:$0xff] %v1241
        %1274 = vst [vmem:[#allocation3 + $0x580] sm:$0xff] %v1242
        %1275 = vst [vmem:[#allocation3 + $0x5c8] sm:$0xff] %v1243
        %1276 = vst [vmem:[#allocation3 + $0x610] sm:$0xff] %v1244
        %1277 = vst [vmem:[#allocation3 + $0x658] sm:$0xff] %v1245
        %1278 = vst [vmem:[#allocation3 + $0x6a0] sm:$0xff] %v1246
        %1279 = vst [vmem:[#allocation3 + $0x6e8] sm:$0xff] %v1247
        %1280 = vst [vmem:[#allocation3 + $0x730] sm:$0xff] %v1248
        %1281 = vst [vmem:[#allocation3 + $0x778] sm:$0xff] %v1249
        %1282 = vst [vmem:[#allocation3 + $0x7c0] sm:$0xff] %v1250
        %1283 = vst [vmem:[#allocation3 + $0x808] sm:$0xff] %v1251
        %1284 = vst [vmem:[#allocation3 + $0x850] sm:$0xff] %v1252
        %1285 = vst [vmem:[#allocation3 + $0x898] sm:$0xff] %v1253
        %1286 = vst [vmem:[#allocation3 + $0x8e0] sm:$0xff] %v1254
        %v1287 = vld [vmem:[#allocation2 + $0x27] sm:$0xff]
        %v1288 = vld [vmem:[#allocation2 + $0x2f] sm:$0xff]
        %v1289 = vld [vmem:[#allocation2 + $0x37] sm:$0xff]
        %v1290 = vld [vmem:[#allocation2 + $0x3f] sm:$0xff]
        %v1291 = vld [vmem:[#allocation2 + $0x47] sm:$0xff]
        %v1292 = vld [vmem:[#allocation2 + $0x4f] sm:$0xff]
        %v1293 = vld [vmem:[#allocation2 + $0x57] sm:$0xff]
        %v1294 = vld [vmem:[#allocation2 + $0x5f] sm:$0xff]
        %v1295 = vld [vmem:[#allocation2 + $0x67] sm:$0xff]
        %v1296 = vld [vmem:[#allocation2 + $0x6f] sm:$0xff]
        %v1297 = vld [vmem:[#allocation2 + $0x77] sm:$0xff]
        %v1298 = vld [vmem:[#allocation2 + $0x7f] sm:$0xff]
        %v1299 = vld [vmem:[#allocation2 + $0x87] sm:$0xff]
        %v1300 = vld [vmem:[#allocation2 + $0x8f] sm:$0xff]
        %v1301 = vld [vmem:[#allocation2 + $0x97] sm:$0xff]
        %v1302 = vld [vmem:[#allocation2 + $0x9f] sm:$0xff]
        %v1303 = vld [vmem:[#allocation2 + $0xa7] sm:$0xff]
        %v1304 = vld [vmem:[#allocation2 + $0xaf] sm:$0xff]
        %v1305 = vld [vmem:[#allocation2 + $0xb7] sm:$0xff]
        %v1306 = vld [vmem:[#allocation2 + $0xbf] sm:$0xff]
        %v1307 = vld [vmem:[#allocation2 + $0xc7] sm:$0xff]
        %v1308 = vld [vmem:[#allocation2 + $0xcf] sm:$0xff]
        %v1309 = vld [vmem:[#allocation2 + $0xd7] sm:$0xff]
        %v1310 = vld [vmem:[#allocation2 + $0xdf] sm:$0xff]
        %v1311 = vld [vmem:[#allocation2 + $0xe7] sm:$0xff]
        %v1312 = vld [vmem:[#allocation2 + $0xef] sm:$0xff]
        %v1313 = vld [vmem:[#allocation2 + $0xf7] sm:$0xff]
        %v1314 = vld [vmem:[#allocation2 + $0xff] sm:$0xff]
        %v1315 = vld [vmem:[#allocation2 + $0x107] sm:$0xff]
        %v1316 = vld [vmem:[#allocation2 + $0x10f] sm:$0xff]
        %v1317 = vld [vmem:[#allocation2 + $0x117] sm:$0xff]
        %v1318 = vld [vmem:[#allocation2 + $0x11f] sm:$0xff]
        %v1319 = vsel %vm743, %v1287, 0.0
        %v1320 = vsel %vm744, %v1288, 0.0
        %v1321 = vsel %vm745, %v1289, 0.0
        %v1322 = vsel %vm746, %v1290, 0.0
        %v1323 = vsel %vm747, %v1291, 0.0
        %v1324 = vsel %vm748, %v1292, 0.0
        %v1325 = vsel %vm749, %v1293, 0.0
        %v1326 = vsel %vm750, %v1294, 0.0
        %v1327 = vsel %vm751, %v1295, 0.0
        %v1328 = vsel %vm752, %v1296, 0.0
        %v1329 = vsel %vm753, %v1297, 0.0
        %v1330 = vsel %vm754, %v1298, 0.0
        %v1331 = vsel %vm755, %v1299, 0.0
        %v1332 = vsel %vm756, %v1300, 0.0
        %v1333 = vsel %vm757, %v1301, 0.0
        %v1334 = vsel %vm758, %v1302, 0.0
        %v1335 = vsel %vm759, %v1303, 0.0
        %v1336 = vsel %vm760, %v1304, 0.0
        %v1337 = vsel %vm761, %v1305, 0.0
        %v1338 = vsel %vm762, %v1306, 0.0
        %v1339 = vsel %vm763, %v1307, 0.0
        %v1340 = vsel %vm764, %v1308, 0.0
        %v1341 = vsel %vm765, %v1309, 0.0
        %v1342 = vsel %vm766, %v1310, 0.0
        %v1343 = vsel %vm767, %v1311, 0.0
        %v1344 = vsel %vm768, %v1312, 0.0
        %v1345 = vsel %vm769, %v1313, 0.0
        %v1346 = vsel %vm770, %v1314, 0.0
        %v1347 = vsel %vm771, %v1315, 0.0
        %v1348 = vsel %vm772, %v1316, 0.0
        %v1349 = vsel %vm773, %v1317, 0.0
        %v1350 = vsel %vm774, %v1318, 0.0
        %1351 = vst [vmem:[#allocation3 + $0x30] sm:$0xff] %v1319
        %1352 = vst [vmem:[#allocation3 + $0x78] sm:$0xff] %v1320
        %1353 = vst [vmem:[#allocation3 + $0xc0] sm:$0xff] %v1321
        %1354 = vst [vmem:[#allocation3 + $0x108] sm:$0xff] %v1322
        %1355 = vst [vmem:[#allocation3 + $0x150] sm:$0xff] %v1323
        %1356 = vst [vmem:[#allocation3 + $0x198] sm:$0xff] %v1324
        %1357 = vst [vmem:[#allocation3 + $0x1e0] sm:$0xff] %v1325
        %1358 = vst [vmem:[#allocation3 + $0x228] sm:$0xff] %v1326
        %1359 = vst [vmem:[#allocation3 + $0x270] sm:$0xff] %v1327
        %1360 = vst [vmem:[#allocation3 + $0x2b8] sm:$0xff] %v1328
        %1361 = vst [vmem:[#allocation3 + $0x300] sm:$0xff] %v1329
        %1362 = vst [vmem:[#allocation3 + $0x348] sm:$0xff] %v1330
        %1363 = vst [vmem:[#allocation3 + $0x390] sm:$0xff] %v1331
        %1364 = vst [vmem:[#allocation3 + $0x3d8] sm:$0xff] %v1332
        %1365 = vst [vmem:[#allocation3 + $0x420] sm:$0xff] %v1333
        %1366 = vst [vmem:[#allocation3 + $0x468] sm:$0xff] %v1334
        %1367 = vst [vmem:[#allocation3 + $0x4b0] sm:$0xff] %v1335
        %1368 = vst [vmem:[#allocation3 + $0x4f8] sm:$0xff] %v1336
        %1369 = vst [vmem:[#allocation3 + $0x540] sm:$0xff] %v1337
        %1370 = vst [vmem:[#allocation3 + $0x588] sm:$0xff] %v1338
        %1371 = vst [vmem:[#allocation3 + $0x5d0] sm:$0xff] %v1339
        %1372 = vst [vmem:[#allocation3 + $0x618] sm:$0xff] %v1340
        %1373 = vst [vmem:[#allocation3 + $0x660] sm:$0xff] %v1341
        %1374 = vst [vmem:[#allocation3 + $0x6a8] sm:$0xff] %v1342
        %1375 = vst [vmem:[#allocation3 + $0x6f0] sm:$0xff] %v1343
        %1376 = vst [vmem:[#allocation3 + $0x738] sm:$0xff] %v1344
        %1377 = vst [vmem:[#allocation3 + $0x780] sm:$0xff] %v1345
        %1378 = vst [vmem:[#allocation3 + $0x7c8] sm:$0xff] %v1346
        %1379 = vst [vmem:[#allocation3 + $0x810] sm:$0xff] %v1347
        %1380 = vst [vmem:[#allocation3 + $0x858] sm:$0xff] %v1348
        %1381 = vst [vmem:[#allocation3 + $0x8a0] sm:$0xff] %v1349
        %1382 = vst [vmem:[#allocation3 + $0x8e8] sm:$0xff] %v1350
        %v1383 = vld [vmem:[#allocation2 + $0x28] sm:$0xff]
        %v1384 = vld [vmem:[#allocation2 + $0x30] sm:$0xff]
        %v1385 = vld [vmem:[#allocation2 + $0x38] sm:$0xff]
        %v1386 = vld [vmem:[#allocation2 + $0x40] sm:$0xff]
        %v1387 = vld [vmem:[#allocation2 + $0x48] sm:$0xff]
        %v1388 = vld [vmem:[#allocation2 + $0x50] sm:$0xff]
        %v1389 = vld [vmem:[#allocation2 + $0x58] sm:$0xff]
        %v1390 = vld [vmem:[#allocation2 + $0x60] sm:$0xff]
        %v1391 = vld [vmem:[#allocation2 + $0x68] sm:$0xff]
        %v1392 = vld [vmem:[#allocation2 + $0x70] sm:$0xff]
        %v1393 = vld [vmem:[#allocation2 + $0x78] sm:$0xff]
        %v1394 = vld [vmem:[#allocation2 + $0x80] sm:$0xff]
        %v1395 = vld [vmem:[#allocation2 + $0x88] sm:$0xff]
        %v1396 = vld [vmem:[#allocation2 + $0x90] sm:$0xff]
        %v1397 = vld [vmem:[#allocation2 + $0x98] sm:$0xff]
        %v1398 = vld [vmem:[#allocation2 + $0xa0] sm:$0xff]
        %v1399 = vld [vmem:[#allocation2 + $0xa8] sm:$0xff]
        %v1400 = vld [vmem:[#allocation2 + $0xb0] sm:$0xff]
        %v1401 = vld [vmem:[#allocation2 + $0xb8] sm:$0xff]
        %v1402 = vld [vmem:[#allocation2 + $0xc0] sm:$0xff]
        %v1403 = vld [vmem:[#allocation2 + $0xc8] sm:$0xff]
        %v1404 = vld [vmem:[#allocation2 + $0xd0] sm:$0xff]
        %v1405 = vld [vmem:[#allocation2 + $0xd8] sm:$0xff]
        %v1406 = vld [vmem:[#allocation2 + $0xe0] sm:$0xff]
        %v1407 = vld [vmem:[#allocation2 + $0xe8] sm:$0xff]
        %v1408 = vld [vmem:[#allocation2 + $0xf0] sm:$0xff]
        %v1409 = vld [vmem:[#allocation2 + $0xf8] sm:$0xff]
        %v1410 = vld [vmem:[#allocation2 + $0x100] sm:$0xff]
        %v1411 = vld [vmem:[#allocation2 + $0x108] sm:$0xff]
        %v1412 = vld [vmem:[#allocation2 + $0x110] sm:$0xff]
        %v1413 = vld [vmem:[#allocation2 + $0x118] sm:$0xff]
        %v1414 = vld [vmem:[#allocation2 + $0x120] sm:$0xff]
        %1415 = vst [vmem:[#allocation3 + $0x38] sm:$0xff] %v1383
        %1416 = vst [vmem:[#allocation3 + $0x80] sm:$0xff] %v1384
        %1417 = vst [vmem:[#allocation3 + $0xc8] sm:$0xff] %v1385
        %1418 = vst [vmem:[#allocation3 + $0x110] sm:$0xff] %v1386
        %1419 = vst [vmem:[#allocation3 + $0x158] sm:$0xff] %v1387
        %1420 = vst [vmem:[#allocation3 + $0x1a0] sm:$0xff] %v1388
        %1421 = vst [vmem:[#allocation3 + $0x1e8] sm:$0xff] %v1389
        %1422 = vst [vmem:[#allocation3 + $0x230] sm:$0xff] %v1390
        %1423 = vst [vmem:[#allocation3 + $0x278] sm:$0xff] %v1391
        %1424 = vst [vmem:[#allocation3 + $0x2c0] sm:$0xff] %v1392
        %1425 = vst [vmem:[#allocation3 + $0x308] sm:$0xff] %v1393
        %1426 = vst [vmem:[#allocation3 + $0x350] sm:$0xff] %v1394
        %1427 = vst [vmem:[#allocation3 + $0x398] sm:$0xff] %v1395
        %1428 = vst [vmem:[#allocation3 + $0x3e0] sm:$0xff] %v1396
        %1429 = vst [vmem:[#allocation3 + $0x428] sm:$0xff] %v1397
        %1430 = vst [vmem:[#allocation3 + $0x470] sm:$0xff] %v1398
        %1431 = vst [vmem:[#allocation3 + $0x4b8] sm:$0xff] %v1399
        %1432 = vst [vmem:[#allocation3 + $0x500] sm:$0xff] %v1400
        %1433 = vst [vmem:[#allocation3 + $0x548] sm:$0xff] %v1401
        %1434 = vst [vmem:[#allocation3 + $0x590] sm:$0xff] %v1402
        %1435 = vst [vmem:[#allocation3 + $0x5d8] sm:$0xff] %v1403
        %1436 = vst [vmem:[#allocation3 + $0x620] sm:$0xff] %v1404
        %1437 = vst [vmem:[#allocation3 + $0x668] sm:$0xff] %v1405
        %1438 = vst [vmem:[#allocation3 + $0x6b0] sm:$0xff] %v1406
        %1439 = vst [vmem:[#allocation3 + $0x6f8] sm:$0xff] %v1407
        %1440 = vst [vmem:[#allocation3 + $0x740] sm:$0xff] %v1408
        %1441 = vst [vmem:[#allocation3 + $0x788] sm:$0xff] %v1409
        %1442 = vst [vmem:[#allocation3 + $0x7d0] sm:$0xff] %v1410
        %1443 = vst [vmem:[#allocation3 + $0x818] sm:$0xff] %v1411
        %1444 = vst [vmem:[#allocation3 + $0x860] sm:$0xff] %v1412
        %1445 = vst [vmem:[#allocation3 + $0x8a8] sm:$0xff] %v1413
        %1446 = vst [vmem:[#allocation3 + $0x8f0] sm:$0xff] %v1414
        %v1447 = vld [vmem:[#allocation2 + $0x29] sm:$0xff]
        %v1448 = vld [vmem:[#allocation2 + $0x31] sm:$0xff]
        %v1449 = vld [vmem:[#allocation2 + $0x39] sm:$0xff]
        %v1450 = vld [vmem:[#allocation2 + $0x41] sm:$0xff]
        %v1451 = vld [vmem:[#allocation2 + $0x49] sm:$0xff]
        %v1452 = vld [vmem:[#allocation2 + $0x51] sm:$0xff]
        %v1453 = vld [vmem:[#allocation2 + $0x59] sm:$0xff]
        %v1454 = vld [vmem:[#allocation2 + $0x61] sm:$0xff]
        %v1455 = vld [vmem:[#allocation2 + $0x69] sm:$0xff]
        %v1456 = vld [vmem:[#allocation2 + $0x71] sm:$0xff]
        %v1457 = vld [vmem:[#allocation2 + $0x79] sm:$0xff]
        %v1458 = vld [vmem:[#allocation2 + $0x81] sm:$0xff]
        %v1459 = vld [vmem:[#allocation2 + $0x89] sm:$0xff]
        %v1460 = vld [vmem:[#allocation2 + $0x91] sm:$0xff]
        %v1461 = vld [vmem:[#allocation2 + $0x99] sm:$0xff]
        %v1462 = vld [vmem:[#allocation2 + $0xa1] sm:$0xff]
        %v1463 = vld [vmem:[#allocation2 + $0xa9] sm:$0xff]
        %v1464 = vld [vmem:[#allocation2 + $0xb1] sm:$0xff]
        %v1465 = vld [vmem:[#allocation2 + $0xb9] sm:$0xff]
        %v1466 = vld [vmem:[#allocation2 + $0xc1] sm:$0xff]
        %v1467 = vld [vmem:[#allocation2 + $0xc9] sm:$0xff]
        %v1468 = vld [vmem:[#allocation2 + $0xd1] sm:$0xff]
        %v1469 = vld [vmem:[#allocation2 + $0xd9] sm:$0xff]
        %v1470 = vld [vmem:[#allocation2 + $0xe1] sm:$0xff]
        %v1471 = vld [vmem:[#allocation2 + $0xe9] sm:$0xff]
        %v1472 = vld [vmem:[#allocation2 + $0xf1] sm:$0xff]
        %v1473 = vld [vmem:[#allocation2 + $0xf9] sm:$0xff]
        %v1474 = vld [vmem:[#allocation2 + $0x101] sm:$0xff]
        %v1475 = vld [vmem:[#allocation2 + $0x109] sm:$0xff]
        %v1476 = vld [vmem:[#allocation2 + $0x111] sm:$0xff]
        %v1477 = vld [vmem:[#allocation2 + $0x119] sm:$0xff]
        %v1478 = vld [vmem:[#allocation2 + $0x121] sm:$0xff]
        %v1479 = vsel %vm935, %v1447, 0.0
        %v1480 = vsel %vm936, %v1448, 0.0
        %v1481 = vsel %vm937, %v1449, 0.0
        %v1482 = vsel %vm938, %v1450, 0.0
        %v1483 = vsel %vm939, %v1451, 0.0
        %v1484 = vsel %vm940, %v1452, 0.0
        %v1485 = vsel %vm941, %v1453, 0.0
        %v1486 = vsel %vm942, %v1454, 0.0
        %v1487 = vsel %vm943, %v1455, 0.0
        %v1488 = vsel %vm944, %v1456, 0.0
        %v1489 = vsel %vm945, %v1457, 0.0
        %v1490 = vsel %vm946, %v1458, 0.0
        %v1491 = vsel %vm947, %v1459, 0.0
        %v1492 = vsel %vm948, %v1460, 0.0
        %v1493 = vsel %vm949, %v1461, 0.0
        %v1494 = vsel %vm950, %v1462, 0.0
        %v1495 = vsel %vm951, %v1463, 0.0
        %v1496 = vsel %vm952, %v1464, 0.0
        %v1497 = vsel %vm953, %v1465, 0.0
        %v1498 = vsel %vm954, %v1466, 0.0
        %v1499 = vsel %vm955, %v1467, 0.0
        %v1500 = vsel %vm956, %v1468, 0.0
        %v1501 = vsel %vm957, %v1469, 0.0
        %v1502 = vsel %vm958, %v1470, 0.0
        %v1503 = vsel %vm959, %v1471, 0.0
        %v1504 = vsel %vm960, %v1472, 0.0
        %v1505 = vsel %vm961, %v1473, 0.0
        %v1506 = vsel %vm962, %v1474, 0.0
        %v1507 = vsel %vm963, %v1475, 0.0
        %v1508 = vsel %vm964, %v1476, 0.0
        %v1509 = vsel %vm965, %v1477, 0.0
        %v1510 = vsel %vm966, %v1478, 0.0
        %1511 = vst [vmem:[#allocation3 + $0x40] sm:$0xff] %v1479
        %1512 = vst [vmem:[#allocation3 + $0x88] sm:$0xff] %v1480
        %1513 = vst [vmem:[#allocation3 + $0xd0] sm:$0xff] %v1481
        %1514 = vst [vmem:[#allocation3 + $0x118] sm:$0xff] %v1482
        %1515 = vst [vmem:[#allocation3 + $0x160] sm:$0xff] %v1483
        %1516 = vst [vmem:[#allocation3 + $0x1a8] sm:$0xff] %v1484
        %1517 = vst [vmem:[#allocation3 + $0x1f0] sm:$0xff] %v1485
        %1518 = vst [vmem:[#allocation3 + $0x238] sm:$0xff] %v1486
        %1519 = vst [vmem:[#allocation3 + $0x280] sm:$0xff] %v1487
        %1520 = vst [vmem:[#allocation3 + $0x2c8] sm:$0xff] %v1488
        %1521 = vst [vmem:[#allocation3 + $0x310] sm:$0xff] %v1489
        %1522 = vst [vmem:[#allocation3 + $0x358] sm:$0xff] %v1490
        %1523 = vst [vmem:[#allocation3 + $0x3a0] sm:$0xff] %v1491
        %1524 = vst [vmem:[#allocation3 + $0x3e8] sm:$0xff] %v1492
        %1525 = vst [vmem:[#allocation3 + $0x430] sm:$0xff] %v1493
        %1526 = vst [vmem:[#allocation3 + $0x478] sm:$0xff] %v1494
        %1527 = vst [vmem:[#allocation3 + $0x4c0] sm:$0xff] %v1495
        %1528 = vst [vmem:[#allocation3 + $0x508] sm:$0xff] %v1496
        %1529 = vst [vmem:[#allocation3 + $0x550] sm:$0xff] %v1497
        %1530 = vst [vmem:[#allocation3 + $0x598] sm:$0xff] %v1498
        %1531 = vst [vmem:[#allocation3 + $0x5e0] sm:$0xff] %v1499
        %1532 = vst [vmem:[#allocation3 + $0x628] sm:$0xff] %v1500
        %1533 = vst [vmem:[#allocation3 + $0x670] sm:$0xff] %v1501
        %1534 = vst [vmem:[#allocation3 + $0x6b8] sm:$0xff] %v1502
        %1535 = vst [vmem:[#allocation3 + $0x700] sm:$0xff] %v1503
        %1536 = vst [vmem:[#allocation3 + $0x748] sm:$0xff] %v1504
        %1537 = vst [vmem:[#allocation3 + $0x790] sm:$0xff] %v1505
        %1538 = vst [vmem:[#allocation3 + $0x7d8] sm:$0xff] %v1506
        %1539 = vst [vmem:[#allocation3 + $0x820] sm:$0xff] %v1507
        %1540 = vst [vmem:[#allocation3 + $0x868] sm:$0xff] %v1508
        %1541 = vst [vmem:[#allocation3 + $0x8b0] sm:$0xff] %v1509
        %1542 = vst [vmem:[#allocation3 + $0x8f8] sm:$0xff] %v1510
        %v1543 = vld [vmem:[#allocation3] sm:$0xff]
        %v1544 = vld [vmem:[#allocation3 + $0x8] sm:$0xff]
        %v1545 = vld [vmem:[#allocation3 + $0x10] sm:$0xff]
        %v1546 = vld [vmem:[#allocation3 + $0x18] sm:$0xff]
        %v1547 = vld [vmem:[#allocation3 + $0x20] sm:$0xff]
        %v1548 = vld [vmem:[#allocation3 + $0x28] sm:$0xff]
        %v1549 = vld [vmem:[#allocation3 + $0x30] sm:$0xff]
        %v1550 = vld [vmem:[#allocation3 + $0x38] sm:$0xff]
        %v1551 = vld [vmem:[#allocation3 + $0x40] sm:$0xff]
        %v1552 = vld [vmem:[#allocation3 + $0x48] sm:$0xff]
        %v1553 = vld [vmem:[#allocation3 + $0x50] sm:$0xff]
        %v1554 = vld [vmem:[#allocation3 + $0x58] sm:$0xff]
        %v1555 = vld [vmem:[#allocation3 + $0x60] sm:$0xff]
        %v1556 = vld [vmem:[#allocation3 + $0x68] sm:$0xff]
        %v1557 = vld [vmem:[#allocation3 + $0x70] sm:$0xff]
        %v1558 = vld [vmem:[#allocation3 + $0x78] sm:$0xff]
        %v1559 = vld [vmem:[#allocation3 + $0x80] sm:$0xff]
        %v1560 = vld [vmem:[#allocation3 + $0x88] sm:$0xff]
        %v1561 = vld [vmem:[#allocation3 + $0x90] sm:$0xff]
        %v1562 = vld [vmem:[#allocation3 + $0x98] sm:$0xff]
        %v1563 = vld [vmem:[#allocation3 + $0xa0] sm:$0xff]
        %v1564 = vld [vmem:[#allocation3 + $0xa8] sm:$0xff]
        %v1565 = vld [vmem:[#allocation3 + $0xb0] sm:$0xff]
        %v1566 = vld [vmem:[#allocation3 + $0xb8] sm:$0xff]
        %v1567 = vld [vmem:[#allocation3 + $0xc0] sm:$0xff]
        %v1568 = vld [vmem:[#allocation3 + $0xc8] sm:$0xff]
        %v1569 = vld [vmem:[#allocation3 + $0xd0] sm:$0xff]
        %v1570 = vld [vmem:[#allocation3 + $0xd8] sm:$0xff]
        %v1571 = vld [vmem:[#allocation3 + $0xe0] sm:$0xff]
        %v1572 = vld [vmem:[#allocation3 + $0xe8] sm:$0xff]
        %v1573 = vld [vmem:[#allocation3 + $0xf0] sm:$0xff]
        %v1574 = vld [vmem:[#allocation3 + $0xf8] sm:$0xff]
        %v1575 = vld [vmem:[#allocation3 + $0x100] sm:$0xff]
        %v1576 = vld [vmem:[#allocation3 + $0x108] sm:$0xff]
        %v1577 = vld [vmem:[#allocation3 + $0x110] sm:$0xff]
        %v1578 = vld [vmem:[#allocation3 + $0x118] sm:$0xff]
        %v1579 = vld [vmem:[#allocation3 + $0x120] sm:$0xff]
        %v1580 = vld [vmem:[#allocation3 + $0x128] sm:$0xff]
        %v1581 = vld [vmem:[#allocation3 + $0x130] sm:$0xff]
        %v1582 = vld [vmem:[#allocation3 + $0x138] sm:$0xff]
        %v1583 = vld [vmem:[#allocation3 + $0x140] sm:$0xff]
        %v1584 = vld [vmem:[#allocation3 + $0x148] sm:$0xff]
        %v1585 = vld [vmem:[#allocation3 + $0x150] sm:$0xff]
        %v1586 = vld [vmem:[#allocation3 + $0x158] sm:$0xff]
        %v1587 = vld [vmem:[#allocation3 + $0x160] sm:$0xff]
        %v1588 = vld [vmem:[#allocation3 + $0x168] sm:$0xff]
        %v1589 = vld [vmem:[#allocation3 + $0x170] sm:$0xff]
        %v1590 = vld [vmem:[#allocation3 + $0x178] sm:$0xff]
        %v1591 = vld [vmem:[#allocation3 + $0x180] sm:$0xff]
        %v1592 = vld [vmem:[#allocation3 + $0x188] sm:$0xff]
        %v1593 = vld [vmem:[#allocation3 + $0x190] sm:$0xff]
        %v1594 = vld [vmem:[#allocation3 + $0x198] sm:$0xff]
        %v1595 = vld [vmem:[#allocation3 + $0x1a0] sm:$0xff]
        %v1596 = vld [vmem:[#allocation3 + $0x1a8] sm:$0xff]
        %v1597 = vld [vmem:[#allocation3 + $0x1b0] sm:$0xff]
        %v1598 = vld [vmem:[#allocation3 + $0x1b8] sm:$0xff]
        %v1599 = vld [vmem:[#allocation3 + $0x1c0] sm:$0xff]
        %v1600 = vld [vmem:[#allocation3 + $0x1c8] sm:$0xff]
        %v1601 = vld [vmem:[#allocation3 + $0x1d0] sm:$0xff]
        %v1602 = vld [vmem:[#allocation3 + $0x1d8] sm:$0xff]
        %v1603 = vld [vmem:[#allocation3 + $0x1e0] sm:$0xff]
        %v1604 = vld [vmem:[#allocation3 + $0x1e8] sm:$0xff]
        %v1605 = vld [vmem:[#allocation3 + $0x1f0] sm:$0xff]
        %v1606 = vld [vmem:[#allocation3 + $0x1f8] sm:$0xff]
        %v1607 = vld [vmem:[#allocation3 + $0x200] sm:$0xff]
        %v1608 = vld [vmem:[#allocation3 + $0x208] sm:$0xff]
        %v1609 = vld [vmem:[#allocation3 + $0x210] sm:$0xff]
        %v1610 = vld [vmem:[#allocation3 + $0x218] sm:$0xff]
        %v1611 = vld [vmem:[#allocation3 + $0x220] sm:$0xff]
        %v1612 = vld [vmem:[#allocation3 + $0x228] sm:$0xff]
        %v1613 = vld [vmem:[#allocation3 + $0x230] sm:$0xff]
        %v1614 = vld [vmem:[#allocation3 + $0x238] sm:$0xff]
        %v1615 = vld [vmem:[#allocation3 + $0x240] sm:$0xff]
        %v1616 = vld [vmem:[#allocation3 + $0x248] sm:$0xff]
        %v1617 = vld [vmem:[#allocation3 + $0x250] sm:$0xff]
        %v1618 = vld [vmem:[#allocation3 + $0x258] sm:$0xff]
        %v1619 = vld [vmem:[#allocation3 + $0x260] sm:$0xff]
        %v1620 = vld [vmem:[#allocation3 + $0x268] sm:$0xff]
        %v1621 = vld [vmem:[#allocation3 + $0x270] sm:$0xff]
        %v1622 = vld [vmem:[#allocation3 + $0x278] sm:$0xff]
        %v1623 = vld [vmem:[#allocation3 + $0x280] sm:$0xff]
        %v1624 = vld [vmem:[#allocation3 + $0x288] sm:$0xff]
        %v1625 = vld [vmem:[#allocation3 + $0x290] sm:$0xff]
        %v1626 = vld [vmem:[#allocation3 + $0x298] sm:$0xff]
        %v1627 = vld [vmem:[#allocation3 + $0x2a0] sm:$0xff]
        %v1628 = vld [vmem:[#allocation3 + $0x2a8] sm:$0xff]
        %v1629 = vld [vmem:[#allocation3 + $0x2b0] sm:$0xff]
        %v1630 = vld [vmem:[#allocation3 + $0x2b8] sm:$0xff]
        %v1631 = vld [vmem:[#allocation3 + $0x2c0] sm:$0xff]
        %v1632 = vld [vmem:[#allocation3 + $0x2c8] sm:$0xff]
        %v1633 = vld [vmem:[#allocation3 + $0x2d0] sm:$0xff]
        %v1634 = vld [vmem:[#allocation3 + $0x2d8] sm:$0xff]
        %v1635 = vld [vmem:[#allocation3 + $0x2e0] sm:$0xff]
        %v1636 = vld [vmem:[#allocation3 + $0x2e8] sm:$0xff]
        %v1637 = vld [vmem:[#allocation3 + $0x2f0] sm:$0xff]
        %v1638 = vld [vmem:[#allocation3 + $0x2f8] sm:$0xff]
        %v1639 = vld [vmem:[#allocation3 + $0x300] sm:$0xff]
        %v1640 = vld [vmem:[#allocation3 + $0x308] sm:$0xff]
        %v1641 = vld [vmem:[#allocation3 + $0x310] sm:$0xff]
        %v1642 = vld [vmem:[#allocation3 + $0x318] sm:$0xff]
        %v1643 = vld [vmem:[#allocation3 + $0x320] sm:$0xff]
        %v1644 = vld [vmem:[#allocation3 + $0x328] sm:$0xff]
        %v1645 = vld [vmem:[#allocation3 + $0x330] sm:$0xff]
        %v1646 = vld [vmem:[#allocation3 + $0x338] sm:$0xff]
        %v1647 = vld [vmem:[#allocation3 + $0x340] sm:$0xff]
        %v1648 = vld [vmem:[#allocation3 + $0x348] sm:$0xff]
        %v1649 = vld [vmem:[#allocation3 + $0x350] sm:$0xff]
        %v1650 = vld [vmem:[#allocation3 + $0x358] sm:$0xff]
        %v1651 = vld [vmem:[#allocation3 + $0x360] sm:$0xff]
        %v1652 = vld [vmem:[#allocation3 + $0x368] sm:$0xff]
        %v1653 = vld [vmem:[#allocation3 + $0x370] sm:$0xff]
        %v1654 = vld [vmem:[#allocation3 + $0x378] sm:$0xff]
        %v1655 = vld [vmem:[#allocation3 + $0x380] sm:$0xff]
        %v1656 = vld [vmem:[#allocation3 + $0x388] sm:$0xff]
        %v1657 = vld [vmem:[#allocation3 + $0x390] sm:$0xff]
        %v1658 = vld [vmem:[#allocation3 + $0x398] sm:$0xff]
        %v1659 = vld [vmem:[#allocation3 + $0x3a0] sm:$0xff]
        %v1660 = vld [vmem:[#allocation3 + $0x3a8] sm:$0xff]
        %v1661 = vld [vmem:[#allocation3 + $0x3b0] sm:$0xff]
        %v1662 = vld [vmem:[#allocation3 + $0x3b8] sm:$0xff]
        %v1663 = vld [vmem:[#allocation3 + $0x3c0] sm:$0xff]
        %v1664 = vld [vmem:[#allocation3 + $0x3c8] sm:$0xff]
        %v1665 = vld [vmem:[#allocation3 + $0x3d0] sm:$0xff]
        %v1666 = vld [vmem:[#allocation3 + $0x3d8] sm:$0xff]
        %v1667 = vld [vmem:[#allocation3 + $0x3e0] sm:$0xff]
        %v1668 = vld [vmem:[#allocation3 + $0x3e8] sm:$0xff]
        %v1669 = vld [vmem:[#allocation3 + $0x3f0] sm:$0xff]
        %v1670 = vld [vmem:[#allocation3 + $0x3f8] sm:$0xff]
        %v1671 = vld [vmem:[#allocation3 + $0x400] sm:$0xff]
        %v1672 = vld [vmem:[#allocation3 + $0x408] sm:$0xff]
        %v1673 = vld [vmem:[#allocation3 + $0x410] sm:$0xff]
        %v1674 = vld [vmem:[#allocation3 + $0x418] sm:$0xff]
        %v1675 = vld [vmem:[#allocation3 + $0x420] sm:$0xff]
        %v1676 = vld [vmem:[#allocation3 + $0x428] sm:$0xff]
        %v1677 = vld [vmem:[#allocation3 + $0x430] sm:$0xff]
        %v1678 = vld [vmem:[#allocation3 + $0x438] sm:$0xff]
        %v1679 = vld [vmem:[#allocation3 + $0x440] sm:$0xff]
        %v1680 = vld [vmem:[#allocation3 + $0x448] sm:$0xff]
        %v1681 = vld [vmem:[#allocation3 + $0x450] sm:$0xff]
        %v1682 = vld [vmem:[#allocation3 + $0x458] sm:$0xff]
        %v1683 = vld [vmem:[#allocation3 + $0x460] sm:$0xff]
        %v1684 = vld [vmem:[#allocation3 + $0x468] sm:$0xff]
        %v1685 = vld [vmem:[#allocation3 + $0x470] sm:$0xff]
        %v1686 = vld [vmem:[#allocation3 + $0x478] sm:$0xff]
        %v1687 = vld [vmem:[#allocation3 + $0x480] sm:$0xff]
        %v1688 = vld [vmem:[#allocation3 + $0x488] sm:$0xff]
        %v1689 = vld [vmem:[#allocation3 + $0x490] sm:$0xff]
        %v1690 = vld [vmem:[#allocation3 + $0x498] sm:$0xff]
        %v1691 = vld [vmem:[#allocation3 + $0x4a0] sm:$0xff]
        %v1692 = vld [vmem:[#allocation3 + $0x4a8] sm:$0xff]
        %v1693 = vld [vmem:[#allocation3 + $0x4b0] sm:$0xff]
        %v1694 = vld [vmem:[#allocation3 + $0x4b8] sm:$0xff]
        %v1695 = vld [vmem:[#allocation3 + $0x4c0] sm:$0xff]
        %v1696 = vld [vmem:[#allocation3 + $0x4c8] sm:$0xff]
        %v1697 = vld [vmem:[#allocation3 + $0x4d0] sm:$0xff]
        %v1698 = vld [vmem:[#allocation3 + $0x4d8] sm:$0xff]
        %v1699 = vld [vmem:[#allocation3 + $0x4e0] sm:$0xff]
        %v1700 = vld [vmem:[#allocation3 + $0x4e8] sm:$0xff]
        %v1701 = vld [vmem:[#allocation3 + $0x4f0] sm:$0xff]
        %v1702 = vld [vmem:[#allocation3 + $0x4f8] sm:$0xff]
        %v1703 = vld [vmem:[#allocation3 + $0x500] sm:$0xff]
        %v1704 = vld [vmem:[#allocation3 + $0x508] sm:$0xff]
        %v1705 = vld [vmem:[#allocation3 + $0x510] sm:$0xff]
        %v1706 = vld [vmem:[#allocation3 + $0x518] sm:$0xff]
        %v1707 = vld [vmem:[#allocation3 + $0x520] sm:$0xff]
        %v1708 = vld [vmem:[#allocation3 + $0x528] sm:$0xff]
        %v1709 = vld [vmem:[#allocation3 + $0x530] sm:$0xff]
        %v1710 = vld [vmem:[#allocation3 + $0x538] sm:$0xff]
        %v1711 = vld [vmem:[#allocation3 + $0x540] sm:$0xff]
        %v1712 = vld [vmem:[#allocation3 + $0x548] sm:$0xff]
        %v1713 = vld [vmem:[#allocation3 + $0x550] sm:$0xff]
        %v1714 = vld [vmem:[#allocation3 + $0x558] sm:$0xff]
        %v1715 = vld [vmem:[#allocation3 + $0x560] sm:$0xff]
        %v1716 = vld [vmem:[#allocation3 + $0x568] sm:$0xff]
        %v1717 = vld [vmem:[#allocation3 + $0x570] sm:$0xff]
        %v1718 = vld [vmem:[#allocation3 + $0x578] sm:$0xff]
        %v1719 = vld [vmem:[#allocation3 + $0x580] sm:$0xff]
        %v1720 = vld [vmem:[#allocation3 + $0x588] sm:$0xff]
        %v1721 = vld [vmem:[#allocation3 + $0x590] sm:$0xff]
        %v1722 = vld [vmem:[#allocation3 + $0x598] sm:$0xff]
        %v1723 = vld [vmem:[#allocation3 + $0x5a0] sm:$0xff]
        %v1724 = vld [vmem:[#allocation3 + $0x5a8] sm:$0xff]
        %v1725 = vld [vmem:[#allocation3 + $0x5b0] sm:$0xff]
        %v1726 = vld [vmem:[#allocation3 + $0x5b8] sm:$0xff]
        %v1727 = vld [vmem:[#allocation3 + $0x5c0] sm:$0xff]
        %v1728 = vld [vmem:[#allocation3 + $0x5c8] sm:$0xff]
        %v1729 = vld [vmem:[#allocation3 + $0x5d0] sm:$0xff]
        %v1730 = vld [vmem:[#allocation3 + $0x5d8] sm:$0xff]
        %v1731 = vld [vmem:[#allocation3 + $0x5e0] sm:$0xff]
        %v1732 = vld [vmem:[#allocation3 + $0x5e8] sm:$0xff]
        %v1733 = vld [vmem:[#allocation3 + $0x5f0] sm:$0xff]
        %v1734 = vld [vmem:[#allocation3 + $0x5f8] sm:$0xff]
        %v1735 = vld [vmem:[#allocation3 + $0x600] sm:$0xff]
        %v1736 = vld [vmem:[#allocation3 + $0x608] sm:$0xff]
        %v1737 = vld [vmem:[#allocation3 + $0x610] sm:$0xff]
        %v1738 = vld [vmem:[#allocation3 + $0x618] sm:$0xff]
        %v1739 = vld [vmem:[#allocation3 + $0x620] sm:$0xff]
        %v1740 = vld [vmem:[#allocation3 + $0x628] sm:$0xff]
        %v1741 = vld [vmem:[#allocation3 + $0x630] sm:$0xff]
        %v1742 = vld [vmem:[#allocation3 + $0x638] sm:$0xff]
        %v1743 = vld [vmem:[#allocation3 + $0x640] sm:$0xff]
        %v1744 = vld [vmem:[#allocation3 + $0x648] sm:$0xff]
        %v1745 = vld [vmem:[#allocation3 + $0x650] sm:$0xff]
        %v1746 = vld [vmem:[#allocation3 + $0x658] sm:$0xff]
        %v1747 = vld [vmem:[#allocation3 + $0x660] sm:$0xff]
        %v1748 = vld [vmem:[#allocation3 + $0x668] sm:$0xff]
        %v1749 = vld [vmem:[#allocation3 + $0x670] sm:$0xff]
        %v1750 = vld [vmem:[#allocation3 + $0x678] sm:$0xff]
        %v1751 = vld [vmem:[#allocation3 + $0x680] sm:$0xff]
        %v1752 = vld [vmem:[#allocation3 + $0x688] sm:$0xff]
        %v1753 = vld [vmem:[#allocation3 + $0x690] sm:$0xff]
        %v1754 = vld [vmem:[#allocation3 + $0x698] sm:$0xff]
        %v1755 = vld [vmem:[#allocation3 + $0x6a0] sm:$0xff]
        %v1756 = vld [vmem:[#allocation3 + $0x6a8] sm:$0xff]
        %v1757 = vld [vmem:[#allocation3 + $0x6b0] sm:$0xff]
        %v1758 = vld [vmem:[#allocation3 + $0x6b8] sm:$0xff]
        %v1759 = vld [vmem:[#allocation3 + $0x6c0] sm:$0xff]
        %v1760 = vld [vmem:[#allocation3 + $0x6c8] sm:$0xff]
        %v1761 = vld [vmem:[#allocation3 + $0x6d0] sm:$0xff]
        %v1762 = vld [vmem:[#allocation3 + $0x6d8] sm:$0xff]
        %v1763 = vld [vmem:[#allocation3 + $0x6e0] sm:$0xff]
        %v1764 = vld [vmem:[#allocation3 + $0x6e8] sm:$0xff]
        %v1765 = vld [vmem:[#allocation3 + $0x6f0] sm:$0xff]
        %v1766 = vld [vmem:[#allocation3 + $0x6f8] sm:$0xff]
        %v1767 = vld [vmem:[#allocation3 + $0x700] sm:$0xff]
        %v1768 = vld [vmem:[#allocation3 + $0x708] sm:$0xff]
        %v1769 = vld [vmem:[#allocation3 + $0x710] sm:$0xff]
        %v1770 = vld [vmem:[#allocation3 + $0x718] sm:$0xff]
        %v1771 = vld [vmem:[#allocation3 + $0x720] sm:$0xff]
        %v1772 = vld [vmem:[#allocation3 + $0x728] sm:$0xff]
        %v1773 = vld [vmem:[#allocation3 + $0x730] sm:$0xff]
        %v1774 = vld [vmem:[#allocation3 + $0x738] sm:$0xff]
        %v1775 = vld [vmem:[#allocation3 + $0x740] sm:$0xff]
        %v1776 = vld [vmem:[#allocation3 + $0x748] sm:$0xff]
        %v1777 = vld [vmem:[#allocation3 + $0x750] sm:$0xff]
        %v1778 = vld [vmem:[#allocation3 + $0x758] sm:$0xff]
        %v1779 = vld [vmem:[#allocation3 + $0x760] sm:$0xff]
        %v1780 = vld [vmem:[#allocation3 + $0x768] sm:$0xff]
        %v1781 = vld [vmem:[#allocation3 + $0x770] sm:$0xff]
        %v1782 = vld [vmem:[#allocation3 + $0x778] sm:$0xff]
        %v1783 = vld [vmem:[#allocation3 + $0x780] sm:$0xff]
        %v1784 = vld [vmem:[#allocation3 + $0x788] sm:$0xff]
        %v1785 = vld [vmem:[#allocation3 + $0x790] sm:$0xff]
        %v1786 = vld [vmem:[#allocation3 + $0x798] sm:$0xff]
        %v1787 = vld [vmem:[#allocation3 + $0x7a0] sm:$0xff]
        %v1788 = vld [vmem:[#allocation3 + $0x7a8] sm:$0xff]
        %v1789 = vld [vmem:[#allocation3 + $0x7b0] sm:$0xff]
        %v1790 = vld [vmem:[#allocation3 + $0x7b8] sm:$0xff]
        %v1791 = vld [vmem:[#allocation3 + $0x7c0] sm:$0xff]
        %v1792 = vld [vmem:[#allocation3 + $0x7c8] sm:$0xff]
        %v1793 = vld [vmem:[#allocation3 + $0x7d0] sm:$0xff]
        %v1794 = vld [vmem:[#allocation3 + $0x7d8] sm:$0xff]
        %v1795 = vld [vmem:[#allocation3 + $0x7e0] sm:$0xff]
        %v1796 = vld [vmem:[#allocation3 + $0x7e8] sm:$0xff]
        %v1797 = vld [vmem:[#allocation3 + $0x7f0] sm:$0xff]
        %v1798 = vld [vmem:[#allocation3 + $0x7f8] sm:$0xff]
        %v1799 = vld [vmem:[#allocation3 + $0x800] sm:$0xff]
        %v1800 = vld [vmem:[#allocation3 + $0x808] sm:$0xff]
        %v1801 = vld [vmem:[#allocation3 + $0x810] sm:$0xff]
        %v1802 = vld [vmem:[#allocation3 + $0x818] sm:$0xff]
        %v1803 = vld [vmem:[#allocation3 + $0x820] sm:$0xff]
        %v1804 = vld [vmem:[#allocation3 + $0x828] sm:$0xff]
        %v1805 = vld [vmem:[#allocation3 + $0x830] sm:$0xff]
        %v1806 = vld [vmem:[#allocation3 + $0x838] sm:$0xff]
        %v1807 = vld [vmem:[#allocation3 + $0x840] sm:$0xff]
        %v1808 = vld [vmem:[#allocation3 + $0x848] sm:$0xff]
        %v1809 = vld [vmem:[#allocation3 + $0x850] sm:$0xff]
        %v1810 = vld [vmem:[#allocation3 + $0x858] sm:$0xff]
        %v1811 = vld [vmem:[#allocation3 + $0x860] sm:$0xff]
        %v1812 = vld [vmem:[#allocation3 + $0x868] sm:$0xff]
        %v1813 = vld [vmem:[#allocation3 + $0x870] sm:$0xff]
        %v1814 = vld [vmem:[#allocation3 + $0x878] sm:$0xff]
        %v1815 = vld [vmem:[#allocation3 + $0x880] sm:$0xff]
        %v1816 = vld [vmem:[#allocation3 + $0x888] sm:$0xff]
        %v1817 = vld [vmem:[#allocation3 + $0x890] sm:$0xff]
        %v1818 = vld [vmem:[#allocation3 + $0x898] sm:$0xff]
        %v1819 = vld [vmem:[#allocation3 + $0x8a0] sm:$0xff]
        %v1820 = vld [vmem:[#allocation3 + $0x8a8] sm:$0xff]
        %v1821 = vld [vmem:[#allocation3 + $0x8b0] sm:$0xff]
        %v1822 = vld [vmem:[#allocation3 + $0x8b8] sm:$0xff]
        %v1823 = vld [vmem:[#allocation3 + $0x8c0] sm:$0xff]
        %v1824 = vld [vmem:[#allocation3 + $0x8c8] sm:$0xff]
        %v1825 = vld [vmem:[#allocation3 + $0x8d0] sm:$0xff]
        %v1826 = vld [vmem:[#allocation3 + $0x8d8] sm:$0xff]
        %v1827 = vld [vmem:[#allocation3 + $0x8e0] sm:$0xff]
        %v1828 = vld [vmem:[#allocation3 + $0x8e8] sm:$0xff]
        %v1829 = vld [vmem:[#allocation3 + $0x8f0] sm:$0xff]
        %v1830 = vld [vmem:[#allocation3 + $0x8f8] sm:$0xff]
        %v1831 = vld [vmem:[#allocation7] sm:$0xff]
        %v1832 = vld [vmem:[#allocation7 + $0x8] sm:$0xff]
        %v1833 = vld [vmem:[#allocation7 + $0x10] sm:$0xff]
        %v1834 = vld [vmem:[#allocation7 + $0x18] sm:$0xff]
        %v1835 = vld [vmem:[#allocation7 + $0x20] sm:$0xff]
        %v1836 = vld [vmem:[#allocation7 + $0x28] sm:$0xff]
        %v1837 = vld [vmem:[#allocation7 + $0x30] sm:$0xff]
        %v1838 = vld [vmem:[#allocation7 + $0x38] sm:$0xff]
        %v1839 = vld [vmem:[#allocation7 + $0x40] sm:$0xff]
        %v1840 = vld [vmem:[#allocation7 + $0x48] sm:$0xff]
        %v1841 = vld [vmem:[#allocation7 + $0x50] sm:$0xff]
        %v1842 = vld [vmem:[#allocation7 + $0x58] sm:$0xff]
        %v1843 = vld [vmem:[#allocation7 + $0x60] sm:$0xff]
        %v1844 = vld [vmem:[#allocation7 + $0x68] sm:$0xff]
        %v1845 = vld [vmem:[#allocation7 + $0x70] sm:$0xff]
        %v1846 = vld [vmem:[#allocation7 + $0x78] sm:$0xff]
        %v1847 = vld [vmem:[#allocation7 + $0x80] sm:$0xff]
        %v1848 = vld [vmem:[#allocation7 + $0x88] sm:$0xff]
        %v1849 = vld [vmem:[#allocation7 + $0x90] sm:$0xff]
        %v1850 = vld [vmem:[#allocation7 + $0x98] sm:$0xff]
        %v1851 = vld [vmem:[#allocation7 + $0xa0] sm:$0xff]
        %v1852 = vld [vmem:[#allocation7 + $0xa8] sm:$0xff]
        %v1853 = vld [vmem:[#allocation7 + $0xb0] sm:$0xff]
        %v1854 = vld [vmem:[#allocation7 + $0xb8] sm:$0xff]
        %v1855 = vld [vmem:[#allocation7 + $0xc0] sm:$0xff]
        %v1856 = vld [vmem:[#allocation7 + $0xc8] sm:$0xff]
        %v1857 = vld [vmem:[#allocation7 + $0xd0] sm:$0xff]
        %v1858 = vld [vmem:[#allocation7 + $0xd8] sm:$0xff]
        %v1859 = vld [vmem:[#allocation7 + $0xe0] sm:$0xff]
        %v1860 = vld [vmem:[#allocation7 + $0xe8] sm:$0xff]
        %v1861 = vld [vmem:[#allocation7 + $0xf0] sm:$0xff]
        %v1862 = vld [vmem:[#allocation7 + $0xf8] sm:$0xff]
        %v1863 = vld [vmem:[#allocation7 + $0x100] sm:$0xff]
        %v1864 = vld [vmem:[#allocation7 + $0x108] sm:$0xff]
        %v1865 = vld [vmem:[#allocation7 + $0x110] sm:$0xff]
        %v1866 = vld [vmem:[#allocation7 + $0x118] sm:$0xff]
        %v1867 = vld [vmem:[#allocation7 + $0x120] sm:$0xff]
        %v1868 = vld [vmem:[#allocation7 + $0x128] sm:$0xff]
        %v1869 = vld [vmem:[#allocation7 + $0x130] sm:$0xff]
        %v1870 = vld [vmem:[#allocation7 + $0x138] sm:$0xff]
        %v1871 = vld [vmem:[#allocation7 + $0x140] sm:$0xff]
        %v1872 = vld [vmem:[#allocation7 + $0x148] sm:$0xff]
        %v1873 = vld [vmem:[#allocation7 + $0x150] sm:$0xff]
        %v1874 = vld [vmem:[#allocation7 + $0x158] sm:$0xff]
        %v1875 = vld [vmem:[#allocation7 + $0x160] sm:$0xff]
        %v1876 = vld [vmem:[#allocation7 + $0x168] sm:$0xff]
        %v1877 = vld [vmem:[#allocation7 + $0x170] sm:$0xff]
        %v1878 = vld [vmem:[#allocation7 + $0x178] sm:$0xff]
        %v1879 = vld [vmem:[#allocation7 + $0x180] sm:$0xff]
        %v1880 = vld [vmem:[#allocation7 + $0x188] sm:$0xff]
        %v1881 = vld [vmem:[#allocation7 + $0x190] sm:$0xff]
        %v1882 = vld [vmem:[#allocation7 + $0x198] sm:$0xff]
        %v1883 = vld [vmem:[#allocation7 + $0x1a0] sm:$0xff]
        %v1884 = vld [vmem:[#allocation7 + $0x1a8] sm:$0xff]
        %v1885 = vld [vmem:[#allocation7 + $0x1b0] sm:$0xff]
        %v1886 = vld [vmem:[#allocation7 + $0x1b8] sm:$0xff]
        %v1887 = vld [vmem:[#allocation7 + $0x1c0] sm:$0xff]
        %v1888 = vld [vmem:[#allocation7 + $0x1c8] sm:$0xff]
        %v1889 = vld [vmem:[#allocation7 + $0x1d0] sm:$0xff]
        %v1890 = vld [vmem:[#allocation7 + $0x1d8] sm:$0xff]
        %v1891 = vld [vmem:[#allocation7 + $0x1e0] sm:$0xff]
        %v1892 = vld [vmem:[#allocation7 + $0x1e8] sm:$0xff]
        %v1893 = vld [vmem:[#allocation7 + $0x1f0] sm:$0xff]
        %v1894 = vld [vmem:[#allocation7 + $0x1f8] sm:$0xff]
        %v1895 = vld [vmem:[#allocation7 + $0x200] sm:$0xff]
        %v1896 = vld [vmem:[#allocation7 + $0x208] sm:$0xff]
        %v1897 = vld [vmem:[#allocation7 + $0x210] sm:$0xff]
        %v1898 = vld [vmem:[#allocation7 + $0x218] sm:$0xff]
        %v1899 = vld [vmem:[#allocation7 + $0x220] sm:$0xff]
        %v1900 = vld [vmem:[#allocation7 + $0x228] sm:$0xff]
        %v1901 = vld [vmem:[#allocation7 + $0x230] sm:$0xff]
        %v1902 = vld [vmem:[#allocation7 + $0x238] sm:$0xff]
        %v1903 = vld [vmem:[#allocation7 + $0x240] sm:$0xff]
        %v1904 = vld [vmem:[#allocation7 + $0x248] sm:$0xff]
        %v1905 = vld [vmem:[#allocation7 + $0x250] sm:$0xff]
        %v1906 = vld [vmem:[#allocation7 + $0x258] sm:$0xff]
        %v1907 = vld [vmem:[#allocation7 + $0x260] sm:$0xff]
        %v1908 = vld [vmem:[#allocation7 + $0x268] sm:$0xff]
        %v1909 = vld [vmem:[#allocation7 + $0x270] sm:$0xff]
        %v1910 = vld [vmem:[#allocation7 + $0x278] sm:$0xff]
        %v1911 = vld [vmem:[#allocation7 + $0x280] sm:$0xff]
        %v1912 = vld [vmem:[#allocation7 + $0x288] sm:$0xff]
        %v1913 = vld [vmem:[#allocation7 + $0x290] sm:$0xff]
        %v1914 = vld [vmem:[#allocation7 + $0x298] sm:$0xff]
        %v1915 = vld [vmem:[#allocation7 + $0x2a0] sm:$0xff]
        %v1916 = vld [vmem:[#allocation7 + $0x2a8] sm:$0xff]
        %v1917 = vld [vmem:[#allocation7 + $0x2b0] sm:$0xff]
        %v1918 = vld [vmem:[#allocation7 + $0x2b8] sm:$0xff]
        %v1919 = vld [vmem:[#allocation7 + $0x2c0] sm:$0xff]
        %v1920 = vld [vmem:[#allocation7 + $0x2c8] sm:$0xff]
        %v1921 = vld [vmem:[#allocation7 + $0x2d0] sm:$0xff]
        %v1922 = vld [vmem:[#allocation7 + $0x2d8] sm:$0xff]
        %v1923 = vld [vmem:[#allocation7 + $0x2e0] sm:$0xff]
        %v1924 = vld [vmem:[#allocation7 + $0x2e8] sm:$0xff]
        %v1925 = vld [vmem:[#allocation7 + $0x2f0] sm:$0xff]
        %v1926 = vld [vmem:[#allocation7 + $0x2f8] sm:$0xff]
        %v1927 = vld [vmem:[#allocation7 + $0x300] sm:$0xff]
        %v1928 = vld [vmem:[#allocation7 + $0x308] sm:$0xff]
        %v1929 = vld [vmem:[#allocation7 + $0x310] sm:$0xff]
        %v1930 = vld [vmem:[#allocation7 + $0x318] sm:$0xff]
        %v1931 = vld [vmem:[#allocation7 + $0x320] sm:$0xff]
        %v1932 = vld [vmem:[#allocation7 + $0x328] sm:$0xff]
        %v1933 = vld [vmem:[#allocation7 + $0x330] sm:$0xff]
        %v1934 = vld [vmem:[#allocation7 + $0x338] sm:$0xff]
        %v1935 = vld [vmem:[#allocation7 + $0x340] sm:$0xff]
        %v1936 = vld [vmem:[#allocation7 + $0x348] sm:$0xff]
        %v1937 = vld [vmem:[#allocation7 + $0x350] sm:$0xff]
        %v1938 = vld [vmem:[#allocation7 + $0x358] sm:$0xff]
        %v1939 = vld [vmem:[#allocation7 + $0x360] sm:$0xff]
        %v1940 = vld [vmem:[#allocation7 + $0x368] sm:$0xff]
        %v1941 = vld [vmem:[#allocation7 + $0x370] sm:$0xff]
        %v1942 = vld [vmem:[#allocation7 + $0x378] sm:$0xff]
        %v1943 = vld [vmem:[#allocation7 + $0x380] sm:$0xff]
        %v1944 = vld [vmem:[#allocation7 + $0x388] sm:$0xff]
        %v1945 = vld [vmem:[#allocation7 + $0x390] sm:$0xff]
        %v1946 = vld [vmem:[#allocation7 + $0x398] sm:$0xff]
        %v1947 = vld [vmem:[#allocation7 + $0x3a0] sm:$0xff]
        %v1948 = vld [vmem:[#allocation7 + $0x3a8] sm:$0xff]
        %v1949 = vld [vmem:[#allocation7 + $0x3b0] sm:$0xff]
        %v1950 = vld [vmem:[#allocation7 + $0x3b8] sm:$0xff]
        %v1951 = vld [vmem:[#allocation7 + $0x3c0] sm:$0xff]
        %v1952 = vld [vmem:[#allocation7 + $0x3c8] sm:$0xff]
        %v1953 = vld [vmem:[#allocation7 + $0x3d0] sm:$0xff]
        %v1954 = vld [vmem:[#allocation7 + $0x3d8] sm:$0xff]
        %v1955 = vld [vmem:[#allocation7 + $0x3e0] sm:$0xff]
        %v1956 = vld [vmem:[#allocation7 + $0x3e8] sm:$0xff]
        %v1957 = vld [vmem:[#allocation7 + $0x3f0] sm:$0xff]
        %v1958 = vld [vmem:[#allocation7 + $0x3f8] sm:$0xff]
        %v1959 = vld [vmem:[#allocation7 + $0x400] sm:$0xff]
        %v1960 = vld [vmem:[#allocation7 + $0x408] sm:$0xff]
        %v1961 = vld [vmem:[#allocation7 + $0x410] sm:$0xff]
        %v1962 = vld [vmem:[#allocation7 + $0x418] sm:$0xff]
        %v1963 = vld [vmem:[#allocation7 + $0x420] sm:$0xff]
        %v1964 = vld [vmem:[#allocation7 + $0x428] sm:$0xff]
        %v1965 = vld [vmem:[#allocation7 + $0x430] sm:$0xff]
        %v1966 = vld [vmem:[#allocation7 + $0x438] sm:$0xff]
        %v1967 = vld [vmem:[#allocation7 + $0x440] sm:$0xff]
        %v1968 = vld [vmem:[#allocation7 + $0x448] sm:$0xff]
        %v1969 = vld [vmem:[#allocation7 + $0x450] sm:$0xff]
        %v1970 = vld [vmem:[#allocation7 + $0x458] sm:$0xff]
        %v1971 = vld [vmem:[#allocation7 + $0x460] sm:$0xff]
        %v1972 = vld [vmem:[#allocation7 + $0x468] sm:$0xff]
        %v1973 = vld [vmem:[#allocation7 + $0x470] sm:$0xff]
        %v1974 = vld [vmem:[#allocation7 + $0x478] sm:$0xff]
        %1975 = vmatpush.msra.mxu0 %v1846
        %1976 = vmatpush.msra.mxu0 %v1845
        %1977 = vmatpush.msra.mxu0 %v1844
        %1978 = vmatpush.msra.mxu0 %v1843
        %1979 = vmatpush.msra.mxu0 %v1842
        %1980 = vmatpush.msra.mxu0 %v1841
        %1981 = vmatpush.msra.mxu0 %v1840
        %1982 = vmatpush.msra.mxu0 %v1839
        %1983 = vmatpush.msra.mxu0 %v1838
        %1984 = vmatpush.msra.mxu0 %v1837
        %1985 = vmatpush.msra.mxu0 %v1836
        %1986 = vmatpush.msra.mxu0 %v1835
        %1987 = vmatpush.msra.mxu0 %v1834
        %1988 = vmatpush.msra.mxu0 %v1833
        %1989 = vmatpush.msra.mxu0 %v1832
        %1990 = vmatpush.msra.mxu0 %v1831
        %1991 = vmatmul.f32.gmra.mxu0 %v1543
        %v1992 = vpop.f32.mrf.mxu0
        %v1993 = vadd.f32 0.0, %v1992
        %1994 = vmatmul.f32.gmra.mxu0 %v1552
        %v1995 = vpop.f32.mrf.mxu0
        %v1996 = vadd.f32 0.0, %v1995
        %1997 = vmatmul.f32.gmra.mxu0 %v1561
        %v1998 = vpop.f32.mrf.mxu0
        %v1999 = vadd.f32 0.0, %v1998
        %2000 = vmatmul.f32.gmra.mxu0 %v1570
        %v2001 = vpop.f32.mrf.mxu0
        %v2002 = vadd.f32 0.0, %v2001
        %2003 = vmatmul.f32.gmra.mxu0 %v1579
        %v2004 = vpop.f32.mrf.mxu0
        %v2005 = vadd.f32 0.0, %v2004
        %2006 = vmatmul.f32.gmra.mxu0 %v1588
        %v2007 = vpop.f32.mrf.mxu0
        %v2008 = vadd.f32 0.0, %v2007
        %2009 = vmatmul.f32.gmra.mxu0 %v1597
        %v2010 = vpop.f32.mrf.mxu0
        %v2011 = vadd.f32 0.0, %v2010
        %2012 = vmatmul.f32.gmra.mxu0 %v1606
        %v2013 = vpop.f32.mrf.mxu0
        %v2014 = vadd.f32 0.0, %v2013
        %2015 = vmatmul.f32.gmra.mxu0 %v1615
        %v2016 = vpop.f32.mrf.mxu0
        %v2017 = vadd.f32 0.0, %v2016
        %2018 = vmatmul.f32.gmra.mxu0 %v1624
        %v2019 = vpop.f32.mrf.mxu0
        %v2020 = vadd.f32 0.0, %v2019
        %2021 = vmatmul.f32.gmra.mxu0 %v1633
        %v2022 = vpop.f32.mrf.mxu0
        %v2023 = vadd.f32 0.0, %v2022
        %2024 = vmatmul.f32.gmra.mxu0 %v1642
        %v2025 = vpop.f32.mrf.mxu0
        %v2026 = vadd.f32 0.0, %v2025
        %2027 = vmatmul.f32.gmra.mxu0 %v1651
        %v2028 = vpop.f32.mrf.mxu0
        %v2029 = vadd.f32 0.0, %v2028
        %2030 = vmatmul.f32.gmra.mxu0 %v1660
        %v2031 = vpop.f32.mrf.mxu0
        %v2032 = vadd.f32 0.0, %v2031
        %2033 = vmatmul.f32.gmra.mxu0 %v1669
        %v2034 = vpop.f32.mrf.mxu0
        %v2035 = vadd.f32 0.0, %v2034
        %2036 = vmatmul.f32.gmra.mxu0 %v1678
        %v2037 = vpop.f32.mrf.mxu0
        %v2038 = vadd.f32 0.0, %v2037
        %2039 = vmatmul.f32.gmra.mxu0 %v1687
        %v2040 = vpop.f32.mrf.mxu0
        %v2041 = vadd.f32 0.0, %v2040
        %2042 = vmatmul.f32.gmra.mxu0 %v1696
        %v2043 = vpop.f32.mrf.mxu0
        %v2044 = vadd.f32 0.0, %v2043
        %2045 = vmatmul.f32.gmra.mxu0 %v1705
        %v2046 = vpop.f32.mrf.mxu0
        %v2047 = vadd.f32 0.0, %v2046
        %2048 = vmatmul.f32.gmra.mxu0 %v1714
        %v2049 = vpop.f32.mrf.mxu0
        %v2050 = vadd.f32 0.0, %v2049
        %2051 = vmatmul.f32.gmra.mxu0 %v1723
        %v2052 = vpop.f32.mrf.mxu0
        %v2053 = vadd.f32 0.0, %v2052
        %2054 = vmatmul.f32.gmra.mxu0 %v1732
        %v2055 = vpop.f32.mrf.mxu0
        %v2056 = vadd.f32 0.0, %v2055
        %2057 = vmatmul.f32.gmra.mxu0 %v1741
        %v2058 = vpop.f32.mrf.mxu0
        %v2059 = vadd.f32 0.0, %v2058
        %2060 = vmatmul.f32.gmra.mxu0 %v1750
        %v2061 = vpop.f32.mrf.mxu0
        %v2062 = vadd.f32 0.0, %v2061
        %2063 = vmatmul.f32.gmra.mxu0 %v1759
        %v2064 = vpop.f32.mrf.mxu0
        %v2065 = vadd.f32 0.0, %v2064
        %2066 = vmatmul.f32.gmra.mxu0 %v1768
        %v2067 = vpop.f32.mrf.mxu0
        %v2068 = vadd.f32 0.0, %v2067
        %2069 = vmatmul.f32.gmra.mxu0 %v1777
        %v2070 = vpop.f32.mrf.mxu0
        %v2071 = vadd.f32 0.0, %v2070
        %2072 = vmatmul.f32.gmra.mxu0 %v1786
        %v2073 = vpop.f32.mrf.mxu0
        %v2074 = vadd.f32 0.0, %v2073
        %2075 = vmatmul.f32.gmra.mxu0 %v1795
        %v2076 = vpop.f32.mrf.mxu0
        %v2077 = vadd.f32 0.0, %v2076
        %2078 = vmatmul.f32.gmra.mxu0 %v1804
        %v2079 = vpop.f32.mrf.mxu0
        %v2080 = vadd.f32 0.0, %v2079
        %2081 = vmatmul.f32.gmra.mxu0 %v1813
        %v2082 = vpop.f32.mrf.mxu0
        %v2083 = vadd.f32 0.0, %v2082
        %2084 = vmatmul.f32.gmra.mxu0 %v1822
        %v2085 = vpop.f32.mrf.mxu0
        %v2086 = vadd.f32 0.0, %v2085
        %2087 = vdwg.mxu0
        %2088 = vmatpush.msra.mxu0 %v1862
        %2089 = vmatpush.msra.mxu0 %v1861
        %2090 = vmatpush.msra.mxu0 %v1860
        %2091 = vmatpush.msra.mxu0 %v1859
        %2092 = vmatpush.msra.mxu0 %v1858
        %2093 = vmatpush.msra.mxu0 %v1857
        %2094 = vmatpush.msra.mxu0 %v1856
        %2095 = vmatpush.msra.mxu0 %v1855
        %2096 = vmatpush.msra.mxu0 %v1854
        %2097 = vmatpush.msra.mxu0 %v1853
        %2098 = vmatpush.msra.mxu0 %v1852
        %2099 = vmatpush.msra.mxu0 %v1851
        %2100 = vmatpush.msra.mxu0 %v1850
        %2101 = vmatpush.msra.mxu0 %v1849
        %2102 = vmatpush.msra.mxu0 %v1848
        %2103 = vmatpush.msra.mxu0 %v1847
        %2104 = vmatmul.f32.gmra.mxu0 %v1544
        %v2105 = vpop.f32.mrf.mxu0
        %v2106 = vadd.f32 %v1993, %v2105
        %2107 = vmatmul.f32.gmra.mxu0 %v1553
        %v2108 = vpop.f32.mrf.mxu0
        %v2109 = vadd.f32 %v1996, %v2108
        %2110 = vmatmul.f32.gmra.mxu0 %v1562
        %v2111 = vpop.f32.mrf.mxu0
        %v2112 = vadd.f32 %v1999, %v2111
        %2113 = vmatmul.f32.gmra.mxu0 %v1571
        %v2114 = vpop.f32.mrf.mxu0
        %v2115 = vadd.f32 %v2002, %v2114
        %2116 = vmatmul.f32.gmra.mxu0 %v1580
        %v2117 = vpop.f32.mrf.mxu0
        %v2118 = vadd.f32 %v2005, %v2117
        %2119 = vmatmul.f32.gmra.mxu0 %v1589
        %v2120 = vpop.f32.mrf.mxu0
        %v2121 = vadd.f32 %v2008, %v2120
        %2122 = vmatmul.f32.gmra.mxu0 %v1598
        %v2123 = vpop.f32.mrf.mxu0
        %v2124 = vadd.f32 %v2011, %v2123
        %2125 = vmatmul.f32.gmra.mxu0 %v1607
        %v2126 = vpop.f32.mrf.mxu0
        %v2127 = vadd.f32 %v2014, %v2126
        %2128 = vmatmul.f32.gmra.mxu0 %v1616
        %v2129 = vpop.f32.mrf.mxu0
        %v2130 = vadd.f32 %v2017, %v2129
        %2131 = vmatmul.f32.gmra.mxu0 %v1625
        %v2132 = vpop.f32.mrf.mxu0
        %v2133 = vadd.f32 %v2020, %v2132
        %2134 = vmatmul.f32.gmra.mxu0 %v1634
        %v2135 = vpop.f32.mrf.mxu0
        %v2136 = vadd.f32 %v2023, %v2135
        %2137 = vmatmul.f32.gmra.mxu0 %v1643
        %v2138 = vpop.f32.mrf.mxu0
        %v2139 = vadd.f32 %v2026, %v2138
        %2140 = vmatmul.f32.gmra.mxu0 %v1652
        %v2141 = vpop.f32.mrf.mxu0
        %v2142 = vadd.f32 %v2029, %v2141
        %2143 = vmatmul.f32.gmra.mxu0 %v1661
        %v2144 = vpop.f32.mrf.mxu0
        %v2145 = vadd.f32 %v2032, %v2144
        %2146 = vmatmul.f32.gmra.mxu0 %v1670
        %v2147 = vpop.f32.mrf.mxu0
        %v2148 = vadd.f32 %v2035, %v2147
        %2149 = vmatmul.f32.gmra.mxu0 %v1679
        %v2150 = vpop.f32.mrf.mxu0
        %v2151 = vadd.f32 %v2038, %v2150
        %2152 = vmatmul.f32.gmra.mxu0 %v1688
        %v2153 = vpop.f32.mrf.mxu0
        %v2154 = vadd.f32 %v2041, %v2153
        %2155 = vmatmul.f32.gmra.mxu0 %v1697
        %v2156 = vpop.f32.mrf.mxu0
        %v2157 = vadd.f32 %v2044, %v2156
        %2158 = vmatmul.f32.gmra.mxu0 %v1706
        %v2159 = vpop.f32.mrf.mxu0
        %v2160 = vadd.f32 %v2047, %v2159
        %2161 = vmatmul.f32.gmra.mxu0 %v1715
        %v2162 = vpop.f32.mrf.mxu0
        %v2163 = vadd.f32 %v2050, %v2162
        %2164 = vmatmul.f32.gmra.mxu0 %v1724
        %v2165 = vpop.f32.mrf.mxu0
        %v2166 = vadd.f32 %v2053, %v2165
        %2167 = vmatmul.f32.gmra.mxu0 %v1733
        %v2168 = vpop.f32.mrf.mxu0
        %v2169 = vadd.f32 %v2056, %v2168
        %2170 = vmatmul.f32.gmra.mxu0 %v1742
        %v2171 = vpop.f32.mrf.mxu0
        %v2172 = vadd.f32 %v2059, %v2171
        %2173 = vmatmul.f32.gmra.mxu0 %v1751
        %v2174 = vpop.f32.mrf.mxu0
        %v2175 = vadd.f32 %v2062, %v2174
        %2176 = vmatmul.f32.gmra.mxu0 %v1760
        %v2177 = vpop.f32.mrf.mxu0
        %v2178 = vadd.f32 %v2065, %v2177
        %2179 = vmatmul.f32.gmra.mxu0 %v1769
        %v2180 = vpop.f32.mrf.mxu0
        %v2181 = vadd.f32 %v2068, %v2180
        %2182 = vmatmul.f32.gmra.mxu0 %v1778
        %v2183 = vpop.f32.mrf.mxu0
        %v2184 = vadd.f32 %v2071, %v2183
        %2185 = vmatmul.f32.gmra.mxu0 %v1787
        %v2186 = vpop.f32.mrf.mxu0
        %v2187 = vadd.f32 %v2074, %v2186
        %2188 = vmatmul.f32.gmra.mxu0 %v1796
        %v2189 = vpop.f32.mrf.mxu0
        %v2190 = vadd.f32 %v2077, %v2189
        %2191 = vmatmul.f32.gmra.mxu0 %v1805
        %v2192 = vpop.f32.mrf.mxu0
        %v2193 = vadd.f32 %v2080, %v2192
        %2194 = vmatmul.f32.gmra.mxu0 %v1814
        %v2195 = vpop.f32.mrf.mxu0
        %v2196 = vadd.f32 %v2083, %v2195
        %2197 = vmatmul.f32.gmra.mxu0 %v1823
        %v2198 = vpop.f32.mrf.mxu0
        %v2199 = vadd.f32 %v2086, %v2198
        %2200 = vdwg.mxu0
        %2201 = vmatpush.msra.mxu0 %v1878
        %2202 = vmatpush.msra.mxu0 %v1877
        %2203 = vmatpush.msra.mxu0 %v1876
        %2204 = vmatpush.msra.mxu0 %v1875
        %2205 = vmatpush.msra.mxu0 %v1874
        %2206 = vmatpush.msra.mxu0 %v1873
        %2207 = vmatpush.msra.mxu0 %v1872
        %2208 = vmatpush.msra.mxu0 %v1871
        %2209 = vmatpush.msra.mxu0 %v1870
        %2210 = vmatpush.msra.mxu0 %v1869
        %2211 = vmatpush.msra.mxu0 %v1868
        %2212 = vmatpush.msra.mxu0 %v1867
        %2213 = vmatpush.msra.mxu0 %v1866
        %2214 = vmatpush.msra.mxu0 %v1865
        %2215 = vmatpush.msra.mxu0 %v1864
        %2216 = vmatpush.msra.mxu0 %v1863
        %2217 = vmatmul.f32.gmra.mxu0 %v1545
        %v2218 = vpop.f32.mrf.mxu0
        %v2219 = vadd.f32 %v2106, %v2218
        %2220 = vmatmul.f32.gmra.mxu0 %v1554
        %v2221 = vpop.f32.mrf.mxu0
        %v2222 = vadd.f32 %v2109, %v2221
        %2223 = vmatmul.f32.gmra.mxu0 %v1563
        %v2224 = vpop.f32.mrf.mxu0
        %v2225 = vadd.f32 %v2112, %v2224
        %2226 = vmatmul.f32.gmra.mxu0 %v1572
        %v2227 = vpop.f32.mrf.mxu0
        %v2228 = vadd.f32 %v2115, %v2227
        %2229 = vmatmul.f32.gmra.mxu0 %v1581
        %v2230 = vpop.f32.mrf.mxu0
        %v2231 = vadd.f32 %v2118, %v2230
        %2232 = vmatmul.f32.gmra.mxu0 %v1590
        %v2233 = vpop.f32.mrf.mxu0
        %v2234 = vadd.f32 %v2121, %v2233
        %2235 = vmatmul.f32.gmra.mxu0 %v1599
        %v2236 = vpop.f32.mrf.mxu0
        %v2237 = vadd.f32 %v2124, %v2236
        %2238 = vmatmul.f32.gmra.mxu0 %v1608
        %v2239 = vpop.f32.mrf.mxu0
        %v2240 = vadd.f32 %v2127, %v2239
        %2241 = vmatmul.f32.gmra.mxu0 %v1617
        %v2242 = vpop.f32.mrf.mxu0
        %v2243 = vadd.f32 %v2130, %v2242
        %2244 = vmatmul.f32.gmra.mxu0 %v1626
        %v2245 = vpop.f32.mrf.mxu0
        %v2246 = vadd.f32 %v2133, %v2245
        %2247 = vmatmul.f32.gmra.mxu0 %v1635
        %v2248 = vpop.f32.mrf.mxu0
        %v2249 = vadd.f32 %v2136, %v2248
        %2250 = vmatmul.f32.gmra.mxu0 %v1644
        %v2251 = vpop.f32.mrf.mxu0
        %v2252 = vadd.f32 %v2139, %v2251
        %2253 = vmatmul.f32.gmra.mxu0 %v1653
        %v2254 = vpop.f32.mrf.mxu0
        %v2255 = vadd.f32 %v2142, %v2254
        %2256 = vmatmul.f32.gmra.mxu0 %v1662
        %v2257 = vpop.f32.mrf.mxu0
        %v2258 = vadd.f32 %v2145, %v2257
        %2259 = vmatmul.f32.gmra.mxu0 %v1671
        %v2260 = vpop.f32.mrf.mxu0
        %v2261 = vadd.f32 %v2148, %v2260
        %2262 = vmatmul.f32.gmra.mxu0 %v1680
        %v2263 = vpop.f32.mrf.mxu0
        %v2264 = vadd.f32 %v2151, %v2263
        %2265 = vmatmul.f32.gmra.mxu0 %v1689
        %v2266 = vpop.f32.mrf.mxu0
        %v2267 = vadd.f32 %v2154, %v2266
        %2268 = vmatmul.f32.gmra.mxu0 %v1698
        %v2269 = vpop.f32.mrf.mxu0
        %v2270 = vadd.f32 %v2157, %v2269
        %2271 = vmatmul.f32.gmra.mxu0 %v1707
        %v2272 = vpop.f32.mrf.mxu0
        %v2273 = vadd.f32 %v2160, %v2272
        %2274 = vmatmul.f32.gmra.mxu0 %v1716
        %v2275 = vpop.f32.mrf.mxu0
        %v2276 = vadd.f32 %v2163, %v2275
        %2277 = vmatmul.f32.gmra.mxu0 %v1725
        %v2278 = vpop.f32.mrf.mxu0
        %v2279 = vadd.f32 %v2166, %v2278
        %2280 = vmatmul.f32.gmra.mxu0 %v1734
        %v2281 = vpop.f32.mrf.mxu0
        %v2282 = vadd.f32 %v2169, %v2281
        %2283 = vmatmul.f32.gmra.mxu0 %v1743
        %v2284 = vpop.f32.mrf.mxu0
        %v2285 = vadd.f32 %v2172, %v2284
        %2286 = vmatmul.f32.gmra.mxu0 %v1752
        %v2287 = vpop.f32.mrf.mxu0
        %v2288 = vadd.f32 %v2175, %v2287
        %2289 = vmatmul.f32.gmra.mxu0 %v1761
        %v2290 = vpop.f32.mrf.mxu0
        %v2291 = vadd.f32 %v2178, %v2290
        %2292 = vmatmul.f32.gmra.mxu0 %v1770
        %v2293 = vpop.f32.mrf.mxu0
        %v2294 = vadd.f32 %v2181, %v2293
        %2295 = vmatmul.f32.gmra.mxu0 %v1779
        %v2296 = vpop.f32.mrf.mxu0
        %v2297 = vadd.f32 %v2184, %v2296
        %2298 = vmatmul.f32.gmra.mxu0 %v1788
        %v2299 = vpop.f32.mrf.mxu0
        %v2300 = vadd.f32 %v2187, %v2299
        %2301 = vmatmul.f32.gmra.mxu0 %v1797
        %v2302 = vpop.f32.mrf.mxu0
        %v2303 = vadd.f32 %v2190, %v2302
        %2304 = vmatmul.f32.gmra.mxu0 %v1806
        %v2305 = vpop.f32.mrf.mxu0
        %v2306 = vadd.f32 %v2193, %v2305
        %2307 = vmatmul.f32.gmra.mxu0 %v1815
        %v2308 = vpop.f32.mrf.mxu0
        %v2309 = vadd.f32 %v2196, %v2308
        %2310 = vmatmul.f32.gmra.mxu0 %v1824
        %v2311 = vpop.f32.mrf.mxu0
        %v2312 = vadd.f32 %v2199, %v2311
        %2313 = vdwg.mxu0
        %2314 = vmatpush.msra.mxu0 %v1894
        %2315 = vmatpush.msra.mxu0 %v1893
        %2316 = vmatpush.msra.mxu0 %v1892
        %2317 = vmatpush.msra.mxu0 %v1891
        %2318 = vmatpush.msra.mxu0 %v1890
        %2319 = vmatpush.msra.mxu0 %v1889
        %2320 = vmatpush.msra.mxu0 %v1888
        %2321 = vmatpush.msra.mxu0 %v1887
        %2322 = vmatpush.msra.mxu0 %v1886
        %2323 = vmatpush.msra.mxu0 %v1885
        %2324 = vmatpush.msra.mxu0 %v1884
        %2325 = vmatpush.msra.mxu0 %v1883
        %2326 = vmatpush.msra.mxu0 %v1882
        %2327 = vmatpush.msra.mxu0 %v1881
        %2328 = vmatpush.msra.mxu0 %v1880
        %2329 = vmatpush.msra.mxu0 %v1879
        %2330 = vmatmul.f32.gmra.mxu0 %v1546
        %v2331 = vpop.f32.mrf.mxu0
        %v2332 = vadd.f32 %v2219, %v2331
        %2333 = vmatmul.f32.gmra.mxu0 %v1555
        %v2334 = vpop.f32.mrf.mxu0
        %v2335 = vadd.f32 %v2222, %v2334
        %2336 = vmatmul.f32.gmra.mxu0 %v1564
        %v2337 = vpop.f32.mrf.mxu0
        %v2338 = vadd.f32 %v2225, %v2337
        %2339 = vmatmul.f32.gmra.mxu0 %v1573
        %v2340 = vpop.f32.mrf.mxu0
        %v2341 = vadd.f32 %v2228, %v2340
        %2342 = vmatmul.f32.gmra.mxu0 %v1582
        %v2343 = vpop.f32.mrf.mxu0
        %v2344 = vadd.f32 %v2231, %v2343
        %2345 = vmatmul.f32.gmra.mxu0 %v1591
        %v2346 = vpop.f32.mrf.mxu0
        %v2347 = vadd.f32 %v2234, %v2346
        %2348 = vmatmul.f32.gmra.mxu0 %v1600
        %v2349 = vpop.f32.mrf.mxu0
        %v2350 = vadd.f32 %v2237, %v2349
        %2351 = vmatmul.f32.gmra.mxu0 %v1609
        %v2352 = vpop.f32.mrf.mxu0
        %v2353 = vadd.f32 %v2240, %v2352
        %2354 = vmatmul.f32.gmra.mxu0 %v1618
        %v2355 = vpop.f32.mrf.mxu0
        %v2356 = vadd.f32 %v2243, %v2355
        %2357 = vmatmul.f32.gmra.mxu0 %v1627
        %v2358 = vpop.f32.mrf.mxu0
        %v2359 = vadd.f32 %v2246, %v2358
        %2360 = vmatmul.f32.gmra.mxu0 %v1636
        %v2361 = vpop.f32.mrf.mxu0
        %v2362 = vadd.f32 %v2249, %v2361
        %2363 = vmatmul.f32.gmra.mxu0 %v1645
        %v2364 = vpop.f32.mrf.mxu0
        %v2365 = vadd.f32 %v2252, %v2364
        %2366 = vmatmul.f32.gmra.mxu0 %v1654
        %v2367 = vpop.f32.mrf.mxu0
        %v2368 = vadd.f32 %v2255, %v2367
        %2369 = vmatmul.f32.gmra.mxu0 %v1663
        %v2370 = vpop.f32.mrf.mxu0
        %v2371 = vadd.f32 %v2258, %v2370
        %2372 = vmatmul.f32.gmra.mxu0 %v1672
        %v2373 = vpop.f32.mrf.mxu0
        %v2374 = vadd.f32 %v2261, %v2373
        %2375 = vmatmul.f32.gmra.mxu0 %v1681
        %v2376 = vpop.f32.mrf.mxu0
        %v2377 = vadd.f32 %v2264, %v2376
        %2378 = vmatmul.f32.gmra.mxu0 %v1690
        %v2379 = vpop.f32.mrf.mxu0
        %v2380 = vadd.f32 %v2267, %v2379
        %2381 = vmatmul.f32.gmra.mxu0 %v1699
        %v2382 = vpop.f32.mrf.mxu0
        %v2383 = vadd.f32 %v2270, %v2382
        %2384 = vmatmul.f32.gmra.mxu0 %v1708
        %v2385 = vpop.f32.mrf.mxu0
        %v2386 = vadd.f32 %v2273, %v2385
        %2387 = vmatmul.f32.gmra.mxu0 %v1717
        %v2388 = vpop.f32.mrf.mxu0
        %v2389 = vadd.f32 %v2276, %v2388
        %2390 = vmatmul.f32.gmra.mxu0 %v1726
        %v2391 = vpop.f32.mrf.mxu0
        %v2392 = vadd.f32 %v2279, %v2391
        %2393 = vmatmul.f32.gmra.mxu0 %v1735
        %v2394 = vpop.f32.mrf.mxu0
        %v2395 = vadd.f32 %v2282, %v2394
        %2396 = vmatmul.f32.gmra.mxu0 %v1744
        %v2397 = vpop.f32.mrf.mxu0
        %v2398 = vadd.f32 %v2285, %v2397
        %2399 = vmatmul.f32.gmra.mxu0 %v1753
        %v2400 = vpop.f32.mrf.mxu0
        %v2401 = vadd.f32 %v2288, %v2400
        %2402 = vmatmul.f32.gmra.mxu0 %v1762
        %v2403 = vpop.f32.mrf.mxu0
        %v2404 = vadd.f32 %v2291, %v2403
        %2405 = vmatmul.f32.gmra.mxu0 %v1771
        %v2406 = vpop.f32.mrf.mxu0
        %v2407 = vadd.f32 %v2294, %v2406
        %2408 = vmatmul.f32.gmra.mxu0 %v1780
        %v2409 = vpop.f32.mrf.mxu0
        %v2410 = vadd.f32 %v2297, %v2409
        %2411 = vmatmul.f32.gmra.mxu0 %v1789
        %v2412 = vpop.f32.mrf.mxu0
        %v2413 = vadd.f32 %v2300, %v2412
        %2414 = vmatmul.f32.gmra.mxu0 %v1798
        %v2415 = vpop.f32.mrf.mxu0
        %v2416 = vadd.f32 %v2303, %v2415
        %2417 = vmatmul.f32.gmra.mxu0 %v1807
        %v2418 = vpop.f32.mrf.mxu0
        %v2419 = vadd.f32 %v2306, %v2418
        %2420 = vmatmul.f32.gmra.mxu0 %v1816
        %v2421 = vpop.f32.mrf.mxu0
        %v2422 = vadd.f32 %v2309, %v2421
        %2423 = vmatmul.f32.gmra.mxu0 %v1825
        %v2424 = vpop.f32.mrf.mxu0
        %v2425 = vadd.f32 %v2312, %v2424
        %2426 = vdwg.mxu0
        %2427 = vmatpush.msra.mxu0 %v1910
        %2428 = vmatpush.msra.mxu0 %v1909
        %2429 = vmatpush.msra.mxu0 %v1908
        %2430 = vmatpush.msra.mxu0 %v1907
        %2431 = vmatpush.msra.mxu0 %v1906
        %2432 = vmatpush.msra.mxu0 %v1905
        %2433 = vmatpush.msra.mxu0 %v1904
        %2434 = vmatpush.msra.mxu0 %v1903
        %2435 = vmatpush.msra.mxu0 %v1902
        %2436 = vmatpush.msra.mxu0 %v1901
        %2437 = vmatpush.msra.mxu0 %v1900
        %2438 = vmatpush.msra.mxu0 %v1899
        %2439 = vmatpush.msra.mxu0 %v1898
        %2440 = vmatpush.msra.mxu0 %v1897
        %2441 = vmatpush.msra.mxu0 %v1896
        %2442 = vmatpush.msra.mxu0 %v1895
        %2443 = vmatmul.f32.gmra.mxu0 %v1547
        %v2444 = vpop.f32.mrf.mxu0
        %v2445 = vadd.f32 %v2332, %v2444
        %2446 = vmatmul.f32.gmra.mxu0 %v1556
        %v2447 = vpop.f32.mrf.mxu0
        %v2448 = vadd.f32 %v2335, %v2447
        %2449 = vmatmul.f32.gmra.mxu0 %v1565
        %v2450 = vpop.f32.mrf.mxu0
        %v2451 = vadd.f32 %v2338, %v2450
        %2452 = vmatmul.f32.gmra.mxu0 %v1574
        %v2453 = vpop.f32.mrf.mxu0
        %v2454 = vadd.f32 %v2341, %v2453
        %2455 = vmatmul.f32.gmra.mxu0 %v1583
        %v2456 = vpop.f32.mrf.mxu0
        %v2457 = vadd.f32 %v2344, %v2456
        %2458 = vmatmul.f32.gmra.mxu0 %v1592
        %v2459 = vpop.f32.mrf.mxu0
        %v2460 = vadd.f32 %v2347, %v2459
        %2461 = vmatmul.f32.gmra.mxu0 %v1601
        %v2462 = vpop.f32.mrf.mxu0
        %v2463 = vadd.f32 %v2350, %v2462
        %2464 = vmatmul.f32.gmra.mxu0 %v1610
        %v2465 = vpop.f32.mrf.mxu0
        %v2466 = vadd.f32 %v2353, %v2465
        %2467 = vmatmul.f32.gmra.mxu0 %v1619
        %v2468 = vpop.f32.mrf.mxu0
        %v2469 = vadd.f32 %v2356, %v2468
        %2470 = vmatmul.f32.gmra.mxu0 %v1628
        %v2471 = vpop.f32.mrf.mxu0
        %v2472 = vadd.f32 %v2359, %v2471
        %2473 = vmatmul.f32.gmra.mxu0 %v1637
        %v2474 = vpop.f32.mrf.mxu0
        %v2475 = vadd.f32 %v2362, %v2474
        %2476 = vmatmul.f32.gmra.mxu0 %v1646
        %v2477 = vpop.f32.mrf.mxu0
        %v2478 = vadd.f32 %v2365, %v2477
        %2479 = vmatmul.f32.gmra.mxu0 %v1655
        %v2480 = vpop.f32.mrf.mxu0
        %v2481 = vadd.f32 %v2368, %v2480
        %2482 = vmatmul.f32.gmra.mxu0 %v1664
        %v2483 = vpop.f32.mrf.mxu0
        %v2484 = vadd.f32 %v2371, %v2483
        %2485 = vmatmul.f32.gmra.mxu0 %v1673
        %v2486 = vpop.f32.mrf.mxu0
        %v2487 = vadd.f32 %v2374, %v2486
        %2488 = vmatmul.f32.gmra.mxu0 %v1682
        %v2489 = vpop.f32.mrf.mxu0
        %v2490 = vadd.f32 %v2377, %v2489
        %2491 = vmatmul.f32.gmra.mxu0 %v1691
        %v2492 = vpop.f32.mrf.mxu0
        %v2493 = vadd.f32 %v2380, %v2492
        %2494 = vmatmul.f32.gmra.mxu0 %v1700
        %v2495 = vpop.f32.mrf.mxu0
        %v2496 = vadd.f32 %v2383, %v2495
        %2497 = vmatmul.f32.gmra.mxu0 %v1709
        %v2498 = vpop.f32.mrf.mxu0
        %v2499 = vadd.f32 %v2386, %v2498
        %2500 = vmatmul.f32.gmra.mxu0 %v1718
        %v2501 = vpop.f32.mrf.mxu0
        %v2502 = vadd.f32 %v2389, %v2501
        %2503 = vmatmul.f32.gmra.mxu0 %v1727
        %v2504 = vpop.f32.mrf.mxu0
        %v2505 = vadd.f32 %v2392, %v2504
        %2506 = vmatmul.f32.gmra.mxu0 %v1736
        %v2507 = vpop.f32.mrf.mxu0
        %v2508 = vadd.f32 %v2395, %v2507
        %2509 = vmatmul.f32.gmra.mxu0 %v1745
        %v2510 = vpop.f32.mrf.mxu0
        %v2511 = vadd.f32 %v2398, %v2510
        %2512 = vmatmul.f32.gmra.mxu0 %v1754
        %v2513 = vpop.f32.mrf.mxu0
        %v2514 = vadd.f32 %v2401, %v2513
        %2515 = vmatmul.f32.gmra.mxu0 %v1763
        %v2516 = vpop.f32.mrf.mxu0
        %v2517 = vadd.f32 %v2404, %v2516
        %2518 = vmatmul.f32.gmra.mxu0 %v1772
        %v2519 = vpop.f32.mrf.mxu0
        %v2520 = vadd.f32 %v2407, %v2519
        %2521 = vmatmul.f32.gmra.mxu0 %v1781
        %v2522 = vpop.f32.mrf.mxu0
        %v2523 = vadd.f32 %v2410, %v2522
        %2524 = vmatmul.f32.gmra.mxu0 %v1790
        %v2525 = vpop.f32.mrf.mxu0
        %v2526 = vadd.f32 %v2413, %v2525
        %2527 = vmatmul.f32.gmra.mxu0 %v1799
        %v2528 = vpop.f32.mrf.mxu0
        %v2529 = vadd.f32 %v2416, %v2528
        %2530 = vmatmul.f32.gmra.mxu0 %v1808
        %v2531 = vpop.f32.mrf.mxu0
        %v2532 = vadd.f32 %v2419, %v2531
        %2533 = vmatmul.f32.gmra.mxu0 %v1817
        %v2534 = vpop.f32.mrf.mxu0
        %v2535 = vadd.f32 %v2422, %v2534
        %2536 = vmatmul.f32.gmra.mxu0 %v1826
        %v2537 = vpop.f32.mrf.mxu0
        %v2538 = vadd.f32 %v2425, %v2537
        %2539 = vdwg.mxu0
        %2540 = vmatpush.msra.mxu0 %v1926
        %2541 = vmatpush.msra.mxu0 %v1925
        %2542 = vmatpush.msra.mxu0 %v1924
        %2543 = vmatpush.msra.mxu0 %v1923
        %2544 = vmatpush.msra.mxu0 %v1922
        %2545 = vmatpush.msra.mxu0 %v1921
        %2546 = vmatpush.msra.mxu0 %v1920
        %2547 = vmatpush.msra.mxu0 %v1919
        %2548 = vmatpush.msra.mxu0 %v1918
        %2549 = vmatpush.msra.mxu0 %v1917
        %2550 = vmatpush.msra.mxu0 %v1916
        %2551 = vmatpush.msra.mxu0 %v1915
        %2552 = vmatpush.msra.mxu0 %v1914
        %2553 = vmatpush.msra.mxu0 %v1913
        %2554 = vmatpush.msra.mxu0 %v1912
        %2555 = vmatpush.msra.mxu0 %v1911
        %2556 = vmatmul.f32.gmra.mxu0 %v1548
        %v2557 = vpop.f32.mrf.mxu0
        %v2558 = vadd.f32 %v2445, %v2557
        %2559 = vmatmul.f32.gmra.mxu0 %v1557
        %v2560 = vpop.f32.mrf.mxu0
        %v2561 = vadd.f32 %v2448, %v2560
        %2562 = vmatmul.f32.gmra.mxu0 %v1566
        %v2563 = vpop.f32.mrf.mxu0
        %v2564 = vadd.f32 %v2451, %v2563
        %2565 = vmatmul.f32.gmra.mxu0 %v1575
        %v2566 = vpop.f32.mrf.mxu0
        %v2567 = vadd.f32 %v2454, %v2566
        %2568 = vmatmul.f32.gmra.mxu0 %v1584
        %v2569 = vpop.f32.mrf.mxu0
        %v2570 = vadd.f32 %v2457, %v2569
        %2571 = vmatmul.f32.gmra.mxu0 %v1593
        %v2572 = vpop.f32.mrf.mxu0
        %v2573 = vadd.f32 %v2460, %v2572
        %2574 = vmatmul.f32.gmra.mxu0 %v1602
        %v2575 = vpop.f32.mrf.mxu0
        %v2576 = vadd.f32 %v2463, %v2575
        %2577 = vmatmul.f32.gmra.mxu0 %v1611
        %v2578 = vpop.f32.mrf.mxu0
        %v2579 = vadd.f32 %v2466, %v2578
        %2580 = vmatmul.f32.gmra.mxu0 %v1620
        %v2581 = vpop.f32.mrf.mxu0
        %v2582 = vadd.f32 %v2469, %v2581
        %2583 = vmatmul.f32.gmra.mxu0 %v1629
        %v2584 = vpop.f32.mrf.mxu0
        %v2585 = vadd.f32 %v2472, %v2584
        %2586 = vmatmul.f32.gmra.mxu0 %v1638
        %v2587 = vpop.f32.mrf.mxu0
        %v2588 = vadd.f32 %v2475, %v2587
        %2589 = vmatmul.f32.gmra.mxu0 %v1647
        %v2590 = vpop.f32.mrf.mxu0
        %v2591 = vadd.f32 %v2478, %v2590
        %2592 = vmatmul.f32.gmra.mxu0 %v1656
        %v2593 = vpop.f32.mrf.mxu0
        %v2594 = vadd.f32 %v2481, %v2593
        %2595 = vmatmul.f32.gmra.mxu0 %v1665
        %v2596 = vpop.f32.mrf.mxu0
        %v2597 = vadd.f32 %v2484, %v2596
        %2598 = vmatmul.f32.gmra.mxu0 %v1674
        %v2599 = vpop.f32.mrf.mxu0
        %v2600 = vadd.f32 %v2487, %v2599
        %2601 = vmatmul.f32.gmra.mxu0 %v1683
        %v2602 = vpop.f32.mrf.mxu0
        %v2603 = vadd.f32 %v2490, %v2602
        %2604 = vmatmul.f32.gmra.mxu0 %v1692
        %v2605 = vpop.f32.mrf.mxu0
        %v2606 = vadd.f32 %v2493, %v2605
        %2607 = vmatmul.f32.gmra.mxu0 %v1701
        %v2608 = vpop.f32.mrf.mxu0
        %v2609 = vadd.f32 %v2496, %v2608
        %2610 = vmatmul.f32.gmra.mxu0 %v1710
        %v2611 = vpop.f32.mrf.mxu0
        %v2612 = vadd.f32 %v2499, %v2611
        %2613 = vmatmul.f32.gmra.mxu0 %v1719
        %v2614 = vpop.f32.mrf.mxu0
        %v2615 = vadd.f32 %v2502, %v2614
        %2616 = vmatmul.f32.gmra.mxu0 %v1728
        %v2617 = vpop.f32.mrf.mxu0
        %v2618 = vadd.f32 %v2505, %v2617
        %2619 = vmatmul.f32.gmra.mxu0 %v1737
        %v2620 = vpop.f32.mrf.mxu0
        %v2621 = vadd.f32 %v2508, %v2620
        %2622 = vmatmul.f32.gmra.mxu0 %v1746
        %v2623 = vpop.f32.mrf.mxu0
        %v2624 = vadd.f32 %v2511, %v2623
        %2625 = vmatmul.f32.gmra.mxu0 %v1755
        %v2626 = vpop.f32.mrf.mxu0
        %v2627 = vadd.f32 %v2514, %v2626
        %2628 = vmatmul.f32.gmra.mxu0 %v1764
        %v2629 = vpop.f32.mrf.mxu0
        %v2630 = vadd.f32 %v2517, %v2629
        %2631 = vmatmul.f32.gmra.mxu0 %v1773
        %v2632 = vpop.f32.mrf.mxu0
        %v2633 = vadd.f32 %v2520, %v2632
        %2634 = vmatmul.f32.gmra.mxu0 %v1782
        %v2635 = vpop.f32.mrf.mxu0
        %v2636 = vadd.f32 %v2523, %v2635
        %2637 = vmatmul.f32.gmra.mxu0 %v1791
        %v2638 = vpop.f32.mrf.mxu0
        %v2639 = vadd.f32 %v2526, %v2638
        %2640 = vmatmul.f32.gmra.mxu0 %v1800
        %v2641 = vpop.f32.mrf.mxu0
        %v2642 = vadd.f32 %v2529, %v2641
        %2643 = vmatmul.f32.gmra.mxu0 %v1809
        %v2644 = vpop.f32.mrf.mxu0
        %v2645 = vadd.f32 %v2532, %v2644
        %2646 = vmatmul.f32.gmra.mxu0 %v1818
        %v2647 = vpop.f32.mrf.mxu0
        %v2648 = vadd.f32 %v2535, %v2647
        %2649 = vmatmul.f32.gmra.mxu0 %v1827
        %v2650 = vpop.f32.mrf.mxu0
        %v2651 = vadd.f32 %v2538, %v2650
        %2652 = vdwg.mxu0
        %2653 = vmatpush.msra.mxu0 %v1942
        %2654 = vmatpush.msra.mxu0 %v1941
        %2655 = vmatpush.msra.mxu0 %v1940
        %2656 = vmatpush.msra.mxu0 %v1939
        %2657 = vmatpush.msra.mxu0 %v1938
        %2658 = vmatpush.msra.mxu0 %v1937
        %2659 = vmatpush.msra.mxu0 %v1936
        %2660 = vmatpush.msra.mxu0 %v1935
        %2661 = vmatpush.msra.mxu0 %v1934
        %2662 = vmatpush.msra.mxu0 %v1933
        %2663 = vmatpush.msra.mxu0 %v1932
        %2664 = vmatpush.msra.mxu0 %v1931
        %2665 = vmatpush.msra.mxu0 %v1930
        %2666 = vmatpush.msra.mxu0 %v1929
        %2667 = vmatpush.msra.mxu0 %v1928
        %2668 = vmatpush.msra.mxu0 %v1927
        %2669 = vmatmul.f32.gmra.mxu0 %v1549
        %v2670 = vpop.f32.mrf.mxu0
        %v2671 = vadd.f32 %v2558, %v2670
        %2672 = vmatmul.f32.gmra.mxu0 %v1558
        %v2673 = vpop.f32.mrf.mxu0
        %v2674 = vadd.f32 %v2561, %v2673
        %2675 = vmatmul.f32.gmra.mxu0 %v1567
        %v2676 = vpop.f32.mrf.mxu0
        %v2677 = vadd.f32 %v2564, %v2676
        %2678 = vmatmul.f32.gmra.mxu0 %v1576
        %v2679 = vpop.f32.mrf.mxu0
        %v2680 = vadd.f32 %v2567, %v2679
        %2681 = vmatmul.f32.gmra.mxu0 %v1585
        %v2682 = vpop.f32.mrf.mxu0
        %v2683 = vadd.f32 %v2570, %v2682
        %2684 = vmatmul.f32.gmra.mxu0 %v1594
        %v2685 = vpop.f32.mrf.mxu0
        %v2686 = vadd.f32 %v2573, %v2685
        %2687 = vmatmul.f32.gmra.mxu0 %v1603
        %v2688 = vpop.f32.mrf.mxu0
        %v2689 = vadd.f32 %v2576, %v2688
        %2690 = vmatmul.f32.gmra.mxu0 %v1612
        %v2691 = vpop.f32.mrf.mxu0
        %v2692 = vadd.f32 %v2579, %v2691
        %2693 = vmatmul.f32.gmra.mxu0 %v1621
        %v2694 = vpop.f32.mrf.mxu0
        %v2695 = vadd.f32 %v2582, %v2694
        %2696 = vmatmul.f32.gmra.mxu0 %v1630
        %v2697 = vpop.f32.mrf.mxu0
        %v2698 = vadd.f32 %v2585, %v2697
        %2699 = vmatmul.f32.gmra.mxu0 %v1639
        %v2700 = vpop.f32.mrf.mxu0
        %v2701 = vadd.f32 %v2588, %v2700
        %2702 = vmatmul.f32.gmra.mxu0 %v1648
        %v2703 = vpop.f32.mrf.mxu0
        %v2704 = vadd.f32 %v2591, %v2703
        %2705 = vmatmul.f32.gmra.mxu0 %v1657
        %v2706 = vpop.f32.mrf.mxu0
        %v2707 = vadd.f32 %v2594, %v2706
        %2708 = vmatmul.f32.gmra.mxu0 %v1666
        %v2709 = vpop.f32.mrf.mxu0
        %v2710 = vadd.f32 %v2597, %v2709
        %2711 = vmatmul.f32.gmra.mxu0 %v1675
        %v2712 = vpop.f32.mrf.mxu0
        %v2713 = vadd.f32 %v2600, %v2712
        %2714 = vmatmul.f32.gmra.mxu0 %v1684
        %v2715 = vpop.f32.mrf.mxu0
        %v2716 = vadd.f32 %v2603, %v2715
        %2717 = vmatmul.f32.gmra.mxu0 %v1693
        %v2718 = vpop.f32.mrf.mxu0
        %v2719 = vadd.f32 %v2606, %v2718
        %2720 = vmatmul.f32.gmra.mxu0 %v1702
        %v2721 = vpop.f32.mrf.mxu0
        %v2722 = vadd.f32 %v2609, %v2721
        %2723 = vmatmul.f32.gmra.mxu0 %v1711
        %v2724 = vpop.f32.mrf.mxu0
        %v2725 = vadd.f32 %v2612, %v2724
        %2726 = vmatmul.f32.gmra.mxu0 %v1720
        %v2727 = vpop.f32.mrf.mxu0
        %v2728 = vadd.f32 %v2615, %v2727
        %2729 = vmatmul.f32.gmra.mxu0 %v1729
        %v2730 = vpop.f32.mrf.mxu0
        %v2731 = vadd.f32 %v2618, %v2730
        %2732 = vmatmul.f32.gmra.mxu0 %v1738
        %v2733 = vpop.f32.mrf.mxu0
        %v2734 = vadd.f32 %v2621, %v2733
        %2735 = vmatmul.f32.gmra.mxu0 %v1747
        %v2736 = vpop.f32.mrf.mxu0
        %v2737 = vadd.f32 %v2624, %v2736
        %2738 = vmatmul.f32.gmra.mxu0 %v1756
        %v2739 = vpop.f32.mrf.mxu0
        %v2740 = vadd.f32 %v2627, %v2739
        %2741 = vmatmul.f32.gmra.mxu0 %v1765
        %v2742 = vpop.f32.mrf.mxu0
        %v2743 = vadd.f32 %v2630, %v2742
        %2744 = vmatmul.f32.gmra.mxu0 %v1774
        %v2745 = vpop.f32.mrf.mxu0
        %v2746 = vadd.f32 %v2633, %v2745
        %2747 = vmatmul.f32.gmra.mxu0 %v1783
        %v2748 = vpop.f32.mrf.mxu0
        %v2749 = vadd.f32 %v2636, %v2748
        %2750 = vmatmul.f32.gmra.mxu0 %v1792
        %v2751 = vpop.f32.mrf.mxu0
        %v2752 = vadd.f32 %v2639, %v2751
        %2753 = vmatmul.f32.gmra.mxu0 %v1801
        %v2754 = vpop.f32.mrf.mxu0
        %v2755 = vadd.f32 %v2642, %v2754
        %2756 = vmatmul.f32.gmra.mxu0 %v1810
        %v2757 = vpop.f32.mrf.mxu0
        %v2758 = vadd.f32 %v2645, %v2757
        %2759 = vmatmul.f32.gmra.mxu0 %v1819
        %v2760 = vpop.f32.mrf.mxu0
        %v2761 = vadd.f32 %v2648, %v2760
        %2762 = vmatmul.f32.gmra.mxu0 %v1828
        %v2763 = vpop.f32.mrf.mxu0
        %v2764 = vadd.f32 %v2651, %v2763
        %2765 = vdwg.mxu0
        %2766 = vmatpush.msra.mxu0 %v1958
        %2767 = vmatpush.msra.mxu0 %v1957
        %2768 = vmatpush.msra.mxu0 %v1956
        %2769 = vmatpush.msra.mxu0 %v1955
        %2770 = vmatpush.msra.mxu0 %v1954
        %2771 = vmatpush.msra.mxu0 %v1953
        %2772 = vmatpush.msra.mxu0 %v1952
        %2773 = vmatpush.msra.mxu0 %v1951
        %2774 = vmatpush.msra.mxu0 %v1950
        %2775 = vmatpush.msra.mxu0 %v1949
        %2776 = vmatpush.msra.mxu0 %v1948
        %2777 = vmatpush.msra.mxu0 %v1947
        %2778 = vmatpush.msra.mxu0 %v1946
        %2779 = vmatpush.msra.mxu0 %v1945
        %2780 = vmatpush.msra.mxu0 %v1944
        %2781 = vmatpush.msra.mxu0 %v1943
        %2782 = vmatmul.f32.gmra.mxu0 %v1550
        %v2783 = vpop.f32.mrf.mxu0
        %v2784 = vadd.f32 %v2671, %v2783
        %2785 = vmatmul.f32.gmra.mxu0 %v1559
        %v2786 = vpop.f32.mrf.mxu0
        %v2787 = vadd.f32 %v2674, %v2786
        %2788 = vmatmul.f32.gmra.mxu0 %v1568
        %v2789 = vpop.f32.mrf.mxu0
        %v2790 = vadd.f32 %v2677, %v2789
        %2791 = vmatmul.f32.gmra.mxu0 %v1577
        %v2792 = vpop.f32.mrf.mxu0
        %v2793 = vadd.f32 %v2680, %v2792
        %2794 = vmatmul.f32.gmra.mxu0 %v1586
        %v2795 = vpop.f32.mrf.mxu0
        %v2796 = vadd.f32 %v2683, %v2795
        %2797 = vmatmul.f32.gmra.mxu0 %v1595
        %v2798 = vpop.f32.mrf.mxu0
        %v2799 = vadd.f32 %v2686, %v2798
        %2800 = vmatmul.f32.gmra.mxu0 %v1604
        %v2801 = vpop.f32.mrf.mxu0
        %v2802 = vadd.f32 %v2689, %v2801
        %2803 = vmatmul.f32.gmra.mxu0 %v1613
        %v2804 = vpop.f32.mrf.mxu0
        %v2805 = vadd.f32 %v2692, %v2804
        %2806 = vmatmul.f32.gmra.mxu0 %v1622
        %v2807 = vpop.f32.mrf.mxu0
        %v2808 = vadd.f32 %v2695, %v2807
        %2809 = vmatmul.f32.gmra.mxu0 %v1631
        %v2810 = vpop.f32.mrf.mxu0
        %v2811 = vadd.f32 %v2698, %v2810
        %2812 = vmatmul.f32.gmra.mxu0 %v1640
        %v2813 = vpop.f32.mrf.mxu0
        %v2814 = vadd.f32 %v2701, %v2813
        %2815 = vmatmul.f32.gmra.mxu0 %v1649
        %v2816 = vpop.f32.mrf.mxu0
        %v2817 = vadd.f32 %v2704, %v2816
        %2818 = vmatmul.f32.gmra.mxu0 %v1658
        %v2819 = vpop.f32.mrf.mxu0
        %v2820 = vadd.f32 %v2707, %v2819
        %2821 = vmatmul.f32.gmra.mxu0 %v1667
        %v2822 = vpop.f32.mrf.mxu0
        %v2823 = vadd.f32 %v2710, %v2822
        %2824 = vmatmul.f32.gmra.mxu0 %v1676
        %v2825 = vpop.f32.mrf.mxu0
        %v2826 = vadd.f32 %v2713, %v2825
        %2827 = vmatmul.f32.gmra.mxu0 %v1685
        %v2828 = vpop.f32.mrf.mxu0
        %v2829 = vadd.f32 %v2716, %v2828
        %2830 = vmatmul.f32.gmra.mxu0 %v1694
        %v2831 = vpop.f32.mrf.mxu0
        %v2832 = vadd.f32 %v2719, %v2831
        %2833 = vmatmul.f32.gmra.mxu0 %v1703
        %v2834 = vpop.f32.mrf.mxu0
        %v2835 = vadd.f32 %v2722, %v2834
        %2836 = vmatmul.f32.gmra.mxu0 %v1712
        %v2837 = vpop.f32.mrf.mxu0
        %v2838 = vadd.f32 %v2725, %v2837
        %2839 = vmatmul.f32.gmra.mxu0 %v1721
        %v2840 = vpop.f32.mrf.mxu0
        %v2841 = vadd.f32 %v2728, %v2840
        %2842 = vmatmul.f32.gmra.mxu0 %v1730
        %v2843 = vpop.f32.mrf.mxu0
        %v2844 = vadd.f32 %v2731, %v2843
        %2845 = vmatmul.f32.gmra.mxu0 %v1739
        %v2846 = vpop.f32.mrf.mxu0
        %v2847 = vadd.f32 %v2734, %v2846
        %2848 = vmatmul.f32.gmra.mxu0 %v1748
        %v2849 = vpop.f32.mrf.mxu0
        %v2850 = vadd.f32 %v2737, %v2849
        %2851 = vmatmul.f32.gmra.mxu0 %v1757
        %v2852 = vpop.f32.mrf.mxu0
        %v2853 = vadd.f32 %v2740, %v2852
        %2854 = vmatmul.f32.gmra.mxu0 %v1766
        %v2855 = vpop.f32.mrf.mxu0
        %v2856 = vadd.f32 %v2743, %v2855
        %2857 = vmatmul.f32.gmra.mxu0 %v1775
        %v2858 = vpop.f32.mrf.mxu0
        %v2859 = vadd.f32 %v2746, %v2858
        %2860 = vmatmul.f32.gmra.mxu0 %v1784
        %v2861 = vpop.f32.mrf.mxu0
        %v2862 = vadd.f32 %v2749, %v2861
        %2863 = vmatmul.f32.gmra.mxu0 %v1793
        %v2864 = vpop.f32.mrf.mxu0
        %v2865 = vadd.f32 %v2752, %v2864
        %2866 = vmatmul.f32.gmra.mxu0 %v1802
        %v2867 = vpop.f32.mrf.mxu0
        %v2868 = vadd.f32 %v2755, %v2867
        %2869 = vmatmul.f32.gmra.mxu0 %v1811
        %v2870 = vpop.f32.mrf.mxu0
        %v2871 = vadd.f32 %v2758, %v2870
        %2872 = vmatmul.f32.gmra.mxu0 %v1820
        %v2873 = vpop.f32.mrf.mxu0
        %v2874 = vadd.f32 %v2761, %v2873
        %2875 = vmatmul.f32.gmra.mxu0 %v1829
        %v2876 = vpop.f32.mrf.mxu0
        %v2877 = vadd.f32 %v2764, %v2876
        %2878 = vdwg.mxu0
        %2879 = vmatpush.msra.mxu0 %v1974
        %2880 = vmatpush.msra.mxu0 %v1973
        %2881 = vmatpush.msra.mxu0 %v1972
        %2882 = vmatpush.msra.mxu0 %v1971
        %2883 = vmatpush.msra.mxu0 %v1970
        %2884 = vmatpush.msra.mxu0 %v1969
        %2885 = vmatpush.msra.mxu0 %v1968
        %2886 = vmatpush.msra.mxu0 %v1967
        %2887 = vmatpush.msra.mxu0 %v1966
        %2888 = vmatpush.msra.mxu0 %v1965
        %2889 = vmatpush.msra.mxu0 %v1964
        %2890 = vmatpush.msra.mxu0 %v1963
        %2891 = vmatpush.msra.mxu0 %v1962
        %2892 = vmatpush.msra.mxu0 %v1961
        %2893 = vmatpush.msra.mxu0 %v1960
        %2894 = vmatpush.msra.mxu0 %v1959
        %2895 = vmatmul.f32.gmra.mxu0 %v1551
        %v2896 = vpop.f32.mrf.mxu0
        %v2897 = vadd.f32 %v2784, %v2896
        %2898 = vmatmul.f32.gmra.mxu0 %v1560
        %v2899 = vpop.f32.mrf.mxu0
        %v2900 = vadd.f32 %v2787, %v2899
        %2901 = vmatmul.f32.gmra.mxu0 %v1569
        %v2902 = vpop.f32.mrf.mxu0
        %v2903 = vadd.f32 %v2790, %v2902
        %2904 = vmatmul.f32.gmra.mxu0 %v1578
        %v2905 = vpop.f32.mrf.mxu0
        %v2906 = vadd.f32 %v2793, %v2905
        %2907 = vmatmul.f32.gmra.mxu0 %v1587
        %v2908 = vpop.f32.mrf.mxu0
        %v2909 = vadd.f32 %v2796, %v2908
        %2910 = vmatmul.f32.gmra.mxu0 %v1596
        %v2911 = vpop.f32.mrf.mxu0
        %v2912 = vadd.f32 %v2799, %v2911
        %2913 = vmatmul.f32.gmra.mxu0 %v1605
        %v2914 = vpop.f32.mrf.mxu0
        %v2915 = vadd.f32 %v2802, %v2914
        %2916 = vmatmul.f32.gmra.mxu0 %v1614
        %v2917 = vpop.f32.mrf.mxu0
        %v2918 = vadd.f32 %v2805, %v2917
        %2919 = vmatmul.f32.gmra.mxu0 %v1623
        %v2920 = vpop.f32.mrf.mxu0
        %v2921 = vadd.f32 %v2808, %v2920
        %2922 = vmatmul.f32.gmra.mxu0 %v1632
        %v2923 = vpop.f32.mrf.mxu0
        %v2924 = vadd.f32 %v2811, %v2923
        %2925 = vmatmul.f32.gmra.mxu0 %v1641
        %v2926 = vpop.f32.mrf.mxu0
        %v2927 = vadd.f32 %v2814, %v2926
        %2928 = vmatmul.f32.gmra.mxu0 %v1650
        %v2929 = vpop.f32.mrf.mxu0
        %v2930 = vadd.f32 %v2817, %v2929
        %2931 = vmatmul.f32.gmra.mxu0 %v1659
        %v2932 = vpop.f32.mrf.mxu0
        %v2933 = vadd.f32 %v2820, %v2932
        %2934 = vmatmul.f32.gmra.mxu0 %v1668
        %v2935 = vpop.f32.mrf.mxu0
        %v2936 = vadd.f32 %v2823, %v2935
        %2937 = vmatmul.f32.gmra.mxu0 %v1677
        %v2938 = vpop.f32.mrf.mxu0
        %v2939 = vadd.f32 %v2826, %v2938
        %2940 = vmatmul.f32.gmra.mxu0 %v1686
        %v2941 = vpop.f32.mrf.mxu0
        %v2942 = vadd.f32 %v2829, %v2941
        %2943 = vmatmul.f32.gmra.mxu0 %v1695
        %v2944 = vpop.f32.mrf.mxu0
        %v2945 = vadd.f32 %v2832, %v2944
        %2946 = vmatmul.f32.gmra.mxu0 %v1704
        %v2947 = vpop.f32.mrf.mxu0
        %v2948 = vadd.f32 %v2835, %v2947
        %2949 = vmatmul.f32.gmra.mxu0 %v1713
        %v2950 = vpop.f32.mrf.mxu0
        %v2951 = vadd.f32 %v2838, %v2950
        %2952 = vmatmul.f32.gmra.mxu0 %v1722
        %v2953 = vpop.f32.mrf.mxu0
        %v2954 = vadd.f32 %v2841, %v2953
        %2955 = vmatmul.f32.gmra.mxu0 %v1731
        %v2956 = vpop.f32.mrf.mxu0
        %v2957 = vadd.f32 %v2844, %v2956
        %2958 = vmatmul.f32.gmra.mxu0 %v1740
        %v2959 = vpop.f32.mrf.mxu0
        %v2960 = vadd.f32 %v2847, %v2959
        %2961 = vmatmul.f32.gmra.mxu0 %v1749
        %v2962 = vpop.f32.mrf.mxu0
        %v2963 = vadd.f32 %v2850, %v2962
        %2964 = vmatmul.f32.gmra.mxu0 %v1758
        %v2965 = vpop.f32.mrf.mxu0
        %v2966 = vadd.f32 %v2853, %v2965
        %2967 = vmatmul.f32.gmra.mxu0 %v1767
        %v2968 = vpop.f32.mrf.mxu0
        %v2969 = vadd.f32 %v2856, %v2968
        %2970 = vmatmul.f32.gmra.mxu0 %v1776
        %v2971 = vpop.f32.mrf.mxu0
        %v2972 = vadd.f32 %v2859, %v2971
        %2973 = vmatmul.f32.gmra.mxu0 %v1785
        %v2974 = vpop.f32.mrf.mxu0
        %v2975 = vadd.f32 %v2862, %v2974
        %2976 = vmatmul.f32.gmra.mxu0 %v1794
        %v2977 = vpop.f32.mrf.mxu0
        %v2978 = vadd.f32 %v2865, %v2977
        %2979 = vmatmul.f32.gmra.mxu0 %v1803
        %v2980 = vpop.f32.mrf.mxu0
        %v2981 = vadd.f32 %v2868, %v2980
        %2982 = vmatmul.f32.gmra.mxu0 %v1812
        %v2983 = vpop.f32.mrf.mxu0
        %v2984 = vadd.f32 %v2871, %v2983
        %2985 = vmatmul.f32.gmra.mxu0 %v1821
        %v2986 = vpop.f32.mrf.mxu0
        %v2987 = vadd.f32 %v2874, %v2986
        %2988 = vmatmul.f32.gmra.mxu0 %v1830
        %v2989 = vpop.f32.mrf.mxu0
        %v2990 = vadd.f32 %v2877, %v2989
        %2991 = vdwg.mxu0
        %v2992 = vmax.f32 %v2897, 0.0
        %v2993 = vmax.f32 %v2900, 0.0
        %v2994 = vmax.f32 %v2903, 0.0
        %v2995 = vmax.f32 %v2906, 0.0
        %v2996 = vmax.f32 %v2909, 0.0
        %v2997 = vmax.f32 %v2912, 0.0
        %v2998 = vmax.f32 %v2915, 0.0
        %v2999 = vmax.f32 %v2918, 0.0
        %v3000 = vmax.f32 %v2921, 0.0
        %v3001 = vmax.f32 %v2924, 0.0
        %v3002 = vmax.f32 %v2927, 0.0
        %v3003 = vmax.f32 %v2930, 0.0
        %v3004 = vmax.f32 %v2933, 0.0
        %v3005 = vmax.f32 %v2936, 0.0
        %v3006 = vmax.f32 %v2939, 0.0
        %v3007 = vmax.f32 %v2942, 0.0
        %v3008 = vmax.f32 %v2945, 0.0
        %v3009 = vmax.f32 %v2948, 0.0
        %v3010 = vmax.f32 %v2951, 0.0
        %v3011 = vmax.f32 %v2954, 0.0
        %v3012 = vmax.f32 %v2957, 0.0
        %v3013 = vmax.f32 %v2960, 0.0
        %v3014 = vmax.f32 %v2963, 0.0
        %v3015 = vmax.f32 %v2966, 0.0
        %v3016 = vmax.f32 %v2969, 0.0
        %v3017 = vmax.f32 %v2972, 0.0
        %v3018 = vmax.f32 %v2975, 0.0
        %v3019 = vmax.f32 %v2978, 0.0
        %v3020 = vmax.f32 %v2981, 0.0
        %v3021 = vmax.f32 %v2984, 0.0
        %v3022 = vmax.f32 %v2987, 0.0
        %v3023 = vmax.f32 %v2990, 0.0
        %3024 = vst [vmem:[#allocation2 + $0x18] sm:$0xff] %v2992
        %3025 = vst [vmem:[#allocation2 + $0x20] sm:$0xff] %v2993
        %3026 = vst [vmem:[#allocation2 + $0x28] sm:$0xff] %v2994
        %3027 = vst [vmem:[#allocation2 + $0x30] sm:$0xff] %v2995
        %3028 = vst [vmem:[#allocation2 + $0x38] sm:$0xff] %v2996
        %3029 = vst [vmem:[#allocation2 + $0x40] sm:$0xff] %v2997
        %3030 = vst [vmem:[#allocation2 + $0x48] sm:$0xff] %v2998
        %3031 = vst [vmem:[#allocation2 + $0x50] sm:$0xff] %v2999
        %3032 = vst [vmem:[#allocation2 + $0x58] sm:$0xff] %v3000
        %3033 = vst [vmem:[#allocation2 + $0x60] sm:$0xff] %v3001
        %3034 = vst [vmem:[#allocation2 + $0x68] sm:$0xff] %v3002
        %3035 = vst [vmem:[#allocation2 + $0x70] sm:$0xff] %v3003
        %3036 = vst [vmem:[#allocation2 + $0x78] sm:$0xff] %v3004
        %3037 = vst [vmem:[#allocation2 + $0x80] sm:$0xff] %v3005
        %3038 = vst [vmem:[#allocation2 + $0x88] sm:$0xff] %v3006
        %3039 = vst [vmem:[#allocation2 + $0x90] sm:$0xff] %v3007
        %3040 = vst [vmem:[#allocation2 + $0x98] sm:$0xff] %v3008
        %3041 = vst [vmem:[#allocation2 + $0xa0] sm:$0xff] %v3009
        %3042 = vst [vmem:[#allocation2 + $0xa8] sm:$0xff] %v3010
        %3043 = vst [vmem:[#allocation2 + $0xb0] sm:$0xff] %v3011
        %3044 = vst [vmem:[#allocation2 + $0xb8] sm:$0xff] %v3012
        %3045 = vst [vmem:[#allocation2 + $0xc0] sm:$0xff] %v3013
        %3046 = vst [vmem:[#allocation2 + $0xc8] sm:$0xff] %v3014
        %3047 = vst [vmem:[#allocation2 + $0xd0] sm:$0xff] %v3015
        %3048 = vst [vmem:[#allocation2 + $0xd8] sm:$0xff] %v3016
        %3049 = vst [vmem:[#allocation2 + $0xe0] sm:$0xff] %v3017
        %3050 = vst [vmem:[#allocation2 + $0xe8] sm:$0xff] %v3018
        %3051 = vst [vmem:[#allocation2 + $0xf0] sm:$0xff] %v3019
        %3052 = vst [vmem:[#allocation2 + $0xf8] sm:$0xff] %v3020
        %3053 = vst [vmem:[#allocation2 + $0x100] sm:$0xff] %v3021
        %3054 = vst [vmem:[#allocation2 + $0x108] sm:$0xff] %v3022
        %3055 = vst [vmem:[#allocation2 + $0x110] sm:$0xff] %v3023
        %v3056 = vld [vmem:[#allocation2 + $0x7] sm:$0xff]
        %v3057 = vld [vmem:[#allocation2 + $0xf] sm:$0xff]
        %v3058 = vld [vmem:[#allocation2 + $0x17] sm:$0xff]
        %v3059 = vld [vmem:[#allocation2 + $0x1f] sm:$0xff]
        %v3060 = vld [vmem:[#allocation2 + $0x27] sm:$0xff]
        %v3061 = vld [vmem:[#allocation2 + $0x2f] sm:$0xff]
        %v3062 = vld [vmem:[#allocation2 + $0x37] sm:$0xff]
        %v3063 = vld [vmem:[#allocation2 + $0x3f] sm:$0xff]
        %v3064 = vld [vmem:[#allocation2 + $0x47] sm:$0xff]
        %v3065 = vld [vmem:[#allocation2 + $0x4f] sm:$0xff]
        %v3066 = vld [vmem:[#allocation2 + $0x57] sm:$0xff]
        %v3067 = vld [vmem:[#allocation2 + $0x5f] sm:$0xff]
        %v3068 = vld [vmem:[#allocation2 + $0x67] sm:$0xff]
        %v3069 = vld [vmem:[#allocation2 + $0x6f] sm:$0xff]
        %v3070 = vld [vmem:[#allocation2 + $0x77] sm:$0xff]
        %v3071 = vld [vmem:[#allocation2 + $0x7f] sm:$0xff]
        %v3072 = vld [vmem:[#allocation2 + $0x87] sm:$0xff]
        %v3073 = vld [vmem:[#allocation2 + $0x8f] sm:$0xff]
        %v3074 = vld [vmem:[#allocation2 + $0x97] sm:$0xff]
        %v3075 = vld [vmem:[#allocation2 + $0x9f] sm:$0xff]
        %v3076 = vld [vmem:[#allocation2 + $0xa7] sm:$0xff]
        %v3077 = vld [vmem:[#allocation2 + $0xaf] sm:$0xff]
        %v3078 = vld [vmem:[#allocation2 + $0xb7] sm:$0xff]
        %v3079 = vld [vmem:[#allocation2 + $0xbf] sm:$0xff]
        %v3080 = vld [vmem:[#allocation2 + $0xc7] sm:$0xff]
        %v3081 = vld [vmem:[#allocation2 + $0xcf] sm:$0xff]
        %v3082 = vld [vmem:[#allocation2 + $0xd7] sm:$0xff]
        %v3083 = vld [vmem:[#allocation2 + $0xdf] sm:$0xff]
        %v3084 = vld [vmem:[#allocation2 + $0xe7] sm:$0xff]
        %v3085 = vld [vmem:[#allocation2 + $0xef] sm:$0xff]
        %v3086 = vld [vmem:[#allocation2 + $0xf7] sm:$0xff]
        %v3087 = vld [vmem:[#allocation2 + $0xff] sm:$0xff]
        %v3088 = vsel %vm743, %v3056, 0.0
        %v3089 = vsel %vm744, %v3057, 0.0
        %v3090 = vsel %vm745, %v3058, 0.0
        %v3091 = vsel %vm746, %v3059, 0.0
        %v3092 = vsel %vm747, %v3060, 0.0
        %v3093 = vsel %vm748, %v3061, 0.0
        %v3094 = vsel %vm749, %v3062, 0.0
        %v3095 = vsel %vm750, %v3063, 0.0
        %v3096 = vsel %vm751, %v3064, 0.0
        %v3097 = vsel %vm752, %v3065, 0.0
        %v3098 = vsel %vm753, %v3066, 0.0
        %v3099 = vsel %vm754, %v3067, 0.0
        %v3100 = vsel %vm755, %v3068, 0.0
        %v3101 = vsel %vm756, %v3069, 0.0
        %v3102 = vsel %vm757, %v3070, 0.0
        %v3103 = vsel %vm758, %v3071, 0.0
        %v3104 = vsel %vm759, %v3072, 0.0
        %v3105 = vsel %vm760, %v3073, 0.0
        %v3106 = vsel %vm761, %v3074, 0.0
        %v3107 = vsel %vm762, %v3075, 0.0
        %v3108 = vsel %vm763, %v3076, 0.0
        %v3109 = vsel %vm764, %v3077, 0.0
        %v3110 = vsel %vm765, %v3078, 0.0
        %v3111 = vsel %vm766, %v3079, 0.0
        %v3112 = vsel %vm767, %v3080, 0.0
        %v3113 = vsel %vm768, %v3081, 0.0
        %v3114 = vsel %vm769, %v3082, 0.0
        %v3115 = vsel %vm770, %v3083, 0.0
        %v3116 = vsel %vm771, %v3084, 0.0
        %v3117 = vsel %vm772, %v3085, 0.0
        %v3118 = vsel %vm773, %v3086, 0.0
        %v3119 = vsel %vm774, %v3087, 0.0
        %3120 = vst [vmem:[#allocation3] sm:$0xff] %v3088
        %3121 = vst [vmem:[#allocation3 + $0x48] sm:$0xff] %v3089
        %3122 = vst [vmem:[#allocation3 + $0x90] sm:$0xff] %v3090
        %3123 = vst [vmem:[#allocation3 + $0xd8] sm:$0xff] %v3091
        %3124 = vst [vmem:[#allocation3 + $0x120] sm:$0xff] %v3092
        %3125 = vst [vmem:[#allocation3 + $0x168] sm:$0xff] %v3093
        %3126 = vst [vmem:[#allocation3 + $0x1b0] sm:$0xff] %v3094
        %3127 = vst [vmem:[#allocation3 + $0x1f8] sm:$0xff] %v3095
        %3128 = vst [vmem:[#allocation3 + $0x240] sm:$0xff] %v3096
        %3129 = vst [vmem:[#allocation3 + $0x288] sm:$0xff] %v3097
        %3130 = vst [vmem:[#allocation3 + $0x2d0] sm:$0xff] %v3098
        %3131 = vst [vmem:[#allocation3 + $0x318] sm:$0xff] %v3099
        %3132 = vst [vmem:[#allocation3 + $0x360] sm:$0xff] %v3100
        %3133 = vst [vmem:[#allocation3 + $0x3a8] sm:$0xff] %v3101
        %3134 = vst [vmem:[#allocation3 + $0x3f0] sm:$0xff] %v3102
        %3135 = vst [vmem:[#allocation3 + $0x438] sm:$0xff] %v3103
        %3136 = vst [vmem:[#allocation3 + $0x480] sm:$0xff] %v3104
        %3137 = vst [vmem:[#allocation3 + $0x4c8] sm:$0xff] %v3105
        %3138 = vst [vmem:[#allocation3 + $0x510] sm:$0xff] %v3106
        %3139 = vst [vmem:[#allocation3 + $0x558] sm:$0xff] %v3107
        %3140 = vst [vmem:[#allocation3 + $0x5a0] sm:$0xff] %v3108
        %3141 = vst [vmem:[#allocation3 + $0x5e8] sm:$0xff] %v3109
        %3142 = vst [vmem:[#allocation3 + $0x630] sm:$0xff] %v3110
        %3143 = vst [vmem:[#allocation3 + $0x678] sm:$0xff] %v3111
        %3144 = vst [vmem:[#allocation3 + $0x6c0] sm:$0xff] %v3112
        %3145 = vst [vmem:[#allocation3 + $0x708] sm:$0xff] %v3113
        %3146 = vst [vmem:[#allocation3 + $0x750] sm:$0xff] %v3114
        %3147 = vst [vmem:[#allocation3 + $0x798] sm:$0xff] %v3115
        %3148 = vst [vmem:[#allocation3 + $0x7e0] sm:$0xff] %v3116
        %3149 = vst [vmem:[#allocation3 + $0x828] sm:$0xff] %v3117
        %3150 = vst [vmem:[#allocation3 + $0x870] sm:$0xff] %v3118
        %3151 = vst [vmem:[#allocation3 + $0x8b8] sm:$0xff] %v3119
        %v3152 = vld [vmem:[#allocation2 + $0x8] sm:$0xff]
        %v3153 = vld [vmem:[#allocation2 + $0x10] sm:$0xff]
        %v3154 = vld [vmem:[#allocation2 + $0x18] sm:$0xff]
        %v3155 = vld [vmem:[#allocation2 + $0x20] sm:$0xff]
        %v3156 = vld [vmem:[#allocation2 + $0x28] sm:$0xff]
        %v3157 = vld [vmem:[#allocation2 + $0x30] sm:$0xff]
        %v3158 = vld [vmem:[#allocation2 + $0x38] sm:$0xff]
        %v3159 = vld [vmem:[#allocation2 + $0x40] sm:$0xff]
        %v3160 = vld [vmem:[#allocation2 + $0x48] sm:$0xff]
        %v3161 = vld [vmem:[#allocation2 + $0x50] sm:$0xff]
        %v3162 = vld [vmem:[#allocation2 + $0x58] sm:$0xff]
        %v3163 = vld [vmem:[#allocation2 + $0x60] sm:$0xff]
        %v3164 = vld [vmem:[#allocation2 + $0x68] sm:$0xff]
        %v3165 = vld [vmem:[#allocation2 + $0x70] sm:$0xff]
        %v3166 = vld [vmem:[#allocation2 + $0x78] sm:$0xff]
        %v3167 = vld [vmem:[#allocation2 + $0x80] sm:$0xff]
        %v3168 = vld [vmem:[#allocation2 + $0x88] sm:$0xff]
        %v3169 = vld [vmem:[#allocation2 + $0x90] sm:$0xff]
        %v3170 = vld [vmem:[#allocation2 + $0x98] sm:$0xff]
        %v3171 = vld [vmem:[#allocation2 + $0xa0] sm:$0xff]
        %v3172 = vld [vmem:[#allocation2 + $0xa8] sm:$0xff]
        %v3173 = vld [vmem:[#allocation2 + $0xb0] sm:$0xff]
        %v3174 = vld [vmem:[#allocation2 + $0xb8] sm:$0xff]
        %v3175 = vld [vmem:[#allocation2 + $0xc0] sm:$0xff]
        %v3176 = vld [vmem:[#allocation2 + $0xc8] sm:$0xff]
        %v3177 = vld [vmem:[#allocation2 + $0xd0] sm:$0xff]
        %v3178 = vld [vmem:[#allocation2 + $0xd8] sm:$0xff]
        %v3179 = vld [vmem:[#allocation2 + $0xe0] sm:$0xff]
        %v3180 = vld [vmem:[#allocation2 + $0xe8] sm:$0xff]
        %v3181 = vld [vmem:[#allocation2 + $0xf0] sm:$0xff]
        %v3182 = vld [vmem:[#allocation2 + $0xf8] sm:$0xff]
        %v3183 = vld [vmem:[#allocation2 + $0x100] sm:$0xff]
        %3184 = vst [vmem:[#allocation3 + $0x8] sm:$0xff] %v3152
        %3185 = vst [vmem:[#allocation3 + $0x50] sm:$0xff] %v3153
        %3186 = vst [vmem:[#allocation3 + $0x98] sm:$0xff] %v3154
        %3187 = vst [vmem:[#allocation3 + $0xe0] sm:$0xff] %v3155
        %3188 = vst [vmem:[#allocation3 + $0x128] sm:$0xff] %v3156
        %3189 = vst [vmem:[#allocation3 + $0x170] sm:$0xff] %v3157
        %3190 = vst [vmem:[#allocation3 + $0x1b8] sm:$0xff] %v3158
        %3191 = vst [vmem:[#allocation3 + $0x200] sm:$0xff] %v3159
        %3192 = vst [vmem:[#allocation3 + $0x248] sm:$0xff] %v3160
        %3193 = vst [vmem:[#allocation3 + $0x290] sm:$0xff] %v3161
        %3194 = vst [vmem:[#allocation3 + $0x2d8] sm:$0xff] %v3162
        %3195 = vst [vmem:[#allocation3 + $0x320] sm:$0xff] %v3163
        %3196 = vst [vmem:[#allocation3 + $0x368] sm:$0xff] %v3164
        %3197 = vst [vmem:[#allocation3 + $0x3b0] sm:$0xff] %v3165
        %3198 = vst [vmem:[#allocation3 + $0x3f8] sm:$0xff] %v3166
        %3199 = vst [vmem:[#allocation3 + $0x440] sm:$0xff] %v3167
        %3200 = vst [vmem:[#allocation3 + $0x488] sm:$0xff] %v3168
        %3201 = vst [vmem:[#allocation3 + $0x4d0] sm:$0xff] %v3169
        %3202 = vst [vmem:[#allocation3 + $0x518] sm:$0xff] %v3170
        %3203 = vst [vmem:[#allocation3 + $0x560] sm:$0xff] %v3171
        %3204 = vst [vmem:[#allocation3 + $0x5a8] sm:$0xff] %v3172
        %3205 = vst [vmem:[#allocation3 + $0x5f0] sm:$0xff] %v3173
        %3206 = vst [vmem:[#allocation3 + $0x638] sm:$0xff] %v3174
        %3207 = vst [vmem:[#allocation3 + $0x680] sm:$0xff] %v3175
        %3208 = vst [vmem:[#allocation3 + $0x6c8] sm:$0xff] %v3176
        %3209 = vst [vmem:[#allocation3 + $0x710] sm:$0xff] %v3177
        %3210 = vst [vmem:[#allocation3 + $0x758] sm:$0xff] %v3178
        %3211 = vst [vmem:[#allocation3 + $0x7a0] sm:$0xff] %v3179
        %3212 = vst [vmem:[#allocation3 + $0x7e8] sm:$0xff] %v3180
        %3213 = vst [vmem:[#allocation3 + $0x830] sm:$0xff] %v3181
        %3214 = vst [vmem:[#allocation3 + $0x878] sm:$0xff] %v3182
        %3215 = vst [vmem:[#allocation3 + $0x8c0] sm:$0xff] %v3183
        %v3216 = vld [vmem:[#allocation2 + $0x9] sm:$0xff]
        %v3217 = vld [vmem:[#allocation2 + $0x11] sm:$0xff]
        %v3218 = vld [vmem:[#allocation2 + $0x19] sm:$0xff]
        %v3219 = vld [vmem:[#allocation2 + $0x21] sm:$0xff]
        %v3220 = vld [vmem:[#allocation2 + $0x29] sm:$0xff]
        %v3221 = vld [vmem:[#allocation2 + $0x31] sm:$0xff]
        %v3222 = vld [vmem:[#allocation2 + $0x39] sm:$0xff]
        %v3223 = vld [vmem:[#allocation2 + $0x41] sm:$0xff]
        %v3224 = vld [vmem:[#allocation2 + $0x49] sm:$0xff]
        %v3225 = vld [vmem:[#allocation2 + $0x51] sm:$0xff]
        %v3226 = vld [vmem:[#allocation2 + $0x59] sm:$0xff]
        %v3227 = vld [vmem:[#allocation2 + $0x61] sm:$0xff]
        %v3228 = vld [vmem:[#allocation2 + $0x69] sm:$0xff]
        %v3229 = vld [vmem:[#allocation2 + $0x71] sm:$0xff]
        %v3230 = vld [vmem:[#allocation2 + $0x79] sm:$0xff]
        %v3231 = vld [vmem:[#allocation2 + $0x81] sm:$0xff]
        %v3232 = vld [vmem:[#allocation2 + $0x89] sm:$0xff]
        %v3233 = vld [vmem:[#allocation2 + $0x91] sm:$0xff]
        %v3234 = vld [vmem:[#allocation2 + $0x99] sm:$0xff]
        %v3235 = vld [vmem:[#allocation2 + $0xa1] sm:$0xff]
        %v3236 = vld [vmem:[#allocation2 + $0xa9] sm:$0xff]
        %v3237 = vld [vmem:[#allocation2 + $0xb1] sm:$0xff]
        %v3238 = vld [vmem:[#allocation2 + $0xb9] sm:$0xff]
        %v3239 = vld [vmem:[#allocation2 + $0xc1] sm:$0xff]
        %v3240 = vld [vmem:[#allocation2 + $0xc9] sm:$0xff]
        %v3241 = vld [vmem:[#allocation2 + $0xd1] sm:$0xff]
        %v3242 = vld [vmem:[#allocation2 + $0xd9] sm:$0xff]
        %v3243 = vld [vmem:[#allocation2 + $0xe1] sm:$0xff]
        %v3244 = vld [vmem:[#allocation2 + $0xe9] sm:$0xff]
        %v3245 = vld [vmem:[#allocation2 + $0xf1] sm:$0xff]
        %v3246 = vld [vmem:[#allocation2 + $0xf9] sm:$0xff]
        %v3247 = vld [vmem:[#allocation2 + $0x101] sm:$0xff]
        %v3248 = vsel %vm935, %v3216, 0.0
        %v3249 = vsel %vm936, %v3217, 0.0
        %v3250 = vsel %vm937, %v3218, 0.0
        %v3251 = vsel %vm938, %v3219, 0.0
        %v3252 = vsel %vm939, %v3220, 0.0
        %v3253 = vsel %vm940, %v3221, 0.0
        %v3254 = vsel %vm941, %v3222, 0.0
        %v3255 = vsel %vm942, %v3223, 0.0
        %v3256 = vsel %vm943, %v3224, 0.0
        %v3257 = vsel %vm944, %v3225, 0.0
        %v3258 = vsel %vm945, %v3226, 0.0
        %v3259 = vsel %vm946, %v3227, 0.0
        %v3260 = vsel %vm947, %v3228, 0.0
        %v3261 = vsel %vm948, %v3229, 0.0
        %v3262 = vsel %vm949, %v3230, 0.0
        %v3263 = vsel %vm950, %v3231, 0.0
        %v3264 = vsel %vm951, %v3232, 0.0
        %v3265 = vsel %vm952, %v3233, 0.0
        %v3266 = vsel %vm953, %v3234, 0.0
        %v3267 = vsel %vm954, %v3235, 0.0
        %v3268 = vsel %vm955, %v3236, 0.0
        %v3269 = vsel %vm956, %v3237, 0.0
        %v3270 = vsel %vm957, %v3238, 0.0
        %v3271 = vsel %vm958, %v3239, 0.0
        %v3272 = vsel %vm959, %v3240, 0.0
        %v3273 = vsel %vm960, %v3241, 0.0
        %v3274 = vsel %vm961, %v3242, 0.0
        %v3275 = vsel %vm962, %v3243, 0.0
        %v3276 = vsel %vm963, %v3244, 0.0
        %v3277 = vsel %vm964, %v3245, 0.0
        %v3278 = vsel %vm965, %v3246, 0.0
        %v3279 = vsel %vm966, %v3247, 0.0
        %3280 = vst [vmem:[#allocation3 + $0x10] sm:$0xff] %v3248
        %3281 = vst [vmem:[#allocation3 + $0x58] sm:$0xff] %v3249
        %3282 = vst [vmem:[#allocation3 + $0xa0] sm:$0xff] %v3250
        %3283 = vst [vmem:[#allocation3 + $0xe8] sm:$0xff] %v3251
        %3284 = vst [vmem:[#allocation3 + $0x130] sm:$0xff] %v3252
        %3285 = vst [vmem:[#allocation3 + $0x178] sm:$0xff] %v3253
        %3286 = vst [vmem:[#allocation3 + $0x1c0] sm:$0xff] %v3254
        %3287 = vst [vmem:[#allocation3 + $0x208] sm:$0xff] %v3255
        %3288 = vst [vmem:[#allocation3 + $0x250] sm:$0xff] %v3256
        %3289 = vst [vmem:[#allocation3 + $0x298] sm:$0xff] %v3257
        %3290 = vst [vmem:[#allocation3 + $0x2e0] sm:$0xff] %v3258
        %3291 = vst [vmem:[#allocation3 + $0x328] sm:$0xff] %v3259
        %3292 = vst [vmem:[#allocation3 + $0x370] sm:$0xff] %v3260
        %3293 = vst [vmem:[#allocation3 + $0x3b8] sm:$0xff] %v3261
        %3294 = vst [vmem:[#allocation3 + $0x400] sm:$0xff] %v3262
        %3295 = vst [vmem:[#allocation3 + $0x448] sm:$0xff] %v3263
        %3296 = vst [vmem:[#allocation3 + $0x490] sm:$0xff] %v3264
        %3297 = vst [vmem:[#allocation3 + $0x4d8] sm:$0xff] %v3265
        %3298 = vst [vmem:[#allocation3 + $0x520] sm:$0xff] %v3266
        %3299 = vst [vmem:[#allocation3 + $0x568] sm:$0xff] %v3267
        %3300 = vst [vmem:[#allocation3 + $0x5b0] sm:$0xff] %v3268
        %3301 = vst [vmem:[#allocation3 + $0x5f8] sm:$0xff] %v3269
        %3302 = vst [vmem:[#allocation3 + $0x640] sm:$0xff] %v3270
        %3303 = vst [vmem:[#allocation3 + $0x688] sm:$0xff] %v3271
        %3304 = vst [vmem:[#allocation3 + $0x6d0] sm:$0xff] %v3272
        %3305 = vst [vmem:[#allocation3 + $0x718] sm:$0xff] %v3273
        %3306 = vst [vmem:[#allocation3 + $0x760] sm:$0xff] %v3274
        %3307 = vst [vmem:[#allocation3 + $0x7a8] sm:$0xff] %v3275
        %3308 = vst [vmem:[#allocation3 + $0x7f0] sm:$0xff] %v3276
        %3309 = vst [vmem:[#allocation3 + $0x838] sm:$0xff] %v3277
        %3310 = vst [vmem:[#allocation3 + $0x880] sm:$0xff] %v3278
        %3311 = vst [vmem:[#allocation3 + $0x8c8] sm:$0xff] %v3279
        %v3312 = vld [vmem:[#allocation2 + $0x17] sm:$0xff]
        %v3313 = vld [vmem:[#allocation2 + $0x1f] sm:$0xff]
        %v3314 = vld [vmem:[#allocation2 + $0x27] sm:$0xff]
        %v3315 = vld [vmem:[#allocation2 + $0x2f] sm:$0xff]
        %v3316 = vld [vmem:[#allocation2 + $0x37] sm:$0xff]
        %v3317 = vld [vmem:[#allocation2 + $0x3f] sm:$0xff]
        %v3318 = vld [vmem:[#allocation2 + $0x47] sm:$0xff]
        %v3319 = vld [vmem:[#allocation2 + $0x4f] sm:$0xff]
        %v3320 = vld [vmem:[#allocation2 + $0x57] sm:$0xff]
        %v3321 = vld [vmem:[#allocation2 + $0x5f] sm:$0xff]
        %v3322 = vld [vmem:[#allocation2 + $0x67] sm:$0xff]
        %v3323 = vld [vmem:[#allocation2 + $0x6f] sm:$0xff]
        %v3324 = vld [vmem:[#allocation2 + $0x77] sm:$0xff]
        %v3325 = vld [vmem:[#allocation2 + $0x7f] sm:$0xff]
        %v3326 = vld [vmem:[#allocation2 + $0x87] sm:$0xff]
        %v3327 = vld [vmem:[#allocation2 + $0x8f] sm:$0xff]
        %v3328 = vld [vmem:[#allocation2 + $0x97] sm:$0xff]
        %v3329 = vld [vmem:[#allocation2 + $0x9f] sm:$0xff]
        %v3330 = vld [vmem:[#allocation2 + $0xa7] sm:$0xff]
        %v3331 = vld [vmem:[#allocation2 + $0xaf] sm:$0xff]
        %v3332 = vld [vmem:[#allocation2 + $0xb7] sm:$0xff]
        %v3333 = vld [vmem:[#allocation2 + $0xbf] sm:$0xff]
        %v3334 = vld [vmem:[#allocation2 + $0xc7] sm:$0xff]
        %v3335 = vld [vmem:[#allocation2 + $0xcf] sm:$0xff]
        %v3336 = vld [vmem:[#allocation2 + $0xd7] sm:$0xff]
        %v3337 = vld [vmem:[#allocation2 + $0xdf] sm:$0xff]
        %v3338 = vld [vmem:[#allocation2 + $0xe7] sm:$0xff]
        %v3339 = vld [vmem:[#allocation2 + $0xef] sm:$0xff]
        %v3340 = vld [vmem:[#allocation2 + $0xf7] sm:$0xff]
        %v3341 = vld [vmem:[#allocation2 + $0xff] sm:$0xff]
        %v3342 = vld [vmem:[#allocation2 + $0x107] sm:$0xff]
        %v3343 = vld [vmem:[#allocation2 + $0x10f] sm:$0xff]
        %v3344 = vsel %vm743, %v3312, 0.0
        %v3345 = vsel %vm744, %v3313, 0.0
        %v3346 = vsel %vm745, %v3314, 0.0
        %v3347 = vsel %vm746, %v3315, 0.0
        %v3348 = vsel %vm747, %v3316, 0.0
        %v3349 = vsel %vm748, %v3317, 0.0
        %v3350 = vsel %vm749, %v3318, 0.0
        %v3351 = vsel %vm750, %v3319, 0.0
        %v3352 = vsel %vm751, %v3320, 0.0
        %v3353 = vsel %vm752, %v3321, 0.0
        %v3354 = vsel %vm753, %v3322, 0.0
        %v3355 = vsel %vm754, %v3323, 0.0
        %v3356 = vsel %vm755, %v3324, 0.0
        %v3357 = vsel %vm756, %v3325, 0.0
        %v3358 = vsel %vm757, %v3326, 0.0
        %v3359 = vsel %vm758, %v3327, 0.0
        %v3360 = vsel %vm759, %v3328, 0.0
        %v3361 = vsel %vm760, %v3329, 0.0
        %v3362 = vsel %vm761, %v3330, 0.0
        %v3363 = vsel %vm762, %v3331, 0.0
        %v3364 = vsel %vm763, %v3332, 0.0
        %v3365 = vsel %vm764, %v3333, 0.0
        %v3366 = vsel %vm765, %v3334, 0.0
        %v3367 = vsel %vm766, %v3335, 0.0
        %v3368 = vsel %vm767, %v3336, 0.0
        %v3369 = vsel %vm768, %v3337, 0.0
        %v3370 = vsel %vm769, %v3338, 0.0
        %v3371 = vsel %vm770, %v3339, 0.0
        %v3372 = vsel %vm771, %v3340, 0.0
        %v3373 = vsel %vm772, %v3341, 0.0
        %v3374 = vsel %vm773, %v3342, 0.0
        %v3375 = vsel %vm774, %v3343, 0.0
        %3376 = vst [vmem:[#allocation3 + $0x18] sm:$0xff] %v3344
        %3377 = vst [vmem:[#allocation3 + $0x60] sm:$0xff] %v3345
        %3378 = vst [vmem:[#allocation3 + $0xa8] sm:$0xff] %v3346
        %3379 = vst [vmem:[#allocation3 + $0xf0] sm:$0xff] %v3347
        %3380 = vst [vmem:[#allocation3 + $0x138] sm:$0xff] %v3348
        %3381 = vst [vmem:[#allocation3 + $0x180] sm:$0xff] %v3349
        %3382 = vst [vmem:[#allocation3 + $0x1c8] sm:$0xff] %v3350
        %3383 = vst [vmem:[#allocation3 + $0x210] sm:$0xff] %v3351
        %3384 = vst [vmem:[#allocation3 + $0x258] sm:$0xff] %v3352
        %3385 = vst [vmem:[#allocation3 + $0x2a0] sm:$0xff] %v3353
        %3386 = vst [vmem:[#allocation3 + $0x2e8] sm:$0xff] %v3354
        %3387 = vst [vmem:[#allocation3 + $0x330] sm:$0xff] %v3355
        %3388 = vst [vmem:[#allocation3 + $0x378] sm:$0xff] %v3356
        %3389 = vst [vmem:[#allocation3 + $0x3c0] sm:$0xff] %v3357
        %3390 = vst [vmem:[#allocation3 + $0x408] sm:$0xff] %v3358
        %3391 = vst [vmem:[#allocation3 + $0x450] sm:$0xff] %v3359
        %3392 = vst [vmem:[#allocation3 + $0x498] sm:$0xff] %v3360
        %3393 = vst [vmem:[#allocation3 + $0x4e0] sm:$0xff] %v3361
        %3394 = vst [vmem:[#allocation3 + $0x528] sm:$0xff] %v3362
        %3395 = vst [vmem:[#allocation3 + $0x570] sm:$0xff] %v3363
        %3396 = vst [vmem:[#allocation3 + $0x5b8] sm:$0xff] %v3364
        %3397 = vst [vmem:[#allocation3 + $0x600] sm:$0xff] %v3365
        %3398 = vst [vmem:[#allocation3 + $0x648] sm:$0xff] %v3366
        %3399 = vst [vmem:[#allocation3 + $0x690] sm:$0xff] %v3367
        %3400 = vst [vmem:[#allocation3 + $0x6d8] sm:$0xff] %v3368
        %3401 = vst [vmem:[#allocation3 + $0x720] sm:$0xff] %v3369
        %3402 = vst [vmem:[#allocation3 + $0x768] sm:$0xff] %v3370
        %3403 = vst [vmem:[#allocation3 + $0x7b0] sm:$0xff] %v3371
        %3404 = vst [vmem:[#allocation3 + $0x7f8] sm:$0xff] %v3372
        %3405 = vst [vmem:[#allocation3 + $0x840] sm:$0xff] %v3373
        %3406 = vst [vmem:[#allocation3 + $0x888] sm:$0xff] %v3374
        %3407 = vst [vmem:[#allocation3 + $0x8d0] sm:$0xff] %v3375
        %v3408 = vld [vmem:[#allocation2 + $0x18] sm:$0xff]
        %v3409 = vld [vmem:[#allocation2 + $0x20] sm:$0xff]
        %v3410 = vld [vmem:[#allocation2 + $0x28] sm:$0xff]
        %v3411 = vld [vmem:[#allocation2 + $0x30] sm:$0xff]
        %v3412 = vld [vmem:[#allocation2 + $0x38] sm:$0xff]
        %v3413 = vld [vmem:[#allocation2 + $0x40] sm:$0xff]
        %v3414 = vld [vmem:[#allocation2 + $0x48] sm:$0xff]
        %v3415 = vld [vmem:[#allocation2 + $0x50] sm:$0xff]
        %v3416 = vld [vmem:[#allocation2 + $0x58] sm:$0xff]
        %v3417 = vld [vmem:[#allocation2 + $0x60] sm:$0xff]
        %v3418 = vld [vmem:[#allocation2 + $0x68] sm:$0xff]
        %v3419 = vld [vmem:[#allocation2 + $0x70] sm:$0xff]
        %v3420 = vld [vmem:[#allocation2 + $0x78] sm:$0xff]
        %v3421 = vld [vmem:[#allocation2 + $0x80] sm:$0xff]
        %v3422 = vld [vmem:[#allocation2 + $0x88] sm:$0xff]
        %v3423 = vld [vmem:[#allocation2 + $0x90] sm:$0xff]
        %v3424 = vld [vmem:[#allocation2 + $0x98] sm:$0xff]
        %v3425 = vld [vmem:[#allocation2 + $0xa0] sm:$0xff]
        %v3426 = vld [vmem:[#allocation2 + $0xa8] sm:$0xff]
        %v3427 = vld [vmem:[#allocation2 + $0xb0] sm:$0xff]
        %v3428 = vld [vmem:[#allocation2 + $0xb8] sm:$0xff]
        %v3429 = vld [vmem:[#allocation2 + $0xc0] sm:$0xff]
        %v3430 = vld [vmem:[#allocation2 + $0xc8] sm:$0xff]
        %v3431 = vld [vmem:[#allocation2 + $0xd0] sm:$0xff]
        %v3432 = vld [vmem:[#allocation2 + $0xd8] sm:$0xff]
        %v3433 = vld [vmem:[#allocation2 + $0xe0] sm:$0xff]
        %v3434 = vld [vmem:[#allocation2 + $0xe8] sm:$0xff]
        %v3435 = vld [vmem:[#allocation2 + $0xf0] sm:$0xff]
        %v3436 = vld [vmem:[#allocation2 + $0xf8] sm:$0xff]
        %v3437 = vld [vmem:[#allocation2 + $0x100] sm:$0xff]
        %v3438 = vld [vmem:[#allocation2 + $0x108] sm:$0xff]
        %v3439 = vld [vmem:[#allocation2 + $0x110] sm:$0xff]
        %3440 = vst [vmem:[#allocation3 + $0x20] sm:$0xff] %v3408
        %3441 = vst [vmem:[#allocation3 + $0x68] sm:$0xff] %v3409
        %3442 = vst [vmem:[#allocation3 + $0xb0] sm:$0xff] %v3410
        %3443 = vst [vmem:[#allocation3 + $0xf8] sm:$0xff] %v3411
        %3444 = vst [vmem:[#allocation3 + $0x140] sm:$0xff] %v3412
        %3445 = vst [vmem:[#allocation3 + $0x188] sm:$0xff] %v3413
        %3446 = vst [vmem:[#allocation3 + $0x1d0] sm:$0xff] %v3414
        %3447 = vst [vmem:[#allocation3 + $0x218] sm:$0xff] %v3415
        %3448 = vst [vmem:[#allocation3 + $0x260] sm:$0xff] %v3416
        %3449 = vst [vmem:[#allocation3 + $0x2a8] sm:$0xff] %v3417
        %3450 = vst [vmem:[#allocation3 + $0x2f0] sm:$0xff] %v3418
        %3451 = vst [vmem:[#allocation3 + $0x338] sm:$0xff] %v3419
        %3452 = vst [vmem:[#allocation3 + $0x380] sm:$0xff] %v3420
        %3453 = vst [vmem:[#allocation3 + $0x3c8] sm:$0xff] %v3421
        %3454 = vst [vmem:[#allocation3 + $0x410] sm:$0xff] %v3422
        %3455 = vst [vmem:[#allocation3 + $0x458] sm:$0xff] %v3423
        %3456 = vst [vmem:[#allocation3 + $0x4a0] sm:$0xff] %v3424
        %3457 = vst [vmem:[#allocation3 + $0x4e8] sm:$0xff] %v3425
        %3458 = vst [vmem:[#allocation3 + $0x530] sm:$0xff] %v3426
        %3459 = vst [vmem:[#allocation3 + $0x578] sm:$0xff] %v3427
        %3460 = vst [vmem:[#allocation3 + $0x5c0] sm:$0xff] %v3428
        %3461 = vst [vmem:[#allocation3 + $0x608] sm:$0xff] %v3429
        %3462 = vst [vmem:[#allocation3 + $0x650] sm:$0xff] %v3430
        %3463 = vst [vmem:[#allocation3 + $0x698] sm:$0xff] %v3431
        %3464 = vst [vmem:[#allocation3 + $0x6e0] sm:$0xff] %v3432
        %3465 = vst [vmem:[#allocation3 + $0x728] sm:$0xff] %v3433
        %3466 = vst [vmem:[#allocation3 + $0x770] sm:$0xff] %v3434
        %3467 = vst [vmem:[#allocation3 + $0x7b8] sm:$0xff] %v3435
        %3468 = vst [vmem:[#allocation3 + $0x800] sm:$0xff] %v3436
        %3469 = vst [vmem:[#allocation3 + $0x848] sm:$0xff] %v3437
        %3470 = vst [vmem:[#allocation3 + $0x890] sm:$0xff] %v3438
        %3471 = vst [vmem:[#allocation3 + $0x8d8] sm:$0xff] %v3439
        %v3472 = vld [vmem:[#allocation2 + $0x19] sm:$0xff]
        %v3473 = vld [vmem:[#allocation2 + $0x21] sm:$0xff]
        %v3474 = vld [vmem:[#allocation2 + $0x29] sm:$0xff]
        %v3475 = vld [vmem:[#allocation2 + $0x31] sm:$0xff]
        %v3476 = vld [vmem:[#allocation2 + $0x39] sm:$0xff]
        %v3477 = vld [vmem:[#allocation2 + $0x41] sm:$0xff]
        %v3478 = vld [vmem:[#allocation2 + $0x49] sm:$0xff]
        %v3479 = vld [vmem:[#allocation2 + $0x51] sm:$0xff]
        %v3480 = vld [vmem:[#allocation2 + $0x59] sm:$0xff]
        %v3481 = vld [vmem:[#allocation2 + $0x61] sm:$0xff]
        %v3482 = vld [vmem:[#allocation2 + $0x69] sm:$0xff]
        %v3483 = vld [vmem:[#allocation2 + $0x71] sm:$0xff]
        %v3484 = vld [vmem:[#allocation2 + $0x79] sm:$0xff]
        %v3485 = vld [vmem:[#allocation2 + $0x81] sm:$0xff]
        %v3486 = vld [vmem:[#allocation2 + $0x89] sm:$0xff]
        %v3487 = vld [vmem:[#allocation2 + $0x91] sm:$0xff]
        %v3488 = vld [vmem:[#allocation2 + $0x99] sm:$0xff]
        %v3489 = vld [vmem:[#allocation2 + $0xa1] sm:$0xff]
        %v3490 = vld [vmem:[#allocation2 + $0xa9] sm:$0xff]
        %v3491 = vld [vmem:[#allocation2 + $0xb1] sm:$0xff]
        %v3492 = vld [vmem:[#allocation2 + $0xb9] sm:$0xff]
        %v3493 = vld [vmem:[#allocation2 + $0xc1] sm:$0xff]
        %v3494 = vld [vmem:[#allocation2 + $0xc9] sm:$0xff]
        %v3495 = vld [vmem:[#allocation2 + $0xd1] sm:$0xff]
        %v3496 = vld [vmem:[#allocation2 + $0xd9] sm:$0xff]
        %v3497 = vld [vmem:[#allocation2 + $0xe1] sm:$0xff]
        %v3498 = vld [vmem:[#allocation2 + $0xe9] sm:$0xff]
        %v3499 = vld [vmem:[#allocation2 + $0xf1] sm:$0xff]
        %v3500 = vld [vmem:[#allocation2 + $0xf9] sm:$0xff]
        %v3501 = vld [vmem:[#allocation2 + $0x101] sm:$0xff]
        %v3502 = vld [vmem:[#allocation2 + $0x109] sm:$0xff]
        %v3503 = vld [vmem:[#allocation2 + $0x111] sm:$0xff]
        %v3504 = vsel %vm935, %v3472, 0.0
        %v3505 = vsel %vm936, %v3473, 0.0
        %v3506 = vsel %vm937, %v3474, 0.0
        %v3507 = vsel %vm938, %v3475, 0.0
        %v3508 = vsel %vm939, %v3476, 0.0
        %v3509 = vsel %vm940, %v3477, 0.0
        %v3510 = vsel %vm941, %v3478, 0.0
        %v3511 = vsel %vm942, %v3479, 0.0
        %v3512 = vsel %vm943, %v3480, 0.0
        %v3513 = vsel %vm944, %v3481, 0.0
        %v3514 = vsel %vm945, %v3482, 0.0
        %v3515 = vsel %vm946, %v3483, 0.0
        %v3516 = vsel %vm947, %v3484, 0.0
        %v3517 = vsel %vm948, %v3485, 0.0
        %v3518 = vsel %vm949, %v3486, 0.0
        %v3519 = vsel %vm950, %v3487, 0.0
        %v3520 = vsel %vm951, %v3488, 0.0
        %v3521 = vsel %vm952, %v3489, 0.0
        %v3522 = vsel %vm953, %v3490, 0.0
        %v3523 = vsel %vm954, %v3491, 0.0
        %v3524 = vsel %vm955, %v3492, 0.0
        %v3525 = vsel %vm956, %v3493, 0.0
        %v3526 = vsel %vm957, %v3494, 0.0
        %v3527 = vsel %vm958, %v3495, 0.0
        %v3528 = vsel %vm959, %v3496, 0.0
        %v3529 = vsel %vm960, %v3497, 0.0
        %v3530 = vsel %vm961, %v3498, 0.0
        %v3531 = vsel %vm962, %v3499, 0.0
        %v3532 = vsel %vm963, %v3500, 0.0
        %v3533 = vsel %vm964, %v3501, 0.0
        %v3534 = vsel %vm965, %v3502, 0.0
        %v3535 = vsel %vm966, %v3503, 0.0
        %3536 = vst [vmem:[#allocation3 + $0x28] sm:$0xff] %v3504
        %3537 = vst [vmem:[#allocation3 + $0x70] sm:$0xff] %v3505
        %3538 = vst [vmem:[#allocation3 + $0xb8] sm:$0xff] %v3506
        %3539 = vst [vmem:[#allocation3 + $0x100] sm:$0xff] %v3507
        %3540 = vst [vmem:[#allocation3 + $0x148] sm:$0xff] %v3508
        %3541 = vst [vmem:[#allocation3 + $0x190] sm:$0xff] %v3509
        %3542 = vst [vmem:[#allocation3 + $0x1d8] sm:$0xff] %v3510
        %3543 = vst [vmem:[#allocation3 + $0x220] sm:$0xff] %v3511
        %3544 = vst [vmem:[#allocation3 + $0x268] sm:$0xff] %v3512
        %3545 = vst [vmem:[#allocation3 + $0x2b0] sm:$0xff] %v3513
        %3546 = vst [vmem:[#allocation3 + $0x2f8] sm:$0xff] %v3514
        %3547 = vst [vmem:[#allocation3 + $0x340] sm:$0xff] %v3515
        %3548 = vst [vmem:[#allocation3 + $0x388] sm:$0xff] %v3516
        %3549 = vst [vmem:[#allocation3 + $0x3d0] sm:$0xff] %v3517
        %3550 = vst [vmem:[#allocation3 + $0x418] sm:$0xff] %v3518
        %3551 = vst [vmem:[#allocation3 + $0x460] sm:$0xff] %v3519
        %3552 = vst [vmem:[#allocation3 + $0x4a8] sm:$0xff] %v3520
        %3553 = vst [vmem:[#allocation3 + $0x4f0] sm:$0xff] %v3521
        %3554 = vst [vmem:[#allocation3 + $0x538] sm:$0xff] %v3522
        %3555 = vst [vmem:[#allocation3 + $0x580] sm:$0xff] %v3523
        %3556 = vst [vmem:[#allocation3 + $0x5c8] sm:$0xff] %v3524
        %3557 = vst [vmem:[#allocation3 + $0x610] sm:$0xff] %v3525
        %3558 = vst [vmem:[#allocation3 + $0x658] sm:$0xff] %v3526
        %3559 = vst [vmem:[#allocation3 + $0x6a0] sm:$0xff] %v3527
        %3560 = vst [vmem:[#allocation3 + $0x6e8] sm:$0xff] %v3528
        %3561 = vst [vmem:[#allocation3 + $0x730] sm:$0xff] %v3529
        %3562 = vst [vmem:[#allocation3 + $0x778] sm:$0xff] %v3530
        %3563 = vst [vmem:[#allocation3 + $0x7c0] sm:$0xff] %v3531
        %3564 = vst [vmem:[#allocation3 + $0x808] sm:$0xff] %v3532
        %3565 = vst [vmem:[#allocation3 + $0x850] sm:$0xff] %v3533
        %3566 = vst [vmem:[#allocation3 + $0x898] sm:$0xff] %v3534
        %3567 = vst [vmem:[#allocation3 + $0x8e0] sm:$0xff] %v3535
        %v3568 = vld [vmem:[#allocation2 + $0x27] sm:$0xff]
        %v3569 = vld [vmem:[#allocation2 + $0x2f] sm:$0xff]
        %v3570 = vld [vmem:[#allocation2 + $0x37] sm:$0xff]
        %v3571 = vld [vmem:[#allocation2 + $0x3f] sm:$0xff]
        %v3572 = vld [vmem:[#allocation2 + $0x47] sm:$0xff]
        %v3573 = vld [vmem:[#allocation2 + $0x4f] sm:$0xff]
        %v3574 = vld [vmem:[#allocation2 + $0x57] sm:$0xff]
        %v3575 = vld [vmem:[#allocation2 + $0x5f] sm:$0xff]
        %v3576 = vld [vmem:[#allocation2 + $0x67] sm:$0xff]
        %v3577 = vld [vmem:[#allocation2 + $0x6f] sm:$0xff]
        %v3578 = vld [vmem:[#allocation2 + $0x77] sm:$0xff]
        %v3579 = vld [vmem:[#allocation2 + $0x7f] sm:$0xff]
        %v3580 = vld [vmem:[#allocation2 + $0x87] sm:$0xff]
        %v3581 = vld [vmem:[#allocation2 + $0x8f] sm:$0xff]
        %v3582 = vld [vmem:[#allocation2 + $0x97] sm:$0xff]
        %v3583 = vld [vmem:[#allocation2 + $0x9f] sm:$0xff]
        %v3584 = vld [vmem:[#allocation2 + $0xa7] sm:$0xff]
        %v3585 = vld [vmem:[#allocation2 + $0xaf] sm:$0xff]
        %v3586 = vld [vmem:[#allocation2 + $0xb7] sm:$0xff]
        %v3587 = vld [vmem:[#allocation2 + $0xbf] sm:$0xff]
        %v3588 = vld [vmem:[#allocation2 + $0xc7] sm:$0xff]
        %v3589 = vld [vmem:[#allocation2 + $0xcf] sm:$0xff]
        %v3590 = vld [vmem:[#allocation2 + $0xd7] sm:$0xff]
        %v3591 = vld [vmem:[#allocation2 + $0xdf] sm:$0xff]
        %v3592 = vld [vmem:[#allocation2 + $0xe7] sm:$0xff]
        %v3593 = vld [vmem:[#allocation2 + $0xef] sm:$0xff]
        %v3594 = vld [vmem:[#allocation2 + $0xf7] sm:$0xff]
        %v3595 = vld [vmem:[#allocation2 + $0xff] sm:$0xff]
        %v3596 = vld [vmem:[#allocation2 + $0x107] sm:$0xff]
        %v3597 = vld [vmem:[#allocation2 + $0x10f] sm:$0xff]
        %v3598 = vld [vmem:[#allocation2 + $0x117] sm:$0xff]
        %v3599 = vld [vmem:[#allocation2 + $0x11f] sm:$0xff]
        %v3600 = vsel %vm743, %v3568, 0.0
        %v3601 = vsel %vm744, %v3569, 0.0
        %v3602 = vsel %vm745, %v3570, 0.0
        %v3603 = vsel %vm746, %v3571, 0.0
        %v3604 = vsel %vm747, %v3572, 0.0
        %v3605 = vsel %vm748, %v3573, 0.0
        %v3606 = vsel %vm749, %v3574, 0.0
        %v3607 = vsel %vm750, %v3575, 0.0
        %v3608 = vsel %vm751, %v3576, 0.0
        %v3609 = vsel %vm752, %v3577, 0.0
        %v3610 = vsel %vm753, %v3578, 0.0
        %v3611 = vsel %vm754, %v3579, 0.0
        %v3612 = vsel %vm755, %v3580, 0.0
        %v3613 = vsel %vm756, %v3581, 0.0
        %v3614 = vsel %vm757, %v3582, 0.0
        %v3615 = vsel %vm758, %v3583, 0.0
        %v3616 = vsel %vm759, %v3584, 0.0
        %v3617 = vsel %vm760, %v3585, 0.0
        %v3618 = vsel %vm761, %v3586, 0.0
        %v3619 = vsel %vm762, %v3587, 0.0
        %v3620 = vsel %vm763, %v3588, 0.0
        %v3621 = vsel %vm764, %v3589, 0.0
        %v3622 = vsel %vm765, %v3590, 0.0
        %v3623 = vsel %vm766, %v3591, 0.0
        %v3624 = vsel %vm767, %v3592, 0.0
        %v3625 = vsel %vm768, %v3593, 0.0
        %v3626 = vsel %vm769, %v3594, 0.0
        %v3627 = vsel %vm770, %v3595, 0.0
        %v3628 = vsel %vm771, %v3596, 0.0
        %v3629 = vsel %vm772, %v3597, 0.0
        %v3630 = vsel %vm773, %v3598, 0.0
        %v3631 = vsel %vm774, %v3599, 0.0
        %3632 = vst [vmem:[#allocation3 + $0x30] sm:$0xff] %v3600
        %3633 = vst [vmem:[#allocation3 + $0x78] sm:$0xff] %v3601
        %3634 = vst [vmem:[#allocation3 + $0xc0] sm:$0xff] %v3602
        %3635 = vst [vmem:[#allocation3 + $0x108] sm:$0xff] %v3603
        %3636 = vst [vmem:[#allocation3 + $0x150] sm:$0xff] %v3604
        %3637 = vst [vmem:[#allocation3 + $0x198] sm:$0xff] %v3605
        %3638 = vst [vmem:[#allocation3 + $0x1e0] sm:$0xff] %v3606
        %3639 = vst [vmem:[#allocation3 + $0x228] sm:$0xff] %v3607
        %3640 = vst [vmem:[#allocation3 + $0x270] sm:$0xff] %v3608
        %3641 = vst [vmem:[#allocation3 + $0x2b8] sm:$0xff] %v3609
        %3642 = vst [vmem:[#allocation3 + $0x300] sm:$0xff] %v3610
        %3643 = vst [vmem:[#allocation3 + $0x348] sm:$0xff] %v3611
        %3644 = vst [vmem:[#allocation3 + $0x390] sm:$0xff] %v3612
        %3645 = vst [vmem:[#allocation3 + $0x3d8] sm:$0xff] %v3613
        %3646 = vst [vmem:[#allocation3 + $0x420] sm:$0xff] %v3614
        %3647 = vst [vmem:[#allocation3 + $0x468] sm:$0xff] %v3615
        %3648 = vst [vmem:[#allocation3 + $0x4b0] sm:$0xff] %v3616
        %3649 = vst [vmem:[#allocation3 + $0x4f8] sm:$0xff] %v3617
        %3650 = vst [vmem:[#allocation3 + $0x540] sm:$0xff] %v3618
        %3651 = vst [vmem:[#allocation3 + $0x588] sm:$0xff] %v3619
        %3652 = vst [vmem:[#allocation3 + $0x5d0] sm:$0xff] %v3620
        %3653 = vst [vmem:[#allocation3 + $0x618] sm:$0xff] %v3621
        %3654 = vst [vmem:[#allocation3 + $0x660] sm:$0xff] %v3622
        %3655 = vst [vmem:[#allocation3 + $0x6a8] sm:$0xff] %v3623
        %3656 = vst [vmem:[#allocation3 + $0x6f0] sm:$0xff] %v3624
        %3657 = vst [vmem:[#allocation3 + $0x738] sm:$0xff] %v3625
        %3658 = vst [vmem:[#allocation3 + $0x780] sm:$0xff] %v3626
        %3659 = vst [vmem:[#allocation3 + $0x7c8] sm:$0xff] %v3627
        %3660 = vst [vmem:[#allocation3 + $0x810] sm:$0xff] %v3628
        %3661 = vst [vmem:[#allocation3 + $0x858] sm:$0xff] %v3629
        %3662 = vst [vmem:[#allocation3 + $0x8a0] sm:$0xff] %v3630
        %3663 = vst [vmem:[#allocation3 + $0x8e8] sm:$0xff] %v3631
        %v3664 = vld [vmem:[#allocation2 + $0x28] sm:$0xff]
        %v3665 = vld [vmem:[#allocation2 + $0x30] sm:$0xff]
        %v3666 = vld [vmem:[#allocation2 + $0x38] sm:$0xff]
        %v3667 = vld [vmem:[#allocation2 + $0x40] sm:$0xff]
        %v3668 = vld [vmem:[#allocation2 + $0x48] sm:$0xff]
        %v3669 = vld [vmem:[#allocation2 + $0x50] sm:$0xff]
        %v3670 = vld [vmem:[#allocation2 + $0x58] sm:$0xff]
        %v3671 = vld [vmem:[#allocation2 + $0x60] sm:$0xff]
        %v3672 = vld [vmem:[#allocation2 + $0x68] sm:$0xff]
        %v3673 = vld [vmem:[#allocation2 + $0x70] sm:$0xff]
        %v3674 = vld [vmem:[#allocation2 + $0x78] sm:$0xff]
        %v3675 = vld [vmem:[#allocation2 + $0x80] sm:$0xff]
        %v3676 = vld [vmem:[#allocation2 + $0x88] sm:$0xff]
        %v3677 = vld [vmem:[#allocation2 + $0x90] sm:$0xff]
        %v3678 = vld [vmem:[#allocation2 + $0x98] sm:$0xff]
        %v3679 = vld [vmem:[#allocation2 + $0xa0] sm:$0xff]
        %v3680 = vld [vmem:[#allocation2 + $0xa8] sm:$0xff]
        %v3681 = vld [vmem:[#allocation2 + $0xb0] sm:$0xff]
        %v3682 = vld [vmem:[#allocation2 + $0xb8] sm:$0xff]
        %v3683 = vld [vmem:[#allocation2 + $0xc0] sm:$0xff]
        %v3684 = vld [vmem:[#allocation2 + $0xc8] sm:$0xff]
        %v3685 = vld [vmem:[#allocation2 + $0xd0] sm:$0xff]
        %v3686 = vld [vmem:[#allocation2 + $0xd8] sm:$0xff]
        %v3687 = vld [vmem:[#allocation2 + $0xe0] sm:$0xff]
        %v3688 = vld [vmem:[#allocation2 + $0xe8] sm:$0xff]
        %v3689 = vld [vmem:[#allocation2 + $0xf0] sm:$0xff]
        %v3690 = vld [vmem:[#allocation2 + $0xf8] sm:$0xff]
        %v3691 = vld [vmem:[#allocation2 + $0x100] sm:$0xff]
        %v3692 = vld [vmem:[#allocation2 + $0x108] sm:$0xff]
        %v3693 = vld [vmem:[#allocation2 + $0x110] sm:$0xff]
        %v3694 = vld [vmem:[#allocation2 + $0x118] sm:$0xff]
        %v3695 = vld [vmem:[#allocation2 + $0x120] sm:$0xff]
        %3696 = vst [vmem:[#allocation3 + $0x38] sm:$0xff] %v3664
        %3697 = vst [vmem:[#allocation3 + $0x80] sm:$0xff] %v3665
        %3698 = vst [vmem:[#allocation3 + $0xc8] sm:$0xff] %v3666
        %3699 = vst [vmem:[#allocation3 + $0x110] sm:$0xff] %v3667
        %3700 = vst [vmem:[#allocation3 + $0x158] sm:$0xff] %v3668
        %3701 = vst [vmem:[#allocation3 + $0x1a0] sm:$0xff] %v3669
        %3702 = vst [vmem:[#allocation3 + $0x1e8] sm:$0xff] %v3670
        %3703 = vst [vmem:[#allocation3 + $0x230] sm:$0xff] %v3671
        %3704 = vst [vmem:[#allocation3 + $0x278] sm:$0xff] %v3672
        %3705 = vst [vmem:[#allocation3 + $0x2c0] sm:$0xff] %v3673
        %3706 = vst [vmem:[#allocation3 + $0x308] sm:$0xff] %v3674
        %3707 = vst [vmem:[#allocation3 + $0x350] sm:$0xff] %v3675
        %3708 = vst [vmem:[#allocation3 + $0x398] sm:$0xff] %v3676
        %3709 = vst [vmem:[#allocation3 + $0x3e0] sm:$0xff] %v3677
        %3710 = vst [vmem:[#allocation3 + $0x428] sm:$0xff] %v3678
        %3711 = vst [vmem:[#allocation3 + $0x470] sm:$0xff] %v3679
        %3712 = vst [vmem:[#allocation3 + $0x4b8] sm:$0xff] %v3680
        %3713 = vst [vmem:[#allocation3 + $0x500] sm:$0xff] %v3681
        %3714 = vst [vmem:[#allocation3 + $0x548] sm:$0xff] %v3682
        %3715 = vst [vmem:[#allocation3 + $0x590] sm:$0xff] %v3683
        %3716 = vst [vmem:[#allocation3 + $0x5d8] sm:$0xff] %v3684
        %3717 = vst [vmem:[#allocation3 + $0x620] sm:$0xff] %v3685
        %3718 = vst [vmem:[#allocation3 + $0x668] sm:$0xff] %v3686
        %3719 = vst [vmem:[#allocation3 + $0x6b0] sm:$0xff] %v3687
        %3720 = vst [vmem:[#allocation3 + $0x6f8] sm:$0xff] %v3688
        %3721 = vst [vmem:[#allocation3 + $0x740] sm:$0xff] %v3689
        %3722 = vst [vmem:[#allocation3 + $0x788] sm:$0xff] %v3690
        %3723 = vst [vmem:[#allocation3 + $0x7d0] sm:$0xff] %v3691
        %3724 = vst [vmem:[#allocation3 + $0x818] sm:$0xff] %v3692
        %3725 = vst [vmem:[#allocation3 + $0x860] sm:$0xff] %v3693
        %3726 = vst [vmem:[#allocation3 + $0x8a8] sm:$0xff] %v3694
        %3727 = vst [vmem:[#allocation3 + $0x8f0] sm:$0xff] %v3695
        %v3728 = vld [vmem:[#allocation2 + $0x29] sm:$0xff]
        %v3729 = vld [vmem:[#allocation2 + $0x31] sm:$0xff]
        %v3730 = vld [vmem:[#allocation2 + $0x39] sm:$0xff]
        %v3731 = vld [vmem:[#allocation2 + $0x41] sm:$0xff]
        %v3732 = vld [vmem:[#allocation2 + $0x49] sm:$0xff]
        %v3733 = vld [vmem:[#allocation2 + $0x51] sm:$0xff]
        %v3734 = vld [vmem:[#allocation2 + $0x59] sm:$0xff]
        %v3735 = vld [vmem:[#allocation2 + $0x61] sm:$0xff]
        %v3736 = vld [vmem:[#allocation2 + $0x69] sm:$0xff]
        %v3737 = vld [vmem:[#allocation2 + $0x71] sm:$0xff]
        %v3738 = vld [vmem:[#allocation2 + $0x79] sm:$0xff]
        %v3739 = vld [vmem:[#allocation2 + $0x81] sm:$0xff]
        %v3740 = vld [vmem:[#allocation2 + $0x89] sm:$0xff]
        %v3741 = vld [vmem:[#allocation2 + $0x91] sm:$0xff]
        %v3742 = vld [vmem:[#allocation2 + $0x99] sm:$0xff]
        %v3743 = vld [vmem:[#allocation2 + $0xa1] sm:$0xff]
        %v3744 = vld [vmem:[#allocation2 + $0xa9] sm:$0xff]
        %v3745 = vld [vmem:[#allocation2 + $0xb1] sm:$0xff]
        %v3746 = vld [vmem:[#allocation2 + $0xb9] sm:$0xff]
        %v3747 = vld [vmem:[#allocation2 + $0xc1] sm:$0xff]
        %v3748 = vld [vmem:[#allocation2 + $0xc9] sm:$0xff]
        %v3749 = vld [vmem:[#allocation2 + $0xd1] sm:$0xff]
        %v3750 = vld [vmem:[#allocation2 + $0xd9] sm:$0xff]
        %v3751 = vld [vmem:[#allocation2 + $0xe1] sm:$0xff]
        %v3752 = vld [vmem:[#allocation2 + $0xe9] sm:$0xff]
        %v3753 = vld [vmem:[#allocation2 + $0xf1] sm:$0xff]
        %v3754 = vld [vmem:[#allocation2 + $0xf9] sm:$0xff]
        %v3755 = vld [vmem:[#allocation2 + $0x101] sm:$0xff]
        %v3756 = vld [vmem:[#allocation2 + $0x109] sm:$0xff]
        %v3757 = vld [vmem:[#allocation2 + $0x111] sm:$0xff]
        %v3758 = vld [vmem:[#allocation2 + $0x119] sm:$0xff]
        %v3759 = vld [vmem:[#allocation2 + $0x121] sm:$0xff]
        %v3760 = vsel %vm935, %v3728, 0.0
        %v3761 = vsel %vm936, %v3729, 0.0
        %v3762 = vsel %vm937, %v3730, 0.0
        %v3763 = vsel %vm938, %v3731, 0.0
        %v3764 = vsel %vm939, %v3732, 0.0
        %v3765 = vsel %vm940, %v3733, 0.0
        %v3766 = vsel %vm941, %v3734, 0.0
        %v3767 = vsel %vm942, %v3735, 0.0
        %v3768 = vsel %vm943, %v3736, 0.0
        %v3769 = vsel %vm944, %v3737, 0.0
        %v3770 = vsel %vm945, %v3738, 0.0
        %v3771 = vsel %vm946, %v3739, 0.0
        %v3772 = vsel %vm947, %v3740, 0.0
        %v3773 = vsel %vm948, %v3741, 0.0
        %v3774 = vsel %vm949, %v3742, 0.0
        %v3775 = vsel %vm950, %v3743, 0.0
        %v3776 = vsel %vm951, %v3744, 0.0
        %v3777 = vsel %vm952, %v3745, 0.0
        %v3778 = vsel %vm953, %v3746, 0.0
        %v3779 = vsel %vm954, %v3747, 0.0
        %v3780 = vsel %vm955, %v3748, 0.0
        %v3781 = vsel %vm956, %v3749, 0.0
        %v3782 = vsel %vm957, %v3750, 0.0
        %v3783 = vsel %vm958, %v3751, 0.0
        %v3784 = vsel %vm959, %v3752, 0.0
        %v3785 = vsel %vm960, %v3753, 0.0
        %v3786 = vsel %vm961, %v3754, 0.0
        %v3787 = vsel %vm962, %v3755, 0.0
        %v3788 = vsel %vm963, %v3756, 0.0
        %v3789 = vsel %vm964, %v3757, 0.0
        %v3790 = vsel %vm965, %v3758, 0.0
        %v3791 = vsel %vm966, %v3759, 0.0
        %3792 = vst [vmem:[#allocation3 + $0x40] sm:$0xff] %v3760
        %3793 = vst [vmem:[#allocation3 + $0x88] sm:$0xff] %v3761
        %3794 = vst [vmem:[#allocation3 + $0xd0] sm:$0xff] %v3762
        %3795 = vst [vmem:[#allocation3 + $0x118] sm:$0xff] %v3763
        %3796 = vst [vmem:[#allocation3 + $0x160] sm:$0xff] %v3764
        %3797 = vst [vmem:[#allocation3 + $0x1a8] sm:$0xff] %v3765
        %3798 = vst [vmem:[#allocation3 + $0x1f0] sm:$0xff] %v3766
        %3799 = vst [vmem:[#allocation3 + $0x238] sm:$0xff] %v3767
        %3800 = vst [vmem:[#allocation3 + $0x280] sm:$0xff] %v3768
        %3801 = vst [vmem:[#allocation3 + $0x2c8] sm:$0xff] %v3769
        %3802 = vst [vmem:[#allocation3 + $0x310] sm:$0xff] %v3770
        %3803 = vst [vmem:[#allocation3 + $0x358] sm:$0xff] %v3771
        %3804 = vst [vmem:[#allocation3 + $0x3a0] sm:$0xff] %v3772
        %3805 = vst [vmem:[#allocation3 + $0x3e8] sm:$0xff] %v3773
        %3806 = vst [vmem:[#allocation3 + $0x430] sm:$0xff] %v3774
        %3807 = vst [vmem:[#allocation3 + $0x478] sm:$0xff] %v3775
        %3808 = vst [vmem:[#allocation3 + $0x4c0] sm:$0xff] %v3776
        %3809 = vst [vmem:[#allocation3 + $0x508] sm:$0xff] %v3777
        %3810 = vst [vmem:[#allocation3 + $0x550] sm:$0xff] %v3778
        %3811 = vst [vmem:[#allocation3 + $0x598] sm:$0xff] %v3779
        %3812 = vst [vmem:[#allocation3 + $0x5e0] sm:$0xff] %v3780
        %3813 = vst [vmem:[#allocation3 + $0x628] sm:$0xff] %v3781
        %3814 = vst [vmem:[#allocation3 + $0x670] sm:$0xff] %v3782
        %3815 = vst [vmem:[#allocation3 + $0x6b8] sm:$0xff] %v3783
        %3816 = vst [vmem:[#allocation3 + $0x700] sm:$0xff] %v3784
        %3817 = vst [vmem:[#allocation3 + $0x748] sm:$0xff] %v3785
        %3818 = vst [vmem:[#allocation3 + $0x790] sm:$0xff] %v3786
        %3819 = vst [vmem:[#allocation3 + $0x7d8] sm:$0xff] %v3787
        %3820 = vst [vmem:[#allocation3 + $0x820] sm:$0xff] %v3788
        %3821 = vst [vmem:[#allocation3 + $0x868] sm:$0xff] %v3789
        %3822 = vst [vmem:[#allocation3 + $0x8b0] sm:$0xff] %v3790
        %3823 = vst [vmem:[#allocation3 + $0x8f8] sm:$0xff] %v3791
        %v3824 = vld [vmem:[#allocation3] sm:$0xff]
        %v3825 = vld [vmem:[#allocation3 + $0x8] sm:$0xff]
        %v3826 = vld [vmem:[#allocation3 + $0x10] sm:$0xff]
        %v3827 = vld [vmem:[#allocation3 + $0x18] sm:$0xff]
        %v3828 = vld [vmem:[#allocation3 + $0x20] sm:$0xff]
        %v3829 = vld [vmem:[#allocation3 + $0x28] sm:$0xff]
        %v3830 = vld [vmem:[#allocation3 + $0x30] sm:$0xff]
        %v3831 = vld [vmem:[#allocation3 + $0x38] sm:$0xff]
        %v3832 = vld [vmem:[#allocation3 + $0x40] sm:$0xff]
        %v3833 = vld [vmem:[#allocation3 + $0x48] sm:$0xff]
        %v3834 = vld [vmem:[#allocation3 + $0x50] sm:$0xff]
        %v3835 = vld [vmem:[#allocation3 + $0x58] sm:$0xff]
        %v3836 = vld [vmem:[#allocation3 + $0x60] sm:$0xff]
        %v3837 = vld [vmem:[#allocation3 + $0x68] sm:$0xff]
        %v3838 = vld [vmem:[#allocation3 + $0x70] sm:$0xff]
        %v3839 = vld [vmem:[#allocation3 + $0x78] sm:$0xff]
        %v3840 = vld [vmem:[#allocation3 + $0x80] sm:$0xff]
        %v3841 = vld [vmem:[#allocation3 + $0x88] sm:$0xff]
        %v3842 = vld [vmem:[#allocation3 + $0x90] sm:$0xff]
        %v3843 = vld [vmem:[#allocation3 + $0x98] sm:$0xff]
        %v3844 = vld [vmem:[#allocation3 + $0xa0] sm:$0xff]
        %v3845 = vld [vmem:[#allocation3 + $0xa8] sm:$0xff]
        %v3846 = vld [vmem:[#allocation3 + $0xb0] sm:$0xff]
        %v3847 = vld [vmem:[#allocation3 + $0xb8] sm:$0xff]
        %v3848 = vld [vmem:[#allocation3 + $0xc0] sm:$0xff]
        %v3849 = vld [vmem:[#allocation3 + $0xc8] sm:$0xff]
        %v3850 = vld [vmem:[#allocation3 + $0xd0] sm:$0xff]
        %v3851 = vld [vmem:[#allocation3 + $0xd8] sm:$0xff]
        %v3852 = vld [vmem:[#allocation3 + $0xe0] sm:$0xff]
        %v3853 = vld [vmem:[#allocation3 + $0xe8] sm:$0xff]
        %v3854 = vld [vmem:[#allocation3 + $0xf0] sm:$0xff]
        %v3855 = vld [vmem:[#allocation3 + $0xf8] sm:$0xff]
        %v3856 = vld [vmem:[#allocation3 + $0x100] sm:$0xff]
        %v3857 = vld [vmem:[#allocation3 + $0x108] sm:$0xff]
        %v3858 = vld [vmem:[#allocation3 + $0x110] sm:$0xff]
        %v3859 = vld [vmem:[#allocation3 + $0x118] sm:$0xff]
        %v3860 = vld [vmem:[#allocation3 + $0x120] sm:$0xff]
        %v3861 = vld [vmem:[#allocation3 + $0x128] sm:$0xff]
        %v3862 = vld [vmem:[#allocation3 + $0x130] sm:$0xff]
        %v3863 = vld [vmem:[#allocation3 + $0x138] sm:$0xff]
        %v3864 = vld [vmem:[#allocation3 + $0x140] sm:$0xff]
        %v3865 = vld [vmem:[#allocation3 + $0x148] sm:$0xff]
        %v3866 = vld [vmem:[#allocation3 + $0x150] sm:$0xff]
        %v3867 = vld [vmem:[#allocation3 + $0x158] sm:$0xff]
        %v3868 = vld [vmem:[#allocation3 + $0x160] sm:$0xff]
        %v3869 = vld [vmem:[#allocation3 + $0x168] sm:$0xff]
        %v3870 = vld [vmem:[#allocation3 + $0x170] sm:$0xff]
        %v3871 = vld [vmem:[#allocation3 + $0x178] sm:$0xff]
        %v3872 = vld [vmem:[#allocation3 + $0x180] sm:$0xff]
        %v3873 = vld [vmem:[#allocation3 + $0x188] sm:$0xff]
        %v3874 = vld [vmem:[#allocation3 + $0x190] sm:$0xff]
        %v3875 = vld [vmem:[#allocation3 + $0x198] sm:$0xff]
        %v3876 = vld [vmem:[#allocation3 + $0x1a0] sm:$0xff]
        %v3877 = vld [vmem:[#allocation3 + $0x1a8] sm:$0xff]
        %v3878 = vld [vmem:[#allocation3 + $0x1b0] sm:$0xff]
        %v3879 = vld [vmem:[#allocation3 + $0x1b8] sm:$0xff]
        %v3880 = vld [vmem:[#allocation3 + $0x1c0] sm:$0xff]
        %v3881 = vld [vmem:[#allocation3 + $0x1c8] sm:$0xff]
        %v3882 = vld [vmem:[#allocation3 + $0x1d0] sm:$0xff]
        %v3883 = vld [vmem:[#allocation3 + $0x1d8] sm:$0xff]
        %v3884 = vld [vmem:[#allocation3 + $0x1e0] sm:$0xff]
        %v3885 = vld [vmem:[#allocation3 + $0x1e8] sm:$0xff]
        %v3886 = vld [vmem:[#allocation3 + $0x1f0] sm:$0xff]
        %v3887 = vld [vmem:[#allocation3 + $0x1f8] sm:$0xff]
        %v3888 = vld [vmem:[#allocation3 + $0x200] sm:$0xff]
        %v3889 = vld [vmem:[#allocation3 + $0x208] sm:$0xff]
        %v3890 = vld [vmem:[#allocation3 + $0x210] sm:$0xff]
        %v3891 = vld [vmem:[#allocation3 + $0x218] sm:$0xff]
        %v3892 = vld [vmem:[#allocation3 + $0x220] sm:$0xff]
        %v3893 = vld [vmem:[#allocation3 + $0x228] sm:$0xff]
        %v3894 = vld [vmem:[#allocation3 + $0x230] sm:$0xff]
        %v3895 = vld [vmem:[#allocation3 + $0x238] sm:$0xff]
        %v3896 = vld [vmem:[#allocation3 + $0x240] sm:$0xff]
        %v3897 = vld [vmem:[#allocation3 + $0x248] sm:$0xff]
        %v3898 = vld [vmem:[#allocation3 + $0x250] sm:$0xff]
        %v3899 = vld [vmem:[#allocation3 + $0x258] sm:$0xff]
        %v3900 = vld [vmem:[#allocation3 + $0x260] sm:$0xff]
        %v3901 = vld [vmem:[#allocation3 + $0x268] sm:$0xff]
        %v3902 = vld [vmem:[#allocation3 + $0x270] sm:$0xff]
        %v3903 = vld [vmem:[#allocation3 + $0x278] sm:$0xff]
        %v3904 = vld [vmem:[#allocation3 + $0x280] sm:$0xff]
        %v3905 = vld [vmem:[#allocation3 + $0x288] sm:$0xff]
        %v3906 = vld [vmem:[#allocation3 + $0x290] sm:$0xff]
        %v3907 = vld [vmem:[#allocation3 + $0x298] sm:$0xff]
        %v3908 = vld [vmem:[#allocation3 + $0x2a0] sm:$0xff]
        %v3909 = vld [vmem:[#allocation3 + $0x2a8] sm:$0xff]
        %v3910 = vld [vmem:[#allocation3 + $0x2b0] sm:$0xff]
        %v3911 = vld [vmem:[#allocation3 + $0x2b8] sm:$0xff]
        %v3912 = vld [vmem:[#allocation3 + $0x2c0] sm:$0xff]
        %v3913 = vld [vmem:[#allocation3 + $0x2c8] sm:$0xff]
        %v3914 = vld [vmem:[#allocation3 + $0x2d0] sm:$0xff]
        %v3915 = vld [vmem:[#allocation3 + $0x2d8] sm:$0xff]
        %v3916 = vld [vmem:[#allocation3 + $0x2e0] sm:$0xff]
        %v3917 = vld [vmem:[#allocation3 + $0x2e8] sm:$0xff]
        %v3918 = vld [vmem:[#allocation3 + $0x2f0] sm:$0xff]
        %v3919 = vld [vmem:[#allocation3 + $0x2f8] sm:$0xff]
        %v3920 = vld [vmem:[#allocation3 + $0x300] sm:$0xff]
        %v3921 = vld [vmem:[#allocation3 + $0x308] sm:$0xff]
        %v3922 = vld [vmem:[#allocation3 + $0x310] sm:$0xff]
        %v3923 = vld [vmem:[#allocation3 + $0x318] sm:$0xff]
        %v3924 = vld [vmem:[#allocation3 + $0x320] sm:$0xff]
        %v3925 = vld [vmem:[#allocation3 + $0x328] sm:$0xff]
        %v3926 = vld [vmem:[#allocation3 + $0x330] sm:$0xff]
        %v3927 = vld [vmem:[#allocation3 + $0x338] sm:$0xff]
        %v3928 = vld [vmem:[#allocation3 + $0x340] sm:$0xff]
        %v3929 = vld [vmem:[#allocation3 + $0x348] sm:$0xff]
        %v3930 = vld [vmem:[#allocation3 + $0x350] sm:$0xff]
        %v3931 = vld [vmem:[#allocation3 + $0x358] sm:$0xff]
        %v3932 = vld [vmem:[#allocation3 + $0x360] sm:$0xff]
        %v3933 = vld [vmem:[#allocation3 + $0x368] sm:$0xff]
        %v3934 = vld [vmem:[#allocation3 + $0x370] sm:$0xff]
        %v3935 = vld [vmem:[#allocation3 + $0x378] sm:$0xff]
        %v3936 = vld [vmem:[#allocation3 + $0x380] sm:$0xff]
        %v3937 = vld [vmem:[#allocation3 + $0x388] sm:$0xff]
        %v3938 = vld [vmem:[#allocation3 + $0x390] sm:$0xff]
        %v3939 = vld [vmem:[#allocation3 + $0x398] sm:$0xff]
        %v3940 = vld [vmem:[#allocation3 + $0x3a0] sm:$0xff]
        %v3941 = vld [vmem:[#allocation3 + $0x3a8] sm:$0xff]
        %v3942 = vld [vmem:[#allocation3 + $0x3b0] sm:$0xff]
        %v3943 = vld [vmem:[#allocation3 + $0x3b8] sm:$0xff]
        %v3944 = vld [vmem:[#allocation3 + $0x3c0] sm:$0xff]
        %v3945 = vld [vmem:[#allocation3 + $0x3c8] sm:$0xff]
        %v3946 = vld [vmem:[#allocation3 + $0x3d0] sm:$0xff]
        %v3947 = vld [vmem:[#allocation3 + $0x3d8] sm:$0xff]
        %v3948 = vld [vmem:[#allocation3 + $0x3e0] sm:$0xff]
        %v3949 = vld [vmem:[#allocation3 + $0x3e8] sm:$0xff]
        %v3950 = vld [vmem:[#allocation3 + $0x3f0] sm:$0xff]
        %v3951 = vld [vmem:[#allocation3 + $0x3f8] sm:$0xff]
        %v3952 = vld [vmem:[#allocation3 + $0x400] sm:$0xff]
        %v3953 = vld [vmem:[#allocation3 + $0x408] sm:$0xff]
        %v3954 = vld [vmem:[#allocation3 + $0x410] sm:$0xff]
        %v3955 = vld [vmem:[#allocation3 + $0x418] sm:$0xff]
        %v3956 = vld [vmem:[#allocation3 + $0x420] sm:$0xff]
        %v3957 = vld [vmem:[#allocation3 + $0x428] sm:$0xff]
        %v3958 = vld [vmem:[#allocation3 + $0x430] sm:$0xff]
        %v3959 = vld [vmem:[#allocation3 + $0x438] sm:$0xff]
        %v3960 = vld [vmem:[#allocation3 + $0x440] sm:$0xff]
        %v3961 = vld [vmem:[#allocation3 + $0x448] sm:$0xff]
        %v3962 = vld [vmem:[#allocation3 + $0x450] sm:$0xff]
        %v3963 = vld [vmem:[#allocation3 + $0x458] sm:$0xff]
        %v3964 = vld [vmem:[#allocation3 + $0x460] sm:$0xff]
        %v3965 = vld [vmem:[#allocation3 + $0x468] sm:$0xff]
        %v3966 = vld [vmem:[#allocation3 + $0x470] sm:$0xff]
        %v3967 = vld [vmem:[#allocation3 + $0x478] sm:$0xff]
        %v3968 = vld [vmem:[#allocation3 + $0x480] sm:$0xff]
        %v3969 = vld [vmem:[#allocation3 + $0x488] sm:$0xff]
        %v3970 = vld [vmem:[#allocation3 + $0x490] sm:$0xff]
        %v3971 = vld [vmem:[#allocation3 + $0x498] sm:$0xff]
        %v3972 = vld [vmem:[#allocation3 + $0x4a0] sm:$0xff]
        %v3973 = vld [vmem:[#allocation3 + $0x4a8] sm:$0xff]
        %v3974 = vld [vmem:[#allocation3 + $0x4b0] sm:$0xff]
        %v3975 = vld [vmem:[#allocation3 + $0x4b8] sm:$0xff]
        %v3976 = vld [vmem:[#allocation3 + $0x4c0] sm:$0xff]
        %v3977 = vld [vmem:[#allocation3 + $0x4c8] sm:$0xff]
        %v3978 = vld [vmem:[#allocation3 + $0x4d0] sm:$0xff]
        %v3979 = vld [vmem:[#allocation3 + $0x4d8] sm:$0xff]
        %v3980 = vld [vmem:[#allocation3 + $0x4e0] sm:$0xff]
        %v3981 = vld [vmem:[#allocation3 + $0x4e8] sm:$0xff]
        %v3982 = vld [vmem:[#allocation3 + $0x4f0] sm:$0xff]
        %v3983 = vld [vmem:[#allocation3 + $0x4f8] sm:$0xff]
        %v3984 = vld [vmem:[#allocation3 + $0x500] sm:$0xff]
        %v3985 = vld [vmem:[#allocation3 + $0x508] sm:$0xff]
        %v3986 = vld [vmem:[#allocation3 + $0x510] sm:$0xff]
        %v3987 = vld [vmem:[#allocation3 + $0x518] sm:$0xff]
        %v3988 = vld [vmem:[#allocation3 + $0x520] sm:$0xff]
        %v3989 = vld [vmem:[#allocation3 + $0x528] sm:$0xff]
        %v3990 = vld [vmem:[#allocation3 + $0x530] sm:$0xff]
        %v3991 = vld [vmem:[#allocation3 + $0x538] sm:$0xff]
        %v3992 = vld [vmem:[#allocation3 + $0x540] sm:$0xff]
        %v3993 = vld [vmem:[#allocation3 + $0x548] sm:$0xff]
        %v3994 = vld [vmem:[#allocation3 + $0x550] sm:$0xff]
        %v3995 = vld [vmem:[#allocation3 + $0x558] sm:$0xff]
        %v3996 = vld [vmem:[#allocation3 + $0x560] sm:$0xff]
        %v3997 = vld [vmem:[#allocation3 + $0x568] sm:$0xff]
        %v3998 = vld [vmem:[#allocation3 + $0x570] sm:$0xff]
        %v3999 = vld [vmem:[#allocation3 + $0x578] sm:$0xff]
        %v4000 = vld [vmem:[#allocation3 + $0x580] sm:$0xff]
        %v4001 = vld [vmem:[#allocation3 + $0x588] sm:$0xff]
        %v4002 = vld [vmem:[#allocation3 + $0x590] sm:$0xff]
        %v4003 = vld [vmem:[#allocation3 + $0x598] sm:$0xff]
        %v4004 = vld [vmem:[#allocation3 + $0x5a0] sm:$0xff]
        %v4005 = vld [vmem:[#allocation3 + $0x5a8] sm:$0xff]
        %v4006 = vld [vmem:[#allocation3 + $0x5b0] sm:$0xff]
        %v4007 = vld [vmem:[#allocation3 + $0x5b8] sm:$0xff]
        %v4008 = vld [vmem:[#allocation3 + $0x5c0] sm:$0xff]
        %v4009 = vld [vmem:[#allocation3 + $0x5c8] sm:$0xff]
        %v4010 = vld [vmem:[#allocation3 + $0x5d0] sm:$0xff]
        %v4011 = vld [vmem:[#allocation3 + $0x5d8] sm:$0xff]
        %v4012 = vld [vmem:[#allocation3 + $0x5e0] sm:$0xff]
        %v4013 = vld [vmem:[#allocation3 + $0x5e8] sm:$0xff]
        %v4014 = vld [vmem:[#allocation3 + $0x5f0] sm:$0xff]
        %v4015 = vld [vmem:[#allocation3 + $0x5f8] sm:$0xff]
        %v4016 = vld [vmem:[#allocation3 + $0x600] sm:$0xff]
        %v4017 = vld [vmem:[#allocation3 + $0x608] sm:$0xff]
        %v4018 = vld [vmem:[#allocation3 + $0x610] sm:$0xff]
        %v4019 = vld [vmem:[#allocation3 + $0x618] sm:$0xff]
        %v4020 = vld [vmem:[#allocation3 + $0x620] sm:$0xff]
        %v4021 = vld [vmem:[#allocation3 + $0x628] sm:$0xff]
        %v4022 = vld [vmem:[#allocation3 + $0x630] sm:$0xff]
        %v4023 = vld [vmem:[#allocation3 + $0x638] sm:$0xff]
        %v4024 = vld [vmem:[#allocation3 + $0x640] sm:$0xff]
        %v4025 = vld [vmem:[#allocation3 + $0x648] sm:$0xff]
        %v4026 = vld [vmem:[#allocation3 + $0x650] sm:$0xff]
        %v4027 = vld [vmem:[#allocation3 + $0x658] sm:$0xff]
        %v4028 = vld [vmem:[#allocation3 + $0x660] sm:$0xff]
        %v4029 = vld [vmem:[#allocation3 + $0x668] sm:$0xff]
        %v4030 = vld [vmem:[#allocation3 + $0x670] sm:$0xff]
        %v4031 = vld [vmem:[#allocation3 + $0x678] sm:$0xff]
        %v4032 = vld [vmem:[#allocation3 + $0x680] sm:$0xff]
        %v4033 = vld [vmem:[#allocation3 + $0x688] sm:$0xff]
        %v4034 = vld [vmem:[#allocation3 + $0x690] sm:$0xff]
        %v4035 = vld [vmem:[#allocation3 + $0x698] sm:$0xff]
        %v4036 = vld [vmem:[#allocation3 + $0x6a0] sm:$0xff]
        %v4037 = vld [vmem:[#allocation3 + $0x6a8] sm:$0xff]
        %v4038 = vld [vmem:[#allocation3 + $0x6b0] sm:$0xff]
        %v4039 = vld [vmem:[#allocation3 + $0x6b8] sm:$0xff]
        %v4040 = vld [vmem:[#allocation3 + $0x6c0] sm:$0xff]
        %v4041 = vld [vmem:[#allocation3 + $0x6c8] sm:$0xff]
        %v4042 = vld [vmem:[#allocation3 + $0x6d0] sm:$0xff]
        %v4043 = vld [vmem:[#allocation3 + $0x6d8] sm:$0xff]
        %v4044 = vld [vmem:[#allocation3 + $0x6e0] sm:$0xff]
        %v4045 = vld [vmem:[#allocation3 + $0x6e8] sm:$0xff]
        %v4046 = vld [vmem:[#allocation3 + $0x6f0] sm:$0xff]
        %v4047 = vld [vmem:[#allocation3 + $0x6f8] sm:$0xff]
        %v4048 = vld [vmem:[#allocation3 + $0x700] sm:$0xff]
        %v4049 = vld [vmem:[#allocation3 + $0x708] sm:$0xff]
        %v4050 = vld [vmem:[#allocation3 + $0x710] sm:$0xff]
        %v4051 = vld [vmem:[#allocation3 + $0x718] sm:$0xff]
        %v4052 = vld [vmem:[#allocation3 + $0x720] sm:$0xff]
        %v4053 = vld [vmem:[#allocation3 + $0x728] sm:$0xff]
        %v4054 = vld [vmem:[#allocation3 + $0x730] sm:$0xff]
        %v4055 = vld [vmem:[#allocation3 + $0x738] sm:$0xff]
        %v4056 = vld [vmem:[#allocation3 + $0x740] sm:$0xff]
        %v4057 = vld [vmem:[#allocation3 + $0x748] sm:$0xff]
        %v4058 = vld [vmem:[#allocation3 + $0x750] sm:$0xff]
        %v4059 = vld [vmem:[#allocation3 + $0x758] sm:$0xff]
        %v4060 = vld [vmem:[#allocation3 + $0x760] sm:$0xff]
        %v4061 = vld [vmem:[#allocation3 + $0x768] sm:$0xff]
        %v4062 = vld [vmem:[#allocation3 + $0x770] sm:$0xff]
        %v4063 = vld [vmem:[#allocation3 + $0x778] sm:$0xff]
        %v4064 = vld [vmem:[#allocation3 + $0x780] sm:$0xff]
        %v4065 = vld [vmem:[#allocation3 + $0x788] sm:$0xff]
        %v4066 = vld [vmem:[#allocation3 + $0x790] sm:$0xff]
        %v4067 = vld [vmem:[#allocation3 + $0x798] sm:$0xff]
        %v4068 = vld [vmem:[#allocation3 + $0x7a0] sm:$0xff]
        %v4069 = vld [vmem:[#allocation3 + $0x7a8] sm:$0xff]
        %v4070 = vld [vmem:[#allocation3 + $0x7b0] sm:$0xff]
        %v4071 = vld [vmem:[#allocation3 + $0x7b8] sm:$0xff]
        %v4072 = vld [vmem:[#allocation3 + $0x7c0] sm:$0xff]
        %v4073 = vld [vmem:[#allocation3 + $0x7c8] sm:$0xff]
        %v4074 = vld [vmem:[#allocation3 + $0x7d0] sm:$0xff]
        %v4075 = vld [vmem:[#allocation3 + $0x7d8] sm:$0xff]
        %v4076 = vld [vmem:[#allocation3 + $0x7e0] sm:$0xff]
        %v4077 = vld [vmem:[#allocation3 + $0x7e8] sm:$0xff]
        %v4078 = vld [vmem:[#allocation3 + $0x7f0] sm:$0xff]
        %v4079 = vld [vmem:[#allocation3 + $0x7f8] sm:$0xff]
        %v4080 = vld [vmem:[#allocation3 + $0x800] sm:$0xff]
        %v4081 = vld [vmem:[#allocation3 + $0x808] sm:$0xff]
        %v4082 = vld [vmem:[#allocation3 + $0x810] sm:$0xff]
        %v4083 = vld [vmem:[#allocation3 + $0x818] sm:$0xff]
        %v4084 = vld [vmem:[#allocation3 + $0x820] sm:$0xff]
        %v4085 = vld [vmem:[#allocation3 + $0x828] sm:$0xff]
        %v4086 = vld [vmem:[#allocation3 + $0x830] sm:$0xff]
        %v4087 = vld [vmem:[#allocation3 + $0x838] sm:$0xff]
        %v4088 = vld [vmem:[#allocation3 + $0x840] sm:$0xff]
        %v4089 = vld [vmem:[#allocation3 + $0x848] sm:$0xff]
        %v4090 = vld [vmem:[#allocation3 + $0x850] sm:$0xff]
        %v4091 = vld [vmem:[#allocation3 + $0x858] sm:$0xff]
        %v4092 = vld [vmem:[#allocation3 + $0x860] sm:$0xff]
        %v4093 = vld [vmem:[#allocation3 + $0x868] sm:$0xff]
        %v4094 = vld [vmem:[#allocation3 + $0x870] sm:$0xff]
        %v4095 = vld [vmem:[#allocation3 + $0x878] sm:$0xff]
        %v4096 = vld [vmem:[#allocation3 + $0x880] sm:$0xff]
        %v4097 = vld [vmem:[#allocation3 + $0x888] sm:$0xff]
        %v4098 = vld [vmem:[#allocation3 + $0x890] sm:$0xff]
        %v4099 = vld [vmem:[#allocation3 + $0x898] sm:$0xff]
        %v4100 = vld [vmem:[#allocation3 + $0x8a0] sm:$0xff]
        %v4101 = vld [vmem:[#allocation3 + $0x8a8] sm:$0xff]
        %v4102 = vld [vmem:[#allocation3 + $0x8b0] sm:$0xff]
        %v4103 = vld [vmem:[#allocation3 + $0x8b8] sm:$0xff]
        %v4104 = vld [vmem:[#allocation3 + $0x8c0] sm:$0xff]
        %v4105 = vld [vmem:[#allocation3 + $0x8c8] sm:$0xff]
        %v4106 = vld [vmem:[#allocation3 + $0x8d0] sm:$0xff]
        %v4107 = vld [vmem:[#allocation3 + $0x8d8] sm:$0xff]
        %v4108 = vld [vmem:[#allocation3 + $0x8e0] sm:$0xff]
        %v4109 = vld [vmem:[#allocation3 + $0x8e8] sm:$0xff]
        %v4110 = vld [vmem:[#allocation3 + $0x8f0] sm:$0xff]
        %v4111 = vld [vmem:[#allocation3 + $0x8f8] sm:$0xff]
        %v4112 = vld [vmem:[#allocation9] sm:$0xff]
        %v4113 = vld [vmem:[#allocation9 + $0x8] sm:$0xff]
        %v4114 = vld [vmem:[#allocation9 + $0x10] sm:$0xff]
        %v4115 = vld [vmem:[#allocation9 + $0x18] sm:$0xff]
        %v4116 = vld [vmem:[#allocation9 + $0x20] sm:$0xff]
        %v4117 = vld [vmem:[#allocation9 + $0x28] sm:$0xff]
        %v4118 = vld [vmem:[#allocation9 + $0x30] sm:$0xff]
        %v4119 = vld [vmem:[#allocation9 + $0x38] sm:$0xff]
        %v4120 = vld [vmem:[#allocation9 + $0x40] sm:$0xff]
        %v4121 = vld [vmem:[#allocation9 + $0x48] sm:$0xff]
        %v4122 = vld [vmem:[#allocation9 + $0x50] sm:$0xff]
        %v4123 = vld [vmem:[#allocation9 + $0x58] sm:$0xff]
        %v4124 = vld [vmem:[#allocation9 + $0x60] sm:$0xff]
        %v4125 = vld [vmem:[#allocation9 + $0x68] sm:$0xff]
        %v4126 = vld [vmem:[#allocation9 + $0x70] sm:$0xff]
        %v4127 = vld [vmem:[#allocation9 + $0x78] sm:$0xff]
        %v4128 = vld [vmem:[#allocation9 + $0x80] sm:$0xff]
        %v4129 = vld [vmem:[#allocation9 + $0x88] sm:$0xff]
        %v4130 = vld [vmem:[#allocation9 + $0x90] sm:$0xff]
        %v4131 = vld [vmem:[#allocation9 + $0x98] sm:$0xff]
        %v4132 = vld [vmem:[#allocation9 + $0xa0] sm:$0xff]
        %v4133 = vld [vmem:[#allocation9 + $0xa8] sm:$0xff]
        %v4134 = vld [vmem:[#allocation9 + $0xb0] sm:$0xff]
        %v4135 = vld [vmem:[#allocation9 + $0xb8] sm:$0xff]
        %v4136 = vld [vmem:[#allocation9 + $0xc0] sm:$0xff]
        %v4137 = vld [vmem:[#allocation9 + $0xc8] sm:$0xff]
        %v4138 = vld [vmem:[#allocation9 + $0xd0] sm:$0xff]
        %v4139 = vld [vmem:[#allocation9 + $0xd8] sm:$0xff]
        %v4140 = vld [vmem:[#allocation9 + $0xe0] sm:$0xff]
        %v4141 = vld [vmem:[#allocation9 + $0xe8] sm:$0xff]
        %v4142 = vld [vmem:[#allocation9 + $0xf0] sm:$0xff]
        %v4143 = vld [vmem:[#allocation9 + $0xf8] sm:$0xff]
        %v4144 = vld [vmem:[#allocation9 + $0x100] sm:$0xff]
        %v4145 = vld [vmem:[#allocation9 + $0x108] sm:$0xff]
        %v4146 = vld [vmem:[#allocation9 + $0x110] sm:$0xff]
        %v4147 = vld [vmem:[#allocation9 + $0x118] sm:$0xff]
        %v4148 = vld [vmem:[#allocation9 + $0x120] sm:$0xff]
        %v4149 = vld [vmem:[#allocation9 + $0x128] sm:$0xff]
        %v4150 = vld [vmem:[#allocation9 + $0x130] sm:$0xff]
        %v4151 = vld [vmem:[#allocation9 + $0x138] sm:$0xff]
        %v4152 = vld [vmem:[#allocation9 + $0x140] sm:$0xff]
        %v4153 = vld [vmem:[#allocation9 + $0x148] sm:$0xff]
        %v4154 = vld [vmem:[#allocation9 + $0x150] sm:$0xff]
        %v4155 = vld [vmem:[#allocation9 + $0x158] sm:$0xff]
        %v4156 = vld [vmem:[#allocation9 + $0x160] sm:$0xff]
        %v4157 = vld [vmem:[#allocation9 + $0x168] sm:$0xff]
        %v4158 = vld [vmem:[#allocation9 + $0x170] sm:$0xff]
        %v4159 = vld [vmem:[#allocation9 + $0x178] sm:$0xff]
        %v4160 = vld [vmem:[#allocation9 + $0x180] sm:$0xff]
        %v4161 = vld [vmem:[#allocation9 + $0x188] sm:$0xff]
        %v4162 = vld [vmem:[#allocation9 + $0x190] sm:$0xff]
        %v4163 = vld [vmem:[#allocation9 + $0x198] sm:$0xff]
        %v4164 = vld [vmem:[#allocation9 + $0x1a0] sm:$0xff]
        %v4165 = vld [vmem:[#allocation9 + $0x1a8] sm:$0xff]
        %v4166 = vld [vmem:[#allocation9 + $0x1b0] sm:$0xff]
        %v4167 = vld [vmem:[#allocation9 + $0x1b8] sm:$0xff]
        %v4168 = vld [vmem:[#allocation9 + $0x1c0] sm:$0xff]
        %v4169 = vld [vmem:[#allocation9 + $0x1c8] sm:$0xff]
        %v4170 = vld [vmem:[#allocation9 + $0x1d0] sm:$0xff]
        %v4171 = vld [vmem:[#allocation9 + $0x1d8] sm:$0xff]
        %v4172 = vld [vmem:[#allocation9 + $0x1e0] sm:$0xff]
        %v4173 = vld [vmem:[#allocation9 + $0x1e8] sm:$0xff]
        %v4174 = vld [vmem:[#allocation9 + $0x1f0] sm:$0xff]
        %v4175 = vld [vmem:[#allocation9 + $0x1f8] sm:$0xff]
        %v4176 = vld [vmem:[#allocation9 + $0x200] sm:$0xff]
        %v4177 = vld [vmem:[#allocation9 + $0x208] sm:$0xff]
        %v4178 = vld [vmem:[#allocation9 + $0x210] sm:$0xff]
        %v4179 = vld [vmem:[#allocation9 + $0x218] sm:$0xff]
        %v4180 = vld [vmem:[#allocation9 + $0x220] sm:$0xff]
        %v4181 = vld [vmem:[#allocation9 + $0x228] sm:$0xff]
        %v4182 = vld [vmem:[#allocation9 + $0x230] sm:$0xff]
        %v4183 = vld [vmem:[#allocation9 + $0x238] sm:$0xff]
        %v4184 = vld [vmem:[#allocation9 + $0x240] sm:$0xff]
        %v4185 = vld [vmem:[#allocation9 + $0x248] sm:$0xff]
        %v4186 = vld [vmem:[#allocation9 + $0x250] sm:$0xff]
        %v4187 = vld [vmem:[#allocation9 + $0x258] sm:$0xff]
        %v4188 = vld [vmem:[#allocation9 + $0x260] sm:$0xff]
        %v4189 = vld [vmem:[#allocation9 + $0x268] sm:$0xff]
        %v4190 = vld [vmem:[#allocation9 + $0x270] sm:$0xff]
        %v4191 = vld [vmem:[#allocation9 + $0x278] sm:$0xff]
        %v4192 = vld [vmem:[#allocation9 + $0x280] sm:$0xff]
        %v4193 = vld [vmem:[#allocation9 + $0x288] sm:$0xff]
        %v4194 = vld [vmem:[#allocation9 + $0x290] sm:$0xff]
        %v4195 = vld [vmem:[#allocation9 + $0x298] sm:$0xff]
        %v4196 = vld [vmem:[#allocation9 + $0x2a0] sm:$0xff]
        %v4197 = vld [vmem:[#allocation9 + $0x2a8] sm:$0xff]
        %v4198 = vld [vmem:[#allocation9 + $0x2b0] sm:$0xff]
        %v4199 = vld [vmem:[#allocation9 + $0x2b8] sm:$0xff]
        %v4200 = vld [vmem:[#allocation9 + $0x2c0] sm:$0xff]
        %v4201 = vld [vmem:[#allocation9 + $0x2c8] sm:$0xff]
        %v4202 = vld [vmem:[#allocation9 + $0x2d0] sm:$0xff]
        %v4203 = vld [vmem:[#allocation9 + $0x2d8] sm:$0xff]
        %v4204 = vld [vmem:[#allocation9 + $0x2e0] sm:$0xff]
        %v4205 = vld [vmem:[#allocation9 + $0x2e8] sm:$0xff]
        %v4206 = vld [vmem:[#allocation9 + $0x2f0] sm:$0xff]
        %v4207 = vld [vmem:[#allocation9 + $0x2f8] sm:$0xff]
        %v4208 = vld [vmem:[#allocation9 + $0x300] sm:$0xff]
        %v4209 = vld [vmem:[#allocation9 + $0x308] sm:$0xff]
        %v4210 = vld [vmem:[#allocation9 + $0x310] sm:$0xff]
        %v4211 = vld [vmem:[#allocation9 + $0x318] sm:$0xff]
        %v4212 = vld [vmem:[#allocation9 + $0x320] sm:$0xff]
        %v4213 = vld [vmem:[#allocation9 + $0x328] sm:$0xff]
        %v4214 = vld [vmem:[#allocation9 + $0x330] sm:$0xff]
        %v4215 = vld [vmem:[#allocation9 + $0x338] sm:$0xff]
        %v4216 = vld [vmem:[#allocation9 + $0x340] sm:$0xff]
        %v4217 = vld [vmem:[#allocation9 + $0x348] sm:$0xff]
        %v4218 = vld [vmem:[#allocation9 + $0x350] sm:$0xff]
        %v4219 = vld [vmem:[#allocation9 + $0x358] sm:$0xff]
        %v4220 = vld [vmem:[#allocation9 + $0x360] sm:$0xff]
        %v4221 = vld [vmem:[#allocation9 + $0x368] sm:$0xff]
        %v4222 = vld [vmem:[#allocation9 + $0x370] sm:$0xff]
        %v4223 = vld [vmem:[#allocation9 + $0x378] sm:$0xff]
        %v4224 = vld [vmem:[#allocation9 + $0x380] sm:$0xff]
        %v4225 = vld [vmem:[#allocation9 + $0x388] sm:$0xff]
        %v4226 = vld [vmem:[#allocation9 + $0x390] sm:$0xff]
        %v4227 = vld [vmem:[#allocation9 + $0x398] sm:$0xff]
        %v4228 = vld [vmem:[#allocation9 + $0x3a0] sm:$0xff]
        %v4229 = vld [vmem:[#allocation9 + $0x3a8] sm:$0xff]
        %v4230 = vld [vmem:[#allocation9 + $0x3b0] sm:$0xff]
        %v4231 = vld [vmem:[#allocation9 + $0x3b8] sm:$0xff]
        %v4232 = vld [vmem:[#allocation9 + $0x3c0] sm:$0xff]
        %v4233 = vld [vmem:[#allocation9 + $0x3c8] sm:$0xff]
        %v4234 = vld [vmem:[#allocation9 + $0x3d0] sm:$0xff]
        %v4235 = vld [vmem:[#allocation9 + $0x3d8] sm:$0xff]
        %v4236 = vld [vmem:[#allocation9 + $0x3e0] sm:$0xff]
        %v4237 = vld [vmem:[#allocation9 + $0x3e8] sm:$0xff]
        %v4238 = vld [vmem:[#allocation9 + $0x3f0] sm:$0xff]
        %v4239 = vld [vmem:[#allocation9 + $0x3f8] sm:$0xff]
        %v4240 = vld [vmem:[#allocation9 + $0x400] sm:$0xff]
        %v4241 = vld [vmem:[#allocation9 + $0x408] sm:$0xff]
        %v4242 = vld [vmem:[#allocation9 + $0x410] sm:$0xff]
        %v4243 = vld [vmem:[#allocation9 + $0x418] sm:$0xff]
        %v4244 = vld [vmem:[#allocation9 + $0x420] sm:$0xff]
        %v4245 = vld [vmem:[#allocation9 + $0x428] sm:$0xff]
        %v4246 = vld [vmem:[#allocation9 + $0x430] sm:$0xff]
        %v4247 = vld [vmem:[#allocation9 + $0x438] sm:$0xff]
        %v4248 = vld [vmem:[#allocation9 + $0x440] sm:$0xff]
        %v4249 = vld [vmem:[#allocation9 + $0x448] sm:$0xff]
        %v4250 = vld [vmem:[#allocation9 + $0x450] sm:$0xff]
        %v4251 = vld [vmem:[#allocation9 + $0x458] sm:$0xff]
        %v4252 = vld [vmem:[#allocation9 + $0x460] sm:$0xff]
        %v4253 = vld [vmem:[#allocation9 + $0x468] sm:$0xff]
        %v4254 = vld [vmem:[#allocation9 + $0x470] sm:$0xff]
        %v4255 = vld [vmem:[#allocation9 + $0x478] sm:$0xff]
        %4256 = vmatpush.msra.mxu0 %v4127
        %4257 = vmatpush.msra.mxu0 %v4126
        %4258 = vmatpush.msra.mxu0 %v4125
        %4259 = vmatpush.msra.mxu0 %v4124
        %4260 = vmatpush.msra.mxu0 %v4123
        %4261 = vmatpush.msra.mxu0 %v4122
        %4262 = vmatpush.msra.mxu0 %v4121
        %4263 = vmatpush.msra.mxu0 %v4120
        %4264 = vmatpush.msra.mxu0 %v4119
        %4265 = vmatpush.msra.mxu0 %v4118
        %4266 = vmatpush.msra.mxu0 %v4117
        %4267 = vmatpush.msra.mxu0 %v4116
        %4268 = vmatpush.msra.mxu0 %v4115
        %4269 = vmatpush.msra.mxu0 %v4114
        %4270 = vmatpush.msra.mxu0 %v4113
        %4271 = vmatpush.msra.mxu0 %v4112
        %4272 = vmatmul.f32.gmra.mxu0 %v3824
        %v4273 = vpop.f32.mrf.mxu0
        %v4274 = vadd.f32 0.0, %v4273
        %4275 = vmatmul.f32.gmra.mxu0 %v3833
        %v4276 = vpop.f32.mrf.mxu0
        %v4277 = vadd.f32 0.0, %v4276
        %4278 = vmatmul.f32.gmra.mxu0 %v3842
        %v4279 = vpop.f32.mrf.mxu0
        %v4280 = vadd.f32 0.0, %v4279
        %4281 = vmatmul.f32.gmra.mxu0 %v3851
        %v4282 = vpop.f32.mrf.mxu0
        %v4283 = vadd.f32 0.0, %v4282
        %4284 = vmatmul.f32.gmra.mxu0 %v3860
        %v4285 = vpop.f32.mrf.mxu0
        %v4286 = vadd.f32 0.0, %v4285
        %4287 = vmatmul.f32.gmra.mxu0 %v3869
        %v4288 = vpop.f32.mrf.mxu0
        %v4289 = vadd.f32 0.0, %v4288
        %4290 = vmatmul.f32.gmra.mxu0 %v3878
        %v4291 = vpop.f32.mrf.mxu0
        %v4292 = vadd.f32 0.0, %v4291
        %4293 = vmatmul.f32.gmra.mxu0 %v3887
        %v4294 = vpop.f32.mrf.mxu0
        %v4295 = vadd.f32 0.0, %v4294
        %4296 = vmatmul.f32.gmra.mxu0 %v3896
        %v4297 = vpop.f32.mrf.mxu0
        %v4298 = vadd.f32 0.0, %v4297
        %4299 = vmatmul.f32.gmra.mxu0 %v3905
        %v4300 = vpop.f32.mrf.mxu0
        %v4301 = vadd.f32 0.0, %v4300
        %4302 = vmatmul.f32.gmra.mxu0 %v3914
        %v4303 = vpop.f32.mrf.mxu0
        %v4304 = vadd.f32 0.0, %v4303
        %4305 = vmatmul.f32.gmra.mxu0 %v3923
        %v4306 = vpop.f32.mrf.mxu0
        %v4307 = vadd.f32 0.0, %v4306
        %4308 = vmatmul.f32.gmra.mxu0 %v3932
        %v4309 = vpop.f32.mrf.mxu0
        %v4310 = vadd.f32 0.0, %v4309
        %4311 = vmatmul.f32.gmra.mxu0 %v3941
        %v4312 = vpop.f32.mrf.mxu0
        %v4313 = vadd.f32 0.0, %v4312
        %4314 = vmatmul.f32.gmra.mxu0 %v3950
        %v4315 = vpop.f32.mrf.mxu0
        %v4316 = vadd.f32 0.0, %v4315
        %4317 = vmatmul.f32.gmra.mxu0 %v3959
        %v4318 = vpop.f32.mrf.mxu0
        %v4319 = vadd.f32 0.0, %v4318
        %4320 = vmatmul.f32.gmra.mxu0 %v3968
        %v4321 = vpop.f32.mrf.mxu0
        %v4322 = vadd.f32 0.0, %v4321
        %4323 = vmatmul.f32.gmra.mxu0 %v3977
        %v4324 = vpop.f32.mrf.mxu0
        %v4325 = vadd.f32 0.0, %v4324
        %4326 = vmatmul.f32.gmra.mxu0 %v3986
        %v4327 = vpop.f32.mrf.mxu0
        %v4328 = vadd.f32 0.0, %v4327
        %4329 = vmatmul.f32.gmra.mxu0 %v3995
        %v4330 = vpop.f32.mrf.mxu0
        %v4331 = vadd.f32 0.0, %v4330
        %4332 = vmatmul.f32.gmra.mxu0 %v4004
        %v4333 = vpop.f32.mrf.mxu0
        %v4334 = vadd.f32 0.0, %v4333
        %4335 = vmatmul.f32.gmra.mxu0 %v4013
        %v4336 = vpop.f32.mrf.mxu0
        %v4337 = vadd.f32 0.0, %v4336
        %4338 = vmatmul.f32.gmra.mxu0 %v4022
        %v4339 = vpop.f32.mrf.mxu0
        %v4340 = vadd.f32 0.0, %v4339
        %4341 = vmatmul.f32.gmra.mxu0 %v4031
        %v4342 = vpop.f32.mrf.mxu0
        %v4343 = vadd.f32 0.0, %v4342
        %4344 = vmatmul.f32.gmra.mxu0 %v4040
        %v4345 = vpop.f32.mrf.mxu0
        %v4346 = vadd.f32 0.0, %v4345
        %4347 = vmatmul.f32.gmra.mxu0 %v4049
        %v4348 = vpop.f32.mrf.mxu0
        %v4349 = vadd.f32 0.0, %v4348
        %4350 = vmatmul.f32.gmra.mxu0 %v4058
        %v4351 = vpop.f32.mrf.mxu0
        %v4352 = vadd.f32 0.0, %v4351
        %4353 = vmatmul.f32.gmra.mxu0 %v4067
        %v4354 = vpop.f32.mrf.mxu0
        %v4355 = vadd.f32 0.0, %v4354
        %4356 = vmatmul.f32.gmra.mxu0 %v4076
        %v4357 = vpop.f32.mrf.mxu0
        %v4358 = vadd.f32 0.0, %v4357
        %4359 = vmatmul.f32.gmra.mxu0 %v4085
        %v4360 = vpop.f32.mrf.mxu0
        %v4361 = vadd.f32 0.0, %v4360
        %4362 = vmatmul.f32.gmra.mxu0 %v4094
        %v4363 = vpop.f32.mrf.mxu0
        %v4364 = vadd.f32 0.0, %v4363
        %4365 = vmatmul.f32.gmra.mxu0 %v4103
        %v4366 = vpop.f32.mrf.mxu0
        %v4367 = vadd.f32 0.0, %v4366
        %4368 = vdwg.mxu0
        %4369 = vmatpush.msra.mxu0 %v4143
        %4370 = vmatpush.msra.mxu0 %v4142
        %4371 = vmatpush.msra.mxu0 %v4141
        %4372 = vmatpush.msra.mxu0 %v4140
        %4373 = vmatpush.msra.mxu0 %v4139
        %4374 = vmatpush.msra.mxu0 %v4138
        %4375 = vmatpush.msra.mxu0 %v4137
        %4376 = vmatpush.msra.mxu0 %v4136
        %4377 = vmatpush.msra.mxu0 %v4135
        %4378 = vmatpush.msra.mxu0 %v4134
        %4379 = vmatpush.msra.mxu0 %v4133
        %4380 = vmatpush.msra.mxu0 %v4132
        %4381 = vmatpush.msra.mxu0 %v4131
        %4382 = vmatpush.msra.mxu0 %v4130
        %4383 = vmatpush.msra.mxu0 %v4129
        %4384 = vmatpush.msra.mxu0 %v4128
        %4385 = vmatmul.f32.gmra.mxu0 %v3825
        %v4386 = vpop.f32.mrf.mxu0
        %v4387 = vadd.f32 %v4274, %v4386
        %4388 = vmatmul.f32.gmra.mxu0 %v3834
        %v4389 = vpop.f32.mrf.mxu0
        %v4390 = vadd.f32 %v4277, %v4389
        %4391 = vmatmul.f32.gmra.mxu0 %v3843
        %v4392 = vpop.f32.mrf.mxu0
        %v4393 = vadd.f32 %v4280, %v4392
        %4394 = vmatmul.f32.gmra.mxu0 %v3852
        %v4395 = vpop.f32.mrf.mxu0
        %v4396 = vadd.f32 %v4283, %v4395
        %4397 = vmatmul.f32.gmra.mxu0 %v3861
        %v4398 = vpop.f32.mrf.mxu0
        %v4399 = vadd.f32 %v4286, %v4398
        %4400 = vmatmul.f32.gmra.mxu0 %v3870
        %v4401 = vpop.f32.mrf.mxu0
        %v4402 = vadd.f32 %v4289, %v4401
        %4403 = vmatmul.f32.gmra.mxu0 %v3879
        %v4404 = vpop.f32.mrf.mxu0
        %v4405 = vadd.f32 %v4292, %v4404
        %4406 = vmatmul.f32.gmra.mxu0 %v3888
        %v4407 = vpop.f32.mrf.mxu0
        %v4408 = vadd.f32 %v4295, %v4407
        %4409 = vmatmul.f32.gmra.mxu0 %v3897
        %v4410 = vpop.f32.mrf.mxu0
        %v4411 = vadd.f32 %v4298, %v4410
        %4412 = vmatmul.f32.gmra.mxu0 %v3906
        %v4413 = vpop.f32.mrf.mxu0
        %v4414 = vadd.f32 %v4301, %v4413
        %4415 = vmatmul.f32.gmra.mxu0 %v3915
        %v4416 = vpop.f32.mrf.mxu0
        %v4417 = vadd.f32 %v4304, %v4416
        %4418 = vmatmul.f32.gmra.mxu0 %v3924
        %v4419 = vpop.f32.mrf.mxu0
        %v4420 = vadd.f32 %v4307, %v4419
        %4421 = vmatmul.f32.gmra.mxu0 %v3933
        %v4422 = vpop.f32.mrf.mxu0
        %v4423 = vadd.f32 %v4310, %v4422
        %4424 = vmatmul.f32.gmra.mxu0 %v3942
        %v4425 = vpop.f32.mrf.mxu0
        %v4426 = vadd.f32 %v4313, %v4425
        %4427 = vmatmul.f32.gmra.mxu0 %v3951
        %v4428 = vpop.f32.mrf.mxu0
        %v4429 = vadd.f32 %v4316, %v4428
        %4430 = vmatmul.f32.gmra.mxu0 %v3960
        %v4431 = vpop.f32.mrf.mxu0
        %v4432 = vadd.f32 %v4319, %v4431
        %4433 = vmatmul.f32.gmra.mxu0 %v3969
        %v4434 = vpop.f32.mrf.mxu0
        %v4435 = vadd.f32 %v4322, %v4434
        %4436 = vmatmul.f32.gmra.mxu0 %v3978
        %v4437 = vpop.f32.mrf.mxu0
        %v4438 = vadd.f32 %v4325, %v4437
        %4439 = vmatmul.f32.gmra.mxu0 %v3987
        %v4440 = vpop.f32.mrf.mxu0
        %v4441 = vadd.f32 %v4328, %v4440
        %4442 = vmatmul.f32.gmra.mxu0 %v3996
        %v4443 = vpop.f32.mrf.mxu0
        %v4444 = vadd.f32 %v4331, %v4443
        %4445 = vmatmul.f32.gmra.mxu0 %v4005
        %v4446 = vpop.f32.mrf.mxu0
        %v4447 = vadd.f32 %v4334, %v4446
        %4448 = vmatmul.f32.gmra.mxu0 %v4014
        %v4449 = vpop.f32.mrf.mxu0
        %v4450 = vadd.f32 %v4337, %v4449
        %4451 = vmatmul.f32.gmra.mxu0 %v4023
        %v4452 = vpop.f32.mrf.mxu0
        %v4453 = vadd.f32 %v4340, %v4452
        %4454 = vmatmul.f32.gmra.mxu0 %v4032
        %v4455 = vpop.f32.mrf.mxu0
        %v4456 = vadd.f32 %v4343, %v4455
        %4457 = vmatmul.f32.gmra.mxu0 %v4041
        %v4458 = vpop.f32.mrf.mxu0
        %v4459 = vadd.f32 %v4346, %v4458
        %4460 = vmatmul.f32.gmra.mxu0 %v4050
        %v4461 = vpop.f32.mrf.mxu0
        %v4462 = vadd.f32 %v4349, %v4461
        %4463 = vmatmul.f32.gmra.mxu0 %v4059
        %v4464 = vpop.f32.mrf.mxu0
        %v4465 = vadd.f32 %v4352, %v4464
        %4466 = vmatmul.f32.gmra.mxu0 %v4068
        %v4467 = vpop.f32.mrf.mxu0
        %v4468 = vadd.f32 %v4355, %v4467
        %4469 = vmatmul.f32.gmra.mxu0 %v4077
        %v4470 = vpop.f32.mrf.mxu0
        %v4471 = vadd.f32 %v4358, %v4470
        %4472 = vmatmul.f32.gmra.mxu0 %v4086
        %v4473 = vpop.f32.mrf.mxu0
        %v4474 = vadd.f32 %v4361, %v4473
        %4475 = vmatmul.f32.gmra.mxu0 %v4095
        %v4476 = vpop.f32.mrf.mxu0
        %v4477 = vadd.f32 %v4364, %v4476
        %4478 = vmatmul.f32.gmra.mxu0 %v4104
        %v4479 = vpop.f32.mrf.mxu0
        %v4480 = vadd.f32 %v4367, %v4479
        %4481 = vdwg.mxu0
        %4482 = vmatpush.msra.mxu0 %v4159
        %4483 = vmatpush.msra.mxu0 %v4158
        %4484 = vmatpush.msra.mxu0 %v4157
        %4485 = vmatpush.msra.mxu0 %v4156
        %4486 = vmatpush.msra.mxu0 %v4155
        %4487 = vmatpush.msra.mxu0 %v4154
        %4488 = vmatpush.msra.mxu0 %v4153
        %4489 = vmatpush.msra.mxu0 %v4152
        %4490 = vmatpush.msra.mxu0 %v4151
        %4491 = vmatpush.msra.mxu0 %v4150
        %4492 = vmatpush.msra.mxu0 %v4149
        %4493 = vmatpush.msra.mxu0 %v4148
        %4494 = vmatpush.msra.mxu0 %v4147
        %4495 = vmatpush.msra.mxu0 %v4146
        %4496 = vmatpush.msra.mxu0 %v4145
        %4497 = vmatpush.msra.mxu0 %v4144
        %4498 = vmatmul.f32.gmra.mxu0 %v3826
        %v4499 = vpop.f32.mrf.mxu0
        %v4500 = vadd.f32 %v4387, %v4499
        %4501 = vmatmul.f32.gmra.mxu0 %v3835
        %v4502 = vpop.f32.mrf.mxu0
        %v4503 = vadd.f32 %v4390, %v4502
        %4504 = vmatmul.f32.gmra.mxu0 %v3844
        %v4505 = vpop.f32.mrf.mxu0
        %v4506 = vadd.f32 %v4393, %v4505
        %4507 = vmatmul.f32.gmra.mxu0 %v3853
        %v4508 = vpop.f32.mrf.mxu0
        %v4509 = vadd.f32 %v4396, %v4508
        %4510 = vmatmul.f32.gmra.mxu0 %v3862
        %v4511 = vpop.f32.mrf.mxu0
        %v4512 = vadd.f32 %v4399, %v4511
        %4513 = vmatmul.f32.gmra.mxu0 %v3871
        %v4514 = vpop.f32.mrf.mxu0
        %v4515 = vadd.f32 %v4402, %v4514
        %4516 = vmatmul.f32.gmra.mxu0 %v3880
        %v4517 = vpop.f32.mrf.mxu0
        %v4518 = vadd.f32 %v4405, %v4517
        %4519 = vmatmul.f32.gmra.mxu0 %v3889
        %v4520 = vpop.f32.mrf.mxu0
        %v4521 = vadd.f32 %v4408, %v4520
        %4522 = vmatmul.f32.gmra.mxu0 %v3898
        %v4523 = vpop.f32.mrf.mxu0
        %v4524 = vadd.f32 %v4411, %v4523
        %4525 = vmatmul.f32.gmra.mxu0 %v3907
        %v4526 = vpop.f32.mrf.mxu0
        %v4527 = vadd.f32 %v4414, %v4526
        %4528 = vmatmul.f32.gmra.mxu0 %v3916
        %v4529 = vpop.f32.mrf.mxu0
        %v4530 = vadd.f32 %v4417, %v4529
        %4531 = vmatmul.f32.gmra.mxu0 %v3925
        %v4532 = vpop.f32.mrf.mxu0
        %v4533 = vadd.f32 %v4420, %v4532
        %4534 = vmatmul.f32.gmra.mxu0 %v3934
        %v4535 = vpop.f32.mrf.mxu0
        %v4536 = vadd.f32 %v4423, %v4535
        %4537 = vmatmul.f32.gmra.mxu0 %v3943
        %v4538 = vpop.f32.mrf.mxu0
        %v4539 = vadd.f32 %v4426, %v4538
        %4540 = vmatmul.f32.gmra.mxu0 %v3952
        %v4541 = vpop.f32.mrf.mxu0
        %v4542 = vadd.f32 %v4429, %v4541
        %4543 = vmatmul.f32.gmra.mxu0 %v3961
        %v4544 = vpop.f32.mrf.mxu0
        %v4545 = vadd.f32 %v4432, %v4544
        %4546 = vmatmul.f32.gmra.mxu0 %v3970
        %v4547 = vpop.f32.mrf.mxu0
        %v4548 = vadd.f32 %v4435, %v4547
        %4549 = vmatmul.f32.gmra.mxu0 %v3979
        %v4550 = vpop.f32.mrf.mxu0
        %v4551 = vadd.f32 %v4438, %v4550
        %4552 = vmatmul.f32.gmra.mxu0 %v3988
        %v4553 = vpop.f32.mrf.mxu0
        %v4554 = vadd.f32 %v4441, %v4553
        %4555 = vmatmul.f32.gmra.mxu0 %v3997
        %v4556 = vpop.f32.mrf.mxu0
        %v4557 = vadd.f32 %v4444, %v4556
        %4558 = vmatmul.f32.gmra.mxu0 %v4006
        %v4559 = vpop.f32.mrf.mxu0
        %v4560 = vadd.f32 %v4447, %v4559
        %4561 = vmatmul.f32.gmra.mxu0 %v4015
        %v4562 = vpop.f32.mrf.mxu0
        %v4563 = vadd.f32 %v4450, %v4562
        %4564 = vmatmul.f32.gmra.mxu0 %v4024
        %v4565 = vpop.f32.mrf.mxu0
        %v4566 = vadd.f32 %v4453, %v4565
        %4567 = vmatmul.f32.gmra.mxu0 %v4033
        %v4568 = vpop.f32.mrf.mxu0
        %v4569 = vadd.f32 %v4456, %v4568
        %4570 = vmatmul.f32.gmra.mxu0 %v4042
        %v4571 = vpop.f32.mrf.mxu0
        %v4572 = vadd.f32 %v4459, %v4571
        %4573 = vmatmul.f32.gmra.mxu0 %v4051
        %v4574 = vpop.f32.mrf.mxu0
        %v4575 = vadd.f32 %v4462, %v4574
        %4576 = vmatmul.f32.gmra.mxu0 %v4060
        %v4577 = vpop.f32.mrf.mxu0
        %v4578 = vadd.f32 %v4465, %v4577
        %4579 = vmatmul.f32.gmra.mxu0 %v4069
        %v4580 = vpop.f32.mrf.mxu0
        %v4581 = vadd.f32 %v4468, %v4580
        %4582 = vmatmul.f32.gmra.mxu0 %v4078
        %v4583 = vpop.f32.mrf.mxu0
        %v4584 = vadd.f32 %v4471, %v4583
        %4585 = vmatmul.f32.gmra.mxu0 %v4087
        %v4586 = vpop.f32.mrf.mxu0
        %v4587 = vadd.f32 %v4474, %v4586
        %4588 = vmatmul.f32.gmra.mxu0 %v4096
        %v4589 = vpop.f32.mrf.mxu0
        %v4590 = vadd.f32 %v4477, %v4589
        %4591 = vmatmul.f32.gmra.mxu0 %v4105
        %v4592 = vpop.f32.mrf.mxu0
        %v4593 = vadd.f32 %v4480, %v4592
        %4594 = vdwg.mxu0
        %4595 = vmatpush.msra.mxu0 %v4175
        %4596 = vmatpush.msra.mxu0 %v4174
        %4597 = vmatpush.msra.mxu0 %v4173
        %4598 = vmatpush.msra.mxu0 %v4172
        %4599 = vmatpush.msra.mxu0 %v4171
        %4600 = vmatpush.msra.mxu0 %v4170
        %4601 = vmatpush.msra.mxu0 %v4169
        %4602 = vmatpush.msra.mxu0 %v4168
        %4603 = vmatpush.msra.mxu0 %v4167
        %4604 = vmatpush.msra.mxu0 %v4166
        %4605 = vmatpush.msra.mxu0 %v4165
        %4606 = vmatpush.msra.mxu0 %v4164
        %4607 = vmatpush.msra.mxu0 %v4163
        %4608 = vmatpush.msra.mxu0 %v4162
        %4609 = vmatpush.msra.mxu0 %v4161
        %4610 = vmatpush.msra.mxu0 %v4160
        %4611 = vmatmul.f32.gmra.mxu0 %v3827
        %v4612 = vpop.f32.mrf.mxu0
        %v4613 = vadd.f32 %v4500, %v4612
        %4614 = vmatmul.f32.gmra.mxu0 %v3836
        %v4615 = vpop.f32.mrf.mxu0
        %v4616 = vadd.f32 %v4503, %v4615
        %4617 = vmatmul.f32.gmra.mxu0 %v3845
        %v4618 = vpop.f32.mrf.mxu0
        %v4619 = vadd.f32 %v4506, %v4618
        %4620 = vmatmul.f32.gmra.mxu0 %v3854
        %v4621 = vpop.f32.mrf.mxu0
        %v4622 = vadd.f32 %v4509, %v4621
        %4623 = vmatmul.f32.gmra.mxu0 %v3863
        %v4624 = vpop.f32.mrf.mxu0
        %v4625 = vadd.f32 %v4512, %v4624
        %4626 = vmatmul.f32.gmra.mxu0 %v3872
        %v4627 = vpop.f32.mrf.mxu0
        %v4628 = vadd.f32 %v4515, %v4627
        %4629 = vmatmul.f32.gmra.mxu0 %v3881
        %v4630 = vpop.f32.mrf.mxu0
        %v4631 = vadd.f32 %v4518, %v4630
        %4632 = vmatmul.f32.gmra.mxu0 %v3890
        %v4633 = vpop.f32.mrf.mxu0
        %v4634 = vadd.f32 %v4521, %v4633
        %4635 = vmatmul.f32.gmra.mxu0 %v3899
        %v4636 = vpop.f32.mrf.mxu0
        %v4637 = vadd.f32 %v4524, %v4636
        %4638 = vmatmul.f32.gmra.mxu0 %v3908
        %v4639 = vpop.f32.mrf.mxu0
        %v4640 = vadd.f32 %v4527, %v4639
        %4641 = vmatmul.f32.gmra.mxu0 %v3917
        %v4642 = vpop.f32.mrf.mxu0
        %v4643 = vadd.f32 %v4530, %v4642
        %4644 = vmatmul.f32.gmra.mxu0 %v3926
        %v4645 = vpop.f32.mrf.mxu0
        %v4646 = vadd.f32 %v4533, %v4645
        %4647 = vmatmul.f32.gmra.mxu0 %v3935
        %v4648 = vpop.f32.mrf.mxu0
        %v4649 = vadd.f32 %v4536, %v4648
        %4650 = vmatmul.f32.gmra.mxu0 %v3944
        %v4651 = vpop.f32.mrf.mxu0
        %v4652 = vadd.f32 %v4539, %v4651
        %4653 = vmatmul.f32.gmra.mxu0 %v3953
        %v4654 = vpop.f32.mrf.mxu0
        %v4655 = vadd.f32 %v4542, %v4654
        %4656 = vmatmul.f32.gmra.mxu0 %v3962
        %v4657 = vpop.f32.mrf.mxu0
        %v4658 = vadd.f32 %v4545, %v4657
        %4659 = vmatmul.f32.gmra.mxu0 %v3971
        %v4660 = vpop.f32.mrf.mxu0
        %v4661 = vadd.f32 %v4548, %v4660
        %4662 = vmatmul.f32.gmra.mxu0 %v3980
        %v4663 = vpop.f32.mrf.mxu0
        %v4664 = vadd.f32 %v4551, %v4663
        %4665 = vmatmul.f32.gmra.mxu0 %v3989
        %v4666 = vpop.f32.mrf.mxu0
        %v4667 = vadd.f32 %v4554, %v4666
        %4668 = vmatmul.f32.gmra.mxu0 %v3998
        %v4669 = vpop.f32.mrf.mxu0
        %v4670 = vadd.f32 %v4557, %v4669
        %4671 = vmatmul.f32.gmra.mxu0 %v4007
        %v4672 = vpop.f32.mrf.mxu0
        %v4673 = vadd.f32 %v4560, %v4672
        %4674 = vmatmul.f32.gmra.mxu0 %v4016
        %v4675 = vpop.f32.mrf.mxu0
        %v4676 = vadd.f32 %v4563, %v4675
        %4677 = vmatmul.f32.gmra.mxu0 %v4025
        %v4678 = vpop.f32.mrf.mxu0
        %v4679 = vadd.f32 %v4566, %v4678
        %4680 = vmatmul.f32.gmra.mxu0 %v4034
        %v4681 = vpop.f32.mrf.mxu0
        %v4682 = vadd.f32 %v4569, %v4681
        %4683 = vmatmul.f32.gmra.mxu0 %v4043
        %v4684 = vpop.f32.mrf.mxu0
        %v4685 = vadd.f32 %v4572, %v4684
        %4686 = vmatmul.f32.gmra.mxu0 %v4052
        %v4687 = vpop.f32.mrf.mxu0
        %v4688 = vadd.f32 %v4575, %v4687
        %4689 = vmatmul.f32.gmra.mxu0 %v4061
        %v4690 = vpop.f32.mrf.mxu0
        %v4691 = vadd.f32 %v4578, %v4690
        %4692 = vmatmul.f32.gmra.mxu0 %v4070
        %v4693 = vpop.f32.mrf.mxu0
        %v4694 = vadd.f32 %v4581, %v4693
        %4695 = vmatmul.f32.gmra.mxu0 %v4079
        %v4696 = vpop.f32.mrf.mxu0
        %v4697 = vadd.f32 %v4584, %v4696
        %4698 = vmatmul.f32.gmra.mxu0 %v4088
        %v4699 = vpop.f32.mrf.mxu0
        %v4700 = vadd.f32 %v4587, %v4699
        %4701 = vmatmul.f32.gmra.mxu0 %v4097
        %v4702 = vpop.f32.mrf.mxu0
        %v4703 = vadd.f32 %v4590, %v4702
        %4704 = vmatmul.f32.gmra.mxu0 %v4106
        %v4705 = vpop.f32.mrf.mxu0
        %v4706 = vadd.f32 %v4593, %v4705
        %4707 = vdwg.mxu0
        %4708 = vmatpush.msra.mxu0 %v4191
        %4709 = vmatpush.msra.mxu0 %v4190
        %4710 = vmatpush.msra.mxu0 %v4189
        %4711 = vmatpush.msra.mxu0 %v4188
        %4712 = vmatpush.msra.mxu0 %v4187
        %4713 = vmatpush.msra.mxu0 %v4186
        %4714 = vmatpush.msra.mxu0 %v4185
        %4715 = vmatpush.msra.mxu0 %v4184
        %4716 = vmatpush.msra.mxu0 %v4183
        %4717 = vmatpush.msra.mxu0 %v4182
        %4718 = vmatpush.msra.mxu0 %v4181
        %4719 = vmatpush.msra.mxu0 %v4180
        %4720 = vmatpush.msra.mxu0 %v4179
        %4721 = vmatpush.msra.mxu0 %v4178
        %4722 = vmatpush.msra.mxu0 %v4177
        %4723 = vmatpush.msra.mxu0 %v4176
        %4724 = vmatmul.f32.gmra.mxu0 %v3828
        %v4725 = vpop.f32.mrf.mxu0
        %v4726 = vadd.f32 %v4613, %v4725
        %4727 = vmatmul.f32.gmra.mxu0 %v3837
        %v4728 = vpop.f32.mrf.mxu0
        %v4729 = vadd.f32 %v4616, %v4728
        %4730 = vmatmul.f32.gmra.mxu0 %v3846
        %v4731 = vpop.f32.mrf.mxu0
        %v4732 = vadd.f32 %v4619, %v4731
        %4733 = vmatmul.f32.gmra.mxu0 %v3855
        %v4734 = vpop.f32.mrf.mxu0
        %v4735 = vadd.f32 %v4622, %v4734
        %4736 = vmatmul.f32.gmra.mxu0 %v3864
        %v4737 = vpop.f32.mrf.mxu0
        %v4738 = vadd.f32 %v4625, %v4737
        %4739 = vmatmul.f32.gmra.mxu0 %v3873
        %v4740 = vpop.f32.mrf.mxu0
        %v4741 = vadd.f32 %v4628, %v4740
        %4742 = vmatmul.f32.gmra.mxu0 %v3882
        %v4743 = vpop.f32.mrf.mxu0
        %v4744 = vadd.f32 %v4631, %v4743
        %4745 = vmatmul.f32.gmra.mxu0 %v3891
        %v4746 = vpop.f32.mrf.mxu0
        %v4747 = vadd.f32 %v4634, %v4746
        %4748 = vmatmul.f32.gmra.mxu0 %v3900
        %v4749 = vpop.f32.mrf.mxu0
        %v4750 = vadd.f32 %v4637, %v4749
        %4751 = vmatmul.f32.gmra.mxu0 %v3909
        %v4752 = vpop.f32.mrf.mxu0
        %v4753 = vadd.f32 %v4640, %v4752
        %4754 = vmatmul.f32.gmra.mxu0 %v3918
        %v4755 = vpop.f32.mrf.mxu0
        %v4756 = vadd.f32 %v4643, %v4755
        %4757 = vmatmul.f32.gmra.mxu0 %v3927
        %v4758 = vpop.f32.mrf.mxu0
        %v4759 = vadd.f32 %v4646, %v4758
        %4760 = vmatmul.f32.gmra.mxu0 %v3936
        %v4761 = vpop.f32.mrf.mxu0
        %v4762 = vadd.f32 %v4649, %v4761
        %4763 = vmatmul.f32.gmra.mxu0 %v3945
        %v4764 = vpop.f32.mrf.mxu0
        %v4765 = vadd.f32 %v4652, %v4764
        %4766 = vmatmul.f32.gmra.mxu0 %v3954
        %v4767 = vpop.f32.mrf.mxu0
        %v4768 = vadd.f32 %v4655, %v4767
        %4769 = vmatmul.f32.gmra.mxu0 %v3963
        %v4770 = vpop.f32.mrf.mxu0
        %v4771 = vadd.f32 %v4658, %v4770
        %4772 = vmatmul.f32.gmra.mxu0 %v3972
        %v4773 = vpop.f32.mrf.mxu0
        %v4774 = vadd.f32 %v4661, %v4773
        %4775 = vmatmul.f32.gmra.mxu0 %v3981
        %v4776 = vpop.f32.mrf.mxu0
        %v4777 = vadd.f32 %v4664, %v4776
        %4778 = vmatmul.f32.gmra.mxu0 %v3990
        %v4779 = vpop.f32.mrf.mxu0
        %v4780 = vadd.f32 %v4667, %v4779
        %4781 = vmatmul.f32.gmra.mxu0 %v3999
        %v4782 = vpop.f32.mrf.mxu0
        %v4783 = vadd.f32 %v4670, %v4782
        %4784 = vmatmul.f32.gmra.mxu0 %v4008
        %v4785 = vpop.f32.mrf.mxu0
        %v4786 = vadd.f32 %v4673, %v4785
        %4787 = vmatmul.f32.gmra.mxu0 %v4017
        %v4788 = vpop.f32.mrf.mxu0
        %v4789 = vadd.f32 %v4676, %v4788
        %4790 = vmatmul.f32.gmra.mxu0 %v4026
        %v4791 = vpop.f32.mrf.mxu0
        %v4792 = vadd.f32 %v4679, %v4791
        %4793 = vmatmul.f32.gmra.mxu0 %v4035
        %v4794 = vpop.f32.mrf.mxu0
        %v4795 = vadd.f32 %v4682, %v4794
        %4796 = vmatmul.f32.gmra.mxu0 %v4044
        %v4797 = vpop.f32.mrf.mxu0
        %v4798 = vadd.f32 %v4685, %v4797
        %4799 = vmatmul.f32.gmra.mxu0 %v4053
        %v4800 = vpop.f32.mrf.mxu0
        %v4801 = vadd.f32 %v4688, %v4800
        %4802 = vmatmul.f32.gmra.mxu0 %v4062
        %v4803 = vpop.f32.mrf.mxu0
        %v4804 = vadd.f32 %v4691, %v4803
        %4805 = vmatmul.f32.gmra.mxu0 %v4071
        %v4806 = vpop.f32.mrf.mxu0
        %v4807 = vadd.f32 %v4694, %v4806
        %4808 = vmatmul.f32.gmra.mxu0 %v4080
        %v4809 = vpop.f32.mrf.mxu0
        %v4810 = vadd.f32 %v4697, %v4809
        %4811 = vmatmul.f32.gmra.mxu0 %v4089
        %v4812 = vpop.f32.mrf.mxu0
        %v4813 = vadd.f32 %v4700, %v4812
        %4814 = vmatmul.f32.gmra.mxu0 %v4098
        %v4815 = vpop.f32.mrf.mxu0
        %v4816 = vadd.f32 %v4703, %v4815
        %4817 = vmatmul.f32.gmra.mxu0 %v4107
        %v4818 = vpop.f32.mrf.mxu0
        %v4819 = vadd.f32 %v4706, %v4818
        %4820 = vdwg.mxu0
        %4821 = vmatpush.msra.mxu0 %v4207
        %4822 = vmatpush.msra.mxu0 %v4206
        %4823 = vmatpush.msra.mxu0 %v4205
        %4824 = vmatpush.msra.mxu0 %v4204
        %4825 = vmatpush.msra.mxu0 %v4203
        %4826 = vmatpush.msra.mxu0 %v4202
        %4827 = vmatpush.msra.mxu0 %v4201
        %4828 = vmatpush.msra.mxu0 %v4200
        %4829 = vmatpush.msra.mxu0 %v4199
        %4830 = vmatpush.msra.mxu0 %v4198
        %4831 = vmatpush.msra.mxu0 %v4197
        %4832 = vmatpush.msra.mxu0 %v4196
        %4833 = vmatpush.msra.mxu0 %v4195
        %4834 = vmatpush.msra.mxu0 %v4194
        %4835 = vmatpush.msra.mxu0 %v4193
        %4836 = vmatpush.msra.mxu0 %v4192
        %4837 = vmatmul.f32.gmra.mxu0 %v3829
        %v4838 = vpop.f32.mrf.mxu0
        %v4839 = vadd.f32 %v4726, %v4838
        %4840 = vmatmul.f32.gmra.mxu0 %v3838
        %v4841 = vpop.f32.mrf.mxu0
        %v4842 = vadd.f32 %v4729, %v4841
        %4843 = vmatmul.f32.gmra.mxu0 %v3847
        %v4844 = vpop.f32.mrf.mxu0
        %v4845 = vadd.f32 %v4732, %v4844
        %4846 = vmatmul.f32.gmra.mxu0 %v3856
        %v4847 = vpop.f32.mrf.mxu0
        %v4848 = vadd.f32 %v4735, %v4847
        %4849 = vmatmul.f32.gmra.mxu0 %v3865
        %v4850 = vpop.f32.mrf.mxu0
        %v4851 = vadd.f32 %v4738, %v4850
        %4852 = vmatmul.f32.gmra.mxu0 %v3874
        %v4853 = vpop.f32.mrf.mxu0
        %v4854 = vadd.f32 %v4741, %v4853
        %4855 = vmatmul.f32.gmra.mxu0 %v3883
        %v4856 = vpop.f32.mrf.mxu0
        %v4857 = vadd.f32 %v4744, %v4856
        %4858 = vmatmul.f32.gmra.mxu0 %v3892
        %v4859 = vpop.f32.mrf.mxu0
        %v4860 = vadd.f32 %v4747, %v4859
        %4861 = vmatmul.f32.gmra.mxu0 %v3901
        %v4862 = vpop.f32.mrf.mxu0
        %v4863 = vadd.f32 %v4750, %v4862
        %4864 = vmatmul.f32.gmra.mxu0 %v3910
        %v4865 = vpop.f32.mrf.mxu0
        %v4866 = vadd.f32 %v4753, %v4865
        %4867 = vmatmul.f32.gmra.mxu0 %v3919
        %v4868 = vpop.f32.mrf.mxu0
        %v4869 = vadd.f32 %v4756, %v4868
        %4870 = vmatmul.f32.gmra.mxu0 %v3928
        %v4871 = vpop.f32.mrf.mxu0
        %v4872 = vadd.f32 %v4759, %v4871
        %4873 = vmatmul.f32.gmra.mxu0 %v3937
        %v4874 = vpop.f32.mrf.mxu0
        %v4875 = vadd.f32 %v4762, %v4874
        %4876 = vmatmul.f32.gmra.mxu0 %v3946
        %v4877 = vpop.f32.mrf.mxu0
        %v4878 = vadd.f32 %v4765, %v4877
        %4879 = vmatmul.f32.gmra.mxu0 %v3955
        %v4880 = vpop.f32.mrf.mxu0
        %v4881 = vadd.f32 %v4768, %v4880
        %4882 = vmatmul.f32.gmra.mxu0 %v3964
        %v4883 = vpop.f32.mrf.mxu0
        %v4884 = vadd.f32 %v4771, %v4883
        %4885 = vmatmul.f32.gmra.mxu0 %v3973
        %v4886 = vpop.f32.mrf.mxu0
        %v4887 = vadd.f32 %v4774, %v4886
        %4888 = vmatmul.f32.gmra.mxu0 %v3982
        %v4889 = vpop.f32.mrf.mxu0
        %v4890 = vadd.f32 %v4777, %v4889
        %4891 = vmatmul.f32.gmra.mxu0 %v3991
        %v4892 = vpop.f32.mrf.mxu0
        %v4893 = vadd.f32 %v4780, %v4892
        %4894 = vmatmul.f32.gmra.mxu0 %v4000
        %v4895 = vpop.f32.mrf.mxu0
        %v4896 = vadd.f32 %v4783, %v4895
        %4897 = vmatmul.f32.gmra.mxu0 %v4009
        %v4898 = vpop.f32.mrf.mxu0
        %v4899 = vadd.f32 %v4786, %v4898
        %4900 = vmatmul.f32.gmra.mxu0 %v4018
        %v4901 = vpop.f32.mrf.mxu0
        %v4902 = vadd.f32 %v4789, %v4901
        %4903 = vmatmul.f32.gmra.mxu0 %v4027
        %v4904 = vpop.f32.mrf.mxu0
        %v4905 = vadd.f32 %v4792, %v4904
        %4906 = vmatmul.f32.gmra.mxu0 %v4036
        %v4907 = vpop.f32.mrf.mxu0
        %v4908 = vadd.f32 %v4795, %v4907
        %4909 = vmatmul.f32.gmra.mxu0 %v4045
        %v4910 = vpop.f32.mrf.mxu0
        %v4911 = vadd.f32 %v4798, %v4910
        %4912 = vmatmul.f32.gmra.mxu0 %v4054
        %v4913 = vpop.f32.mrf.mxu0
        %v4914 = vadd.f32 %v4801, %v4913
        %4915 = vmatmul.f32.gmra.mxu0 %v4063
        %v4916 = vpop.f32.mrf.mxu0
        %v4917 = vadd.f32 %v4804, %v4916
        %4918 = vmatmul.f32.gmra.mxu0 %v4072
        %v4919 = vpop.f32.mrf.mxu0
        %v4920 = vadd.f32 %v4807, %v4919
        %4921 = vmatmul.f32.gmra.mxu0 %v4081
        %v4922 = vpop.f32.mrf.mxu0
        %v4923 = vadd.f32 %v4810, %v4922
        %4924 = vmatmul.f32.gmra.mxu0 %v4090
        %v4925 = vpop.f32.mrf.mxu0
        %v4926 = vadd.f32 %v4813, %v4925
        %4927 = vmatmul.f32.gmra.mxu0 %v4099
        %v4928 = vpop.f32.mrf.mxu0
        %v4929 = vadd.f32 %v4816, %v4928
        %4930 = vmatmul.f32.gmra.mxu0 %v4108
        %v4931 = vpop.f32.mrf.mxu0
        %v4932 = vadd.f32 %v4819, %v4931
        %4933 = vdwg.mxu0
        %4934 = vmatpush.msra.mxu0 %v4223
        %4935 = vmatpush.msra.mxu0 %v4222
        %4936 = vmatpush.msra.mxu0 %v4221
        %4937 = vmatpush.msra.mxu0 %v4220
        %4938 = vmatpush.msra.mxu0 %v4219
        %4939 = vmatpush.msra.mxu0 %v4218
        %4940 = vmatpush.msra.mxu0 %v4217
        %4941 = vmatpush.msra.mxu0 %v4216
        %4942 = vmatpush.msra.mxu0 %v4215
        %4943 = vmatpush.msra.mxu0 %v4214
        %4944 = vmatpush.msra.mxu0 %v4213
        %4945 = vmatpush.msra.mxu0 %v4212
        %4946 = vmatpush.msra.mxu0 %v4211
        %4947 = vmatpush.msra.mxu0 %v4210
        %4948 = vmatpush.msra.mxu0 %v4209
        %4949 = vmatpush.msra.mxu0 %v4208
        %4950 = vmatmul.f32.gmra.mxu0 %v3830
        %v4951 = vpop.f32.mrf.mxu0
        %v4952 = vadd.f32 %v4839, %v4951
        %4953 = vmatmul.f32.gmra.mxu0 %v3839
        %v4954 = vpop.f32.mrf.mxu0
        %v4955 = vadd.f32 %v4842, %v4954
        %4956 = vmatmul.f32.gmra.mxu0 %v3848
        %v4957 = vpop.f32.mrf.mxu0
        %v4958 = vadd.f32 %v4845, %v4957
        %4959 = vmatmul.f32.gmra.mxu0 %v3857
        %v4960 = vpop.f32.mrf.mxu0
        %v4961 = vadd.f32 %v4848, %v4960
        %4962 = vmatmul.f32.gmra.mxu0 %v3866
        %v4963 = vpop.f32.mrf.mxu0
        %v4964 = vadd.f32 %v4851, %v4963
        %4965 = vmatmul.f32.gmra.mxu0 %v3875
        %v4966 = vpop.f32.mrf.mxu0
        %v4967 = vadd.f32 %v4854, %v4966
        %4968 = vmatmul.f32.gmra.mxu0 %v3884
        %v4969 = vpop.f32.mrf.mxu0
        %v4970 = vadd.f32 %v4857, %v4969
        %4971 = vmatmul.f32.gmra.mxu0 %v3893
        %v4972 = vpop.f32.mrf.mxu0
        %v4973 = vadd.f32 %v4860, %v4972
        %4974 = vmatmul.f32.gmra.mxu0 %v3902
        %v4975 = vpop.f32.mrf.mxu0
        %v4976 = vadd.f32 %v4863, %v4975
        %4977 = vmatmul.f32.gmra.mxu0 %v3911
        %v4978 = vpop.f32.mrf.mxu0
        %v4979 = vadd.f32 %v4866, %v4978
        %4980 = vmatmul.f32.gmra.mxu0 %v3920
        %v4981 = vpop.f32.mrf.mxu0
        %v4982 = vadd.f32 %v4869, %v4981
        %4983 = vmatmul.f32.gmra.mxu0 %v3929
        %v4984 = vpop.f32.mrf.mxu0
        %v4985 = vadd.f32 %v4872, %v4984
        %4986 = vmatmul.f32.gmra.mxu0 %v3938
        %v4987 = vpop.f32.mrf.mxu0
        %v4988 = vadd.f32 %v4875, %v4987
        %4989 = vmatmul.f32.gmra.mxu0 %v3947
        %v4990 = vpop.f32.mrf.mxu0
        %v4991 = vadd.f32 %v4878, %v4990
        %4992 = vmatmul.f32.gmra.mxu0 %v3956
        %v4993 = vpop.f32.mrf.mxu0
        %v4994 = vadd.f32 %v4881, %v4993
        %4995 = vmatmul.f32.gmra.mxu0 %v3965
        %v4996 = vpop.f32.mrf.mxu0
        %v4997 = vadd.f32 %v4884, %v4996
        %4998 = vmatmul.f32.gmra.mxu0 %v3974
        %v4999 = vpop.f32.mrf.mxu0
        %v5000 = vadd.f32 %v4887, %v4999
        %5001 = vmatmul.f32.gmra.mxu0 %v3983
        %v5002 = vpop.f32.mrf.mxu0
        %v5003 = vadd.f32 %v4890, %v5002
        %5004 = vmatmul.f32.gmra.mxu0 %v3992
        %v5005 = vpop.f32.mrf.mxu0
        %v5006 = vadd.f32 %v4893, %v5005
        %5007 = vmatmul.f32.gmra.mxu0 %v4001
        %v5008 = vpop.f32.mrf.mxu0
        %v5009 = vadd.f32 %v4896, %v5008
        %5010 = vmatmul.f32.gmra.mxu0 %v4010
        %v5011 = vpop.f32.mrf.mxu0
        %v5012 = vadd.f32 %v4899, %v5011
        %5013 = vmatmul.f32.gmra.mxu0 %v4019
        %v5014 = vpop.f32.mrf.mxu0
        %v5015 = vadd.f32 %v4902, %v5014
        %5016 = vmatmul.f32.gmra.mxu0 %v4028
        %v5017 = vpop.f32.mrf.mxu0
        %v5018 = vadd.f32 %v4905, %v5017
        %5019 = vmatmul.f32.gmra.mxu0 %v4037
        %v5020 = vpop.f32.mrf.mxu0
        %v5021 = vadd.f32 %v4908, %v5020
        %5022 = vmatmul.f32.gmra.mxu0 %v4046
        %v5023 = vpop.f32.mrf.mxu0
        %v5024 = vadd.f32 %v4911, %v5023
        %5025 = vmatmul.f32.gmra.mxu0 %v4055
        %v5026 = vpop.f32.mrf.mxu0
        %v5027 = vadd.f32 %v4914, %v5026
        %5028 = vmatmul.f32.gmra.mxu0 %v4064
        %v5029 = vpop.f32.mrf.mxu0
        %v5030 = vadd.f32 %v4917, %v5029
        %5031 = vmatmul.f32.gmra.mxu0 %v4073
        %v5032 = vpop.f32.mrf.mxu0
        %v5033 = vadd.f32 %v4920, %v5032
        %5034 = vmatmul.f32.gmra.mxu0 %v4082
        %v5035 = vpop.f32.mrf.mxu0
        %v5036 = vadd.f32 %v4923, %v5035
        %5037 = vmatmul.f32.gmra.mxu0 %v4091
        %v5038 = vpop.f32.mrf.mxu0
        %v5039 = vadd.f32 %v4926, %v5038
        %5040 = vmatmul.f32.gmra.mxu0 %v4100
        %v5041 = vpop.f32.mrf.mxu0
        %v5042 = vadd.f32 %v4929, %v5041
        %5043 = vmatmul.f32.gmra.mxu0 %v4109
        %v5044 = vpop.f32.mrf.mxu0
        %v5045 = vadd.f32 %v4932, %v5044
        %5046 = vdwg.mxu0
        %5047 = vmatpush.msra.mxu0 %v4239
        %5048 = vmatpush.msra.mxu0 %v4238
        %5049 = vmatpush.msra.mxu0 %v4237
        %5050 = vmatpush.msra.mxu0 %v4236
        %5051 = vmatpush.msra.mxu0 %v4235
        %5052 = vmatpush.msra.mxu0 %v4234
        %5053 = vmatpush.msra.mxu0 %v4233
        %5054 = vmatpush.msra.mxu0 %v4232
        %5055 = vmatpush.msra.mxu0 %v4231
        %5056 = vmatpush.msra.mxu0 %v4230
        %5057 = vmatpush.msra.mxu0 %v4229
        %5058 = vmatpush.msra.mxu0 %v4228
        %5059 = vmatpush.msra.mxu0 %v4227
        %5060 = vmatpush.msra.mxu0 %v4226
        %5061 = vmatpush.msra.mxu0 %v4225
        %5062 = vmatpush.msra.mxu0 %v4224
        %5063 = vmatmul.f32.gmra.mxu0 %v3831
        %v5064 = vpop.f32.mrf.mxu0
        %v5065 = vadd.f32 %v4952, %v5064
        %5066 = vmatmul.f32.gmra.mxu0 %v3840
        %v5067 = vpop.f32.mrf.mxu0
        %v5068 = vadd.f32 %v4955, %v5067
        %5069 = vmatmul.f32.gmra.mxu0 %v3849
        %v5070 = vpop.f32.mrf.mxu0
        %v5071 = vadd.f32 %v4958, %v5070
        %5072 = vmatmul.f32.gmra.mxu0 %v3858
        %v5073 = vpop.f32.mrf.mxu0
        %v5074 = vadd.f32 %v4961, %v5073
        %5075 = vmatmul.f32.gmra.mxu0 %v3867
        %v5076 = vpop.f32.mrf.mxu0
        %v5077 = vadd.f32 %v4964, %v5076
        %5078 = vmatmul.f32.gmra.mxu0 %v3876
        %v5079 = vpop.f32.mrf.mxu0
        %v5080 = vadd.f32 %v4967, %v5079
        %5081 = vmatmul.f32.gmra.mxu0 %v3885
        %v5082 = vpop.f32.mrf.mxu0
        %v5083 = vadd.f32 %v4970, %v5082
        %5084 = vmatmul.f32.gmra.mxu0 %v3894
        %v5085 = vpop.f32.mrf.mxu0
        %v5086 = vadd.f32 %v4973, %v5085
        %5087 = vmatmul.f32.gmra.mxu0 %v3903
        %v5088 = vpop.f32.mrf.mxu0
        %v5089 = vadd.f32 %v4976, %v5088
        %5090 = vmatmul.f32.gmra.mxu0 %v3912
        %v5091 = vpop.f32.mrf.mxu0
        %v5092 = vadd.f32 %v4979, %v5091
        %5093 = vmatmul.f32.gmra.mxu0 %v3921
        %v5094 = vpop.f32.mrf.mxu0
        %v5095 = vadd.f32 %v4982, %v5094
        %5096 = vmatmul.f32.gmra.mxu0 %v3930
        %v5097 = vpop.f32.mrf.mxu0
        %v5098 = vadd.f32 %v4985, %v5097
        %5099 = vmatmul.f32.gmra.mxu0 %v3939
        %v5100 = vpop.f32.mrf.mxu0
        %v5101 = vadd.f32 %v4988, %v5100
        %5102 = vmatmul.f32.gmra.mxu0 %v3948
        %v5103 = vpop.f32.mrf.mxu0
        %v5104 = vadd.f32 %v4991, %v5103
        %5105 = vmatmul.f32.gmra.mxu0 %v3957
        %v5106 = vpop.f32.mrf.mxu0
        %v5107 = vadd.f32 %v4994, %v5106
        %5108 = vmatmul.f32.gmra.mxu0 %v3966
        %v5109 = vpop.f32.mrf.mxu0
        %v5110 = vadd.f32 %v4997, %v5109
        %5111 = vmatmul.f32.gmra.mxu0 %v3975
        %v5112 = vpop.f32.mrf.mxu0
        %v5113 = vadd.f32 %v5000, %v5112
        %5114 = vmatmul.f32.gmra.mxu0 %v3984
        %v5115 = vpop.f32.mrf.mxu0
        %v5116 = vadd.f32 %v5003, %v5115
        %5117 = vmatmul.f32.gmra.mxu0 %v3993
        %v5118 = vpop.f32.mrf.mxu0
        %v5119 = vadd.f32 %v5006, %v5118
        %5120 = vmatmul.f32.gmra.mxu0 %v4002
        %v5121 = vpop.f32.mrf.mxu0
        %v5122 = vadd.f32 %v5009, %v5121
        %5123 = vmatmul.f32.gmra.mxu0 %v4011
        %v5124 = vpop.f32.mrf.mxu0
        %v5125 = vadd.f32 %v5012, %v5124
        %5126 = vmatmul.f32.gmra.mxu0 %v4020
        %v5127 = vpop.f32.mrf.mxu0
        %v5128 = vadd.f32 %v5015, %v5127
        %5129 = vmatmul.f32.gmra.mxu0 %v4029
        %v5130 = vpop.f32.mrf.mxu0
        %v5131 = vadd.f32 %v5018, %v5130
        %5132 = vmatmul.f32.gmra.mxu0 %v4038
        %v5133 = vpop.f32.mrf.mxu0
        %v5134 = vadd.f32 %v5021, %v5133
        %5135 = vmatmul.f32.gmra.mxu0 %v4047
        %v5136 = vpop.f32.mrf.mxu0
        %v5137 = vadd.f32 %v5024, %v5136
        %5138 = vmatmul.f32.gmra.mxu0 %v4056
        %v5139 = vpop.f32.mrf.mxu0
        %v5140 = vadd.f32 %v5027, %v5139
        %5141 = vmatmul.f32.gmra.mxu0 %v4065
        %v5142 = vpop.f32.mrf.mxu0
        %v5143 = vadd.f32 %v5030, %v5142
        %5144 = vmatmul.f32.gmra.mxu0 %v4074
        %v5145 = vpop.f32.mrf.mxu0
        %v5146 = vadd.f32 %v5033, %v5145
        %5147 = vmatmul.f32.gmra.mxu0 %v4083
        %v5148 = vpop.f32.mrf.mxu0
        %v5149 = vadd.f32 %v5036, %v5148
        %5150 = vmatmul.f32.gmra.mxu0 %v4092
        %v5151 = vpop.f32.mrf.mxu0
        %v5152 = vadd.f32 %v5039, %v5151
        %5153 = vmatmul.f32.gmra.mxu0 %v4101
        %v5154 = vpop.f32.mrf.mxu0
        %v5155 = vadd.f32 %v5042, %v5154
        %5156 = vmatmul.f32.gmra.mxu0 %v4110
        %v5157 = vpop.f32.mrf.mxu0
        %v5158 = vadd.f32 %v5045, %v5157
        %5159 = vdwg.mxu0
        %5160 = vmatpush.msra.mxu0 %v4255
        %5161 = vmatpush.msra.mxu0 %v4254
        %5162 = vmatpush.msra.mxu0 %v4253
        %5163 = vmatpush.msra.mxu0 %v4252
        %5164 = vmatpush.msra.mxu0 %v4251
        %5165 = vmatpush.msra.mxu0 %v4250
        %5166 = vmatpush.msra.mxu0 %v4249
        %5167 = vmatpush.msra.mxu0 %v4248
        %5168 = vmatpush.msra.mxu0 %v4247
        %5169 = vmatpush.msra.mxu0 %v4246
        %5170 = vmatpush.msra.mxu0 %v4245
        %5171 = vmatpush.msra.mxu0 %v4244
        %5172 = vmatpush.msra.mxu0 %v4243
        %5173 = vmatpush.msra.mxu0 %v4242
        %5174 = vmatpush.msra.mxu0 %v4241
        %5175 = vmatpush.msra.mxu0 %v4240
        %5176 = vmatmul.f32.gmra.mxu0 %v3832
        %v5177 = vpop.f32.mrf.mxu0
        %v5178 = vadd.f32 %v5065, %v5177
        %5179 = vmatmul.f32.gmra.mxu0 %v3841
        %v5180 = vpop.f32.mrf.mxu0
        %v5181 = vadd.f32 %v5068, %v5180
        %5182 = vmatmul.f32.gmra.mxu0 %v3850
        %v5183 = vpop.f32.mrf.mxu0
        %v5184 = vadd.f32 %v5071, %v5183
        %5185 = vmatmul.f32.gmra.mxu0 %v3859
        %v5186 = vpop.f32.mrf.mxu0
        %v5187 = vadd.f32 %v5074, %v5186
        %5188 = vmatmul.f32.gmra.mxu0 %v3868
        %v5189 = vpop.f32.mrf.mxu0
        %v5190 = vadd.f32 %v5077, %v5189
        %5191 = vmatmul.f32.gmra.mxu0 %v3877
        %v5192 = vpop.f32.mrf.mxu0
        %v5193 = vadd.f32 %v5080, %v5192
        %5194 = vmatmul.f32.gmra.mxu0 %v3886
        %v5195 = vpop.f32.mrf.mxu0
        %v5196 = vadd.f32 %v5083, %v5195
        %5197 = vmatmul.f32.gmra.mxu0 %v3895
        %v5198 = vpop.f32.mrf.mxu0
        %v5199 = vadd.f32 %v5086, %v5198
        %5200 = vmatmul.f32.gmra.mxu0 %v3904
        %v5201 = vpop.f32.mrf.mxu0
        %v5202 = vadd.f32 %v5089, %v5201
        %5203 = vmatmul.f32.gmra.mxu0 %v3913
        %v5204 = vpop.f32.mrf.mxu0
        %v5205 = vadd.f32 %v5092, %v5204
        %5206 = vmatmul.f32.gmra.mxu0 %v3922
        %v5207 = vpop.f32.mrf.mxu0
        %v5208 = vadd.f32 %v5095, %v5207
        %5209 = vmatmul.f32.gmra.mxu0 %v3931
        %v5210 = vpop.f32.mrf.mxu0
        %v5211 = vadd.f32 %v5098, %v5210
        %5212 = vmatmul.f32.gmra.mxu0 %v3940
        %v5213 = vpop.f32.mrf.mxu0
        %v5214 = vadd.f32 %v5101, %v5213
        %5215 = vmatmul.f32.gmra.mxu0 %v3949
        %v5216 = vpop.f32.mrf.mxu0
        %v5217 = vadd.f32 %v5104, %v5216
        %5218 = vmatmul.f32.gmra.mxu0 %v3958
        %v5219 = vpop.f32.mrf.mxu0
        %v5220 = vadd.f32 %v5107, %v5219
        %5221 = vmatmul.f32.gmra.mxu0 %v3967
        %v5222 = vpop.f32.mrf.mxu0
        %v5223 = vadd.f32 %v5110, %v5222
        %5224 = vmatmul.f32.gmra.mxu0 %v3976
        %v5225 = vpop.f32.mrf.mxu0
        %v5226 = vadd.f32 %v5113, %v5225
        %5227 = vmatmul.f32.gmra.mxu0 %v3985
        %v5228 = vpop.f32.mrf.mxu0
        %v5229 = vadd.f32 %v5116, %v5228
        %5230 = vmatmul.f32.gmra.mxu0 %v3994
        %v5231 = vpop.f32.mrf.mxu0
        %v5232 = vadd.f32 %v5119, %v5231
        %5233 = vmatmul.f32.gmra.mxu0 %v4003
        %v5234 = vpop.f32.mrf.mxu0
        %v5235 = vadd.f32 %v5122, %v5234
        %5236 = vmatmul.f32.gmra.mxu0 %v4012
        %v5237 = vpop.f32.mrf.mxu0
        %v5238 = vadd.f32 %v5125, %v5237
        %5239 = vmatmul.f32.gmra.mxu0 %v4021
        %v5240 = vpop.f32.mrf.mxu0
        %v5241 = vadd.f32 %v5128, %v5240
        %5242 = vmatmul.f32.gmra.mxu0 %v4030
        %v5243 = vpop.f32.mrf.mxu0
        %v5244 = vadd.f32 %v5131, %v5243
        %5245 = vmatmul.f32.gmra.mxu0 %v4039
        %v5246 = vpop.f32.mrf.mxu0
        %v5247 = vadd.f32 %v5134, %v5246
        %5248 = vmatmul.f32.gmra.mxu0 %v4048
        %v5249 = vpop.f32.mrf.mxu0
        %v5250 = vadd.f32 %v5137, %v5249
        %5251 = vmatmul.f32.gmra.mxu0 %v4057
        %v5252 = vpop.f32.mrf.mxu0
        %v5253 = vadd.f32 %v5140, %v5252
        %5254 = vmatmul.f32.gmra.mxu0 %v4066
        %v5255 = vpop.f32.mrf.mxu0
        %v5256 = vadd.f32 %v5143, %v5255
        %5257 = vmatmul.f32.gmra.mxu0 %v4075
        %v5258 = vpop.f32.mrf.mxu0
        %v5259 = vadd.f32 %v5146, %v5258
        %5260 = vmatmul.f32.gmra.mxu0 %v4084
        %v5261 = vpop.f32.mrf.mxu0
        %v5262 = vadd.f32 %v5149, %v5261
        %5263 = vmatmul.f32.gmra.mxu0 %v4093
        %v5264 = vpop.f32.mrf.mxu0
        %v5265 = vadd.f32 %v5152, %v5264
        %5266 = vmatmul.f32.gmra.mxu0 %v4102
        %v5267 = vpop.f32.mrf.mxu0
        %v5268 = vadd.f32 %v5155, %v5267
        %5269 = vmatmul.f32.gmra.mxu0 %v4111
        %v5270 = vpop.f32.mrf.mxu0
        %v5271 = vadd.f32 %v5158, %v5270
        %5272 = vdwg.mxu0
        %v5273 = vmax.f32 %v5178, 0.0
        %v5274 = vmax.f32 %v5181, 0.0
        %v5275 = vmax.f32 %v5184, 0.0
        %v5276 = vmax.f32 %v5187, 0.0
        %v5277 = vmax.f32 %v5190, 0.0
        %v5278 = vmax.f32 %v5193, 0.0
        %v5279 = vmax.f32 %v5196, 0.0
        %v5280 = vmax.f32 %v5199, 0.0
        %v5281 = vmax.f32 %v5202, 0.0
        %v5282 = vmax.f32 %v5205, 0.0
        %v5283 = vmax.f32 %v5208, 0.0
        %v5284 = vmax.f32 %v5211, 0.0
        %v5285 = vmax.f32 %v5214, 0.0
        %v5286 = vmax.f32 %v5217, 0.0
        %v5287 = vmax.f32 %v5220, 0.0
        %v5288 = vmax.f32 %v5223, 0.0
        %v5289 = vmax.f32 %v5226, 0.0
        %v5290 = vmax.f32 %v5229, 0.0
        %v5291 = vmax.f32 %v5232, 0.0
        %v5292 = vmax.f32 %v5235, 0.0
        %v5293 = vmax.f32 %v5238, 0.0
        %v5294 = vmax.f32 %v5241, 0.0
        %v5295 = vmax.f32 %v5244, 0.0
        %v5296 = vmax.f32 %v5247, 0.0
        %v5297 = vmax.f32 %v5250, 0.0
        %v5298 = vmax.f32 %v5253, 0.0
        %v5299 = vmax.f32 %v5256, 0.0
        %v5300 = vmax.f32 %v5259, 0.0
        %v5301 = vmax.f32 %v5262, 0.0
        %v5302 = vmax.f32 %v5265, 0.0
        %v5303 = vmax.f32 %v5268, 0.0
        %v5304 = vmax.f32 %v5271, 0.0
        %v5305 = vld [vmem:[%s190] sm:$0xff]
        %v5306 = vld [vmem:[%s190 + $0x8] sm:$0xff]
        %v5307 = vld [vmem:[%s190 + $0x10] sm:$0xff]
        %v5308 = vld [vmem:[%s190 + $0x18] sm:$0xff]
        %v5309 = vld [vmem:[%s190 + $0x20] sm:$0xff]
        %v5310 = vld [vmem:[%s190 + $0x28] sm:$0xff]
        %v5311 = vld [vmem:[%s190 + $0x30] sm:$0xff]
        %v5312 = vld [vmem:[%s190 + $0x38] sm:$0xff]
        %v5313 = vld [vmem:[%s190 + $0x40] sm:$0xff]
        %v5314 = vld [vmem:[%s190 + $0x48] sm:$0xff]
        %v5315 = vld [vmem:[%s190 + $0x50] sm:$0xff]
        %v5316 = vld [vmem:[%s190 + $0x58] sm:$0xff]
        %v5317 = vld [vmem:[%s190 + $0x60] sm:$0xff]
        %v5318 = vld [vmem:[%s190 + $0x68] sm:$0xff]
        %v5319 = vld [vmem:[%s190 + $0x70] sm:$0xff]
        %v5320 = vld [vmem:[%s190 + $0x78] sm:$0xff]
        %v5321 = vld [vmem:[%s190 + $0x80] sm:$0xff]
        %v5322 = vld [vmem:[%s190 + $0x88] sm:$0xff]
        %v5323 = vld [vmem:[%s190 + $0x90] sm:$0xff]
        %v5324 = vld [vmem:[%s190 + $0x98] sm:$0xff]
        %v5325 = vld [vmem:[%s190 + $0xa0] sm:$0xff]
        %v5326 = vld [vmem:[%s190 + $0xa8] sm:$0xff]
        %v5327 = vld [vmem:[%s190 + $0xb0] sm:$0xff]
        %v5328 = vld [vmem:[%s190 + $0xb8] sm:$0xff]
        %v5329 = vld [vmem:[%s190 + $0xc0] sm:$0xff]
        %v5330 = vld [vmem:[%s190 + $0xc8] sm:$0xff]
        %v5331 = vld [vmem:[%s190 + $0xd0] sm:$0xff]
        %v5332 = vld [vmem:[%s190 + $0xd8] sm:$0xff]
        %v5333 = vld [vmem:[%s190 + $0xe0] sm:$0xff]
        %v5334 = vld [vmem:[%s190 + $0xe8] sm:$0xff]
        %v5335 = vld [vmem:[%s190 + $0xf0] sm:$0xff]
        %v5336 = vld [vmem:[%s190 + $0xf8] sm:$0xff]
        %v5337 = vadd.f32 %v5273, %v5305
        %v5338 = vadd.f32 %v5274, %v5306
        %v5339 = vadd.f32 %v5275, %v5307
        %v5340 = vadd.f32 %v5276, %v5308
        %v5341 = vadd.f32 %v5277, %v5309
        %v5342 = vadd.f32 %v5278, %v5310
        %v5343 = vadd.f32 %v5279, %v5311
        %v5344 = vadd.f32 %v5280, %v5312
        %v5345 = vadd.f32 %v5281, %v5313
        %v5346 = vadd.f32 %v5282, %v5314
        %v5347 = vadd.f32 %v5283, %v5315
        %v5348 = vadd.f32 %v5284, %v5316
        %v5349 = vadd.f32 %v5285, %v5317
        %v5350 = vadd.f32 %v5286, %v5318
        %v5351 = vadd.f32 %v5287, %v5319
        %v5352 = vadd.f32 %v5288, %v5320
        %v5353 = vadd.f32 %v5289, %v5321
        %v5354 = vadd.f32 %v5290, %v5322
        %v5355 = vadd.f32 %v5291, %v5323
        %v5356 = vadd.f32 %v5292, %v5324
        %v5357 = vadd.f32 %v5293, %v5325
        %v5358 = vadd.f32 %v5294, %v5326
        %v5359 = vadd.f32 %v5295, %v5327
        %v5360 = vadd.f32 %v5296, %v5328
        %v5361 = vadd.f32 %v5297, %v5329
        %v5362 = vadd.f32 %v5298, %v5330
        %v5363 = vadd.f32 %v5299, %v5331
        %v5364 = vadd.f32 %v5300, %v5332
        %v5365 = vadd.f32 %v5301, %v5333
        %v5366 = vadd.f32 %v5302, %v5334
        %v5367 = vadd.f32 %v5303, %v5335
        %v5368 = vadd.f32 %v5304, %v5336
        %5369 = vst [vmem:[%s223] sm:$0xff] %v5337
        %5370 = vst [vmem:[%s223 + $0x8] sm:$0xff] %v5338
        %5371 = vst [vmem:[%s223 + $0x10] sm:$0xff] %v5339
        %5372 = vst [vmem:[%s223 + $0x18] sm:$0xff] %v5340
        %5373 = vst [vmem:[%s223 + $0x20] sm:$0xff] %v5341
        %5374 = vst [vmem:[%s223 + $0x28] sm:$0xff] %v5342
        %5375 = vst [vmem:[%s223 + $0x30] sm:$0xff] %v5343
        %5376 = vst [vmem:[%s223 + $0x38] sm:$0xff] %v5344
        %5377 = vst [vmem:[%s223 + $0x40] sm:$0xff] %v5345
        %5378 = vst [vmem:[%s223 + $0x48] sm:$0xff] %v5346
        %5379 = vst [vmem:[%s223 + $0x50] sm:$0xff] %v5347
        %5380 = vst [vmem:[%s223 + $0x58] sm:$0xff] %v5348
        %5381 = vst [vmem:[%s223 + $0x60] sm:$0xff] %v5349
        %5382 = vst [vmem:[%s223 + $0x68] sm:$0xff] %v5350
        %5383 = vst [vmem:[%s223 + $0x70] sm:$0xff] %v5351
        %5384 = vst [vmem:[%s223 + $0x78] sm:$0xff] %v5352
        %5385 = vst [vmem:[%s223 + $0x80] sm:$0xff] %v5353
        %5386 = vst [vmem:[%s223 + $0x88] sm:$0xff] %v5354
        %5387 = vst [vmem:[%s223 + $0x90] sm:$0xff] %v5355
        %5388 = vst [vmem:[%s223 + $0x98] sm:$0xff] %v5356
        %5389 = vst [vmem:[%s223 + $0xa0] sm:$0xff] %v5357
        %5390 = vst [vmem:[%s223 + $0xa8] sm:$0xff] %v5358
        %5391 = vst [vmem:[%s223 + $0xb0] sm:$0xff] %v5359
        %5392 = vst [vmem:[%s223 + $0xb8] sm:$0xff] %v5360
        %5393 = vst [vmem:[%s223 + $0xc0] sm:$0xff] %v5361
        %5394 = vst [vmem:[%s223 + $0xc8] sm:$0xff] %v5362
        %5395 = vst [vmem:[%s223 + $0xd0] sm:$0xff] %v5363
        %5396 = vst [vmem:[%s223 + $0xd8] sm:$0xff] %v5364
        %5397 = vst [vmem:[%s223 + $0xe0] sm:$0xff] %v5365
        %5398 = vst [vmem:[%s223 + $0xe8] sm:$0xff] %v5366
        %5399 = vst [vmem:[%s223 + $0xf0] sm:$0xff] %v5367
        %5400 = vst [vmem:[%s223 + $0xf8] sm:$0xff] %v5368
        %s5401 = sand.u32 %s97, 1
        %s5402 = scalar_lea.sflag [#allocation6], %s5401
        %s5403 = sand.u32 %s97, 1
        %s5404 = smul.addr %s5403, 256
        %s5405 = scalar_lea.vmem [#allocation10], %s5404
        // Predicated region
        $region45: #{resblock_forward.1} parent=31 // pred_check
          %p5406 = pneg %p107
        $region46: #{resblock_forward.1} parent=31 // pred_check_branch
          %5408 = sbr.rel (%p5406) target = $region48
        $region47: #{resblock_forward.1} parent=31 // pred_region
          %5410 = vsyncadd %s5402, 0
          %s5411 = smul.addr %s21, 32
          %s5412 = smul.addr %s5411, 8
          %s5413 = scalar_lea.hbm %s3, %s5412
          %s5414 = sshll.u32 %s5405, 4
          %s5415 = int_to_ptr.vmem [resolvable:$true] %s5414
          %s5416 = sshll.u32 %s5413, 4
          %s5417 = int_to_ptr.hbm [resolvable:$true] %s5416
          %5422 = dma.vmem_to_hbm [thread:$0]  %s5415, 4096, %s5417, %s5402, 128, 128, 8
        $region48: #{resblock_forward.1} parent=31 // pred_fallthru
          _
      $region32: #{resblock_forward.1} parent=5 // pred_fallthru
        _
      %p5423 = scmp.le.s32.totalorder 2, %s16
      // Predicated region
      $region49: #{resblock_forward.1} parent=5 // pred_check
        %p5424 = pneg %p5423
      $region50: #{resblock_forward.1} parent=5 // pred_check_branch
        %5426 = sbr.rel (%p5424) target = $region52
      $region51: #{resblock_forward.1} parent=5 // pred_region
        %s5427 = ssub.s32 %s16, 2
        // Predicated region
        $region53: #{resblock_forward.1} parent=51 // pred_check
          %p5428 = pneg %p113
        $region54: #{resblock_forward.1} parent=51 // pred_check_branch
          %5430 = sbr.rel (%p5428) target = $region56
        $region55: #{resblock_forward.1} parent=51 // pred_region
          %s5431 = sand.u32 %s98, 1
          %s5432 = scalar_lea.sflag [#allocation6], %s5431
          %s5433 = sand.u32 %s98, 1
          %s5434 = smul.addr %s5433, 256
          %s5435 = scalar_lea.vmem [#allocation10], %s5434
          %5437 = dma.done %s5432, 4096
        $region56: #{resblock_forward.1} parent=51 // pred_fallthru
          _
      $region52: #{resblock_forward.1} parent=5 // pred_fallthru
        _
    $region6: #{resblock_forward.1} parent=1 // loop_footer
      %s20 = sadd.s32 1, %s16
    $region7: #{resblock_forward.1} parent=1 // loop_footer_branch
      %15 = sbr.rel target = $region3
    $region8: #{resblock_forward.1} parent=1 // loop_exit
      _
    %5438 = vsyncpa [#allocation5], 1
    %s5439 = scalar_lea.sflag [#allocation5], 1
    %5440 = vsyncpa %s5439, 1
    %5441 = vsyncpa [#allocation8], 1
    %5442 = vsyncpa [#allocation6], 1
    %s5443 = scalar_lea.sflag [#allocation6], 1
    %5444 = vsyncpa %s5443, 1

</llo_original>
